<compile_context>
chip_gen: v6e
topology: v6e:2x2x1
jax: 0.10.0
libtpu: 0.0.40
codegen_flags: <defaults>
</compile_context>

<pallas_src>
import jax
import jax.numpy as jnp
from jax.experimental import pallas as pl
from jax.experimental.pallas import tpu as pltpu

# ---- static sizes implied by the module -------------------------------------
F_SIZE = 4                 # feature_size (small, synthetic)
C_IN = 2 * F_SIZE          # pre_conv1 input channels
H_IN = W_IN = 14           # conv(2x2,stride2) -> 7x7, AvgPool2d(7) -> 1x1
H_OUT = W_OUT = 7
P = H_OUT * W_OUT          # 49 valid spatial positions
P_PAD = 64                 # padded position count ((8,128)-aligned groups)
K = C_IN * 4               # im2col patch length for the 2x2 conv (32)
C1 = 512                   # pre_conv1 out channels
X_SIZE = 256               # pre_conv2 out channels / x_size
H_ATT = 128                # rnn_att_size
H_TOP = 128                # rnn_top_size
A_SIZE = 32
IN_ATT = X_SIZE + H_TOP    # 384 (attention GRU input width)
SP_W = 3 * H_ATT           # 384, packed small-param row width
EPS = 1e-5                 # LayerNorm eps (PyTorch default)

# packed small-param row indices
_R_GX, _R_BX, _R_GH, _R_BH = 0, 1, 2, 3
_R_BIH_ATT, _R_BHH_ATT = 4, 5
_R_BHA, _R_WA = 6, 7
_R_BIH_TOP, _R_BHH_TOP = 8, 9
_N_SP_ROWS = 10


# ---- in-kernel helpers -------------------------------------------------------
def _sigmoid(x):
    # exp goes to the EUP; the divide is one VPU op on a tiny (bb, 3H) tensor.
    return 1.0 / (1.0 + jnp.exp(-x))


def _layernorm(x, g, b):
    mu = jnp.mean(x, axis=-1, keepdims=True)
    var = jnp.mean((x - mu) ** 2, axis=-1, keepdims=True)
    return (x - mu) * jax.lax.rsqrt(var + EPS) * g + b


def _gru_cell(x, h, w_ih_t, w_hh_t, b_ih, b_hh, hidden):
    gi = jnp.dot(x, w_ih_t, preferred_element_type=jnp.float32) + b_ih
    gh = jnp.dot(h, w_hh_t, preferred_element_type=jnp.float32) + b_hh
    r = _sigmoid(gi[:, :hidden] + gh[:, :hidden])
    z = _sigmoid(gi[:, hidden:2 * hidden] + gh[:, hidden:2 * hidden])
    n = jnp.tanh(gi[:, 2 * hidden:] + r * gh[:, 2 * hidden:])
    return (1.0 - z) * n + z * h


# ---- kernel 1: hoisted conv path + ax projection + pooling (one tiled matmul) -
def conv_kernel(p_ref, w1_ref, b1_ref, w2_ref, b2_ref, wxa_ref, bxa_ref,
                x_ref, ax_ref, pooled_ref):
    # conv 2x2/s2 -> ReLU -> conv 1x1 over all rows of this tile
    x1 = jnp.maximum(
        jnp.dot(p_ref[...], w1_ref[...], preferred_element_type=jnp.float32)
        + b1_ref[...], 0.0)                                     # (tm, 512)
    x = (jnp.dot(x1, w2_ref[...], preferred_element_type=jnp.float32)
         + b2_ref[...])                                         # (tm, 256)
    x_ref[...] = x

    # hoisted attention projection: ax = x @ wxa^T + bxa  (time-invariant)
    ax_ref[...] = (jnp.dot(x, wxa_ref[...], preferred_element_type=jnp.float32)
                   + bxa_ref[...])                              # (tm, 32)

    # hoisted per-frame pooling: mean over 49 valid positions + masked max
    g = x.shape[0] // P_PAD
    x3 = x.reshape(g, P_PAD, X_SIZE)
    pos = jax.lax.broadcasted_iota(jnp.int32, (P_PAD, X_SIZE), 0)
    valid = (pos < P)[None, :, :]
    x_sum = jnp.sum(jnp.where(valid, x3, 0.0), axis=1) * (1.0 / P)
    x_max = jnp.max(jnp.where(valid, x3, -jnp.inf), axis=1)
    pooled_ref[...] = x_sum + x_max                             # (g, 256)


def conv_pallas(rows, w1t, b1, w2t, b2, wxat, bxa, *, tm=512):
    m = rows.shape[0]
    assert m % tm == 0 and tm % P_PAD == 0
    return pl.pallas_call(
        conv_kernel,
        out_shape=(
            jax.ShapeDtypeStruct((m, X_SIZE), jnp.float32),
            jax.ShapeDtypeStruct((m, A_SIZE), jnp.float32),
            jax.ShapeDtypeStruct((m // P_PAD, X_SIZE), jnp.float32),
        ),
        grid_spec=pltpu.PrefetchScalarGridSpec(
            num_scalar_prefetch=0,
            grid=(m // tm,),
            in_specs=[
                pl.BlockSpec((tm, K), lambda i: (i, 0)),
                pl.BlockSpec((K, C1), lambda i: (0, 0)),
                pl.BlockSpec((1, C1), lambda i: (0, 0)),
                pl.BlockSpec((C1, X_SIZE), lambda i: (0, 0)),
                pl.BlockSpec((1, X_SIZE), lambda i: (0, 0)),
                pl.BlockSpec((X_SIZE, A_SIZE), lambda i: (0, 0)),
                pl.BlockSpec((1, A_SIZE), lambda i: (0, 0)),
            ],
            out_specs=[
                pl.BlockSpec((tm, X_SIZE), lambda i: (i, 0)),
                pl.BlockSpec((tm, A_SIZE), lambda i: (i, 0)),
                pl.BlockSpec((tm // P_PAD, X_SIZE), lambda i: (i, 0)),
            ],
        ),
        compiler_params=pltpu.CompilerParams(dimension_semantics=("parallel",)),
    )(rows, w1t, b1, w2t, b2, wxat, bxa)


# ---- kernel 2: recurrent attention/GRU kernel, fully batched per grid step ----
def spa_att_kernel(x_ref, ax_ref, pooled_ref, h0t_ref, h0a_ref,
                   wgru_ref, wha_ref, sp_ref,
                   satt_ref, htop_ref, htop_scr, hatt_scr):
    t = pl.program_id(1)
    bb = h0t_ref.shape[0]                      # batch rows inside this block

    @pl.when(t == 0)
    def _():
        htop_scr[...] = h0t_ref[...]
        hatt_scr[...] = h0a_ref[...]

    h_top = htop_scr[...]                      # (bb, 128)
    h_att = hatt_scr[...]                      # (bb, 128)

    # packed small params (one row each)
    gx = sp_ref[_R_GX:_R_GX + 1, :X_SIZE]
    bx = sp_ref[_R_BX:_R_BX + 1, :X_SIZE]
    gh = sp_ref[_R_GH:_R_GH + 1, :H_TOP]
    bh = sp_ref[_R_BH:_R_BH + 1, :H_TOP]
    bih_att = sp_ref[_R_BIH_ATT:_R_BIH_ATT + 1, :]
    bhh_att = sp_ref[_R_BHH_ATT:_R_BHH_ATT + 1, :]
    bha = sp_ref[_R_BHA:_R_BHA + 1, :A_SIZE]
    wa3 = sp_ref[_R_WA:_R_WA + 1, :A_SIZE].reshape(1, 1, A_SIZE)
    bih_top = sp_ref[_R_BIH_TOP:_R_BIH_TOP + 1, :]
    bhh_top = sp_ref[_R_BHH_TOP:_R_BHH_TOP + 1, :]

    # packed GRU weights (already transposed for right-mult)
    wih_att = wgru_ref[0:IN_ATT, :]                                # (384, 384)
    whh_att = wgru_ref[IN_ATT:IN_ATT + H_ATT, :]                   # (128, 384)
    wih_top = wgru_ref[IN_ATT + H_ATT:IN_ATT + H_ATT + X_SIZE, :]  # (256, 384)
    whh_top = wgru_ref[IN_ATT + H_ATT + X_SIZE:, :]                # (128, 384)

    # --- attention GRU (batched, pooled features hoisted to conv kernel) ---
    pooled = pooled_ref[0]                                         # (bb, 256)
    att_in = jnp.concatenate(
        [_layernorm(pooled, gx, bx), _layernorm(h_top, gh, bh)], axis=1)
    h_att = _gru_cell(att_in, h_att, wih_att, whh_att, bih_att, bhh_att, H_ATT)
    hatt_scr[...] = h_att

    # --- spatial attention: one batched ah matmul, padded positions -> -inf ---
    ah = (jnp.dot(h_att, wha_ref[...], preferred_element_type=jnp.float32)
          + bha)                                                   # (bb, 32)
    ax = ax_ref[0].reshape(bb, P_PAD, A_SIZE)                      # (bb, 64, 32)
    aw = jnp.tanh(ax + ah[:, None, :])                             # (bb, 64, 32)
    logits = jnp.sum(aw * wa3, axis=-1)                            # (bb, 64)
    pos = jax.lax.broadcasted_iota(jnp.int32, (1, P_PAD), 1)
    logits = jnp.where(pos < P, logits, -jnp.inf)
    m = jnp.max(logits, axis=-1, keepdims=True)
    e = jnp.exp(logits - m)                                        # pads -> exactly 0
    inv_s = pl.reciprocal(jnp.sum(e, axis=-1, keepdims=True), approx=True)
    alpha = e * inv_s                                              # (bb, 64)
    satt_ref[0] = alpha                                            # pads already 0

    # --- attention-weighted pooling + top GRU (batched) ---
    x3 = x_ref[0].reshape(bb, P_PAD, X_SIZE)                       # (bb, 64, 256)
    top_in = jnp.sum(x3 * alpha[:, :, None], axis=1)               # (bb, 256)
    h_top = _gru_cell(top_in, h_top, wih_top, whh_top, bih_top, bhh_top, H_TOP)
    htop_scr[...] = h_top

    @pl.when(t == pl.num_programs(1) - 1)
    def _():
        htop_ref[...] = h_top                                      # (bb, 128)


def recurrent_pallas(x_flat, ax_flat, pooled_flat, h0_top, h0_att,
                     w_gru, wha_t, sp, *, B, T, bb):
    nb = B // bb
    bp = bb * P_PAD

    in_specs = [
        pl.BlockSpec((1, bp, X_SIZE), lambda ib, t: (t, ib, 0)),   # per-frame x
        pl.BlockSpec((1, bp, A_SIZE), lambda ib, t: (t, ib, 0)),   # hoisted ax
        pl.BlockSpec((1, bb, X_SIZE), lambda ib, t: (t, ib, 0)),   # hoisted pooled
        pl.BlockSpec((bb, H_TOP), lambda ib, t: (ib, 0)),          # h0_top
        pl.BlockSpec((bb, H_ATT), lambda ib, t: (ib, 0)),          # h0_att
        pl.BlockSpec(w_gru.shape, lambda ib, t: (0, 0)),
        pl.BlockSpec(wha_t.shape, lambda ib, t: (0, 0)),
        pl.BlockSpec(sp.shape, lambda ib, t: (0, 0)),
    ]
    out_specs = [
        pl.BlockSpec((1, bb, P_PAD), lambda ib, t: (t, ib, 0)),    # attention maps
        pl.BlockSpec((bb, H_TOP), lambda ib, t: (ib, 0)),          # final h_top
    ]
    out_shape = (
        jax.ShapeDtypeStruct((T, B, P_PAD), jnp.float32),
        jax.ShapeDtypeStruct((B, H_TOP), jnp.float32),
    )

    return pl.pallas_call(
        spa_att_kernel,
        grid_spec=pltpu.PrefetchScalarGridSpec(
            num_scalar_prefetch=0,
            grid=(nb, T),
            in_specs=in_specs,
            out_specs=out_specs,
            scratch_shapes=[pltpu.VMEM((bb, H_TOP), jnp.float32),
                            pltpu.VMEM((bb, H_ATT), jnp.float32)]),
        out_shape=out_shape,
        compiler_params=pltpu.CompilerParams(
            dimension_semantics=("parallel", "arbitrary")),
    )(x_flat, ax_flat, pooled_flat, h0_top, h0_att, w_gru, wha_t, sp)


# ---- wrapper -----------------------------------------------------------------
def spa_att_pallas(video, h0_top, h0_att, p, *, batch_block=None, conv_tile=512):
    B, T = video.shape[0], video.shape[1]
    if batch_block is not None:
        bb = batch_block
    else:
        bb = min(B, 128)                    # f32 VMEM cap safe for v7x (64 MiB)
        if bb == B and B >= 16 and (B // 2) % 8 == 0:
            bb = B // 2                     # keep >=2 batch blocks for megacore
    assert B % bb == 0 and (bb == B or bb % 8 == 0)

    # im2col for the 2x2/stride-2 conv, frame-major (t, b, position), P padded to 64
    patches = video.reshape(B, T, C_IN, H_OUT, 2, W_OUT, 2)
    patches = patches.transpose(1, 0, 3, 5, 2, 4, 6).reshape(T, B, P, K)
    patches = jnp.pad(patches, ((0, 0), (0, 0), (0, P_PAD - P), (0, 0)))
    rows = patches.reshape(T * B * P_PAD, K)

    n_rows = rows.shape[0]
    m_pad = pl.cdiv(n_rows, conv_tile) * conv_tile
    rows = jnp.pad(rows, ((0, m_pad - n_rows), (0, 0)))

    w1t = p['w1'].reshape(C1, K).T                 # (32, 512)
    b1 = p['b1'].reshape(1, C1)
    w2t = p['w2'].T                                # (512, 256)
    b2 = p['b2'].reshape(1, X_SIZE)
    wxat = p['wxa'].T                              # (256, 32)
    bxa = p['bxa'].reshape(1, A_SIZE)

    # hoisted conv + ax + pooling: one tiled Pallas kernel over all rows
    x_all, ax_all, pooled_all = conv_pallas(rows, w1t, b1, w2t, b2, wxat, bxa,
                                            tm=conv_tile)
    x_flat = x_all[:n_rows].reshape(T, B * P_PAD, X_SIZE)
    ax_flat = ax_all[:n_rows].reshape(T, B * P_PAD, A_SIZE)
    pooled_flat = pooled_all[:T * B].reshape(T, B, X_SIZE)

    # packed weights for the recurrent kernel
    w_gru = jnp.concatenate([p['wih_att'].T, p['whh_att'].T,
                             p['wih_top'].T, p['whh_top'].T], axis=0)   # (896, 384)
    wha_t = p['wha'].T                                                  # (128, 32)

    def _row(v):
        v = v.reshape(1, -1)
        return jnp.pad(v, ((0, 0), (0, SP_W - v.shape[1])))
    sp = jnp.concatenate([
        _row(p['gx']), _row(p['bx']), _row(p['gh']), _row(p['bh']),
        _row(p['bih_att']), _row(p['bhh_att']),
        _row(p['bha']), _row(p['wa']),
        _row(p['bih_top']), _row(p['bhh_top'])], axis=0)                # (10, 384)
    assert sp.shape == (_N_SP_ROWS, SP_W)

    satt, h_top_last = recurrent_pallas(x_flat, ax_flat, pooled_flat,
                                        h0_top, h0_att, w_gru, wha_t, sp,
                                        B=B, T=T, bb=bb)

    video_soft_att = (satt[:, :, :P].transpose(1, 0, 2)
                      .reshape(B, T, 1, H_OUT, W_OUT))
    final_score = (h_top_last @ p['wsc'].T + p['bsc'].reshape(1, 1))[:, 0]
    return final_score, video_soft_att


# ---- deterministic parameter init (synthetic; shapes from __init__) ----------
def init_params(key):
    ks = jax.random.split(key, 20)
    r = lambda k, shape, s: jax.random.normal(k, shape, jnp.float32) * s
    return dict(
        w1=r(ks[0], (C1, C_IN, 2, 2), 0.2), b1=r(ks[1], (C1,), 0.1),
        w2=r(ks[2], (X_SIZE, C1), 0.05), b2=r(ks[3], (X_SIZE,), 0.1),
        gx=jnp.ones((X_SIZE,), jnp.float32), bx=jnp.zeros((X_SIZE,), jnp.float32),
        gh=jnp.ones((H_TOP,), jnp.float32), bh=jnp.zeros((H_TOP,), jnp.float32),
        wih_att=r(ks[4], (3 * H_ATT, X_SIZE + H_TOP), 0.05),
        whh_att=r(ks[5], (3 * H_ATT, H_ATT), 0.05),
        bih_att=r(ks[6], (3 * H_ATT,), 0.05),
        bhh_att=r(ks[7], (3 * H_ATT,), 0.05),
        wxa=r(ks[8], (A_SIZE, X_SIZE), 0.05), bxa=r(ks[9], (A_SIZE,), 0.05),
        wha=r(ks[10], (A_SIZE, H_ATT), 0.05), bha=r(ks[11], (A_SIZE,), 0.05),
        wa=r(ks[12], (1, A_SIZE), 0.1),
        wih_top=r(ks[13], (3 * H_TOP, X_SIZE), 0.05),
        whh_top=r(ks[14], (3 * H_TOP, H_TOP), 0.05),
        bih_top=r(ks[15], (3 * H_TOP,), 0.05),
        bhh_top=r(ks[16], (3 * H_TOP,), 0.05),
        wsc=r(ks[17], (1, H_TOP), 0.1), bsc=r(ks[18], (1,), 0.1),
    )


# ---- pure-JAX reference (mirrors the PyTorch 'full' variant) ------------------
def _gru_ref(x, h, w_ih, w_hh, b_ih, b_hh):
    hid = h.shape[-1]
    gi = x @ w_ih.T + b_ih
    gh = h @ w_hh.T + b_hh
    r = jax.nn.sigmoid(gi[..., :hid] + gh[..., :hid])
    z = jax.nn.sigmoid(gi[..., hid:2 * hid] + gh[..., hid:2 * hid])
    n = jnp.tanh(gi[..., 2 * hid:] + r * gh[..., 2 * hid:])
    return (1 - z) * n + z * h


def _ln_ref(x, g, b):
    mu = x.mean(-1, keepdims=True)
    var = ((x - mu) ** 2).mean(-1, keepdims=True)
    return (x - mu) / jnp.sqrt(var + EPS) * g + b


def reference(video, p, h0_top, h0_att):
    B, T = video.shape[:2]
    h_top, h_att = h0_top, h0_att
    satts = []
    for t in range(T):
        fm = video[:, t]  # (B, C, 14, 14)
        patches = fm.reshape(B, C_IN, 7, 2, 7, 2).transpose(0, 2, 4, 1, 3, 5).reshape(B, P, K)
        x1 = jax.nn.relu(patches @ p['w1'].reshape(C1, K).T + p['b1'])
        x = x1 @ p['w2'].T + p['b2']                      # (B, 49, 256)
        xn = _ln_ref(x.mean(1) + x.max(1), p['gx'], p['bx'])
        hn = _ln_ref(h_top, p['gh'], p['bh'])
        att_in = jnp.concatenate([xn, hn], axis=1)
        h_att = _gru_ref(att_in, h_att, p['wih_att'], p['whh_att'], p['bih_att'], p['bhh_att'])
        a = jnp.tanh(x @ p['wxa'].T + p['bxa'] + (h_att @ p['wha'].T + p['bha'])[:, None, :])
        logits = (a @ p['wa'].T)[..., 0]                  # (B, 49)
        alpha = jax.nn.softmax(logits, axis=1)
        satts.append(alpha.reshape(B, 1, H_OUT, W_OUT))
        top_in = jnp.sum(x * alpha[:, :, None], axis=1)
        h_top = _gru_ref(top_in, h_top, p['wih_top'], p['whh_top'], p['bih_top'], p['bhh_top'])
    score = (h_top @ p['wsc'].T + p['bsc'])[:, 0]
    return score, jnp.stack(satts, axis=1)


if __name__ == "__main__":
    key = jax.random.PRNGKey(0)
    kp, kv, kht, kha = jax.random.split(key, 4)
    B, T = 2, 3

    params = init_params(kp)
    video = jax.random.normal(kv, (B, T, C_IN, H_IN, W_IN), jnp.float32)
    # torch.randn hidden-state init -> deterministic normal draws passed explicitly
    h0_top = jax.random.normal(kht, (B, H_TOP), jnp.float32)
    h0_att = jax.random.normal(kha, (B, H_ATT), jnp.float32)

    fwd = jax.jit(spa_att_pallas)
    final_score, video_soft_att = fwd(video, h0_top, h0_att, params)
    jax.block_until_ready((final_score, video_soft_att))

    ref_score, ref_satt = reference(video, params, h0_top, h0_att)
    assert final_score.shape == (B,)
    assert video_soft_att.shape == (B, T, 1, H_OUT, W_OUT)
    assert jnp.allclose(final_score, ref_score, atol=2e-3, rtol=2e-3)
    assert jnp.allclose(video_soft_att, ref_satt, atol=2e-3, rtol=2e-3)

    print("KERNEL_OK")
</pallas_src>

<mosaic_0001>
module attributes {stable_mosaic.version = 11 : i64} {
  func.func @conv_kernel(%arg0: i32, %arg1: memref<512x32xf32, #tpu.memory_space<vmem>>, %arg2: memref<32x512xf32, #tpu.memory_space<vmem>>, %arg3: memref<1x512xf32, #tpu.memory_space<vmem>>, %arg4: memref<512x256xf32, #tpu.memory_space<vmem>>, %arg5: memref<1x256xf32, #tpu.memory_space<vmem>>, %arg6: memref<256x32xf32, #tpu.memory_space<vmem>>, %arg7: memref<1x32xf32, #tpu.memory_space<vmem>>, %arg8: memref<512x256xf32, #tpu.memory_space<vmem>>, %arg9: memref<512x32xf32, #tpu.memory_space<vmem>>, %arg10: memref<8x256xf32, #tpu.memory_space<vmem>>) attributes {dimension_semantics = [#tpu.dimension_semantics<parallel>], iteration_bounds = array<i64: 1>, scalar_prefetch = 0 : i64, scratch_operands = 0 : i64, tpu.core_type = #tpu.core_type<tc>, window_params = [{transform_indices = @transform_0, window_bounds = array<i64: 512, 32>}, {pipeline_mode = #tpu.pipeline_mode<synchronous>, transform_indices = @transform_1, window_bounds = array<i64: 32, 512>}, {pipeline_mode = #tpu.pipeline_mode<synchronous>, transform_indices = @transform_2, window_bounds = array<i64: 1, 512>}, {pipeline_mode = #tpu.pipeline_mode<synchronous>, transform_indices = @transform_3, window_bounds = array<i64: 512, 256>}, {pipeline_mode = #tpu.pipeline_mode<synchronous>, transform_indices = @transform_4, window_bounds = array<i64: 1, 256>}, {pipeline_mode = #tpu.pipeline_mode<synchronous>, transform_indices = @transform_5, window_bounds = array<i64: 256, 32>}, {pipeline_mode = #tpu.pipeline_mode<synchronous>, transform_indices = @transform_6, window_bounds = array<i64: 1, 32>}, {transform_indices = @transform_7, window_bounds = array<i64: 512, 256>}, {transform_indices = @transform_8, window_bounds = array<i64: 512, 32>}, {transform_indices = @transform_9, window_bounds = array<i64: 8, 256>}]} {
    %c0 = arith.constant 0 : index
    %c0_0 = arith.constant 0 : index
    %0 = vector.load %arg1[%c0, %c0_0] : memref<512x32xf32, #tpu.memory_space<vmem>>, vector<512x32xf32>
    %c0_1 = arith.constant 0 : index
    %c0_2 = arith.constant 0 : index
    %1 = vector.load %arg2[%c0_1, %c0_2] : memref<32x512xf32, #tpu.memory_space<vmem>>, vector<32x512xf32>
    %cst = arith.constant dense<0.000000e+00> : vector<512x512xf32>
    %2 = tpu.matmul %0, %1, %cst {dimension_numbers = #tpu.dot_dimension_numbers<[1], [0], [0], [1], [0, 0, 1, 1], [], []>} : vector<512x32xf32>, vector<32x512xf32>, vector<512x512xf32> -> vector<512x512xf32>
    %c0_3 = arith.constant 0 : index
    %c0_4 = arith.constant 0 : index
    %3 = vector.load %arg3[%c0_3, %c0_4] : memref<1x512xf32, #tpu.memory_space<vmem>>, vector<1x512xf32>
    %4 = vector.broadcast %3 : vector<1x512xf32> to vector<512x512xf32>
    %5 = arith.addf %2, %4 : vector<512x512xf32>
    %cst_5 = arith.constant 0.000000e+00 : f32
    %6 = vector.broadcast %cst_5 : f32 to vector<512x512xf32>
    %7 = arith.maximumf %5, %6 : vector<512x512xf32>
    %c0_6 = arith.constant 0 : index
    %c0_7 = arith.constant 0 : index
    %8 = vector.load %arg4[%c0_6, %c0_7] : memref<512x256xf32, #tpu.memory_space<vmem>>, vector<512x256xf32>
    %cst_8 = arith.constant dense<0.000000e+00> : vector<512x256xf32>
    %9 = tpu.matmul %7, %8, %cst_8 {dimension_numbers = #tpu.dot_dimension_numbers<[1], [0], [0], [1], [0, 0, 1, 1], [], []>} : vector<512x512xf32>, vector<512x256xf32>, vector<512x256xf32> -> vector<512x256xf32>
    %c0_9 = arith.constant 0 : index
    %c0_10 = arith.constant 0 : index
    %10 = vector.load %arg5[%c0_9, %c0_10] : memref<1x256xf32, #tpu.memory_space<vmem>>, vector<1x256xf32>
    %11 = vector.broadcast %10 : vector<1x256xf32> to vector<512x256xf32>
    %12 = arith.addf %9, %11 : vector<512x256xf32>
    %c0_11 = arith.constant 0 : index
    %c0_12 = arith.constant 0 : index
    %13 = vector.load %arg8[%c0_11, %c0_12] : memref<512x256xf32, #tpu.memory_space<vmem>>, vector<512x256xf32>
    tpu.vector_store %arg8[%c0_11, %c0_12], %12 {strides = array<i32>} : memref<512x256xf32, #tpu.memory_space<vmem>>, vector<512x256xf32>,
    %c0_13 = arith.constant 0 : index
    %c0_14 = arith.constant 0 : index
    %14 = vector.load %arg6[%c0_13, %c0_14] : memref<256x32xf32, #tpu.memory_space<vmem>>, vector<256x32xf32>
    %cst_15 = arith.constant dense<0.000000e+00> : vector<512x32xf32>
    %15 = tpu.matmul %12, %14, %cst_15 {dimension_numbers = #tpu.dot_dimension_numbers<[1], [0], [0], [1], [0, 0, 1, 1], [], []>} : vector<512x256xf32>, vector<256x32xf32>, vector<512x32xf32> -> vector<512x32xf32>
    %c0_16 = arith.constant 0 : index
    %c0_17 = arith.constant 0 : index
    %16 = vector.load %arg7[%c0_16, %c0_17] : memref<1x32xf32, #tpu.memory_space<vmem>>, vector<1x32xf32>
    %17 = vector.broadcast %16 : vector<1x32xf32> to vector<512x32xf32>
    %18 = arith.addf %15, %17 : vector<512x32xf32>
    %c0_18 = arith.constant 0 : index
    %c0_19 = arith.constant 0 : index
    %19 = vector.load %arg9[%c0_18, %c0_19] : memref<512x32xf32, #tpu.memory_space<vmem>>, vector<512x32xf32>
    tpu.vector_store %arg9[%c0_18, %c0_19], %18 {strides = array<i32>} : memref<512x32xf32, #tpu.memory_space<vmem>>, vector<512x32xf32>,
    %20 = vector.shape_cast %12 : vector<512x256xf32> to vector<8x64x256xf32>
    %21 = tpu.iota {dimensions = array<i32: 0>} : vector<64x256xi32>
    %c49_i32 = arith.constant 49 : i32
    %22 = vector.broadcast %c49_i32 : i32 to vector<64x256xi32>
    %23 = arith.cmpi slt, %21, %22 : vector<64x256xi32>
    %24 = vector.shape_cast %23 : vector<64x256xi1> to vector<1x64x256xi1>
    %cst_20 = arith.constant 0.000000e+00 : f32
    %25 = vector.shape_cast %24 : vector<1x64x256xi1> to vector<1x64x256xi1>
    %26 = vector.broadcast %25 : vector<1x64x256xi1> to vector<8x64x256xi1>
    %27 = vector.broadcast %cst_20 : f32 to vector<8x64x256xf32>
    %28 = arith.select %26, %20, %27 : vector<8x64x256xi1>, vector<8x64x256xf32>
    %cst_21 = arith.constant dense<0.000000e+00> : vector<8x256xf32>
    %29 = vector.multi_reduction <add>, %28, %cst_21 [1] : vector<8x64x256xf32> to vector<8x256xf32>
    %cst_22 = arith.constant 0.0204081628 : f32
    %30 = vector.broadcast %cst_22 : f32 to vector<8x256xf32>
    %31 = arith.mulf %29, %30 : vector<8x256xf32>
    %cst_23 = arith.constant 0xFF800000 : f32
    %32 = vector.shape_cast %24 : vector<1x64x256xi1> to vector<1x64x256xi1>
    %33 = vector.broadcast %32 : vector<1x64x256xi1> to vector<8x64x256xi1>
    %34 = vector.broadcast %cst_23 : f32 to vector<8x64x256xf32>
    %35 = arith.select %33, %20, %34 : vector<8x64x256xi1>, vector<8x64x256xf32>
    %cst_24 = arith.constant dense<0xFF800000> : vector<8x256xf32>
    %36 = vector.multi_reduction <maximumf>, %35, %cst_24 [1] : vector<8x64x256xf32> to vector<8x256xf32>
    %37 = arith.addf %31, %36 : vector<8x256xf32>
    %c0_25 = arith.constant 0 : index
    %c0_26 = arith.constant 0 : index
    %38 = vector.load %arg10[%c0_25, %c0_26] : memref<8x256xf32, #tpu.memory_space<vmem>>, vector<8x256xf32>
    tpu.vector_store %arg10[%c0_25, %c0_26], %37 {strides = array<i32>} : memref<8x256xf32, #tpu.memory_space<vmem>>, vector<8x256xf32>,
    return
  }
  func.func @transform_0(%arg0: i32) -> (i32, i32) {
    %c0_i32 = arith.constant 0 : i32
    %c0_i32_0 = arith.constant 0 : i32
    return %arg0, %c0_i32 : i32, i32
  }
  func.func @transform_1(%arg0: i32) -> (i32, i32) {
    %c0_i32 = arith.constant 0 : i32
    %c0_i32_0 = arith.constant 0 : i32
    %c0_i32_1 = arith.constant 0 : i32
    return %c0_i32, %c0_i32_0 : i32, i32
  }
  func.func @transform_2(%arg0: i32) -> (i32, i32) {
    %c0_i32 = arith.constant 0 : i32
    %c0_i32_0 = arith.constant 0 : i32
    %c0_i32_1 = arith.constant 0 : i32
    return %c0_i32, %c0_i32_0 : i32, i32
  }
  func.func @transform_3(%arg0: i32) -> (i32, i32) {
    %c0_i32 = arith.constant 0 : i32
    %c0_i32_0 = arith.constant 0 : i32
    %c0_i32_1 = arith.constant 0 : i32
    return %c0_i32, %c0_i32_0 : i32, i32
  }
  func.func @transform_4(%arg0: i32) -> (i32, i32) {
    %c0_i32 = arith.constant 0 : i32
    %c0_i32_0 = arith.constant 0 : i32
    %c0_i32_1 = arith.constant 0 : i32
    return %c0_i32, %c0_i32_0 : i32, i32
  }
  func.func @transform_5(%arg0: i32) -> (i32, i32) {
    %c0_i32 = arith.constant 0 : i32
    %c0_i32_0 = arith.constant 0 : i32
    %c0_i32_1 = arith.constant 0 : i32
    return %c0_i32, %c0_i32_0 : i32, i32
  }
  func.func @transform_6(%arg0: i32) -> (i32, i32) {
    %c0_i32 = arith.constant 0 : i32
    %c0_i32_0 = arith.constant 0 : i32
    %c0_i32_1 = arith.constant 0 : i32
    return %c0_i32, %c0_i32_0 : i32, i32
  }
  func.func @transform_7(%arg0: i32) -> (i32, i32) {
    %c0_i32 = arith.constant 0 : i32
    %c0_i32_0 = arith.constant 0 : i32
    return %arg0, %c0_i32 : i32, i32
  }
  func.func @transform_8(%arg0: i32) -> (i32, i32) {
    %c0_i32 = arith.constant 0 : i32
    %c0_i32_0 = arith.constant 0 : i32
    return %arg0, %c0_i32 : i32, i32
  }
  func.func @transform_9(%arg0: i32) -> (i32, i32) {
    %c0_i32 = arith.constant 0 : i32
    %c0_i32_0 = arith.constant 0 : i32
    return %arg0, %c0_i32 : i32, i32
  }
}

module attributes {stable_mosaic.version = 11 : i64} {
  func.func @spa_att_kernel(%arg0: i32, %arg1: i32, %arg2: memref<1x128x256xf32, #tpu.memory_space<vmem>>, %arg3: memref<1x128x32xf32, #tpu.memory_space<vmem>>, %arg4: memref<1x2x256xf32, #tpu.memory_space<vmem>>, %arg5: memref<2x128xf32, #tpu.memory_space<vmem>>, %arg6: memref<2x128xf32, #tpu.memory_space<vmem>>, %arg7: memref<896x384xf32, #tpu.memory_space<vmem>>, %arg8: memref<128x32xf32, #tpu.memory_space<vmem>>, %arg9: memref<10x384xf32, #tpu.memory_space<vmem>>, %arg10: memref<1x2x64xf32, #tpu.memory_space<vmem>>, %arg11: memref<2x128xf32, #tpu.memory_space<vmem>>, %arg12: memref<2x128xf32, #tpu.memory_space<vmem>>, %arg13: memref<2x128xf32, #tpu.memory_space<vmem>>) attributes {dimension_semantics = [#tpu.dimension_semantics<parallel>, #tpu.dimension_semantics<arbitrary>], iteration_bounds = array<i64: 1, 3>, scalar_prefetch = 0 : i64, scratch_operands = 2 : i64, tpu.core_type = #tpu.core_type<tc>, window_params = [{transform_indices = @transform_0, window_bounds = array<i64: 1, 128, 256>}, {transform_indices = @transform_1, window_bounds = array<i64: 1, 128, 32>}, {transform_indices = @transform_2, window_bounds = array<i64: 1, 2, 256>}, {transform_indices = @transform_3, window_bounds = array<i64: 2, 128>}, {transform_indices = @transform_4, window_bounds = array<i64: 2, 128>}, {pipeline_mode = #tpu.pipeline_mode<synchronous>, transform_indices = @transform_5, window_bounds = array<i64: 896, 384>}, {pipeline_mode = #tpu.pipeline_mode<synchronous>, transform_indices = @transform_6, window_bounds = array<i64: 128, 32>}, {pipeline_mode = #tpu.pipeline_mode<synchronous>, transform_indices = @transform_7, window_bounds = array<i64: 10, 384>}, {transform_indices = @transform_8, window_bounds = array<i64: 1, 2, 64>}, {transform_indices = @transform_9, window_bounds = array<i64: 2, 128>}]} {
    %c0_i32 = arith.constant 0 : i32
    %0 = arith.cmpi eq, %arg1, %c0_i32 : i32
    %1 = arith.extui %0 : i1 to i32
    %c0_i32_0 = arith.constant 0 : i32
    %2 = arith.cmpi ne, %1, %c0_i32_0 : i32
    scf.if %2 {
      %c0_72 = arith.constant 0 : index
      %c0_73 = arith.constant 0 : index
      %185 = vector.load %arg5[%c0_72, %c0_73] : memref<2x128xf32, #tpu.memory_space<vmem>>, vector<2x128xf32>
      %c0_74 = arith.constant 0 : index
      %c0_75 = arith.constant 0 : index
      %186 = vector.load %arg12[%c0_74, %c0_75] : memref<2x128xf32, #tpu.memory_space<vmem>>, vector<2x128xf32>
      tpu.vector_store %arg12[%c0_74, %c0_75], %185 {strides = array<i32>} : memref<2x128xf32, #tpu.memory_space<vmem>>, vector<2x128xf32>,
      %c0_76 = arith.constant 0 : index
      %c0_77 = arith.constant 0 : index
      %187 = vector.load %arg6[%c0_76, %c0_77] : memref<2x128xf32, #tpu.memory_space<vmem>>, vector<2x128xf32>
      %c0_78 = arith.constant 0 : index
      %c0_79 = arith.constant 0 : index
      %188 = vector.load %arg13[%c0_78, %c0_79] : memref<2x128xf32, #tpu.memory_space<vmem>>, vector<2x128xf32>
      tpu.vector_store %arg13[%c0_78, %c0_79], %187 {strides = array<i32>} : memref<2x128xf32, #tpu.memory_space<vmem>>, vector<2x128xf32>,
    } else {
    }
    %c0 = arith.constant 0 : index
    %c0_1 = arith.constant 0 : index
    %3 = vector.load %arg12[%c0, %c0_1] : memref<2x128xf32, #tpu.memory_space<vmem>>, vector<2x128xf32>
    %c0_2 = arith.constant 0 : index
    %c0_3 = arith.constant 0 : index
    %4 = vector.load %arg13[%c0_2, %c0_3] : memref<2x128xf32, #tpu.memory_space<vmem>>, vector<2x128xf32>
    %c0_4 = arith.constant 0 : index
    %c0_5 = arith.constant 0 : index
    %5 = vector.load %arg9[%c0_4, %c0_5] : memref<10x384xf32, #tpu.memory_space<vmem>>, vector<1x256xf32>
    %c1 = arith.constant 1 : index
    %c0_6 = arith.constant 0 : index
    %6 = vector.load %arg9[%c1, %c0_6] : memref<10x384xf32, #tpu.memory_space<vmem>>, vector<1x256xf32>
    %c2 = arith.constant 2 : index
    %c0_7 = arith.constant 0 : index
    %7 = vector.load %arg9[%c2, %c0_7] : memref<10x384xf32, #tpu.memory_space<vmem>>, vector<1x128xf32>
    %c3 = arith.constant 3 : index
    %c0_8 = arith.constant 0 : index
    %8 = vector.load %arg9[%c3, %c0_8] : memref<10x384xf32, #tpu.memory_space<vmem>>, vector<1x128xf32>
    %c4 = arith.constant 4 : index
    %c0_9 = arith.constant 0 : index
    %9 = vector.load %arg9[%c4, %c0_9] : memref<10x384xf32, #tpu.memory_space<vmem>>, vector<1x384xf32>
    %c5 = arith.constant 5 : index
    %c0_10 = arith.constant 0 : index
    %10 = vector.load %arg9[%c5, %c0_10] : memref<10x384xf32, #tpu.memory_space<vmem>>, vector<1x384xf32>
    %c6 = arith.constant 6 : index
    %c0_11 = arith.constant 0 : index
    %11 = vector.load %arg9[%c6, %c0_11] : memref<10x384xf32, #tpu.memory_space<vmem>>, vector<1x32xf32>
    %c7 = arith.constant 7 : index
    %c0_12 = arith.constant 0 : index
    %12 = vector.load %arg9[%c7, %c0_12] : memref<10x384xf32, #tpu.memory_space<vmem>>, vector<1x32xf32>
    %13 = vector.shape_cast %12 : vector<1x32xf32> to vector<1x1x32xf32>
    %c8 = arith.constant 8 : index
    %c0_13 = arith.constant 0 : index
    %14 = vector.load %arg9[%c8, %c0_13] : memref<10x384xf32, #tpu.memory_space<vmem>>, vector<1x384xf32>
    %c9 = arith.constant 9 : index
    %c0_14 = arith.constant 0 : index
    %15 = vector.load %arg9[%c9, %c0_14] : memref<10x384xf32, #tpu.memory_space<vmem>>, vector<1x384xf32>
    %c0_15 = arith.constant 0 : index
    %c0_16 = arith.constant 0 : index
    %16 = vector.load %arg7[%c0_15, %c0_16] : memref<896x384xf32, #tpu.memory_space<vmem>>, vector<384x384xf32>
    %c384 = arith.constant 384 : index
    %c0_17 = arith.constant 0 : index
    %17 = vector.load %arg7[%c384, %c0_17] : memref<896x384xf32, #tpu.memory_space<vmem>>, vector<128x384xf32>
    %c512 = arith.constant 512 : index
    %c0_18 = arith.constant 0 : index
    %18 = vector.load %arg7[%c512, %c0_18] : memref<896x384xf32, #tpu.memory_space<vmem>>, vector<256x384xf32>
    %c768 = arith.constant 768 : index
    %c0_19 = arith.constant 0 : index
    %19 = vector.load %arg7[%c768, %c0_19] : memref<896x384xf32, #tpu.memory_space<vmem>>, vector<128x384xf32>
    %c0_20 = arith.constant 0 : index
    %c0_21 = arith.constant 0 : index
    %c0_22 = arith.constant 0 : index
    %20 = vector.load %arg4[%c0_20, %c0_21, %c0_22] : memref<1x2x256xf32, #tpu.memory_space<vmem>>, vector<1x2x256xf32>
    %21 = vector.shape_cast %20 : vector<1x2x256xf32> to vector<2x256xf32>
    %cst = arith.constant dense<0.000000e+00> : vector<2xf32>
    %22 = vector.multi_reduction <add>, %21, %cst [1] : vector<2x256xf32> to vector<2xf32>
    %23 = vector.shape_cast %22 : vector<2xf32> to vector<2x1xf32>
    %cst_23 = arith.constant 2.560000e+02 : f32
    %24 = vector.broadcast %cst_23 : f32 to vector<2x1xf32>
    %25 = arith.divf %23, %24 : vector<2x1xf32>
    %26 = vector.broadcast %25 : vector<2x1xf32> to vector<2x256xf32>
    %27 = arith.subf %21, %26 : vector<2x256xf32>
    %28 = arith.mulf %27, %27 : vector<2x256xf32>
    %cst_24 = arith.constant dense<0.000000e+00> : vector<2xf32>
    %29 = vector.multi_reduction <add>, %28, %cst_24 [1] : vector<2x256xf32> to vector<2xf32>
    %30 = vector.shape_cast %29 : vector<2xf32> to vector<2x1xf32>
    %cst_25 = arith.constant 2.560000e+02 : f32
    %31 = vector.broadcast %cst_25 : f32 to vector<2x1xf32>
    %32 = arith.divf %30, %31 : vector<2x1xf32>
    %33 = vector.broadcast %25 : vector<2x1xf32> to vector<2x256xf32>
    %34 = arith.subf %21, %33 : vector<2x256xf32>
    %cst_26 = arith.constant 9.99999974E-6 : f32
    %35 = vector.broadcast %cst_26 : f32 to vector<2x1xf32>
    %36 = arith.addf %32, %35 : vector<2x1xf32>
    %37 = math.rsqrt %36 : vector<2x1xf32>
    %38 = vector.broadcast %37 : vector<2x1xf32> to vector<2x256xf32>
    %39 = arith.mulf %34, %38 : vector<2x256xf32>
    %40 = vector.broadcast %5 : vector<1x256xf32> to vector<2x256xf32>
    %41 = arith.mulf %39, %40 : vector<2x256xf32>
    %42 = vector.broadcast %6 : vector<1x256xf32> to vector<2x256xf32>
    %43 = arith.addf %41, %42 : vector<2x256xf32>
    %cst_27 = arith.constant dense<0.000000e+00> : vector<2xf32>
    %44 = vector.multi_reduction <add>, %3, %cst_27 [1] : vector<2x128xf32> to vector<2xf32>
    %45 = vector.shape_cast %44 : vector<2xf32> to vector<2x1xf32>
    %cst_28 = arith.constant 1.280000e+02 : f32
    %46 = vector.broadcast %cst_28 : f32 to vector<2x1xf32>
    %47 = arith.divf %45, %46 : vector<2x1xf32>
    %48 = vector.broadcast %47 : vector<2x1xf32> to vector<2x128xf32>
    %49 = arith.subf %3, %48 : vector<2x128xf32>
    %50 = arith.mulf %49, %49 : vector<2x128xf32>
    %cst_29 = arith.constant dense<0.000000e+00> : vector<2xf32>
    %51 = vector.multi_reduction <add>, %50, %cst_29 [1] : vector<2x128xf32> to vector<2xf32>
    %52 = vector.shape_cast %51 : vector<2xf32> to vector<2x1xf32>
    %cst_30 = arith.constant 1.280000e+02 : f32
    %53 = vector.broadcast %cst_30 : f32 to vector<2x1xf32>
    %54 = arith.divf %52, %53 : vector<2x1xf32>
    %55 = vector.broadcast %47 : vector<2x1xf32> to vector<2x128xf32>
    %56 = arith.subf %3, %55 : vector<2x128xf32>
    %cst_31 = arith.constant 9.99999974E-6 : f32
    %57 = vector.broadcast %cst_31 : f32 to vector<2x1xf32>
    %58 = arith.addf %54, %57 : vector<2x1xf32>
    %59 = math.rsqrt %58 : vector<2x1xf32>
    %60 = vector.broadcast %59 : vector<2x1xf32> to vector<2x128xf32>
    %61 = arith.mulf %56, %60 : vector<2x128xf32>
    %62 = vector.broadcast %7 : vector<1x128xf32> to vector<2x128xf32>
    %63 = arith.mulf %61, %62 : vector<2x128xf32>
    %64 = vector.broadcast %8 : vector<1x128xf32> to vector<2x128xf32>
    %65 = arith.addf %63, %64 : vector<2x128xf32>
    %66 = tpu.concatenate %43, %65 in 1 : vector<2x256xf32>, vector<2x128xf32> -> vector<2x384xf32>
    %cst_32 = arith.constant dense<0.000000e+00> : vector<2x384xf32>
    %67 = tpu.matmul %66, %16, %cst_32 {dimension_numbers = #tpu.dot_dimension_numbers<[1], [0], [0], [1], [0, 0, 1, 1], [], []>} : vector<2x384xf32>, vector<384x384xf32>, vector<2x384xf32> -> vector<2x384xf32>
    %68 = vector.broadcast %9 : vector<1x384xf32> to vector<2x384xf32>
    %69 = arith.addf %67, %68 : vector<2x384xf32>
    %cst_33 = arith.constant dense<0.000000e+00> : vector<2x384xf32>
    %70 = tpu.matmul %4, %17, %cst_33 {dimension_numbers = #tpu.dot_dimension_numbers<[1], [0], [0], [1], [0, 0, 1, 1], [], []>} : vector<2x128xf32>, vector<128x384xf32>, vector<2x384xf32> -> vector<2x384xf32>
    %71 = vector.broadcast %10 : vector<1x384xf32> to vector<2x384xf32>
    %72 = arith.addf %70, %71 : vector<2x384xf32>
    %73 = vector.extract_strided_slice %69 {offsets = [0, 0], sizes = [2, 128], strides = [1, 1]} : vector<2x384xf32> to vector<2x128xf32>
    %74 = vector.extract_strided_slice %72 {offsets = [0, 0], sizes = [2, 128], strides = [1, 1]} : vector<2x384xf32> to vector<2x128xf32>
    %75 = arith.addf %73, %74 : vector<2x128xf32>
    %cst_34 = arith.constant 0.000000e+00 : f32
    %76 = vector.broadcast %cst_34 : f32 to vector<2x128xf32>
    %77 = arith.subf %76, %75 : vector<2x128xf32>
    %78 = math.exp %77 : vector<2x128xf32>
    %cst_35 = arith.constant 1.000000e+00 : f32
    %79 = vector.broadcast %cst_35 : f32 to vector<2x128xf32>
    %80 = arith.addf %79, %78 : vector<2x128xf32>
    %cst_36 = arith.constant 1.000000e+00 : f32
    %81 = vector.broadcast %cst_36 : f32 to vector<2x128xf32>
    %82 = arith.divf %81, %80 : vector<2x128xf32>
    %83 = vector.extract_strided_slice %69 {offsets = [0, 128], sizes = [2, 128], strides = [1, 1]} : vector<2x384xf32> to vector<2x128xf32>
    %84 = vector.extract_strided_slice %72 {offsets = [0, 128], sizes = [2, 128], strides = [1, 1]} : vector<2x384xf32> to vector<2x128xf32>
    %85 = arith.addf %83, %84 : vector<2x128xf32>
    %cst_37 = arith.constant 0.000000e+00 : f32
    %86 = vector.broadcast %cst_37 : f32 to vector<2x128xf32>
    %87 = arith.subf %86, %85 : vector<2x128xf32>
    %88 = math.exp %87 : vector<2x128xf32>
    %cst_38 = arith.constant 1.000000e+00 : f32
    %89 = vector.broadcast %cst_38 : f32 to vector<2x128xf32>
    %90 = arith.addf %89, %88 : vector<2x128xf32>
    %cst_39 = arith.constant 1.000000e+00 : f32
    %91 = vector.broadcast %cst_39 : f32 to vector<2x128xf32>
    %92 = arith.divf %91, %90 : vector<2x128xf32>
    %93 = vector.extract_strided_slice %69 {offsets = [0, 256], sizes = [2, 128], strides = [1, 1]} : vector<2x384xf32> to vector<2x128xf32>
    %94 = vector.extract_strided_slice %72 {offsets = [0, 256], sizes = [2, 128], strides = [1, 1]} : vector<2x384xf32> to vector<2x128xf32>
    %95 = arith.mulf %82, %94 : vector<2x128xf32>
    %96 = arith.addf %93, %95 : vector<2x128xf32>
    %97 = math.tanh %96 : vector<2x128xf32>
    %cst_40 = arith.constant 1.000000e+00 : f32
    %98 = vector.broadcast %cst_40 : f32 to vector<2x128xf32>
    %99 = arith.subf %98, %92 : vector<2x128xf32>
    %100 = arith.mulf %99, %97 : vector<2x128xf32>
    %101 = arith.mulf %92, %4 : vector<2x128xf32>
    %102 = arith.addf %100, %101 : vector<2x128xf32>
    %c0_41 = arith.constant 0 : index
    %c0_42 = arith.constant 0 : index
    %103 = vector.load %arg13[%c0_41, %c0_42] : memref<2x128xf32, #tpu.memory_space<vmem>>, vector<2x128xf32>
    tpu.vector_store %arg13[%c0_41, %c0_42], %102 {strides = array<i32>} : memref<2x128xf32, #tpu.memory_space<vmem>>, vector<2x128xf32>,
    %c0_43 = arith.constant 0 : index
    %c0_44 = arith.constant 0 : index
    %104 = vector.load %arg8[%c0_43, %c0_44] : memref<128x32xf32, #tpu.memory_space<vmem>>, vector<128x32xf32>
    %cst_45 = arith.constant dense<0.000000e+00> : vector<2x32xf32>
    %105 = tpu.matmul %102, %104, %cst_45 {dimension_numbers = #tpu.dot_dimension_numbers<[1], [0], [0], [1], [0, 0, 1, 1], [], []>} : vector<2x128xf32>, vector<128x32xf32>, vector<2x32xf32> -> vector<2x32xf32>
    %106 = vector.broadcast %11 : vector<1x32xf32> to vector<2x32xf32>
    %107 = arith.addf %105, %106 : vector<2x32xf32>
    %c0_46 = arith.constant 0 : index
    %c0_47 = arith.constant 0 : index
    %c0_48 = arith.constant 0 : index
    %108 = vector.load %arg3[%c0_46, %c0_47, %c0_48] : memref<1x128x32xf32, #tpu.memory_space<vmem>>, vector<1x128x32xf32>
    %109 = vector.shape_cast %108 : vector<1x128x32xf32> to vector<128x32xf32>
    %110 = vector.shape_cast %109 : vector<128x32xf32> to vector<2x64x32xf32>
    %111 = vector.shape_cast %107 : vector<2x32xf32> to vector<2x1x32xf32>
    %112 = vector.broadcast %111 : vector<2x1x32xf32> to vector<2x64x32xf32>
    %113 = arith.addf %110, %112 : vector<2x64x32xf32>
    %114 = math.tanh %113 : vector<2x64x32xf32>
    %115 = vector.broadcast %13 : vector<1x1x32xf32> to vector<2x64x32xf32>
    %116 = arith.mulf %114, %115 : vector<2x64x32xf32>
    %cst_49 = arith.constant dense<0.000000e+00> : vector<2x64xf32>
    %117 = vector.multi_reduction <add>, %116, %cst_49 [2] : vector<2x64x32xf32> to vector<2x64xf32>
    %118 = tpu.iota {dimensions = array<i32: 1>} : vector<1x64xi32>
    %c49_i32 = arith.constant 49 : i32
    %119 = vector.broadcast %c49_i32 : i32 to vector<1x64xi32>
    %120 = arith.cmpi slt, %118, %119 : vector<1x64xi32>
    %cst_50 = arith.constant 0xFF800000 : f32
    %121 = vector.shape_cast %120 : vector<1x64xi1> to vector<1x64xi1>
    %122 = vector.broadcast %121 : vector<1x64xi1> to vector<2x64xi1>
    %123 = vector.broadcast %cst_50 : f32 to vector<2x64xf32>
    %124 = arith.select %122, %117, %123 : vector<2x64xi1>, vector<2x64xf32>
    %cst_51 = arith.constant dense<0xFF800000> : vector<2xf32>
    %125 = vector.multi_reduction <maximumf>, %124, %cst_51 [1] : vector<2x64xf32> to vector<2xf32>
    %126 = vector.shape_cast %125 : vector<2xf32> to vector<2x1xf32>
    %127 = vector.broadcast %126 : vector<2x1xf32> to vector<2x64xf32>
    %128 = arith.subf %124, %127 : vector<2x64xf32>
    %129 = math.exp %128 : vector<2x64xf32>
    %cst_52 = arith.constant dense<0.000000e+00> : vector<2xf32>
    %130 = vector.multi_reduction <add>, %129, %cst_52 [1] : vector<2x64xf32> to vector<2xf32>
    %131 = vector.shape_cast %130 : vector<2xf32> to vector<2x1xf32>
    %132 = tpu.reciprocal %131 {approx = true} : vector<2x1xf32> -> vector<2x1xf32>
    %133 = vector.broadcast %132 : vector<2x1xf32> to vector<2x64xf32>
    %134 = arith.mulf %129, %133 : vector<2x64xf32>
    %c0_53 = arith.constant 0 : index
    %c0_54 = arith.constant 0 : index
    %c0_55 = arith.constant 0 : index
    %135 = vector.load %arg10[%c0_53, %c0_54, %c0_55] : memref<1x2x64xf32, #tpu.memory_space<vmem>>, vector<1x2x64xf32>
    %136 = vector.shape_cast %135 : vector<1x2x64xf32> to vector<2x64xf32>
    %137 = vector.shape_cast %134 : vector<2x64xf32> to vector<1x2x64xf32>
    tpu.vector_store %arg10[%c0_53, %c0_54, %c0_55], %137 {strides = array<i32>} : memref<1x2x64xf32, #tpu.memory_space<vmem>>, vector<1x2x64xf32>,
    %c0_56 = arith.constant 0 : index
    %c0_57 = arith.constant 0 : index
    %c0_58 = arith.constant 0 : index
    %138 = vector.load %arg2[%c0_56, %c0_57, %c0_58] : memref<1x128x256xf32, #tpu.memory_space<vmem>>, vector<1x128x256xf32>
    %139 = vector.shape_cast %138 : vector<1x128x256xf32> to vector<128x256xf32>
    %140 = vector.shape_cast %139 : vector<128x256xf32> to vector<2x64x256xf32>
    %141 = vector.shape_cast %134 : vector<2x64xf32> to vector<2x64x1xf32>
    %142 = vector.broadcast %141 : vector<2x64x1xf32> to vector<2x64x256xf32>
    %143 = arith.mulf %140, %142 : vector<2x64x256xf32>
    %cst_59 = arith.constant dense<0.000000e+00> : vector<2x256xf32>
    %144 = vector.multi_reduction <add>, %143, %cst_59 [1] : vector<2x64x256xf32> to vector<2x256xf32>
    %cst_60 = arith.constant dense<0.000000e+00> : vector<2x384xf32>
    %145 = tpu.matmul %144, %18, %cst_60 {dimension_numbers = #tpu.dot_dimension_numbers<[1], [0], [0], [1], [0, 0, 1, 1], [], []>} : vector<2x256xf32>, vector<256x384xf32>, vector<2x384xf32> -> vector<2x384xf32>
    %146 = vector.broadcast %14 : vector<1x384xf32> to vector<2x384xf32>
    %147 = arith.addf %145, %146 : vector<2x384xf32>
    %cst_61 = arith.constant dense<0.000000e+00> : vector<2x384xf32>
    %148 = tpu.matmul %3, %19, %cst_61 {dimension_numbers = #tpu.dot_dimension_numbers<[1], [0], [0], [1], [0, 0, 1, 1], [], []>} : vector<2x128xf32>, vector<128x384xf32>, vector<2x384xf32> -> vector<2x384xf32>
    %149 = vector.broadcast %15 : vector<1x384xf32> to vector<2x384xf32>
    %150 = arith.addf %148, %149 : vector<2x384xf32>
    %151 = vector.extract_strided_slice %147 {offsets = [0, 0], sizes = [2, 128], strides = [1, 1]} : vector<2x384xf32> to vector<2x128xf32>
    %152 = vector.extract_strided_slice %150 {offsets = [0, 0], sizes = [2, 128], strides = [1, 1]} : vector<2x384xf32> to vector<2x128xf32>
    %153 = arith.addf %151, %152 : vector<2x128xf32>
    %cst_62 = arith.constant 0.000000e+00 : f32
    %154 = vector.broadcast %cst_62 : f32 to vector<2x128xf32>
    %155 = arith.subf %154, %153 : vector<2x128xf32>
    %156 = math.exp %155 : vector<2x128xf32>
    %cst_63 = arith.constant 1.000000e+00 : f32
    %157 = vector.broadcast %cst_63 : f32 to vector<2x128xf32>
    %158 = arith.addf %157, %156 : vector<2x128xf32>
    %cst_64 = arith.constant 1.000000e+00 : f32
    %159 = vector.broadcast %cst_64 : f32 to vector<2x128xf32>
    %160 = arith.divf %159, %158 : vector<2x128xf32>
    %161 = vector.extract_strided_slice %147 {offsets = [0, 128], sizes = [2, 128], strides = [1, 1]} : vector<2x384xf32> to vector<2x128xf32>
    %162 = vector.extract_strided_slice %150 {offsets = [0, 128], sizes = [2, 128], strides = [1, 1]} : vector<2x384xf32> to vector<2x128xf32>
    %163 = arith.addf %161, %162 : vector<2x128xf32>
    %cst_65 = arith.constant 0.000000e+00 : f32
    %164 = vector.broadcast %cst_65 : f32 to vector<2x128xf32>
    %165 = arith.subf %164, %163 : vector<2x128xf32>
    %166 = math.exp %165 : vector<2x128xf32>
    %cst_66 = arith.constant 1.000000e+00 : f32
    %167 = vector.broadcast %cst_66 : f32 to vector<2x128xf32>
    %168 = arith.addf %167, %166 : vector<2x128xf32>
    %cst_67 = arith.constant 1.000000e+00 : f32
    %169 = vector.broadcast %cst_67 : f32 to vector<2x128xf32>
    %170 = arith.divf %169, %168 : vector<2x128xf32>
    %171 = vector.extract_strided_slice %147 {offsets = [0, 256], sizes = [2, 128], strides = [1, 1]} : vector<2x384xf32> to vector<2x128xf32>
    %172 = vector.extract_strided_slice %150 {offsets = [0, 256], sizes = [2, 128], strides = [1, 1]} : vector<2x384xf32> to vector<2x128xf32>
    %173 = arith.mulf %160, %172 : vector<2x128xf32>
    %174 = arith.addf %171, %173 : vector<2x128xf32>
    %175 = math.tanh %174 : vector<2x128xf32>
    %cst_68 = arith.constant 1.000000e+00 : f32
    %176 = vector.broadcast %cst_68 : f32 to vector<2x128xf32>
    %177 = arith.subf %176, %170 : vector<2x128xf32>
    %178 = arith.mulf %177, %175 : vector<2x128xf32>
    %179 = arith.mulf %170, %3 : vector<2x128xf32>
    %180 = arith.addf %178, %179 : vector<2x128xf32>
    %c0_69 = arith.constant 0 : index
    %c0_70 = arith.constant 0 : index
    %181 = vector.load %arg12[%c0_69, %c0_70] : memref<2x128xf32, #tpu.memory_space<vmem>>, vector<2x128xf32>
    tpu.vector_store %arg12[%c0_69, %c0_70], %180 {strides = array<i32>} : memref<2x128xf32, #tpu.memory_space<vmem>>, vector<2x128xf32>,
    %c2_i32 = arith.constant 2 : i32
    %182 = arith.cmpi eq, %arg1, %c2_i32 : i32
    %183 = arith.extui %182 : i1 to i32
    %c0_i32_71 = arith.constant 0 : i32
    %184 = arith.cmpi ne, %183, %c0_i32_71 : i32
    scf.if %184 {
      %c0_72 = arith.constant 0 : index
      %c0_73 = arith.constant 0 : index
      %185 = vector.load %arg11[%c0_72, %c0_73] : memref<2x128xf32, #tpu.memory_space<vmem>>, vector<2x128xf32>
      tpu.vector_store %arg11[%c0_72, %c0_73], %180 {strides = array<i32>} : memref<2x128xf32, #tpu.memory_space<vmem>>, vector<2x128xf32>,
    } else {
    }
    return
  }
  func.func @transform_0(%arg0: i32, %arg1: i32) -> (i32, i32, i32) {
    %c0_i32 = arith.constant 0 : i32
    %c0_i32_0 = arith.constant 0 : i32
    return %arg1, %arg0, %c0_i32 : i32, i32, i32
  }
  func.func @transform_1(%arg0: i32, %arg1: i32) -> (i32, i32, i32) {
    %c0_i32 = arith.constant 0 : i32
    %c0_i32_0 = arith.constant 0 : i32
    return %arg1, %arg0, %c0_i32 : i32, i32, i32
  }
  func.func @transform_2(%arg0: i32, %arg1: i32) -> (i32, i32, i32) {
    %c0_i32 = arith.constant 0 : i32
    %c0_i32_0 = arith.constant 0 : i32
    return %arg1, %arg0, %c0_i32 : i32, i32, i32
  }
  func.func @transform_3(%arg0: i32, %arg1: i32) -> (i32, i32) {
    %c0_i32 = arith.constant 0 : i32
    %c0_i32_0 = arith.constant 0 : i32
    return %arg0, %c0_i32 : i32, i32
  }
  func.func @transform_4(%arg0: i32, %arg1: i32) -> (i32, i32) {
    %c0_i32 = arith.constant 0 : i32
    %c0_i32_0 = arith.constant 0 : i32
    return %arg0, %c0_i32 : i32, i32
  }
  func.func @transform_5(%arg0: i32, %arg1: i32) -> (i32, i32) {
    %c0_i32 = arith.constant 0 : i32
    %c0_i32_0 = arith.constant 0 : i32
    %c0_i32_1 = arith.constant 0 : i32
    return %c0_i32, %c0_i32_0 : i32, i32
  }
  func.func @transform_6(%arg0: i32, %arg1: i32) -> (i32, i32) {
    %c0_i32 = arith.constant 0 : i32
    %c0_i32_0 = arith.constant 0 : i32
    %c0_i32_1 = arith.constant 0 : i32
    return %c0_i32, %c0_i32_0 : i32, i32
  }
  func.func @transform_7(%arg0: i32, %arg1: i32) -> (i32, i32) {
    %c0_i32 = arith.constant 0 : i32
    %c0_i32_0 = arith.constant 0 : i32
    %c0_i32_1 = arith.constant 0 : i32
    return %c0_i32, %c0_i32_0 : i32, i32
  }
  func.func @transform_8(%arg0: i32, %arg1: i32) -> (i32, i32, i32) {
    %c0_i32 = arith.constant 0 : i32
    %c0_i32_0 = arith.constant 0 : i32
    return %arg1, %arg0, %c0_i32 : i32, i32, i32
  }
  func.func @transform_9(%arg0: i32, %arg1: i32) -> (i32, i32) {
    %c0_i32 = arith.constant 0 : i32
    %c0_i32_0 = arith.constant 0 : i32
    return %arg0, %c0_i32 : i32, i32
  }
}

</mosaic_0001>

<llo_original>
// kernel: spa_att_pallas.3
$region0: #{spa_att_pallas.3}
  #allocation0 [shape = 'u32[]', space=smem, size = 0x4, offset = 0x4, fixed_abs, tag = 'smem constant byte address 0x4 - core index']
  #allocation1 [shape = 'u32[144,128]{1,0:T(1,128)}', space=vmem, size = 0x12000, scoped, tag = 'internal scratch']
  #allocation2 [shape = 'f32[2,128]{1,0:T(2,128)}', space=vmem, size = 0x400, scoped, tag = 'scratch operand']
  #allocation3 [shape = 'f32[2,128]{1,0:T(2,128)}', space=vmem, size = 0x400, scoped, tag = 'scratch operand']
  %s0 = inlined_call_operand.vmem [shape: f32[3,128,256], index: 0, kind: input, shape index: {}]
  %s1 = inlined_call_operand.vmem [shape: f32[3,128,32], index: 1, kind: input, shape index: {}]
  %s2 = inlined_call_operand.vmem [shape: f32[3,2,256], index: 2, kind: input, shape index: {}]
  %s3 = inlined_call_operand.vmem [shape: f32[2,128], index: 3, kind: input, shape index: {}]
  %s4 = inlined_call_operand.vmem [shape: f32[2,128], index: 4, kind: input, shape index: {}]
  %s5 = inlined_call_operand.vmem [shape: f32[896,384], index: 5, kind: input, shape index: {}]
  %s6 = inlined_call_operand.vmem [shape: f32[128,32], index: 6, kind: input, shape index: {}]
  %s7 = inlined_call_operand.vmem [shape: f32[10,384], index: 7, kind: input, shape index: {}]
  %s8 = inlined_call_operand.vmem [shape: f32[3,2,64], index: 8, kind: output, shape index: {0}]
  %s9 = inlined_call_operand.vmem [shape: f32[2,128], index: 9, kind: output, shape index: {1}]
  %10 = xla_tuple %s8, %s9
  %s11 = sld [smem:[#allocation0]]
  $region81: #{spa_att_pallas.3} parent=0
    _
  %s13 = ssub.s32 1, %s11
  %s14 = scalar_select 0, %s13, %s11
  loop: start=0, step=1, limit=5
  $region2: #{spa_att_pallas.3} parent=0 // loop_pre_header
    _
  $region3: #{spa_att_pallas.3} parent=0 // loop_header
    %s16 = sphi 0, %s20
    %p17 = scmp.ge.s32.totalorder %s16, 5
    %s23 = sphi 0, %s35
    %s24 = sphi 0, %s31
    %s25 = sphi 0, %s23
    %s26 = sphi 0, %s24
    %s27 = sphi 0, %s25
    %s28 = sphi 0, %s26
    %s40 = sphi 0, %s42
    %s43 = sphi 0, %s40
    %s44 = sphi 0, %s43
    %s60 = sphi 0, %s44
    %s68 = sphi 0, %s70
    %s71 = sphi 0, %s68
    %s72 = sphi 0, %s71
    %s88 = sphi 0, %s72
    %s96 = sphi 0, %s98
    %s99 = sphi 0, %s96
    %s100 = sphi 0, %s99
    %s116 = sphi 0, %s100
    %s122 = sphi 0, %s124
    %s125 = sphi 0, %s122
    %s126 = sphi 0, %s125
    %s142 = sphi 0, %s126
    %s148 = sphi 0, %s150
    %s151 = sphi 0, %s148
    %s152 = sphi 0, %s151
    %s168 = sphi 0, %s152
    %s172 = sphi 0, %s172
    %s174 = sphi 0, %s172
    %s175 = sphi 0, %s174
    %s189 = sphi 0, %s175
    %s193 = sphi 0, %s193
    %s195 = sphi 0, %s193
    %s196 = sphi 0, %s195
    %s210 = sphi 0, %s196
    %s214 = sphi 0, %s214
    %s216 = sphi 0, %s214
    %s217 = sphi 0, %s216
    %s231 = sphi 0, %s217
    %s239 = sphi 0, %s241
    %s242 = sphi 0, %s239
    %s243 = sphi 0, %s242
    %s259 = sphi 0, %s243
    %s265 = sphi 0, %s267
    %s268 = sphi 0, %s265
    %s269 = sphi 0, %s268
    %s285 = sphi 0, %s269
  $region4: #{spa_att_pallas.3} parent=0 // loop_header_branch
    %19 = sbr.rel (%p17) target = $region8
  $region5: #{spa_att_pallas.3} parent=0 // loop_body
    %s21 = ssub.s32 %s16, 1
    %s22 = ssub.s32 %s16, 2
    %s29 = sadd.s32 1, %s24
    %p30 = scmp.ge.s32.totalorder %s29, 3
    %s31 = scalar_select %p30, 0, %s29
    %s32 = sadd.s32 1, %s23
    %s33 = scalar_select %p30, %s32, %s23
    %p34 = scmp.ge.s32.totalorder %s33, 1
    %s35 = scalar_select %p34, 0, %s33
    %s36 = ssub.s32 %s24, %s31
    %s37 = ssub.s32 %s23, %s35
    %s38 = sor.u32 %s36, %s37
    %p39 = scmp.eq.s32.totalorder %s38, 0
    %s41 = sadd.s32 %s40, 1
    %s42 = scalar_select %p39, %s40, %s41
    %p45 = pneg %p39
    %p46 = scmp.eq.s32.totalorder %s16, 2
    %p47 = por %p45, %p46
    %p48 = scmp.ne.s32.totalorder %s40, %s43
    %p49 = scmp.eq.s32.totalorder %s16, 0
    %p50 = por %p48, %p49
    %p51 = scmp.ne.s32.totalorder %s40, %s43
    %p52 = scmp.eq.s32.totalorder %s21, 2
    %p53 = por %p51, %p52
    %p54 = scmp.ne.s32.totalorder %s43, %s44
    %p55 = scmp.eq.s32.totalorder %s21, 0
    %p56 = por %p54, %p55
    %p57 = scmp.ne.s32.totalorder %s43, %s44
    %p58 = scmp.eq.s32.totalorder %s22, 2
    %p59 = por %p57, %p58
    %p61 = scmp.ne.s32.totalorder %s44, %s60
    %p62 = scmp.eq.s32.totalorder %s22, 0
    %p63 = por %p61, %p62
    %s64 = ssub.s32 %s24, %s31
    %s65 = ssub.s32 %s23, %s35
    %s66 = sor.u32 %s64, %s65
    %p67 = scmp.eq.s32.totalorder %s66, 0
    %s69 = sadd.s32 %s68, 1
    %s70 = scalar_select %p67, %s68, %s69
    %p73 = pneg %p67
    %p74 = scmp.eq.s32.totalorder %s16, 2
    %p75 = por %p73, %p74
    %p76 = scmp.ne.s32.totalorder %s68, %s71
    %p77 = scmp.eq.s32.totalorder %s16, 0
    %p78 = por %p76, %p77
    %p79 = scmp.ne.s32.totalorder %s68, %s71
    %p80 = scmp.eq.s32.totalorder %s21, 2
    %p81 = por %p79, %p80
    %p82 = scmp.ne.s32.totalorder %s71, %s72
    %p83 = scmp.eq.s32.totalorder %s21, 0
    %p84 = por %p82, %p83
    %p85 = scmp.ne.s32.totalorder %s71, %s72
    %p86 = scmp.eq.s32.totalorder %s22, 2
    %p87 = por %p85, %p86
    %p89 = scmp.ne.s32.totalorder %s72, %s88
    %p90 = scmp.eq.s32.totalorder %s22, 0
    %p91 = por %p89, %p90
    %s92 = ssub.s32 %s24, %s31
    %s93 = ssub.s32 %s23, %s35
    %s94 = sor.u32 %s92, %s93
    %p95 = scmp.eq.s32.totalorder %s94, 0
    %s97 = sadd.s32 %s96, 1
    %s98 = scalar_select %p95, %s96, %s97
    %p101 = pneg %p95
    %p102 = scmp.eq.s32.totalorder %s16, 2
    %p103 = por %p101, %p102
    %p104 = scmp.ne.s32.totalorder %s96, %s99
    %p105 = scmp.eq.s32.totalorder %s16, 0
    %p106 = por %p104, %p105
    %p107 = scmp.ne.s32.totalorder %s96, %s99
    %p108 = scmp.eq.s32.totalorder %s21, 2
    %p109 = por %p107, %p108
    %p110 = scmp.ne.s32.totalorder %s99, %s100
    %p111 = scmp.eq.s32.totalorder %s21, 0
    %p112 = por %p110, %p111
    %p113 = scmp.ne.s32.totalorder %s99, %s100
    %p114 = scmp.eq.s32.totalorder %s22, 2
    %p115 = por %p113, %p114
    %p117 = scmp.ne.s32.totalorder %s100, %s116
    %p118 = scmp.eq.s32.totalorder %s22, 0
    %p119 = por %p117, %p118
    %s120 = ssub.s32 %s23, %s35
    %p121 = scmp.eq.s32.totalorder %s120, 0
    %s123 = sadd.s32 %s122, 1
    %s124 = scalar_select %p121, %s122, %s123
    %p127 = pneg %p121
    %p128 = scmp.eq.s32.totalorder %s16, 2
    %p129 = por %p127, %p128
    %p130 = scmp.ne.s32.totalorder %s122, %s125
    %p131 = scmp.eq.s32.totalorder %s16, 0
    %p132 = por %p130, %p131
    %p133 = scmp.ne.s32.totalorder %s122, %s125
    %p134 = scmp.eq.s32.totalorder %s21, 2
    %p135 = por %p133, %p134
    %p136 = scmp.ne.s32.totalorder %s125, %s126
    %p137 = scmp.eq.s32.totalorder %s21, 0
    %p138 = por %p136, %p137
    %p139 = scmp.ne.s32.totalorder %s125, %s126
    %p140 = scmp.eq.s32.totalorder %s22, 2
    %p141 = por %p139, %p140
    %p143 = scmp.ne.s32.totalorder %s126, %s142
    %p144 = scmp.eq.s32.totalorder %s22, 0
    %p145 = por %p143, %p144
    %s146 = ssub.s32 %s23, %s35
    %p147 = scmp.eq.s32.totalorder %s146, 0
    %s149 = sadd.s32 %s148, 1
    %s150 = scalar_select %p147, %s148, %s149
    %p153 = pneg %p147
    %p154 = scmp.eq.s32.totalorder %s16, 2
    %p155 = por %p153, %p154
    %p156 = scmp.ne.s32.totalorder %s148, %s151
    %p157 = scmp.eq.s32.totalorder %s16, 0
    %p158 = por %p156, %p157
    %p159 = scmp.ne.s32.totalorder %s148, %s151
    %p160 = scmp.eq.s32.totalorder %s21, 2
    %p161 = por %p159, %p160
    %p162 = scmp.ne.s32.totalorder %s151, %s152
    %p163 = scmp.eq.s32.totalorder %s21, 0
    %p164 = por %p162, %p163
    %p165 = scmp.ne.s32.totalorder %s151, %s152
    %p166 = scmp.eq.s32.totalorder %s22, 2
    %p167 = por %p165, %p166
    %p169 = scmp.ne.s32.totalorder %s152, %s168
    %p170 = scmp.eq.s32.totalorder %s22, 0
    %p171 = por %p169, %p170
    %s173 = sadd.s32 %s172, 1
    %p176 = scmp.eq.s32.totalorder %s16, 2
    %p177 = scmp.ne.s32.totalorder %s172, %s174
    %p178 = scmp.eq.s32.totalorder %s16, 0
    %p179 = por %p177, %p178
    %p180 = scmp.ne.s32.totalorder %s172, %s174
    %p181 = scmp.eq.s32.totalorder %s21, 2
    %p182 = por %p180, %p181
    %p183 = scmp.ne.s32.totalorder %s174, %s175
    %p184 = scmp.eq.s32.totalorder %s21, 0
    %p185 = por %p183, %p184
    %p186 = scmp.ne.s32.totalorder %s174, %s175
    %p187 = scmp.eq.s32.totalorder %s22, 2
    %p188 = por %p186, %p187
    %p190 = scmp.ne.s32.totalorder %s175, %s189
    %p191 = scmp.eq.s32.totalorder %s22, 0
    %p192 = por %p190, %p191
    %s194 = sadd.s32 %s193, 1
    %p197 = scmp.eq.s32.totalorder %s16, 2
    %p198 = scmp.ne.s32.totalorder %s193, %s195
    %p199 = scmp.eq.s32.totalorder %s16, 0
    %p200 = por %p198, %p199
    %p201 = scmp.ne.s32.totalorder %s193, %s195
    %p202 = scmp.eq.s32.totalorder %s21, 2
    %p203 = por %p201, %p202
    %p204 = scmp.ne.s32.totalorder %s195, %s196
    %p205 = scmp.eq.s32.totalorder %s21, 0
    %p206 = por %p204, %p205
    %p207 = scmp.ne.s32.totalorder %s195, %s196
    %p208 = scmp.eq.s32.totalorder %s22, 2
    %p209 = por %p207, %p208
    %p211 = scmp.ne.s32.totalorder %s196, %s210
    %p212 = scmp.eq.s32.totalorder %s22, 0
    %p213 = por %p211, %p212
    %s215 = sadd.s32 %s214, 1
    %p218 = scmp.eq.s32.totalorder %s16, 2
    %p219 = scmp.ne.s32.totalorder %s214, %s216
    %p220 = scmp.eq.s32.totalorder %s16, 0
    %p221 = por %p219, %p220
    %p222 = scmp.ne.s32.totalorder %s214, %s216
    %p223 = scmp.eq.s32.totalorder %s21, 2
    %p224 = por %p222, %p223
    %p225 = scmp.ne.s32.totalorder %s216, %s217
    %p226 = scmp.eq.s32.totalorder %s21, 0
    %p227 = por %p225, %p226
    %p228 = scmp.ne.s32.totalorder %s216, %s217
    %p229 = scmp.eq.s32.totalorder %s22, 2
    %p230 = por %p228, %p229
    %p232 = scmp.ne.s32.totalorder %s217, %s231
    %p233 = scmp.eq.s32.totalorder %s22, 0
    %p234 = por %p232, %p233
    %s235 = ssub.s32 %s24, %s31
    %s236 = ssub.s32 %s23, %s35
    %s237 = sor.u32 %s235, %s236
    %p238 = scmp.eq.s32.totalorder %s237, 0
    %s240 = sadd.s32 %s239, 1
    %s241 = scalar_select %p238, %s239, %s240
    %p244 = pneg %p238
    %p245 = scmp.eq.s32.totalorder %s16, 2
    %p246 = por %p244, %p245
    %p247 = scmp.ne.s32.totalorder %s239, %s242
    %p248 = scmp.eq.s32.totalorder %s16, 0
    %p249 = por %p247, %p248
    %p250 = scmp.ne.s32.totalorder %s239, %s242
    %p251 = scmp.eq.s32.totalorder %s21, 2
    %p252 = por %p250, %p251
    %p253 = scmp.ne.s32.totalorder %s242, %s243
    %p254 = scmp.eq.s32.totalorder %s21, 0
    %p255 = por %p253, %p254
    %p256 = scmp.ne.s32.totalorder %s242, %s243
    %p257 = scmp.eq.s32.totalorder %s22, 2
    %p258 = por %p256, %p257
    %p260 = scmp.ne.s32.totalorder %s243, %s259
    %p261 = scmp.eq.s32.totalorder %s22, 0
    %p262 = por %p260, %p261
    %s263 = ssub.s32 %s23, %s35
    %p264 = scmp.eq.s32.totalorder %s263, 0
    %s266 = sadd.s32 %s265, 1
    %s267 = scalar_select %p264, %s265, %s266
    %p270 = pneg %p264
    %p271 = scmp.eq.s32.totalorder %s16, 2
    %p272 = por %p270, %p271
    %p273 = scmp.ne.s32.totalorder %s265, %s268
    %p274 = scmp.eq.s32.totalorder %s16, 0
    %p275 = por %p273, %p274
    %p276 = scmp.ne.s32.totalorder %s265, %s268
    %p277 = scmp.eq.s32.totalorder %s21, 2
    %p278 = por %p276, %p277
    %p279 = scmp.ne.s32.totalorder %s268, %s269
    %p280 = scmp.eq.s32.totalorder %s21, 0
    %p281 = por %p279, %p280
    %p282 = scmp.ne.s32.totalorder %s268, %s269
    %p283 = scmp.eq.s32.totalorder %s22, 2
    %p284 = por %p282, %p283
    %p286 = scmp.ne.s32.totalorder %s269, %s285
    %p287 = scmp.eq.s32.totalorder %s22, 0
    %p288 = por %p286, %p287
    %p289 = scmp.le.s32.totalorder 1, %s16
    %p290 = scmp.lt.s32.totalorder %s16, 4
    %p291 = pnand %p289, %p290
    %p292 = pneg %p291
    // Predicated region
    $region9: #{spa_att_pallas.3} parent=5 // pred_check
      _
    $region10: #{spa_att_pallas.3} parent=5 // pred_check_branch
      %294 = sbr.rel (%p291) target = $region12
    $region11: #{spa_att_pallas.3} parent=5 // pred_region
      %s295 = ssub.s32 %s16, 1
      // Predicated region
      $region13: #{spa_att_pallas.3} parent=11 // pred_check
        %p296 = pneg %p138
      $region14: #{spa_att_pallas.3} parent=11 // pred_check_branch
        %298 = sbr.rel (%p296) target = $region16
      $region15: #{spa_att_pallas.3} parent=11 // pred_region
        %p299 = scmp.lt.s32.totalorder %s25, 0
        %s300 = scalar_select %p299, %s25, 0
        %s301 = smul.addr %s300, 2
        %s302 = scalar_lea.vmem %s3, %s301
      $region16: #{spa_att_pallas.3} parent=11 // pred_fallthru
        _
      // Predicated region
      $region17: #{spa_att_pallas.3} parent=11 // pred_check
        %p303 = pneg %p164
      $region18: #{spa_att_pallas.3} parent=11 // pred_check_branch
        %305 = sbr.rel (%p303) target = $region20
      $region19: #{spa_att_pallas.3} parent=11 // pred_region
        %p306 = scmp.lt.s32.totalorder %s25, 0
        %s307 = scalar_select %p306, %s25, 0
        %s308 = smul.addr %s307, 2
        %s309 = scalar_lea.vmem %s4, %s308
      $region20: #{spa_att_pallas.3} parent=11 // pred_fallthru
        _
      // Predicated region
      $region21: #{spa_att_pallas.3} parent=11 // pred_check
        %p310 = pneg %p185
      $region22: #{spa_att_pallas.3} parent=11 // pred_check_branch
        %312 = sbr.rel (%p310) target = $region24
      $region23: #{spa_att_pallas.3} parent=11 // pred_region
        _
      $region24: #{spa_att_pallas.3} parent=11 // pred_fallthru
        _
      // Predicated region
      $region25: #{spa_att_pallas.3} parent=11 // pred_check
        %p313 = pneg %p206
      $region26: #{spa_att_pallas.3} parent=11 // pred_check_branch
        %315 = sbr.rel (%p313) target = $region28
      $region27: #{spa_att_pallas.3} parent=11 // pred_region
        _
      $region28: #{spa_att_pallas.3} parent=11 // pred_fallthru
        _
      // Predicated region
      $region29: #{spa_att_pallas.3} parent=11 // pred_check
        %p316 = pneg %p227
      $region30: #{spa_att_pallas.3} parent=11 // pred_check_branch
        %318 = sbr.rel (%p316) target = $region32
      $region31: #{spa_att_pallas.3} parent=11 // pred_region
        _
      $region32: #{spa_att_pallas.3} parent=11 // pred_fallthru
        _
    $region12: #{spa_att_pallas.3} parent=5 // pred_fallthru
      _
    %p319 = scmp.lt.s32.totalorder %s16, 3
    // Predicated region
    $region33: #{spa_att_pallas.3} parent=5 // pred_check
      %p320 = pneg %p319
    $region34: #{spa_att_pallas.3} parent=5 // pred_check_branch
      %322 = sbr.rel (%p320) target = $region36
    $region35: #{spa_att_pallas.3} parent=5 // pred_region
      // Predicated region
      $region37: #{spa_att_pallas.3} parent=35 // pred_check
        %p323 = pneg %p50
      $region38: #{spa_att_pallas.3} parent=35 // pred_check_branch
        %325 = sbr.rel (%p323) target = $region40
      $region39: #{spa_att_pallas.3} parent=35 // pred_region
        %s326 = smul.u32 16, %s23
        %p327 = scmp.lt.s32.totalorder %s24, 2
        %s328 = scalar_select %p327, %s24, 2
        %p329 = scmp.lt.s32.totalorder %s326, 15
        %s330 = scalar_select %p329, %s326, 15
        %s331 = smul.addr %s330, 2
        %s332 = smul.addr %s328, 32
        %s333 = sadd.s32 %s331, %s332
        %s334 = smul.addr %s333, 8
        %s335 = scalar_lea.vmem %s0, %s334
        %s336 = smul.u32 16, %s23
      $region40: #{spa_att_pallas.3} parent=35 // pred_fallthru
        _
      // Predicated region
      $region41: #{spa_att_pallas.3} parent=35 // pred_check
        %p337 = pneg %p78
      $region42: #{spa_att_pallas.3} parent=35 // pred_check_branch
        %339 = sbr.rel (%p337) target = $region44
      $region43: #{spa_att_pallas.3} parent=35 // pred_region
        %s340 = smul.u32 16, %s23
        %p341 = scmp.lt.s32.totalorder %s24, 2
        %s342 = scalar_select %p341, %s24, 2
        %p343 = scmp.lt.s32.totalorder %s340, 15
        %s344 = scalar_select %p343, %s340, 15
        %s345 = smul.addr %s342, 16
        %s346 = sadd.s32 %s344, %s345
        %s347 = smul.addr %s346, 8
        %s348 = scalar_lea.vmem %s1, %s347
        %s349 = smul.u32 16, %s23
      $region44: #{spa_att_pallas.3} parent=35 // pred_fallthru
        _
      // Predicated region
      $region45: #{spa_att_pallas.3} parent=35 // pred_check
        %p350 = pneg %p106
      $region46: #{spa_att_pallas.3} parent=35 // pred_check_branch
        %352 = sbr.rel (%p350) target = $region48
      $region47: #{spa_att_pallas.3} parent=35 // pred_region
        %p353 = scmp.lt.s32.totalorder %s24, 2
        %s354 = scalar_select %p353, %s24, 2
        %p355 = scmp.lt.s32.totalorder %s23, 0
        %s356 = scalar_select %p355, %s23, 0
        %s357 = smul.addr %s356, 2
        %s358 = smul.addr %s354, 2
        %s359 = sadd.s32 %s357, %s358
        %s360 = smul.addr %s359, 2
        %s361 = scalar_lea.vmem %s2, %s360
      $region48: #{spa_att_pallas.3} parent=35 // pred_fallthru
        _
    $region36: #{spa_att_pallas.3} parent=5 // pred_fallthru
      _
    %p362 = scmp.le.s32.totalorder 1, %s16
    %p363 = scmp.lt.s32.totalorder %s16, 4
    %p364 = pnand %p362, %p363
    %p365 = pneg %p364
    // Predicated region
    $region49: #{spa_att_pallas.3} parent=5 // pred_check
      _
    $region50: #{spa_att_pallas.3} parent=5 // pred_check_branch
      %367 = sbr.rel (%p364) target = $region52
    $region51: #{spa_att_pallas.3} parent=5 // pred_region
      %s368 = ssub.s32 %s16, 1
      %s369 = smul.u32 16, %s25
      %p370 = scmp.lt.s32.totalorder %s26, 2
      %s371 = scalar_select %p370, %s26, 2
      %p372 = scmp.lt.s32.totalorder %s369, 15
      %s373 = scalar_select %p372, %s369, 15
      %s374 = smul.addr %s373, 2
      %s375 = smul.addr %s371, 32
      %s376 = sadd.s32 %s374, %s375
      %s377 = smul.addr %s376, 8
      %s378 = scalar_lea.vmem %s0, %s377
      %p379 = pneg %p56
      %p380 = pneg %p53
      %s381 = smul.u32 16, %s25
      %p382 = scmp.lt.s32.totalorder %s26, 2
      %s383 = scalar_select %p382, %s26, 2
      %p384 = scmp.lt.s32.totalorder %s381, 15
      %s385 = scalar_select %p384, %s381, 15
      %s386 = smul.addr %s383, 16
      %s387 = sadd.s32 %s385, %s386
      %s388 = smul.addr %s387, 8
      %s389 = scalar_lea.vmem %s1, %s388
      %p390 = pneg %p84
      %p391 = pneg %p81
      %p392 = scmp.lt.s32.totalorder %s26, 2
      %s393 = scalar_select %p392, %s26, 2
      %p394 = scmp.lt.s32.totalorder %s25, 0
      %s395 = scalar_select %p394, %s25, 0
      %s396 = smul.addr %s395, 2
      %s397 = smul.addr %s393, 2
      %s398 = sadd.s32 %s396, %s397
      %s399 = smul.addr %s398, 2
      %s400 = scalar_lea.vmem %s2, %s399
      %p401 = pneg %p112
      %p402 = pneg %p109
      %p403 = scmp.lt.s32.totalorder %s25, 0
      %s404 = scalar_select %p403, %s25, 0
      %s405 = smul.addr %s404, 2
      %s406 = scalar_lea.vmem %s3, %s405
      %p407 = pneg %p138
      %p408 = pneg %p135
      %p409 = scmp.lt.s32.totalorder %s25, 0
      %s410 = scalar_select %p409, %s25, 0
      %s411 = smul.addr %s410, 2
      %s412 = scalar_lea.vmem %s4, %s411
      %p413 = pneg %p164
      %p414 = pneg %p161
      %p415 = pneg %p185
      %p416 = pneg %p182
      %p417 = pneg %p206
      %p418 = pneg %p203
      %p419 = pneg %p227
      %p420 = pneg %p224
      %p421 = pneg %p255
      %p422 = pneg %p252
      %p423 = scmp.lt.s32.totalorder %s26, 2
      %s424 = scalar_select %p423, %s26, 2
      %p425 = scmp.lt.s32.totalorder %s25, 0
      %s426 = scalar_select %p425, %s25, 0
      %s427 = sadd.s32 %s426, %s424
      %s428 = smul.addr %s427, 2
      %s429 = scalar_lea.vmem %s8, %s428
      %p430 = pneg %p281
      %p431 = pneg %p278
      %p432 = scmp.lt.s32.totalorder %s25, 0
      %s433 = scalar_select %p432, %s25, 0
      %s434 = smul.addr %s433, 2
      %s435 = scalar_lea.vmem %s9, %s434
      %s436 = smul.u32 16, %s25
      %p437 = scmp.lt.s32.totalorder %s26, 2
      %s438 = scalar_select %p437, %s26, 2
      %p439 = scmp.lt.s32.totalorder %s436, 15
      %s440 = scalar_select %p439, %s436, 15
      %s441 = smul.addr %s440, 2
      %s442 = smul.addr %s438, 32
      %s443 = sadd.s32 %s441, %s442
      %s444 = smul.addr %s443, 8
      %s445 = scalar_lea.vmem %s0, %s444
      %s446 = smul.u32 16, %s25
      %s447 = smul.u32 16, %s25
      %p448 = scmp.lt.s32.totalorder %s26, 2
      %s449 = scalar_select %p448, %s26, 2
      %p450 = scmp.lt.s32.totalorder %s447, 15
      %s451 = scalar_select %p450, %s447, 15
      %s452 = smul.addr %s449, 16
      %s453 = sadd.s32 %s451, %s452
      %s454 = smul.addr %s453, 8
      %s455 = scalar_lea.vmem %s1, %s454
      %s456 = smul.u32 16, %s25
      %p457 = scmp.lt.s32.totalorder %s26, 2
      %s458 = scalar_select %p457, %s26, 2
      %p459 = scmp.lt.s32.totalorder %s25, 0
      %s460 = scalar_select %p459, %s25, 0
      %s461 = smul.addr %s460, 2
      %s462 = smul.addr %s458, 2
      %s463 = sadd.s32 %s461, %s462
      %s464 = smul.addr %s463, 2
      %s465 = scalar_lea.vmem %s2, %s464
      %p466 = scmp.lt.s32.totalorder %s25, 0
      %s467 = scalar_select %p466, %s25, 0
      %s468 = smul.addr %s467, 2
      %s469 = scalar_lea.vmem %s3, %s468
      %p470 = scmp.lt.s32.totalorder %s25, 0
      %s471 = scalar_select %p470, %s25, 0
      %s472 = smul.addr %s471, 2
      %s473 = scalar_lea.vmem %s4, %s472
      %p474 = scmp.lt.s32.totalorder %s26, 2
      %s475 = scalar_select %p474, %s26, 2
      %p476 = scmp.lt.s32.totalorder %s25, 0
      %s477 = scalar_select %p476, %s25, 0
      %s478 = sadd.s32 %s477, %s475
      %s479 = smul.addr %s478, 2
      %s480 = scalar_lea.vmem %s8, %s479
      %p481 = scmp.lt.s32.totalorder %s25, 0
      %s482 = scalar_select %p481, %s25, 0
      %s483 = smul.addr %s482, 2
      %s484 = scalar_lea.vmem %s9, %s483
      %p485 = scmp.eq.s32.totalorder %s26, 0
      // Predicated region
      $region53: #{spa_att_pallas.3} parent=51 // pred_check
        %p486 = pneg %p485
      $region54: #{spa_att_pallas.3} parent=51 // pred_check_branch
        %488 = sbr.rel (%p486) target = $region56
      $region55: #{spa_att_pallas.3} parent=51 // pred_region
        %v489 = vld [vmem:[%s469] sm:$0x3]
        %490 = vst [vmem:[#allocation2] sm:$0x3] %v489
        %v491 = vld [vmem:[%s473] sm:$0x3]
        %492 = vst [vmem:[#allocation3] sm:$0x3] %v491
      $region56: #{spa_att_pallas.3} parent=51 // pred_fallthru
        _
      %v493 = vld [vmem:[#allocation2] sm:$0x3]
      %v494 = vld [vmem:[#allocation3] sm:$0x3]
      %v495 = vld [vmem:[%s7] ss:$8 sm:$0x3]
      %s496 = scalar_lea.vmem %s7, 1
      %v497 = vld [vmem:[%s496] ss:$8 sm:$0x3]
      %v498 = vld [vmem:[%s7 + $0x2] ss:$0 sm:$0xff]
      %v499 = vld [vmem:[%s7 + $0x3] ss:$0 sm:$0xff]
      %s500 = scalar_lea.vmem %s7, 4
      %v501 = vld [vmem:[%s500] ss:$8 sm:$0x7]
      %s502 = scalar_lea.vmem %s7, 5
      %v503 = vld [vmem:[%s502] ss:$8 sm:$0x7]
      %v504 = vld [vmem:[%s7 + $0x6] ss:$0 sm:$0xff]
      %v505 = vld [vmem:[%s7 + $0x7] ss:$0 sm:$0xff]
      %s506 = scalar_lea.vmem %s7, 24
      %v507 = vld [vmem:[%s506] ss:$8 sm:$0x7]
      %s508 = scalar_lea.vmem %s7, 25
      %v509 = vld [vmem:[%s508] ss:$8 sm:$0x7]
      %v510 = vld [vmem:[%s5] sm:$0xff]
      %v511 = vld [vmem:[%s5 + $0x8] sm:$0xff]
      %v512 = vld [vmem:[%s5 + $0x10] sm:$0xff]
      %v513 = vld [vmem:[%s5 + $0x18] sm:$0xff]
      %v514 = vld [vmem:[%s5 + $0x20] sm:$0xff]
      %v515 = vld [vmem:[%s5 + $0x28] sm:$0xff]
      %v516 = vld [vmem:[%s5 + $0x30] sm:$0xff]
      %v517 = vld [vmem:[%s5 + $0x38] sm:$0xff]
      %v518 = vld [vmem:[%s5 + $0x40] sm:$0xff]
      %v519 = vld [vmem:[%s5 + $0x48] sm:$0xff]
      %v520 = vld [vmem:[%s5 + $0x50] sm:$0xff]
      %v521 = vld [vmem:[%s5 + $0x58] sm:$0xff]
      %v522 = vld [vmem:[%s5 + $0x60] sm:$0xff]
      %v523 = vld [vmem:[%s5 + $0x68] sm:$0xff]
      %v524 = vld [vmem:[%s5 + $0x70] sm:$0xff]
      %v525 = vld [vmem:[%s5 + $0x78] sm:$0xff]
      %v526 = vld [vmem:[%s5 + $0x80] sm:$0xff]
      %v527 = vld [vmem:[%s5 + $0x88] sm:$0xff]
      %v528 = vld [vmem:[%s5 + $0x90] sm:$0xff]
      %v529 = vld [vmem:[%s5 + $0x98] sm:$0xff]
      %v530 = vld [vmem:[%s5 + $0xa0] sm:$0xff]
      %v531 = vld [vmem:[%s5 + $0xa8] sm:$0xff]
      %v532 = vld [vmem:[%s5 + $0xb0] sm:$0xff]
      %v533 = vld [vmem:[%s5 + $0xb8] sm:$0xff]
      %v534 = vld [vmem:[%s5 + $0xc0] sm:$0xff]
      %v535 = vld [vmem:[%s5 + $0xc8] sm:$0xff]
      %v536 = vld [vmem:[%s5 + $0xd0] sm:$0xff]
      %v537 = vld [vmem:[%s5 + $0xd8] sm:$0xff]
      %v538 = vld [vmem:[%s5 + $0xe0] sm:$0xff]
      %v539 = vld [vmem:[%s5 + $0xe8] sm:$0xff]
      %v540 = vld [vmem:[%s5 + $0xf0] sm:$0xff]
      %v541 = vld [vmem:[%s5 + $0xf8] sm:$0xff]
      %v542 = vld [vmem:[%s5 + $0x100] sm:$0xff]
      %v543 = vld [vmem:[%s5 + $0x108] sm:$0xff]
      %v544 = vld [vmem:[%s5 + $0x110] sm:$0xff]
      %v545 = vld [vmem:[%s5 + $0x118] sm:$0xff]
      %v546 = vld [vmem:[%s5 + $0x120] sm:$0xff]
      %v547 = vld [vmem:[%s5 + $0x128] sm:$0xff]
      %v548 = vld [vmem:[%s5 + $0x130] sm:$0xff]
      %v549 = vld [vmem:[%s5 + $0x138] sm:$0xff]
      %v550 = vld [vmem:[%s5 + $0x140] sm:$0xff]
      %v551 = vld [vmem:[%s5 + $0x148] sm:$0xff]
      %v552 = vld [vmem:[%s5 + $0x150] sm:$0xff]
      %v553 = vld [vmem:[%s5 + $0x158] sm:$0xff]
      %v554 = vld [vmem:[%s5 + $0x160] sm:$0xff]
      %v555 = vld [vmem:[%s5 + $0x168] sm:$0xff]
      %v556 = vld [vmem:[%s5 + $0x170] sm:$0xff]
      %v557 = vld [vmem:[%s5 + $0x178] sm:$0xff]
      %v558 = vld [vmem:[%s5 + $0x180] sm:$0xff]
      %v559 = vld [vmem:[%s5 + $0x188] sm:$0xff]
      %v560 = vld [vmem:[%s5 + $0x190] sm:$0xff]
      %v561 = vld [vmem:[%s5 + $0x198] sm:$0xff]
      %v562 = vld [vmem:[%s5 + $0x1a0] sm:$0xff]
      %v563 = vld [vmem:[%s5 + $0x1a8] sm:$0xff]
      %v564 = vld [vmem:[%s5 + $0x1b0] sm:$0xff]
      %v565 = vld [vmem:[%s5 + $0x1b8] sm:$0xff]
      %v566 = vld [vmem:[%s5 + $0x1c0] sm:$0xff]
      %v567 = vld [vmem:[%s5 + $0x1c8] sm:$0xff]
      %v568 = vld [vmem:[%s5 + $0x1d0] sm:$0xff]
      %v569 = vld [vmem:[%s5 + $0x1d8] sm:$0xff]
      %v570 = vld [vmem:[%s5 + $0x1e0] sm:$0xff]
      %v571 = vld [vmem:[%s5 + $0x1e8] sm:$0xff]
      %v572 = vld [vmem:[%s5 + $0x1f0] sm:$0xff]
      %v573 = vld [vmem:[%s5 + $0x1f8] sm:$0xff]
      %v574 = vld [vmem:[%s5 + $0x200] sm:$0xff]
      %v575 = vld [vmem:[%s5 + $0x208] sm:$0xff]
      %v576 = vld [vmem:[%s5 + $0x210] sm:$0xff]
      %v577 = vld [vmem:[%s5 + $0x218] sm:$0xff]
      %v578 = vld [vmem:[%s5 + $0x220] sm:$0xff]
      %v579 = vld [vmem:[%s5 + $0x228] sm:$0xff]
      %v580 = vld [vmem:[%s5 + $0x230] sm:$0xff]
      %v581 = vld [vmem:[%s5 + $0x238] sm:$0xff]
      %v582 = vld [vmem:[%s5 + $0x240] sm:$0xff]
      %v583 = vld [vmem:[%s5 + $0x248] sm:$0xff]
      %v584 = vld [vmem:[%s5 + $0x250] sm:$0xff]
      %v585 = vld [vmem:[%s5 + $0x258] sm:$0xff]
      %v586 = vld [vmem:[%s5 + $0x260] sm:$0xff]
      %v587 = vld [vmem:[%s5 + $0x268] sm:$0xff]
      %v588 = vld [vmem:[%s5 + $0x270] sm:$0xff]
      %v589 = vld [vmem:[%s5 + $0x278] sm:$0xff]
      %v590 = vld [vmem:[%s5 + $0x280] sm:$0xff]
      %v591 = vld [vmem:[%s5 + $0x288] sm:$0xff]
      %v592 = vld [vmem:[%s5 + $0x290] sm:$0xff]
      %v593 = vld [vmem:[%s5 + $0x298] sm:$0xff]
      %v594 = vld [vmem:[%s5 + $0x2a0] sm:$0xff]
      %v595 = vld [vmem:[%s5 + $0x2a8] sm:$0xff]
      %v596 = vld [vmem:[%s5 + $0x2b0] sm:$0xff]
      %v597 = vld [vmem:[%s5 + $0x2b8] sm:$0xff]
      %v598 = vld [vmem:[%s5 + $0x2c0] sm:$0xff]
      %v599 = vld [vmem:[%s5 + $0x2c8] sm:$0xff]
      %v600 = vld [vmem:[%s5 + $0x2d0] sm:$0xff]
      %v601 = vld [vmem:[%s5 + $0x2d8] sm:$0xff]
      %v602 = vld [vmem:[%s5 + $0x2e0] sm:$0xff]
      %v603 = vld [vmem:[%s5 + $0x2e8] sm:$0xff]
      %v604 = vld [vmem:[%s5 + $0x2f0] sm:$0xff]
      %v605 = vld [vmem:[%s5 + $0x2f8] sm:$0xff]
      %v606 = vld [vmem:[%s5 + $0x300] sm:$0xff]
      %v607 = vld [vmem:[%s5 + $0x308] sm:$0xff]
      %v608 = vld [vmem:[%s5 + $0x310] sm:$0xff]
      %v609 = vld [vmem:[%s5 + $0x318] sm:$0xff]
      %v610 = vld [vmem:[%s5 + $0x320] sm:$0xff]
      %v611 = vld [vmem:[%s5 + $0x328] sm:$0xff]
      %v612 = vld [vmem:[%s5 + $0x330] sm:$0xff]
      %v613 = vld [vmem:[%s5 + $0x338] sm:$0xff]
      %v614 = vld [vmem:[%s5 + $0x340] sm:$0xff]
      %v615 = vld [vmem:[%s5 + $0x348] sm:$0xff]
      %v616 = vld [vmem:[%s5 + $0x350] sm:$0xff]
      %v617 = vld [vmem:[%s5 + $0x358] sm:$0xff]
      %v618 = vld [vmem:[%s5 + $0x360] sm:$0xff]
      %v619 = vld [vmem:[%s5 + $0x368] sm:$0xff]
      %v620 = vld [vmem:[%s5 + $0x370] sm:$0xff]
      %v621 = vld [vmem:[%s5 + $0x378] sm:$0xff]
      %v622 = vld [vmem:[%s5 + $0x380] sm:$0xff]
      %v623 = vld [vmem:[%s5 + $0x388] sm:$0xff]
      %v624 = vld [vmem:[%s5 + $0x390] sm:$0xff]
      %v625 = vld [vmem:[%s5 + $0x398] sm:$0xff]
      %v626 = vld [vmem:[%s5 + $0x3a0] sm:$0xff]
      %v627 = vld [vmem:[%s5 + $0x3a8] sm:$0xff]
      %v628 = vld [vmem:[%s5 + $0x3b0] sm:$0xff]
      %v629 = vld [vmem:[%s5 + $0x3b8] sm:$0xff]
      %v630 = vld [vmem:[%s5 + $0x3c0] sm:$0xff]
      %v631 = vld [vmem:[%s5 + $0x3c8] sm:$0xff]
      %v632 = vld [vmem:[%s5 + $0x3d0] sm:$0xff]
      %v633 = vld [vmem:[%s5 + $0x3d8] sm:$0xff]
      %v634 = vld [vmem:[%s5 + $0x3e0] sm:$0xff]
      %v635 = vld [vmem:[%s5 + $0x3e8] sm:$0xff]
      %v636 = vld [vmem:[%s5 + $0x3f0] sm:$0xff]
      %v637 = vld [vmem:[%s5 + $0x3f8] sm:$0xff]
      %v638 = vld [vmem:[%s5 + $0x400] sm:$0xff]
      %v639 = vld [vmem:[%s5 + $0x408] sm:$0xff]
      %v640 = vld [vmem:[%s5 + $0x410] sm:$0xff]
      %v641 = vld [vmem:[%s5 + $0x418] sm:$0xff]
      %v642 = vld [vmem:[%s5 + $0x420] sm:$0xff]
      %v643 = vld [vmem:[%s5 + $0x428] sm:$0xff]
      %v644 = vld [vmem:[%s5 + $0x430] sm:$0xff]
      %v645 = vld [vmem:[%s5 + $0x438] sm:$0xff]
      %v646 = vld [vmem:[%s5 + $0x440] sm:$0xff]
      %v647 = vld [vmem:[%s5 + $0x448] sm:$0xff]
      %v648 = vld [vmem:[%s5 + $0x450] sm:$0xff]
      %v649 = vld [vmem:[%s5 + $0x458] sm:$0xff]
      %v650 = vld [vmem:[%s5 + $0x460] sm:$0xff]
      %v651 = vld [vmem:[%s5 + $0x468] sm:$0xff]
      %v652 = vld [vmem:[%s5 + $0x470] sm:$0xff]
      %v653 = vld [vmem:[%s5 + $0x478] sm:$0xff]
      %v654 = vld [vmem:[%s5 + $0x480] sm:$0xff]
      %v655 = vld [vmem:[%s5 + $0x488] sm:$0xff]
      %v656 = vld [vmem:[%s5 + $0x490] sm:$0xff]
      %v657 = vld [vmem:[%s5 + $0x498] sm:$0xff]
      %v658 = vld [vmem:[%s5 + $0x4a0] sm:$0xff]
      %v659 = vld [vmem:[%s5 + $0x4a8] sm:$0xff]
      %v660 = vld [vmem:[%s5 + $0x4b0] sm:$0xff]
      %v661 = vld [vmem:[%s5 + $0x4b8] sm:$0xff]
      %v662 = vld [vmem:[%s5 + $0x4c0] sm:$0xff]
      %v663 = vld [vmem:[%s5 + $0x4c8] sm:$0xff]
      %v664 = vld [vmem:[%s5 + $0x4d0] sm:$0xff]
      %v665 = vld [vmem:[%s5 + $0x4d8] sm:$0xff]
      %v666 = vld [vmem:[%s5 + $0x4e0] sm:$0xff]
      %v667 = vld [vmem:[%s5 + $0x4e8] sm:$0xff]
      %v668 = vld [vmem:[%s5 + $0x4f0] sm:$0xff]
      %v669 = vld [vmem:[%s5 + $0x4f8] sm:$0xff]
      %v670 = vld [vmem:[%s5 + $0x500] sm:$0xff]
      %v671 = vld [vmem:[%s5 + $0x508] sm:$0xff]
      %v672 = vld [vmem:[%s5 + $0x510] sm:$0xff]
      %v673 = vld [vmem:[%s5 + $0x518] sm:$0xff]
      %v674 = vld [vmem:[%s5 + $0x520] sm:$0xff]
      %v675 = vld [vmem:[%s5 + $0x528] sm:$0xff]
      %v676 = vld [vmem:[%s5 + $0x530] sm:$0xff]
      %v677 = vld [vmem:[%s5 + $0x538] sm:$0xff]
      %v678 = vld [vmem:[%s5 + $0x540] sm:$0xff]
      %v679 = vld [vmem:[%s5 + $0x548] sm:$0xff]
      %v680 = vld [vmem:[%s5 + $0x550] sm:$0xff]
      %v681 = vld [vmem:[%s5 + $0x558] sm:$0xff]
      %v682 = vld [vmem:[%s5 + $0x560] sm:$0xff]
      %v683 = vld [vmem:[%s5 + $0x568] sm:$0xff]
      %v684 = vld [vmem:[%s5 + $0x570] sm:$0xff]
      %v685 = vld [vmem:[%s5 + $0x578] sm:$0xff]
      %v686 = vld [vmem:[%s5 + $0x580] sm:$0xff]
      %v687 = vld [vmem:[%s5 + $0x588] sm:$0xff]
      %v688 = vld [vmem:[%s5 + $0x590] sm:$0xff]
      %v689 = vld [vmem:[%s5 + $0x598] sm:$0xff]
      %v690 = vld [vmem:[%s5 + $0x5a0] sm:$0xff]
      %v691 = vld [vmem:[%s5 + $0x5a8] sm:$0xff]
      %v692 = vld [vmem:[%s5 + $0x5b0] sm:$0xff]
      %v693 = vld [vmem:[%s5 + $0x5b8] sm:$0xff]
      %v694 = vld [vmem:[%s5 + $0x5c0] sm:$0xff]
      %v695 = vld [vmem:[%s5 + $0x5c8] sm:$0xff]
      %v696 = vld [vmem:[%s5 + $0x5d0] sm:$0xff]
      %v697 = vld [vmem:[%s5 + $0x5d8] sm:$0xff]
      %v698 = vld [vmem:[%s5 + $0x5e0] sm:$0xff]
      %v699 = vld [vmem:[%s5 + $0x5e8] sm:$0xff]
      %v700 = vld [vmem:[%s5 + $0x5f0] sm:$0xff]
      %v701 = vld [vmem:[%s5 + $0x5f8] sm:$0xff]
      %v702 = vld [vmem:[%s5 + $0x600] sm:$0xff]
      %v703 = vld [vmem:[%s5 + $0x608] sm:$0xff]
      %v704 = vld [vmem:[%s5 + $0x610] sm:$0xff]
      %v705 = vld [vmem:[%s5 + $0x618] sm:$0xff]
      %v706 = vld [vmem:[%s5 + $0x620] sm:$0xff]
      %v707 = vld [vmem:[%s5 + $0x628] sm:$0xff]
      %v708 = vld [vmem:[%s5 + $0x630] sm:$0xff]
      %v709 = vld [vmem:[%s5 + $0x638] sm:$0xff]
      %v710 = vld [vmem:[%s5 + $0x640] sm:$0xff]
      %v711 = vld [vmem:[%s5 + $0x648] sm:$0xff]
      %v712 = vld [vmem:[%s5 + $0x650] sm:$0xff]
      %v713 = vld [vmem:[%s5 + $0x658] sm:$0xff]
      %v714 = vld [vmem:[%s5 + $0x660] sm:$0xff]
      %v715 = vld [vmem:[%s5 + $0x668] sm:$0xff]
      %v716 = vld [vmem:[%s5 + $0x670] sm:$0xff]
      %v717 = vld [vmem:[%s5 + $0x678] sm:$0xff]
      %v718 = vld [vmem:[%s5 + $0x680] sm:$0xff]
      %v719 = vld [vmem:[%s5 + $0x688] sm:$0xff]
      %v720 = vld [vmem:[%s5 + $0x690] sm:$0xff]
      %v721 = vld [vmem:[%s5 + $0x698] sm:$0xff]
      %v722 = vld [vmem:[%s5 + $0x6a0] sm:$0xff]
      %v723 = vld [vmem:[%s5 + $0x6a8] sm:$0xff]
      %v724 = vld [vmem:[%s5 + $0x6b0] sm:$0xff]
      %v725 = vld [vmem:[%s5 + $0x6b8] sm:$0xff]
      %v726 = vld [vmem:[%s5 + $0x6c0] sm:$0xff]
      %v727 = vld [vmem:[%s5 + $0x6c8] sm:$0xff]
      %v728 = vld [vmem:[%s5 + $0x6d0] sm:$0xff]
      %v729 = vld [vmem:[%s5 + $0x6d8] sm:$0xff]
      %v730 = vld [vmem:[%s5 + $0x6e0] sm:$0xff]
      %v731 = vld [vmem:[%s5 + $0x6e8] sm:$0xff]
      %v732 = vld [vmem:[%s5 + $0x6f0] sm:$0xff]
      %v733 = vld [vmem:[%s5 + $0x6f8] sm:$0xff]
      %v734 = vld [vmem:[%s5 + $0x700] sm:$0xff]
      %v735 = vld [vmem:[%s5 + $0x708] sm:$0xff]
      %v736 = vld [vmem:[%s5 + $0x710] sm:$0xff]
      %v737 = vld [vmem:[%s5 + $0x718] sm:$0xff]
      %v738 = vld [vmem:[%s5 + $0x720] sm:$0xff]
      %v739 = vld [vmem:[%s5 + $0x728] sm:$0xff]
      %v740 = vld [vmem:[%s5 + $0x730] sm:$0xff]
      %v741 = vld [vmem:[%s5 + $0x738] sm:$0xff]
      %v742 = vld [vmem:[%s5 + $0x740] sm:$0xff]
      %v743 = vld [vmem:[%s5 + $0x748] sm:$0xff]
      %v744 = vld [vmem:[%s5 + $0x750] sm:$0xff]
      %v745 = vld [vmem:[%s5 + $0x758] sm:$0xff]
      %v746 = vld [vmem:[%s5 + $0x760] sm:$0xff]
      %v747 = vld [vmem:[%s5 + $0x768] sm:$0xff]
      %v748 = vld [vmem:[%s5 + $0x770] sm:$0xff]
      %v749 = vld [vmem:[%s5 + $0x778] sm:$0xff]
      %v750 = vld [vmem:[%s5 + $0x780] sm:$0xff]
      %v751 = vld [vmem:[%s5 + $0x788] sm:$0xff]
      %v752 = vld [vmem:[%s5 + $0x790] sm:$0xff]
      %v753 = vld [vmem:[%s5 + $0x798] sm:$0xff]
      %v754 = vld [vmem:[%s5 + $0x7a0] sm:$0xff]
      %v755 = vld [vmem:[%s5 + $0x7a8] sm:$0xff]
      %v756 = vld [vmem:[%s5 + $0x7b0] sm:$0xff]
      %v757 = vld [vmem:[%s5 + $0x7b8] sm:$0xff]
      %v758 = vld [vmem:[%s5 + $0x7c0] sm:$0xff]
      %v759 = vld [vmem:[%s5 + $0x7c8] sm:$0xff]
      %v760 = vld [vmem:[%s5 + $0x7d0] sm:$0xff]
      %v761 = vld [vmem:[%s5 + $0x7d8] sm:$0xff]
      %v762 = vld [vmem:[%s5 + $0x7e0] sm:$0xff]
      %v763 = vld [vmem:[%s5 + $0x7e8] sm:$0xff]
      %v764 = vld [vmem:[%s5 + $0x7f0] sm:$0xff]
      %v765 = vld [vmem:[%s5 + $0x7f8] sm:$0xff]
      %v766 = vld [vmem:[%s5 + $0x800] sm:$0xff]
      %v767 = vld [vmem:[%s5 + $0x808] sm:$0xff]
      %v768 = vld [vmem:[%s5 + $0x810] sm:$0xff]
      %v769 = vld [vmem:[%s5 + $0x818] sm:$0xff]
      %v770 = vld [vmem:[%s5 + $0x820] sm:$0xff]
      %v771 = vld [vmem:[%s5 + $0x828] sm:$0xff]
      %v772 = vld [vmem:[%s5 + $0x830] sm:$0xff]
      %v773 = vld [vmem:[%s5 + $0x838] sm:$0xff]
      %v774 = vld [vmem:[%s5 + $0x840] sm:$0xff]
      %v775 = vld [vmem:[%s5 + $0x848] sm:$0xff]
      %v776 = vld [vmem:[%s5 + $0x850] sm:$0xff]
      %v777 = vld [vmem:[%s5 + $0x858] sm:$0xff]
      %v778 = vld [vmem:[%s5 + $0x860] sm:$0xff]
      %v779 = vld [vmem:[%s5 + $0x868] sm:$0xff]
      %v780 = vld [vmem:[%s5 + $0x870] sm:$0xff]
      %v781 = vld [vmem:[%s5 + $0x878] sm:$0xff]
      %v782 = vld [vmem:[%s5 + $0x880] sm:$0xff]
      %v783 = vld [vmem:[%s5 + $0x888] sm:$0xff]
      %v784 = vld [vmem:[%s5 + $0x890] sm:$0xff]
      %v785 = vld [vmem:[%s5 + $0x898] sm:$0xff]
      %v786 = vld [vmem:[%s5 + $0x8a0] sm:$0xff]
      %v787 = vld [vmem:[%s5 + $0x8a8] sm:$0xff]
      %v788 = vld [vmem:[%s5 + $0x8b0] sm:$0xff]
      %v789 = vld [vmem:[%s5 + $0x8b8] sm:$0xff]
      %v790 = vld [vmem:[%s5 + $0x8c0] sm:$0xff]
      %v791 = vld [vmem:[%s5 + $0x8c8] sm:$0xff]
      %v792 = vld [vmem:[%s5 + $0x8d0] sm:$0xff]
      %v793 = vld [vmem:[%s5 + $0x8d8] sm:$0xff]
      %v794 = vld [vmem:[%s5 + $0x8e0] sm:$0xff]
      %v795 = vld [vmem:[%s5 + $0x8e8] sm:$0xff]
      %v796 = vld [vmem:[%s5 + $0x8f0] sm:$0xff]
      %v797 = vld [vmem:[%s5 + $0x8f8] sm:$0xff]
      %v798 = vld [vmem:[%s5 + $0x900] sm:$0xff]
      %v799 = vld [vmem:[%s5 + $0x908] sm:$0xff]
      %v800 = vld [vmem:[%s5 + $0x910] sm:$0xff]
      %v801 = vld [vmem:[%s5 + $0x918] sm:$0xff]
      %v802 = vld [vmem:[%s5 + $0x920] sm:$0xff]
      %v803 = vld [vmem:[%s5 + $0x928] sm:$0xff]
      %v804 = vld [vmem:[%s5 + $0x930] sm:$0xff]
      %v805 = vld [vmem:[%s5 + $0x938] sm:$0xff]
      %v806 = vld [vmem:[%s5 + $0x940] sm:$0xff]
      %v807 = vld [vmem:[%s5 + $0x948] sm:$0xff]
      %v808 = vld [vmem:[%s5 + $0x950] sm:$0xff]
      %v809 = vld [vmem:[%s5 + $0x958] sm:$0xff]
      %v810 = vld [vmem:[%s5 + $0x960] sm:$0xff]
      %v811 = vld [vmem:[%s5 + $0x968] sm:$0xff]
      %v812 = vld [vmem:[%s5 + $0x970] sm:$0xff]
      %v813 = vld [vmem:[%s5 + $0x978] sm:$0xff]
      %v814 = vld [vmem:[%s5 + $0x980] sm:$0xff]
      %v815 = vld [vmem:[%s5 + $0x988] sm:$0xff]
      %v816 = vld [vmem:[%s5 + $0x990] sm:$0xff]
      %v817 = vld [vmem:[%s5 + $0x998] sm:$0xff]
      %v818 = vld [vmem:[%s5 + $0x9a0] sm:$0xff]
      %v819 = vld [vmem:[%s5 + $0x9a8] sm:$0xff]
      %v820 = vld [vmem:[%s5 + $0x9b0] sm:$0xff]
      %v821 = vld [vmem:[%s5 + $0x9b8] sm:$0xff]
      %v822 = vld [vmem:[%s5 + $0x9c0] sm:$0xff]
      %v823 = vld [vmem:[%s5 + $0x9c8] sm:$0xff]
      %v824 = vld [vmem:[%s5 + $0x9d0] sm:$0xff]
      %v825 = vld [vmem:[%s5 + $0x9d8] sm:$0xff]
      %v826 = vld [vmem:[%s5 + $0x9e0] sm:$0xff]
      %v827 = vld [vmem:[%s5 + $0x9e8] sm:$0xff]
      %v828 = vld [vmem:[%s5 + $0x9f0] sm:$0xff]
      %v829 = vld [vmem:[%s5 + $0x9f8] sm:$0xff]
      %v830 = vld [vmem:[%s5 + $0xa00] sm:$0xff]
      %v831 = vld [vmem:[%s5 + $0xa08] sm:$0xff]
      %v832 = vld [vmem:[%s5 + $0xa10] sm:$0xff]
      %v833 = vld [vmem:[%s5 + $0xa18] sm:$0xff]
      %v834 = vld [vmem:[%s5 + $0xa20] sm:$0xff]
      %v835 = vld [vmem:[%s5 + $0xa28] sm:$0xff]
      %v836 = vld [vmem:[%s5 + $0xa30] sm:$0xff]
      %v837 = vld [vmem:[%s5 + $0xa38] sm:$0xff]
      %v838 = vld [vmem:[%s5 + $0xa40] sm:$0xff]
      %v839 = vld [vmem:[%s5 + $0xa48] sm:$0xff]
      %v840 = vld [vmem:[%s5 + $0xa50] sm:$0xff]
      %v841 = vld [vmem:[%s5 + $0xa58] sm:$0xff]
      %v842 = vld [vmem:[%s5 + $0xa60] sm:$0xff]
      %v843 = vld [vmem:[%s5 + $0xa68] sm:$0xff]
      %v844 = vld [vmem:[%s5 + $0xa70] sm:$0xff]
      %v845 = vld [vmem:[%s5 + $0xa78] sm:$0xff]
      %v846 = vld [vmem:[%s465] sm:$0xf]
      %v849 = vunpack.c.l.s4 1983009808
      %v850 = vunpack.c.0.s8 %v849
      %v851 = vlaneseq
      %v852 = vshrl.u32 %v851, 7
      %v853 = vsub.s32 %v850, %v852
      %v854 = vrot.slane %v846, %v853
      %v855 = vcombine.high %v854, %v854
      %vm858 = vcmask 1041408
      %v859 = vsel %vm858, %v854, 0.0
      %v860 = vsel %vm858, %v855, 0.0
      %v861 = vadd.f32 %v859, %v860
      %862 = vadd.xlane.f32.xlu0 %v861
      %v863 = vpop.xlane.xlu0 %862
      %v864 = vrcp.pop 256.0
      %v865 = vmul.f32 %v863, %v864
      %v868 = vunpack.c.l.s4 269488144
      %v869 = vunpack.c.0.s8 %v868
      %v870 = vlaneseq
      %v871 = vshrl.u32 %v870, 7
      %v872 = vsub.s32 %v869, %v871
      %v873 = vrot.slane %v865, %v872
      %v875 = vsub.f32 %v846, %v873
      %v876 = vmul.f32 %v875, %v875
      %v879 = vunpack.c.l.s4 1983009808
      %v880 = vunpack.c.0.s8 %v879
      %v881 = vlaneseq
      %v882 = vshrl.u32 %v881, 7
      %v883 = vsub.s32 %v880, %v882
      %v884 = vrot.slane %v876, %v883
      %v885 = vcombine.high %v884, %v884
      %v888 = vsel %vm858, %v884, 0.0
      %v889 = vsel %vm858, %v885, 0.0
      %v890 = vadd.f32 %v888, %v889
      %891 = vadd.xlane.f32.xlu0 %v890
      %v892 = vpop.xlane.xlu0 %891
      %v893 = vmul.f32 %v892, %v864
      %v894 = vadd.f32 %v893, 1e-05
      %v895 = vrsqrt.pop %v894
      %v898 = vunpack.c.l.s4 269488144
      %v899 = vunpack.c.0.s8 %v898
      %v900 = vlaneseq
      %v901 = vshrl.u32 %v900, 7
      %v902 = vsub.s32 %v899, %v901
      %v903 = vrot.slane %v895, %v902
      %v905 = vmul.f32 %v875, %v903
      %v907 = vlaneseq
      %v908 = vshrl.u32 %v907, 7
      %v909 = vsub.s32 0, %v908
      %v910 = vrot.slane %v495, %v909
      %v911 = vlaneseq
      %v912 = vshrl.u32 %v911, 7
      %v913 = vsub.s32 1, %v912
      %v914 = vrot.slane %v495, %v913
      %v915 = vcombine.low %v910, %v914
      %v917 = vunpack.c.l.s4 1983009808
      %v918 = vunpack.c.0.s8 %v917
      %v919 = vlaneseq
      %v920 = vshrl.u32 %v919, 7
      %v921 = vsub.s32 %v918, %v920
      %v922 = vrot.slane %v915, %v921
      %v924 = vmul.f32 %v905, %v922
      %v926 = vlaneseq
      %v927 = vshrl.u32 %v926, 7
      %v928 = vsub.s32 0, %v927
      %v929 = vrot.slane %v497, %v928
      %v930 = vlaneseq
      %v931 = vshrl.u32 %v930, 7
      %v932 = vsub.s32 1, %v931
      %v933 = vrot.slane %v497, %v932
      %v934 = vcombine.low %v929, %v933
      %v936 = vunpack.c.l.s4 1983009808
      %v937 = vunpack.c.0.s8 %v936
      %v938 = vlaneseq
      %v939 = vshrl.u32 %v938, 7
      %v940 = vsub.s32 %v937, %v939
      %v941 = vrot.slane %v934, %v940
      %v943 = vadd.f32 %v924, %v941
      %v944 = vsel %vm858, %v493, 0.0
      %945 = vadd.xlane.f32.xlu0 %v944
      %v946 = vpop.xlane.xlu0 %945
      %v947 = vrcp.pop 128.0
      %v948 = vmul.f32 %v946, %v947
      %v949 = vsub.f32 %v493, %v948
      %v950 = vmul.f32 %v949, %v949
      %v951 = vsel %vm858, %v950, 0.0
      %952 = vadd.xlane.f32.xlu0 %v951
      %v953 = vpop.xlane.xlu0 %952
      %v954 = vmul.f32 %v953, %v947
      %v955 = vadd.f32 %v954, 1e-05
      %v956 = vrsqrt.pop %v955
      %v957 = vmul.f32 %v949, %v956
      %v958 = vmul.f32 %v957, %v498
      %v959 = vadd.f32 %v958, %v499
      %v962 = vunpack.c.l.s4 1983009808
      %v963 = vunpack.c.0.s8 %v962
      %v964 = vlaneseq
      %v965 = vshrl.u32 %v964, 7
      %v966 = vsub.s32 %v963, %v965
      %v967 = vrot.slane %v943, %v966
      %v968 = vcombine.high %v967, %v967
      %v972 = vlaneseq
      %v973 = vshrl.u32 %v972, 7
      %v974 = vsub.s32 0, %v973
      %v975 = vrot.slane %v501, %v974
      %v976 = vlaneseq
      %v977 = vshrl.u32 %v976, 7
      %v978 = vsub.s32 1, %v977
      %v979 = vrot.slane %v501, %v978
      %v980 = vlaneseq
      %v981 = vshrl.u32 %v980, 7
      %v982 = vsub.s32 2, %v981
      %v983 = vrot.slane %v501, %v982
      %987 = vmatprep.subr.mxu0 %v556
      %988 = vmatpush1.msra.mxu0 %v555
      %989 = vmatprep.subr.mxu0 %v553
      %990 = vmatpush1.msra.mxu0 %v552
      %991 = vmatprep.subr.mxu0 %v550
      %992 = vmatpush1.msra.mxu0 %v549
      %993 = vmatprep.subr.mxu0 %v547
      %994 = vmatpush1.msra.mxu0 %v546
      %995 = vmatprep.subr.mxu0 %v544
      %996 = vmatpush1.msra.mxu0 %v543
      %997 = vmatprep.subr.mxu0 %v541
      %998 = vmatpush1.msra.mxu0 %v540
      %999 = vmatprep.subr.mxu0 %v538
      %1000 = vmatpush1.msra.mxu0 %v537
      %1001 = vmatprep.subr.mxu0 %v535
      %1002 = vmatpush1.msra.mxu0 %v534
      %1003 = vmatprep.subr.mxu0 %v532
      %1004 = vmatpush1.msra.mxu0 %v531
      %1005 = vmatprep.subr.mxu0 %v529
      %1006 = vmatpush1.msra.mxu0 %v528
      %1007 = vmatprep.subr.mxu0 %v526
      %1008 = vmatpush1.msra.mxu0 %v525
      %1009 = vmatprep.subr.mxu0 %v523
      %1010 = vmatpush1.msra.mxu0 %v522
      %1011 = vmatprep.subr.mxu0 %v520
      %1012 = vmatpush1.msra.mxu0 %v519
      %1013 = vmatprep.subr.mxu0 %v517
      %1014 = vmatpush1.msra.mxu0 %v516
      %1015 = vmatprep.subr.mxu0 %v514
      %1016 = vmatpush1.msra.mxu0 %v513
      %1017 = vmatprep.subr.mxu0 %v511
      %1018 = vmatpush1.msra.mxu0 %v510
      %1019 = vmatprep.subr.mxu0 %v604
      %1020 = vmatpush2.msra.mxu0 %v603
      %1021 = vmatprep.subr.mxu0 %v601
      %1022 = vmatpush2.msra.mxu0 %v600
      %1023 = vmatprep.subr.mxu0 %v598
      %1024 = vmatpush2.msra.mxu0 %v597
      %1025 = vmatprep.subr.mxu0 %v595
      %1026 = vmatpush2.msra.mxu0 %v594
      %1027 = vmatprep.subr.mxu0 %v592
      %1028 = vmatpush2.msra.mxu0 %v591
      %1029 = vmatprep.subr.mxu0 %v589
      %1030 = vmatpush2.msra.mxu0 %v588
      %1031 = vmatprep.subr.mxu0 %v586
      %1032 = vmatpush2.msra.mxu0 %v585
      %1033 = vmatprep.subr.mxu0 %v583
      %1034 = vmatpush2.msra.mxu0 %v582
      %1035 = vmatprep.subr.mxu0 %v580
      %1036 = vmatpush2.msra.mxu0 %v579
      %1037 = vmatprep.subr.mxu0 %v577
      %1038 = vmatpush2.msra.mxu0 %v576
      %1039 = vmatprep.subr.mxu0 %v574
      %1040 = vmatpush2.msra.mxu0 %v573
      %1041 = vmatprep.subr.mxu0 %v571
      %1042 = vmatpush2.msra.mxu0 %v570
      %1043 = vmatprep.subr.mxu0 %v568
      %1044 = vmatpush2.msra.mxu0 %v567
      %1045 = vmatprep.subr.mxu0 %v565
      %1046 = vmatpush2.msra.mxu0 %v564
      %1047 = vmatprep.subr.mxu0 %v562
      %1048 = vmatpush2.msra.mxu0 %v561
      %1049 = vmatprep.subr.mxu0 %v559
      %1050 = vmatpush2.msra.mxu0 %v558
      %1051 = vmatprep.mubr.f32.mxu0 %v968
      %1052 = vmatmul.mubr.f32.gmra.mxu0 %v967
      %v1053 = vpop.f32.mrf.mxu0
      %v1054 = vadd.f32 %v975, %v1053
      %v1055 = vpop.f32.mrf.mxu0
      %v1056 = vadd.f32 %v979, %v1055
      %1057 = vdwg.mxu0
      %1058 = vmatprep.subr.mxu0 %v652
      %1059 = vmatpush1.msra.mxu0 %v651
      %1060 = vmatprep.subr.mxu0 %v649
      %1061 = vmatpush1.msra.mxu0 %v648
      %1062 = vmatprep.subr.mxu0 %v646
      %1063 = vmatpush1.msra.mxu0 %v645
      %1064 = vmatprep.subr.mxu0 %v643
      %1065 = vmatpush1.msra.mxu0 %v642
      %1066 = vmatprep.subr.mxu0 %v640
      %1067 = vmatpush1.msra.mxu0 %v639
      %1068 = vmatprep.subr.mxu0 %v637
      %1069 = vmatpush1.msra.mxu0 %v636
      %1070 = vmatprep.subr.mxu0 %v634
      %1071 = vmatpush1.msra.mxu0 %v633
      %1072 = vmatprep.subr.mxu0 %v631
      %1073 = vmatpush1.msra.mxu0 %v630
      %1074 = vmatprep.subr.mxu0 %v628
      %1075 = vmatpush1.msra.mxu0 %v627
      %1076 = vmatprep.subr.mxu0 %v625
      %1077 = vmatpush1.msra.mxu0 %v624
      %1078 = vmatprep.subr.mxu0 %v622
      %1079 = vmatpush1.msra.mxu0 %v621
      %1080 = vmatprep.subr.mxu0 %v619
      %1081 = vmatpush1.msra.mxu0 %v618
      %1082 = vmatprep.subr.mxu0 %v616
      %1083 = vmatpush1.msra.mxu0 %v615
      %1084 = vmatprep.subr.mxu0 %v613
      %1085 = vmatpush1.msra.mxu0 %v612
      %1086 = vmatprep.subr.mxu0 %v610
      %1087 = vmatpush1.msra.mxu0 %v609
      %1088 = vmatprep.subr.mxu0 %v607
      %1089 = vmatpush1.msra.mxu0 %v606
      %1090 = vmatprep.subr.mxu0 0.0
      %1091 = vmatpush2.msra.mxu0 0.0
      %1092 = vmatprep.subr.mxu0 0.0
      %1093 = vmatpush2.msra.mxu0 0.0
      %1094 = vmatprep.subr.mxu0 0.0
      %1095 = vmatpush2.msra.mxu0 0.0
      %1096 = vmatprep.subr.mxu0 0.0
      %1097 = vmatpush2.msra.mxu0 0.0
      %1098 = vmatprep.subr.mxu0 0.0
      %1099 = vmatpush2.msra.mxu0 0.0
      %1100 = vmatprep.subr.mxu0 0.0
      %1101 = vmatpush2.msra.mxu0 0.0
      %1102 = vmatprep.subr.mxu0 0.0
      %1103 = vmatpush2.msra.mxu0 0.0
      %1104 = vmatprep.subr.mxu0 0.0
      %1105 = vmatpush2.msra.mxu0 0.0
      %1106 = vmatprep.subr.mxu0 0.0
      %1107 = vmatpush2.msra.mxu0 0.0
      %1108 = vmatprep.subr.mxu0 0.0
      %1109 = vmatpush2.msra.mxu0 0.0
      %1110 = vmatprep.subr.mxu0 0.0
      %1111 = vmatpush2.msra.mxu0 0.0
      %1112 = vmatprep.subr.mxu0 0.0
      %1113 = vmatpush2.msra.mxu0 0.0
      %1114 = vmatprep.subr.mxu0 0.0
      %1115 = vmatpush2.msra.mxu0 0.0
      %1116 = vmatprep.subr.mxu0 0.0
      %1117 = vmatpush2.msra.mxu0 0.0
      %1118 = vmatprep.subr.mxu0 0.0
      %1119 = vmatpush2.msra.mxu0 0.0
      %1120 = vmatprep.subr.mxu0 0.0
      %1121 = vmatpush2.msra.mxu0 0.0
      %1122 = vmatprep.mubr.f32.mxu0 0.0
      %1123 = vmatmul.mubr.f32.gmra.mxu0 %v959
      %v1124 = vpop.f32.mrf.mxu0
      %v1125 = vadd.f32 %v1054, %v1124
      %v1126 = vpop.f32.mrf.mxu0
      %v1127 = vadd.f32 %v1056, %v1126
      %1128 = vdwg.mxu0
      %1129 = vmatprep.subr.mxu0 0.0
      %1130 = vmatpush1.msra.mxu0 %v557
      %1131 = vmatprep.subr.mxu0 0.0
      %1132 = vmatpush1.msra.mxu0 %v554
      %1133 = vmatprep.subr.mxu0 0.0
      %1134 = vmatpush1.msra.mxu0 %v551
      %1135 = vmatprep.subr.mxu0 0.0
      %1136 = vmatpush1.msra.mxu0 %v548
      %1137 = vmatprep.subr.mxu0 0.0
      %1138 = vmatpush1.msra.mxu0 %v545
      %1139 = vmatprep.subr.mxu0 0.0
      %1140 = vmatpush1.msra.mxu0 %v542
      %1141 = vmatprep.subr.mxu0 0.0
      %1142 = vmatpush1.msra.mxu0 %v539
      %1143 = vmatprep.subr.mxu0 0.0
      %1144 = vmatpush1.msra.mxu0 %v536
      %1145 = vmatprep.subr.mxu0 0.0
      %1146 = vmatpush1.msra.mxu0 %v533
      %1147 = vmatprep.subr.mxu0 0.0
      %1148 = vmatpush1.msra.mxu0 %v530
      %1149 = vmatprep.subr.mxu0 0.0
      %1150 = vmatpush1.msra.mxu0 %v527
      %1151 = vmatprep.subr.mxu0 0.0
      %1152 = vmatpush1.msra.mxu0 %v524
      %1153 = vmatprep.subr.mxu0 0.0
      %1154 = vmatpush1.msra.mxu0 %v521
      %1155 = vmatprep.subr.mxu0 0.0
      %1156 = vmatpush1.msra.mxu0 %v518
      %1157 = vmatprep.subr.mxu0 0.0
      %1158 = vmatpush1.msra.mxu0 %v515
      %1159 = vmatprep.subr.mxu0 0.0
      %1160 = vmatpush1.msra.mxu0 %v512
      %1161 = vmatprep.subr.mxu0 0.0
      %1162 = vmatpush2.msra.mxu0 %v605
      %1163 = vmatprep.subr.mxu0 0.0
      %1164 = vmatpush2.msra.mxu0 %v602
      %1165 = vmatprep.subr.mxu0 0.0
      %1166 = vmatpush2.msra.mxu0 %v599
      %1167 = vmatprep.subr.mxu0 0.0
      %1168 = vmatpush2.msra.mxu0 %v596
      %1169 = vmatprep.subr.mxu0 0.0
      %1170 = vmatpush2.msra.mxu0 %v593
      %1171 = vmatprep.subr.mxu0 0.0
      %1172 = vmatpush2.msra.mxu0 %v590
      %1173 = vmatprep.subr.mxu0 0.0
      %1174 = vmatpush2.msra.mxu0 %v587
      %1175 = vmatprep.subr.mxu0 0.0
      %1176 = vmatpush2.msra.mxu0 %v584
      %1177 = vmatprep.subr.mxu0 0.0
      %1178 = vmatpush2.msra.mxu0 %v581
      %1179 = vmatprep.subr.mxu0 0.0
      %1180 = vmatpush2.msra.mxu0 %v578
      %1181 = vmatprep.subr.mxu0 0.0
      %1182 = vmatpush2.msra.mxu0 %v575
      %1183 = vmatprep.subr.mxu0 0.0
      %1184 = vmatpush2.msra.mxu0 %v572
      %1185 = vmatprep.subr.mxu0 0.0
      %1186 = vmatpush2.msra.mxu0 %v569
      %1187 = vmatprep.subr.mxu0 0.0
      %1188 = vmatpush2.msra.mxu0 %v566
      %1189 = vmatprep.subr.mxu0 0.0
      %1190 = vmatpush2.msra.mxu0 %v563
      %1191 = vmatprep.subr.mxu0 0.0
      %1192 = vmatpush2.msra.mxu0 %v560
      %1193 = vmatprep.mubr.f32.mxu0 %v968
      %1194 = vmatmul.mubr.f32.gmra.mxu0 %v967
      %v1195 = vpop.f32.mrf.mxu0
      %v1196 = vadd.f32 %v983, %v1195
      %v1197 = vpop.f32.mrf.mxu0
      %1198 = vdwg.mxu0
      %1199 = vmatprep.subr.mxu0 0.0
      %1200 = vmatpush1.msra.mxu0 %v653
      %1201 = vmatprep.subr.mxu0 0.0
      %1202 = vmatpush1.msra.mxu0 %v650
      %1203 = vmatprep.subr.mxu0 0.0
      %1204 = vmatpush1.msra.mxu0 %v647
      %1205 = vmatprep.subr.mxu0 0.0
      %1206 = vmatpush1.msra.mxu0 %v644
      %1207 = vmatprep.subr.mxu0 0.0
      %1208 = vmatpush1.msra.mxu0 %v641
      %1209 = vmatprep.subr.mxu0 0.0
      %1210 = vmatpush1.msra.mxu0 %v638
      %1211 = vmatprep.subr.mxu0 0.0
      %1212 = vmatpush1.msra.mxu0 %v635
      %1213 = vmatprep.subr.mxu0 0.0
      %1214 = vmatpush1.msra.mxu0 %v632
      %1215 = vmatprep.subr.mxu0 0.0
      %1216 = vmatpush1.msra.mxu0 %v629
      %1217 = vmatprep.subr.mxu0 0.0
      %1218 = vmatpush1.msra.mxu0 %v626
      %1219 = vmatprep.subr.mxu0 0.0
      %1220 = vmatpush1.msra.mxu0 %v623
      %1221 = vmatprep.subr.mxu0 0.0
      %1222 = vmatpush1.msra.mxu0 %v620
      %1223 = vmatprep.subr.mxu0 0.0
      %1224 = vmatpush1.msra.mxu0 %v617
      %1225 = vmatprep.subr.mxu0 0.0
      %1226 = vmatpush1.msra.mxu0 %v614
      %1227 = vmatprep.subr.mxu0 0.0
      %1228 = vmatpush1.msra.mxu0 %v611
      %1229 = vmatprep.subr.mxu0 0.0
      %1230 = vmatpush1.msra.mxu0 %v608
      %1231 = vmatprep.subr.mxu0 0.0
      %1232 = vmatpush2.msra.mxu0 0.0
      %1233 = vmatprep.subr.mxu0 0.0
      %1234 = vmatpush2.msra.mxu0 0.0
      %1235 = vmatprep.subr.mxu0 0.0
      %1236 = vmatpush2.msra.mxu0 0.0
      %1237 = vmatprep.subr.mxu0 0.0
      %1238 = vmatpush2.msra.mxu0 0.0
      %1239 = vmatprep.subr.mxu0 0.0
      %1240 = vmatpush2.msra.mxu0 0.0
      %1241 = vmatprep.subr.mxu0 0.0
      %1242 = vmatpush2.msra.mxu0 0.0
      %1243 = vmatprep.subr.mxu0 0.0
      %1244 = vmatpush2.msra.mxu0 0.0
      %1245 = vmatprep.subr.mxu0 0.0
      %1246 = vmatpush2.msra.mxu0 0.0
      %1247 = vmatprep.subr.mxu0 0.0
      %1248 = vmatpush2.msra.mxu0 0.0
      %1249 = vmatprep.subr.mxu0 0.0
      %1250 = vmatpush2.msra.mxu0 0.0
      %1251 = vmatprep.subr.mxu0 0.0
      %1252 = vmatpush2.msra.mxu0 0.0
      %1253 = vmatprep.subr.mxu0 0.0
      %1254 = vmatpush2.msra.mxu0 0.0
      %1255 = vmatprep.subr.mxu0 0.0
      %1256 = vmatpush2.msra.mxu0 0.0
      %1257 = vmatprep.subr.mxu0 0.0
      %1258 = vmatpush2.msra.mxu0 0.0
      %1259 = vmatprep.subr.mxu0 0.0
      %1260 = vmatpush2.msra.mxu0 0.0
      %1261 = vmatprep.subr.mxu0 0.0
      %1262 = vmatpush2.msra.mxu0 0.0
      %1263 = vmatprep.mubr.f32.mxu0 0.0
      %1264 = vmatmul.mubr.f32.gmra.mxu0 %v959
      %v1265 = vpop.f32.mrf.mxu0
      %v1266 = vadd.f32 %v1196, %v1265
      %v1267 = vpop.f32.mrf.mxu0
      %1268 = vdwg.mxu0
      %v1270 = vlaneseq
      %v1271 = vshrl.u32 %v1270, 7
      %v1272 = vsub.s32 0, %v1271
      %v1273 = vrot.slane %v503, %v1272
      %v1274 = vlaneseq
      %v1275 = vshrl.u32 %v1274, 7
      %v1276 = vsub.s32 1, %v1275
      %v1277 = vrot.slane %v503, %v1276
      %v1278 = vlaneseq
      %v1279 = vshrl.u32 %v1278, 7
      %v1280 = vsub.s32 2, %v1279
      %v1281 = vrot.slane %v503, %v1280
      %1285 = vmatprep.subr.mxu0 %v700
      %1286 = vmatpush1.msra.mxu0 %v699
      %1287 = vmatprep.subr.mxu0 %v697
      %1288 = vmatpush1.msra.mxu0 %v696
      %1289 = vmatprep.subr.mxu0 %v694
      %1290 = vmatpush1.msra.mxu0 %v693
      %1291 = vmatprep.subr.mxu0 %v691
      %1292 = vmatpush1.msra.mxu0 %v690
      %1293 = vmatprep.subr.mxu0 %v688
      %1294 = vmatpush1.msra.mxu0 %v687
      %1295 = vmatprep.subr.mxu0 %v685
      %1296 = vmatpush1.msra.mxu0 %v684
      %1297 = vmatprep.subr.mxu0 %v682
      %1298 = vmatpush1.msra.mxu0 %v681
      %1299 = vmatprep.subr.mxu0 %v679
      %1300 = vmatpush1.msra.mxu0 %v678
      %1301 = vmatprep.subr.mxu0 %v676
      %1302 = vmatpush1.msra.mxu0 %v675
      %1303 = vmatprep.subr.mxu0 %v673
      %1304 = vmatpush1.msra.mxu0 %v672
      %1305 = vmatprep.subr.mxu0 %v670
      %1306 = vmatpush1.msra.mxu0 %v669
      %1307 = vmatprep.subr.mxu0 %v667
      %1308 = vmatpush1.msra.mxu0 %v666
      %1309 = vmatprep.subr.mxu0 %v664
      %1310 = vmatpush1.msra.mxu0 %v663
      %1311 = vmatprep.subr.mxu0 %v661
      %1312 = vmatpush1.msra.mxu0 %v660
      %1313 = vmatprep.subr.mxu0 %v658
      %1314 = vmatpush1.msra.mxu0 %v657
      %1315 = vmatprep.subr.mxu0 %v655
      %1316 = vmatpush1.msra.mxu0 %v654
      %1317 = vmatprep.subr.mxu0 0.0
      %1318 = vmatpush2.msra.mxu0 0.0
      %1319 = vmatprep.subr.mxu0 0.0
      %1320 = vmatpush2.msra.mxu0 0.0
      %1321 = vmatprep.subr.mxu0 0.0
      %1322 = vmatpush2.msra.mxu0 0.0
      %1323 = vmatprep.subr.mxu0 0.0
      %1324 = vmatpush2.msra.mxu0 0.0
      %1325 = vmatprep.subr.mxu0 0.0
      %1326 = vmatpush2.msra.mxu0 0.0
      %1327 = vmatprep.subr.mxu0 0.0
      %1328 = vmatpush2.msra.mxu0 0.0
      %1329 = vmatprep.subr.mxu0 0.0
      %1330 = vmatpush2.msra.mxu0 0.0
      %1331 = vmatprep.subr.mxu0 0.0
      %1332 = vmatpush2.msra.mxu0 0.0
      %1333 = vmatprep.subr.mxu0 0.0
      %1334 = vmatpush2.msra.mxu0 0.0
      %1335 = vmatprep.subr.mxu0 0.0
      %1336 = vmatpush2.msra.mxu0 0.0
      %1337 = vmatprep.subr.mxu0 0.0
      %1338 = vmatpush2.msra.mxu0 0.0
      %1339 = vmatprep.subr.mxu0 0.0
      %1340 = vmatpush2.msra.mxu0 0.0
      %1341 = vmatprep.subr.mxu0 0.0
      %1342 = vmatpush2.msra.mxu0 0.0
      %1343 = vmatprep.subr.mxu0 0.0
      %1344 = vmatpush2.msra.mxu0 0.0
      %1345 = vmatprep.subr.mxu0 0.0
      %1346 = vmatpush2.msra.mxu0 0.0
      %1347 = vmatprep.subr.mxu0 0.0
      %1348 = vmatpush2.msra.mxu0 0.0
      %1349 = vmatprep.mubr.f32.mxu0 0.0
      %1350 = vmatmul.mubr.f32.gmra.mxu0 %v494
      %v1351 = vpop.f32.mrf.mxu0
      %v1352 = vadd.f32 %v1273, %v1351
      %v1353 = vpop.f32.mrf.mxu0
      %v1354 = vadd.f32 %v1277, %v1353
      %1355 = vdwg.mxu0
      %1356 = vmatprep.subr.mxu0 0.0
      %1357 = vmatpush1.msra.mxu0 %v701
      %1358 = vmatprep.subr.mxu0 0.0
      %1359 = vmatpush1.msra.mxu0 %v698
      %1360 = vmatprep.subr.mxu0 0.0
      %1361 = vmatpush1.msra.mxu0 %v695
      %1362 = vmatprep.subr.mxu0 0.0
      %1363 = vmatpush1.msra.mxu0 %v692
      %1364 = vmatprep.subr.mxu0 0.0
      %1365 = vmatpush1.msra.mxu0 %v689
      %1366 = vmatprep.subr.mxu0 0.0
      %1367 = vmatpush1.msra.mxu0 %v686
      %1368 = vmatprep.subr.mxu0 0.0
      %1369 = vmatpush1.msra.mxu0 %v683
      %1370 = vmatprep.subr.mxu0 0.0
      %1371 = vmatpush1.msra.mxu0 %v680
      %1372 = vmatprep.subr.mxu0 0.0
      %1373 = vmatpush1.msra.mxu0 %v677
      %1374 = vmatprep.subr.mxu0 0.0
      %1375 = vmatpush1.msra.mxu0 %v674
      %1376 = vmatprep.subr.mxu0 0.0
      %1377 = vmatpush1.msra.mxu0 %v671
      %1378 = vmatprep.subr.mxu0 0.0
      %1379 = vmatpush1.msra.mxu0 %v668
      %1380 = vmatprep.subr.mxu0 0.0
      %1381 = vmatpush1.msra.mxu0 %v665
      %1382 = vmatprep.subr.mxu0 0.0
      %1383 = vmatpush1.msra.mxu0 %v662
      %1384 = vmatprep.subr.mxu0 0.0
      %1385 = vmatpush1.msra.mxu0 %v659
      %1386 = vmatprep.subr.mxu0 0.0
      %1387 = vmatpush1.msra.mxu0 %v656
      %1388 = vmatprep.subr.mxu0 0.0
      %1389 = vmatpush2.msra.mxu0 0.0
      %1390 = vmatprep.subr.mxu0 0.0
      %1391 = vmatpush2.msra.mxu0 0.0
      %1392 = vmatprep.subr.mxu0 0.0
      %1393 = vmatpush2.msra.mxu0 0.0
      %1394 = vmatprep.subr.mxu0 0.0
      %1395 = vmatpush2.msra.mxu0 0.0
      %1396 = vmatprep.subr.mxu0 0.0
      %1397 = vmatpush2.msra.mxu0 0.0
      %1398 = vmatprep.subr.mxu0 0.0
      %1399 = vmatpush2.msra.mxu0 0.0
      %1400 = vmatprep.subr.mxu0 0.0
      %1401 = vmatpush2.msra.mxu0 0.0
      %1402 = vmatprep.subr.mxu0 0.0
      %1403 = vmatpush2.msra.mxu0 0.0
      %1404 = vmatprep.subr.mxu0 0.0
      %1405 = vmatpush2.msra.mxu0 0.0
      %1406 = vmatprep.subr.mxu0 0.0
      %1407 = vmatpush2.msra.mxu0 0.0
      %1408 = vmatprep.subr.mxu0 0.0
      %1409 = vmatpush2.msra.mxu0 0.0
      %1410 = vmatprep.subr.mxu0 0.0
      %1411 = vmatpush2.msra.mxu0 0.0
      %1412 = vmatprep.subr.mxu0 0.0
      %1413 = vmatpush2.msra.mxu0 0.0
      %1414 = vmatprep.subr.mxu0 0.0
      %1415 = vmatpush2.msra.mxu0 0.0
      %1416 = vmatprep.subr.mxu0 0.0
      %1417 = vmatpush2.msra.mxu0 0.0
      %1418 = vmatprep.subr.mxu0 0.0
      %1419 = vmatpush2.msra.mxu0 0.0
      %1420 = vmatprep.mubr.f32.mxu0 0.0
      %1421 = vmatmul.mubr.f32.gmra.mxu0 %v494
      %v1422 = vpop.f32.mrf.mxu0
      %v1423 = vadd.f32 %v1281, %v1422
      %v1424 = vpop.f32.mrf.mxu0
      %1425 = vdwg.mxu0
      %v1426 = vadd.f32 %v1125, %v1352
      %v1427 = vsub.f32 0.0, %v1426
      %v1428 = vmul.f32 %v1427, 1.442695
      %v1429 = vpow.pop %v1428
      %v1430 = vadd.f32 %v1429, 1.0
      %v1431 = vrcp.pop %v1430
      %v1432 = vmul.f32 1.0, %v1431
      %v1433 = vadd.f32 %v1127, %v1354
      %v1434 = vsub.f32 0.0, %v1433
      %v1435 = vmul.f32 %v1434, 1.442695
      %v1436 = vpow.pop %v1435
      %v1437 = vadd.f32 %v1436, 1.0
      %v1438 = vrcp.pop %v1437
      %v1439 = vmul.f32 1.0, %v1438
      %v1440 = vmul.f32 %v1432, %v1423
      %v1441 = vadd.f32 %v1266, %v1440
      %v1442 = vtanh.pop %v1441
      %v1443 = vsub.f32 1.0, %v1439
      %v1444 = vmul.f32 %v1443, %v1442
      %v1445 = vmul.f32 %v1439, %v494
      %v1446 = vadd.f32 %v1444, %v1445
      %1447 = vst [vmem:[#allocation3] sm:$0x3] %v1446
      %v1448 = vld [vmem:[%s6] sm:$0xff]
      %v1449 = vld [vmem:[%s6 + $0x8] sm:$0xff]
      %v1450 = vld [vmem:[%s6 + $0x10] sm:$0xff]
      %v1451 = vld [vmem:[%s6 + $0x18] sm:$0xff]
      %v1452 = vld [vmem:[%s6 + $0x20] sm:$0xff]
      %v1453 = vld [vmem:[%s6 + $0x28] sm:$0xff]
      %v1454 = vld [vmem:[%s6 + $0x30] sm:$0xff]
      %v1455 = vld [vmem:[%s6 + $0x38] sm:$0xff]
      %v1456 = vld [vmem:[%s6 + $0x40] sm:$0xff]
      %v1457 = vld [vmem:[%s6 + $0x48] sm:$0xff]
      %v1458 = vld [vmem:[%s6 + $0x50] sm:$0xff]
      %v1459 = vld [vmem:[%s6 + $0x58] sm:$0xff]
      %v1460 = vld [vmem:[%s6 + $0x60] sm:$0xff]
      %v1461 = vld [vmem:[%s6 + $0x68] sm:$0xff]
      %v1462 = vld [vmem:[%s6 + $0x70] sm:$0xff]
      %v1463 = vld [vmem:[%s6 + $0x78] sm:$0xff]
      %1464 = vmatprep.subr.mxu0 0.0
      %1465 = vmatpush1.msra.mxu0 %v1463
      %1466 = vmatprep.subr.mxu0 0.0
      %1467 = vmatpush1.msra.mxu0 %v1462
      %1468 = vmatprep.subr.mxu0 0.0
      %1469 = vmatpush1.msra.mxu0 %v1461
      %1470 = vmatprep.subr.mxu0 0.0
      %1471 = vmatpush1.msra.mxu0 %v1460
      %1472 = vmatprep.subr.mxu0 0.0
      %1473 = vmatpush1.msra.mxu0 %v1459
      %1474 = vmatprep.subr.mxu0 0.0
      %1475 = vmatpush1.msra.mxu0 %v1458
      %1476 = vmatprep.subr.mxu0 0.0
      %1477 = vmatpush1.msra.mxu0 %v1457
      %1478 = vmatprep.subr.mxu0 0.0
      %1479 = vmatpush1.msra.mxu0 %v1456
      %1480 = vmatprep.subr.mxu0 0.0
      %1481 = vmatpush1.msra.mxu0 %v1455
      %1482 = vmatprep.subr.mxu0 0.0
      %1483 = vmatpush1.msra.mxu0 %v1454
      %1484 = vmatprep.subr.mxu0 0.0
      %1485 = vmatpush1.msra.mxu0 %v1453
      %1486 = vmatprep.subr.mxu0 0.0
      %1487 = vmatpush1.msra.mxu0 %v1452
      %1488 = vmatprep.subr.mxu0 0.0
      %1489 = vmatpush1.msra.mxu0 %v1451
      %1490 = vmatprep.subr.mxu0 0.0
      %1491 = vmatpush1.msra.mxu0 %v1450
      %1492 = vmatprep.subr.mxu0 0.0
      %1493 = vmatpush1.msra.mxu0 %v1449
      %1494 = vmatprep.subr.mxu0 0.0
      %1495 = vmatpush1.msra.mxu0 %v1448
      %1496 = vmatprep.subr.mxu0 0.0
      %1497 = vmatpush2.msra.mxu0 0.0
      %1498 = vmatprep.subr.mxu0 0.0
      %1499 = vmatpush2.msra.mxu0 0.0
      %1500 = vmatprep.subr.mxu0 0.0
      %1501 = vmatpush2.msra.mxu0 0.0
      %1502 = vmatprep.subr.mxu0 0.0
      %1503 = vmatpush2.msra.mxu0 0.0
      %1504 = vmatprep.subr.mxu0 0.0
      %1505 = vmatpush2.msra.mxu0 0.0
      %1506 = vmatprep.subr.mxu0 0.0
      %1507 = vmatpush2.msra.mxu0 0.0
      %1508 = vmatprep.subr.mxu0 0.0
      %1509 = vmatpush2.msra.mxu0 0.0
      %1510 = vmatprep.subr.mxu0 0.0
      %1511 = vmatpush2.msra.mxu0 0.0
      %1512 = vmatprep.subr.mxu0 0.0
      %1513 = vmatpush2.msra.mxu0 0.0
      %1514 = vmatprep.subr.mxu0 0.0
      %1515 = vmatpush2.msra.mxu0 0.0
      %1516 = vmatprep.subr.mxu0 0.0
      %1517 = vmatpush2.msra.mxu0 0.0
      %1518 = vmatprep.subr.mxu0 0.0
      %1519 = vmatpush2.msra.mxu0 0.0
      %1520 = vmatprep.subr.mxu0 0.0
      %1521 = vmatpush2.msra.mxu0 0.0
      %1522 = vmatprep.subr.mxu0 0.0
      %1523 = vmatpush2.msra.mxu0 0.0
      %1524 = vmatprep.subr.mxu0 0.0
      %1525 = vmatpush2.msra.mxu0 0.0
      %1526 = vmatprep.subr.mxu0 0.0
      %1527 = vmatpush2.msra.mxu0 0.0
      %1528 = vmatprep.mubr.f32.mxu0 0.0
      %1529 = vmatmul.mubr.f32.gmra.mxu0 %v1446
      %v1530 = vpop.f32.mrf.mxu0
      %v1531 = vadd.f32 %v504, %v1530
      %v1532 = vpop.f32.mrf.mxu0
      %1533 = vdwg.mxu0
      %v1534 = vld [vmem:[%s455] sm:$0xff]
      %v1535 = vld [vmem:[%s455 + $0x8] sm:$0xff]
      %v1536 = vld [vmem:[%s455 + $0x10] sm:$0xff]
      %v1537 = vld [vmem:[%s455 + $0x18] sm:$0xff]
      %v1538 = vld [vmem:[%s455 + $0x20] sm:$0xff]
      %v1539 = vld [vmem:[%s455 + $0x28] sm:$0xff]
      %v1540 = vld [vmem:[%s455 + $0x30] sm:$0xff]
      %v1541 = vld [vmem:[%s455 + $0x38] sm:$0xff]
      %v1542 = vld [vmem:[%s455 + $0x40] sm:$0xff]
      %v1543 = vld [vmem:[%s455 + $0x48] sm:$0xff]
      %v1544 = vld [vmem:[%s455 + $0x50] sm:$0xff]
      %v1545 = vld [vmem:[%s455 + $0x58] sm:$0xff]
      %v1546 = vld [vmem:[%s455 + $0x60] sm:$0xff]
      %v1547 = vld [vmem:[%s455 + $0x68] sm:$0xff]
      %v1548 = vld [vmem:[%s455 + $0x70] sm:$0xff]
      %v1549 = vld [vmem:[%s455 + $0x78] sm:$0xff]
      %v1552 = vunpack.c.l.s4 1966171168
      %v1553 = vunpack.c.0.s8 %v1552
      %v1554 = vlaneseq
      %v1555 = vshrl.u32 %v1554, 7
      %v1556 = vsub.s32 %v1553, %v1555
      %v1557 = vrot.slane %v1531, %v1556
      %v1558 = vcombine.high %v1557, %v1557
      %v1560 = vunpack.c.l.s4 1966171168
      %v1561 = vunpack.c.0.s8 %v1560
      %v1562 = vlaneseq
      %v1563 = vshrl.u32 %v1562, 7
      %v1564 = vsub.s32 %v1561, %v1563
      %v1565 = vrot.slane %v1557, %v1564
      %v1567 = vunpack.c.l.s4 1966171168
      %v1568 = vunpack.c.0.s8 %v1567
      %v1569 = vlaneseq
      %v1570 = vshrl.u32 %v1569, 7
      %v1571 = vsub.s32 %v1568, %v1570
      %v1572 = vrot.slane %v1558, %v1571
      %v1573 = vlaneseq
      %v1574 = vshrl.u32 %v1573, 7
      %v1575 = vsub.s32 0, %v1574
      %v1576 = vrot.slane %v1565, %v1575
      %v1577 = vlaneseq
      %v1578 = vshrl.u32 %v1577, 7
      %v1579 = vsub.s32 0, %v1578
      %v1580 = vrot.slane %v1572, %v1579
      %v1583 = vadd.f32 %v1534, %v1576
      %v1584 = vadd.f32 %v1535, %v1576
      %v1585 = vadd.f32 %v1536, %v1576
      %v1586 = vadd.f32 %v1537, %v1576
      %v1587 = vadd.f32 %v1538, %v1576
      %v1588 = vadd.f32 %v1539, %v1576
      %v1589 = vadd.f32 %v1540, %v1576
      %v1590 = vadd.f32 %v1541, %v1576
      %v1591 = vadd.f32 %v1542, %v1580
      %v1592 = vadd.f32 %v1543, %v1580
      %v1593 = vadd.f32 %v1544, %v1580
      %v1594 = vadd.f32 %v1545, %v1580
      %v1595 = vadd.f32 %v1546, %v1580
      %v1596 = vadd.f32 %v1547, %v1580
      %v1597 = vadd.f32 %v1548, %v1580
      %v1598 = vadd.f32 %v1549, %v1580
      %v1599 = vtanh.pop %v1583
      %v1600 = vtanh.pop %v1584
      %v1601 = vtanh.pop %v1585
      %v1602 = vtanh.pop %v1586
      %v1603 = vtanh.pop %v1587
      %v1604 = vtanh.pop %v1588
      %v1605 = vtanh.pop %v1589
      %v1606 = vtanh.pop %v1590
      %v1607 = vtanh.pop %v1591
      %v1608 = vtanh.pop %v1592
      %v1609 = vtanh.pop %v1593
      %v1610 = vtanh.pop %v1594
      %v1611 = vtanh.pop %v1595
      %v1612 = vtanh.pop %v1596
      %v1613 = vtanh.pop %v1597
      %v1614 = vtanh.pop %v1598
      %v1615 = vmul.f32 %v1599, %v505
      %v1616 = vmul.f32 %v1600, %v505
      %v1617 = vmul.f32 %v1601, %v505
      %v1618 = vmul.f32 %v1602, %v505
      %v1619 = vmul.f32 %v1603, %v505
      %v1620 = vmul.f32 %v1604, %v505
      %v1621 = vmul.f32 %v1605, %v505
      %v1622 = vmul.f32 %v1606, %v505
      %v1623 = vmul.f32 %v1607, %v505
      %v1624 = vmul.f32 %v1608, %v505
      %v1625 = vmul.f32 %v1609, %v505
      %v1626 = vmul.f32 %v1610, %v505
      %v1627 = vmul.f32 %v1611, %v505
      %v1628 = vmul.f32 %v1612, %v505
      %v1629 = vmul.f32 %v1613, %v505
      %v1630 = vmul.f32 %v1614, %v505
      %vm1631 = vcmask 261120
      %v1632 = vsel %vm1631, %v1615, 0.0
      %1633 = vadd.xlane.f32.xlu0 %v1632
      %v1634 = vpop.xlane.xlu0 %1633
      %v1635 = vsel %vm1631, %v1616, 0.0
      %1636 = vadd.xlane.f32.xlu0 %v1635
      %v1637 = vpop.xlane.xlu0 %1636
      %v1638 = vsel %vm1631, %v1617, 0.0
      %1639 = vadd.xlane.f32.xlu0 %v1638
      %v1640 = vpop.xlane.xlu0 %1639
      %v1641 = vsel %vm1631, %v1618, 0.0
      %1642 = vadd.xlane.f32.xlu0 %v1641
      %v1643 = vpop.xlane.xlu0 %1642
      %v1644 = vsel %vm1631, %v1619, 0.0
      %1645 = vadd.xlane.f32.xlu0 %v1644
      %v1646 = vpop.xlane.xlu0 %1645
      %v1647 = vsel %vm1631, %v1620, 0.0
      %1648 = vadd.xlane.f32.xlu0 %v1647
      %v1649 = vpop.xlane.xlu0 %1648
      %v1650 = vsel %vm1631, %v1621, 0.0
      %1651 = vadd.xlane.f32.xlu0 %v1650
      %v1652 = vpop.xlane.xlu0 %1651
      %v1653 = vsel %vm1631, %v1622, 0.0
      %1654 = vadd.xlane.f32.xlu0 %v1653
      %v1655 = vpop.xlane.xlu0 %1654
      %v1656 = vsel %vm1631, %v1623, 0.0
      %1657 = vadd.xlane.f32.xlu0 %v1656
      %v1658 = vpop.xlane.xlu0 %1657
      %v1659 = vsel %vm1631, %v1624, 0.0
      %1660 = vadd.xlane.f32.xlu0 %v1659
      %v1661 = vpop.xlane.xlu0 %1660
      %v1662 = vsel %vm1631, %v1625, 0.0
      %1663 = vadd.xlane.f32.xlu0 %v1662
      %v1664 = vpop.xlane.xlu0 %1663
      %v1665 = vsel %vm1631, %v1626, 0.0
      %1666 = vadd.xlane.f32.xlu0 %v1665
      %v1667 = vpop.xlane.xlu0 %1666
      %v1668 = vsel %vm1631, %v1627, 0.0
      %1669 = vadd.xlane.f32.xlu0 %v1668
      %v1670 = vpop.xlane.xlu0 %1669
      %v1671 = vsel %vm1631, %v1628, 0.0
      %1672 = vadd.xlane.f32.xlu0 %v1671
      %v1673 = vpop.xlane.xlu0 %1672
      %v1674 = vsel %vm1631, %v1629, 0.0
      %1675 = vadd.xlane.f32.xlu0 %v1674
      %v1676 = vpop.xlane.xlu0 %1675
      %v1677 = vsel %vm1631, %v1630, 0.0
      %1678 = vadd.xlane.f32.xlu0 %v1677
      %v1679 = vpop.xlane.xlu0 %1678
      %v1680 = vlaneseq
      %v1681 = vand.u32 %v1680, 127
      %vm1682 = vcmp.lt.s32.totalorder %v1681, 49
      %v1683 = vsel %vm1682, 1, 0
      %vm1684 = vcmp.eq.s32.totalorder %v1683, 1
      %v1701 = vlaneseq
      %v1702 = vshrl.u32 %v1701, 7
      %v1703 = vsub.s32 %v1681, %v1702
      %v1704 = vrot.slane %v1634, %v1703
      %v1705 = vadd.s32 %v1681, 4294967288
      %v1706 = vlaneseq
      %v1707 = vshrl.u32 %v1706, 7
      %v1708 = vsub.s32 %v1705, %v1707
      %v1709 = vrot.slane %v1637, %v1708
      %vm1710 = vcmask 130112
      %v1711 = vsel %vm1710, %v1709, %v1704
      %v1712 = vadd.s32 %v1681, 4294967280
      %v1713 = vlaneseq
      %v1714 = vshrl.u32 %v1713, 7
      %v1715 = vsub.s32 %v1712, %v1714
      %v1716 = vrot.slane %v1640, %v1715
      %vm1717 = vcmask 195712
      %v1718 = vsel %vm1717, %v1716, %v1711
      %v1719 = vadd.s32 %v1681, 4294967272
      %v1720 = vlaneseq
      %v1721 = vshrl.u32 %v1720, 7
      %v1722 = vsub.s32 %v1719, %v1721
      %v1723 = vrot.slane %v1643, %v1722
      %vm1724 = vcmask 261312
      %v1725 = vsel %vm1724, %v1723, %v1718
      %v1726 = vadd.s32 %v1681, 4294967264
      %v1727 = vlaneseq
      %v1728 = vshrl.u32 %v1727, 7
      %v1729 = vsub.s32 %v1726, %v1728
      %v1730 = vrot.slane %v1646, %v1729
      %vm1731 = vcmask 326912
      %v1732 = vsel %vm1731, %v1730, %v1725
      %v1733 = vadd.s32 %v1681, 4294967256
      %v1734 = vlaneseq
      %v1735 = vshrl.u32 %v1734, 7
      %v1736 = vsub.s32 %v1733, %v1735
      %v1737 = vrot.slane %v1649, %v1736
      %vm1738 = vcmask 392512
      %v1739 = vsel %vm1738, %v1737, %v1732
      %v1740 = vadd.s32 %v1681, 4294967248
      %v1741 = vlaneseq
      %v1742 = vshrl.u32 %v1741, 7
      %v1743 = vsub.s32 %v1740, %v1742
      %v1744 = vrot.slane %v1652, %v1743
      %vm1745 = vcmask 458112
      %v1746 = vsel %vm1745, %v1744, %v1739
      %v1747 = vadd.s32 %v1681, 4294967240
      %v1748 = vlaneseq
      %v1749 = vshrl.u32 %v1748, 7
      %v1750 = vsub.s32 %v1747, %v1749
      %v1751 = vrot.slane %v1655, %v1750
      %vm1752 = vcmask 523712
      %v1753 = vsel %vm1752, %v1751, %v1746
      %v1754 = vlaneseq
      %v1755 = vshrl.u32 %v1754, 7
      %v1756 = vsub.s32 %v1681, %v1755
      %v1757 = vrot.slane %v1658, %v1756
      %v1758 = vlaneseq
      %v1759 = vshrl.u32 %v1758, 7
      %v1760 = vsub.s32 %v1705, %v1759
      %v1761 = vrot.slane %v1661, %v1760
      %v1762 = vsel %vm1710, %v1761, %v1757
      %v1763 = vlaneseq
      %v1764 = vshrl.u32 %v1763, 7
      %v1765 = vsub.s32 %v1712, %v1764
      %v1766 = vrot.slane %v1664, %v1765
      %v1767 = vsel %vm1717, %v1766, %v1762
      %v1768 = vlaneseq
      %v1769 = vshrl.u32 %v1768, 7
      %v1770 = vsub.s32 %v1719, %v1769
      %v1771 = vrot.slane %v1667, %v1770
      %v1772 = vsel %vm1724, %v1771, %v1767
      %v1773 = vlaneseq
      %v1774 = vshrl.u32 %v1773, 7
      %v1775 = vsub.s32 %v1726, %v1774
      %v1776 = vrot.slane %v1670, %v1775
      %v1777 = vsel %vm1731, %v1776, %v1772
      %v1778 = vlaneseq
      %v1779 = vshrl.u32 %v1778, 7
      %v1780 = vsub.s32 %v1733, %v1779
      %v1781 = vrot.slane %v1673, %v1780
      %v1782 = vsel %vm1738, %v1781, %v1777
      %v1783 = vlaneseq
      %v1784 = vshrl.u32 %v1783, 7
      %v1785 = vsub.s32 %v1740, %v1784
      %v1786 = vrot.slane %v1676, %v1785
      %v1787 = vsel %vm1745, %v1786, %v1782
      %v1788 = vlaneseq
      %v1789 = vshrl.u32 %v1788, 7
      %v1790 = vsub.s32 %v1747, %v1789
      %v1791 = vrot.slane %v1679, %v1790
      %v1792 = vsel %vm1752, %v1791, %v1787
      %vm1793 = vcmask 1041409
      %v1794 = vsel %vm1793, %v1792, %v1753
      %v1796 = vsel %vm1684, %v1794, -inf
      %vm1797 = vcmask 517120
      %v1798 = vsel %vm1797, %v1796, -inf
      %1799 = vmax.xlane.f32.xlu0 %v1798
      %v1800 = vpop.xlane.xlu0 %1799
      %v1801 = vsub.f32 %v1796, %v1800
      %v1802 = vmul.f32 %v1801, 1.442695
      %v1803 = vpow.pop %v1802
      %v1804 = vsel %vm1797, %v1803, 0.0
      %1805 = vadd.xlane.f32.xlu0 %v1804
      %v1806 = vpop.xlane.xlu0 %1805
      %v1807 = vrcp.pop %v1806
      %v1808 = vmul.f32 %v1803, %v1807
      %1809 = vst.msk [vmem:[%s480] sm:$0x3] %vm1797, %v1808
      %v1810 = vld [vmem:[%s445] sm:$0xff]
      %v1811 = vld [vmem:[%s445 + $0x8] sm:$0xff]
      %v1812 = vld [vmem:[%s445 + $0x10] sm:$0xff]
      %v1813 = vld [vmem:[%s445 + $0x18] sm:$0xff]
      %v1814 = vld [vmem:[%s445 + $0x20] sm:$0xff]
      %v1815 = vld [vmem:[%s445 + $0x28] sm:$0xff]
      %v1816 = vld [vmem:[%s445 + $0x30] sm:$0xff]
      %v1817 = vld [vmem:[%s445 + $0x38] sm:$0xff]
      %v1818 = vld [vmem:[%s445 + $0x40] sm:$0xff]
      %v1819 = vld [vmem:[%s445 + $0x48] sm:$0xff]
      %v1820 = vld [vmem:[%s445 + $0x50] sm:$0xff]
      %v1821 = vld [vmem:[%s445 + $0x58] sm:$0xff]
      %v1822 = vld [vmem:[%s445 + $0x60] sm:$0xff]
      %v1823 = vld [vmem:[%s445 + $0x68] sm:$0xff]
      %v1824 = vld [vmem:[%s445 + $0x70] sm:$0xff]
      %v1825 = vld [vmem:[%s445 + $0x78] sm:$0xff]
      %v1826 = vld [vmem:[%s445 + $0x80] sm:$0xff]
      %v1827 = vld [vmem:[%s445 + $0x88] sm:$0xff]
      %v1828 = vld [vmem:[%s445 + $0x90] sm:$0xff]
      %v1829 = vld [vmem:[%s445 + $0x98] sm:$0xff]
      %v1830 = vld [vmem:[%s445 + $0xa0] sm:$0xff]
      %v1831 = vld [vmem:[%s445 + $0xa8] sm:$0xff]
      %v1832 = vld [vmem:[%s445 + $0xb0] sm:$0xff]
      %v1833 = vld [vmem:[%s445 + $0xb8] sm:$0xff]
      %v1834 = vld [vmem:[%s445 + $0xc0] sm:$0xff]
      %v1835 = vld [vmem:[%s445 + $0xc8] sm:$0xff]
      %v1836 = vld [vmem:[%s445 + $0xd0] sm:$0xff]
      %v1837 = vld [vmem:[%s445 + $0xd8] sm:$0xff]
      %v1838 = vld [vmem:[%s445 + $0xe0] sm:$0xff]
      %v1839 = vld [vmem:[%s445 + $0xe8] sm:$0xff]
      %v1840 = vld [vmem:[%s445 + $0xf0] sm:$0xff]
      %v1841 = vld [vmem:[%s445 + $0xf8] sm:$0xff]
      %v1842 = vlaneseq
      %v1843 = vshrl.u32 %v1842, 7
      %v1844 = vsub.s32 0, %v1843
      %v1845 = vrot.slane %v1808, %v1844
      %1847 = vbcast.lane.b32.xlu0 %v1845, 256
      %v1848 = vpop.permute.xlu0 %1847
      %s1850 = sor.u32 256, 8
      %1851 = vbcast.lane.b32.xlu0 %v1845, %s1850
      %v1852 = vpop.permute.xlu0 %1851
      %s1854 = sor.u32 256, 16
      %1855 = vbcast.lane.b32.xlu0 %v1845, %s1854
      %v1856 = vpop.permute.xlu0 %1855
      %s1858 = sor.u32 256, 24
      %1859 = vbcast.lane.b32.xlu0 %v1845, %s1858
      %v1860 = vpop.permute.xlu0 %1859
      %s1862 = sor.u32 256, 32
      %1863 = vbcast.lane.b32.xlu0 %v1845, %s1862
      %v1864 = vpop.permute.xlu0 %1863
      %s1866 = sor.u32 256, 40
      %1867 = vbcast.lane.b32.xlu0 %v1845, %s1866
      %v1868 = vpop.permute.xlu0 %1867
      %s1870 = sor.u32 256, 48
      %1871 = vbcast.lane.b32.xlu0 %v1845, %s1870
      %v1872 = vpop.permute.xlu0 %1871
      %s1874 = sor.u32 256, 56
      %1875 = vbcast.lane.b32.xlu0 %v1845, %s1874
      %v1876 = vpop.permute.xlu0 %1875
      %v1877 = vlaneseq
      %v1878 = vshrl.u32 %v1877, 7
      %v1879 = vsub.s32 1, %v1878
      %v1880 = vrot.slane %v1808, %v1879
      %1882 = vbcast.lane.b32.xlu0 %v1880, 256
      %v1883 = vpop.permute.xlu0 %1882
      %s1885 = sor.u32 256, 8
      %1886 = vbcast.lane.b32.xlu0 %v1880, %s1885
      %v1887 = vpop.permute.xlu0 %1886
      %s1889 = sor.u32 256, 16
      %1890 = vbcast.lane.b32.xlu0 %v1880, %s1889
      %v1891 = vpop.permute.xlu0 %1890
      %s1893 = sor.u32 256, 24
      %1894 = vbcast.lane.b32.xlu0 %v1880, %s1893
      %v1895 = vpop.permute.xlu0 %1894
      %s1897 = sor.u32 256, 32
      %1898 = vbcast.lane.b32.xlu0 %v1880, %s1897
      %v1899 = vpop.permute.xlu0 %1898
      %s1901 = sor.u32 256, 40
      %1902 = vbcast.lane.b32.xlu0 %v1880, %s1901
      %v1903 = vpop.permute.xlu0 %1902
      %s1905 = sor.u32 256, 48
      %1906 = vbcast.lane.b32.xlu0 %v1880, %s1905
      %v1907 = vpop.permute.xlu0 %1906
      %s1909 = sor.u32 256, 56
      %1910 = vbcast.lane.b32.xlu0 %v1880, %s1909
      %v1911 = vpop.permute.xlu0 %1910
      %v1912 = vmul.f32 %v1810, %v1848
      %v1913 = vmul.f32 %v1811, %v1848
      %v1914 = vmul.f32 %v1812, %v1852
      %v1915 = vmul.f32 %v1813, %v1852
      %v1916 = vmul.f32 %v1814, %v1856
      %v1917 = vmul.f32 %v1815, %v1856
      %v1918 = vmul.f32 %v1816, %v1860
      %v1919 = vmul.f32 %v1817, %v1860
      %v1920 = vmul.f32 %v1818, %v1864
      %v1921 = vmul.f32 %v1819, %v1864
      %v1922 = vmul.f32 %v1820, %v1868
      %v1923 = vmul.f32 %v1821, %v1868
      %v1924 = vmul.f32 %v1822, %v1872
      %v1925 = vmul.f32 %v1823, %v1872
      %v1926 = vmul.f32 %v1824, %v1876
      %v1927 = vmul.f32 %v1825, %v1876
      %v1928 = vmul.f32 %v1826, %v1883
      %v1929 = vmul.f32 %v1827, %v1883
      %v1930 = vmul.f32 %v1828, %v1887
      %v1931 = vmul.f32 %v1829, %v1887
      %v1932 = vmul.f32 %v1830, %v1891
      %v1933 = vmul.f32 %v1831, %v1891
      %v1934 = vmul.f32 %v1832, %v1895
      %v1935 = vmul.f32 %v1833, %v1895
      %v1936 = vmul.f32 %v1834, %v1899
      %v1937 = vmul.f32 %v1835, %v1899
      %v1938 = vmul.f32 %v1836, %v1903
      %v1939 = vmul.f32 %v1837, %v1903
      %v1940 = vmul.f32 %v1838, %v1907
      %v1941 = vmul.f32 %v1839, %v1907
      %v1942 = vmul.f32 %v1840, %v1911
      %v1943 = vmul.f32 %v1841, %v1911
      %v1944 = vadd.f32 %v1912, %v1914
      %v1945 = vadd.f32 %v1944, %v1916
      %v1946 = vadd.f32 %v1945, %v1918
      %v1947 = vadd.f32 %v1946, %v1920
      %v1948 = vadd.f32 %v1947, %v1922
      %v1949 = vadd.f32 %v1948, %v1924
      %v1950 = vadd.f32 %v1949, %v1926
      %v1951 = vrot.slane %v1950, 4
      %v1952 = vadd.f32 %v1950, %v1951
      %v1953 = vrot.slane %v1952, 2
      %v1954 = vadd.f32 %v1952, %v1953
      %v1955 = vrot.slane %v1954, 1
      %v1956 = vadd.f32 %v1954, %v1955
      %v1957 = vadd.f32 %v1913, %v1915
      %v1958 = vadd.f32 %v1957, %v1917
      %v1959 = vadd.f32 %v1958, %v1919
      %v1960 = vadd.f32 %v1959, %v1921
      %v1961 = vadd.f32 %v1960, %v1923
      %v1962 = vadd.f32 %v1961, %v1925
      %v1963 = vadd.f32 %v1962, %v1927
      %v1964 = vrot.slane %v1963, 4
      %v1965 = vadd.f32 %v1963, %v1964
      %v1966 = vrot.slane %v1965, 2
      %v1967 = vadd.f32 %v1965, %v1966
      %v1968 = vrot.slane %v1967, 1
      %v1969 = vadd.f32 %v1967, %v1968
      %v1970 = vadd.f32 %v1928, %v1930
      %v1971 = vadd.f32 %v1970, %v1932
      %v1972 = vadd.f32 %v1971, %v1934
      %v1973 = vadd.f32 %v1972, %v1936
      %v1974 = vadd.f32 %v1973, %v1938
      %v1975 = vadd.f32 %v1974, %v1940
      %v1976 = vadd.f32 %v1975, %v1942
      %v1977 = vrot.slane %v1976, 4
      %v1978 = vadd.f32 %v1976, %v1977
      %v1979 = vrot.slane %v1978, 2
      %v1980 = vadd.f32 %v1978, %v1979
      %v1981 = vrot.slane %v1980, 1
      %v1982 = vadd.f32 %v1980, %v1981
      %v1983 = vadd.f32 %v1929, %v1931
      %v1984 = vadd.f32 %v1983, %v1933
      %v1985 = vadd.f32 %v1984, %v1935
      %v1986 = vadd.f32 %v1985, %v1937
      %v1987 = vadd.f32 %v1986, %v1939
      %v1988 = vadd.f32 %v1987, %v1941
      %v1989 = vadd.f32 %v1988, %v1943
      %v1990 = vrot.slane %v1989, 4
      %v1991 = vadd.f32 %v1989, %v1990
      %v1992 = vrot.slane %v1991, 2
      %v1993 = vadd.f32 %v1991, %v1992
      %v1994 = vrot.slane %v1993, 1
      %v1995 = vadd.f32 %v1993, %v1994
      %v1997 = vlaneseq
      %v1998 = vshrl.u32 %v1997, 7
      %v1999 = vsub.s32 0, %v1998
      %v2000 = vrot.slane %v507, %v1999
      %v2001 = vlaneseq
      %v2002 = vshrl.u32 %v2001, 7
      %v2003 = vsub.s32 1, %v2002
      %v2004 = vrot.slane %v507, %v2003
      %v2005 = vlaneseq
      %v2006 = vshrl.u32 %v2005, 7
      %v2007 = vsub.s32 2, %v2006
      %v2008 = vrot.slane %v507, %v2007
      %v2016 = vsel %vm1793, %v1982, %v1956
      %v2017 = vsel %vm1793, %v1995, %v1969
      %2020 = vmatprep.subr.mxu0 %v748
      %2021 = vmatpush1.msra.mxu0 %v747
      %2022 = vmatprep.subr.mxu0 %v745
      %2023 = vmatpush1.msra.mxu0 %v744
      %2024 = vmatprep.subr.mxu0 %v742
      %2025 = vmatpush1.msra.mxu0 %v741
      %2026 = vmatprep.subr.mxu0 %v739
      %2027 = vmatpush1.msra.mxu0 %v738
      %2028 = vmatprep.subr.mxu0 %v736
      %2029 = vmatpush1.msra.mxu0 %v735
      %2030 = vmatprep.subr.mxu0 %v733
      %2031 = vmatpush1.msra.mxu0 %v732
      %2032 = vmatprep.subr.mxu0 %v730
      %2033 = vmatpush1.msra.mxu0 %v729
      %2034 = vmatprep.subr.mxu0 %v727
      %2035 = vmatpush1.msra.mxu0 %v726
      %2036 = vmatprep.subr.mxu0 %v724
      %2037 = vmatpush1.msra.mxu0 %v723
      %2038 = vmatprep.subr.mxu0 %v721
      %2039 = vmatpush1.msra.mxu0 %v720
      %2040 = vmatprep.subr.mxu0 %v718
      %2041 = vmatpush1.msra.mxu0 %v717
      %2042 = vmatprep.subr.mxu0 %v715
      %2043 = vmatpush1.msra.mxu0 %v714
      %2044 = vmatprep.subr.mxu0 %v712
      %2045 = vmatpush1.msra.mxu0 %v711
      %2046 = vmatprep.subr.mxu0 %v709
      %2047 = vmatpush1.msra.mxu0 %v708
      %2048 = vmatprep.subr.mxu0 %v706
      %2049 = vmatpush1.msra.mxu0 %v705
      %2050 = vmatprep.subr.mxu0 %v703
      %2051 = vmatpush1.msra.mxu0 %v702
      %2052 = vmatprep.subr.mxu0 %v796
      %2053 = vmatpush2.msra.mxu0 %v795
      %2054 = vmatprep.subr.mxu0 %v793
      %2055 = vmatpush2.msra.mxu0 %v792
      %2056 = vmatprep.subr.mxu0 %v790
      %2057 = vmatpush2.msra.mxu0 %v789
      %2058 = vmatprep.subr.mxu0 %v787
      %2059 = vmatpush2.msra.mxu0 %v786
      %2060 = vmatprep.subr.mxu0 %v784
      %2061 = vmatpush2.msra.mxu0 %v783
      %2062 = vmatprep.subr.mxu0 %v781
      %2063 = vmatpush2.msra.mxu0 %v780
      %2064 = vmatprep.subr.mxu0 %v778
      %2065 = vmatpush2.msra.mxu0 %v777
      %2066 = vmatprep.subr.mxu0 %v775
      %2067 = vmatpush2.msra.mxu0 %v774
      %2068 = vmatprep.subr.mxu0 %v772
      %2069 = vmatpush2.msra.mxu0 %v771
      %2070 = vmatprep.subr.mxu0 %v769
      %2071 = vmatpush2.msra.mxu0 %v768
      %2072 = vmatprep.subr.mxu0 %v766
      %2073 = vmatpush2.msra.mxu0 %v765
      %2074 = vmatprep.subr.mxu0 %v763
      %2075 = vmatpush2.msra.mxu0 %v762
      %2076 = vmatprep.subr.mxu0 %v760
      %2077 = vmatpush2.msra.mxu0 %v759
      %2078 = vmatprep.subr.mxu0 %v757
      %2079 = vmatpush2.msra.mxu0 %v756
      %2080 = vmatprep.subr.mxu0 %v754
      %2081 = vmatpush2.msra.mxu0 %v753
      %2082 = vmatprep.subr.mxu0 %v751
      %2083 = vmatpush2.msra.mxu0 %v750
      %2084 = vmatprep.mubr.f32.mxu0 %v2017
      %2085 = vmatmul.mubr.f32.gmra.mxu0 %v2016
      %v2086 = vpop.f32.mrf.mxu0
      %v2087 = vadd.f32 %v2000, %v2086
      %v2088 = vpop.f32.mrf.mxu0
      %v2089 = vadd.f32 %v2004, %v2088
      %2090 = vdwg.mxu0
      %2091 = vmatprep.subr.mxu0 0.0
      %2092 = vmatpush1.msra.mxu0 %v749
      %2093 = vmatprep.subr.mxu0 0.0
      %2094 = vmatpush1.msra.mxu0 %v746
      %2095 = vmatprep.subr.mxu0 0.0
      %2096 = vmatpush1.msra.mxu0 %v743
      %2097 = vmatprep.subr.mxu0 0.0
      %2098 = vmatpush1.msra.mxu0 %v740
      %2099 = vmatprep.subr.mxu0 0.0
      %2100 = vmatpush1.msra.mxu0 %v737
      %2101 = vmatprep.subr.mxu0 0.0
      %2102 = vmatpush1.msra.mxu0 %v734
      %2103 = vmatprep.subr.mxu0 0.0
      %2104 = vmatpush1.msra.mxu0 %v731
      %2105 = vmatprep.subr.mxu0 0.0
      %2106 = vmatpush1.msra.mxu0 %v728
      %2107 = vmatprep.subr.mxu0 0.0
      %2108 = vmatpush1.msra.mxu0 %v725
      %2109 = vmatprep.subr.mxu0 0.0
      %2110 = vmatpush1.msra.mxu0 %v722
      %2111 = vmatprep.subr.mxu0 0.0
      %2112 = vmatpush1.msra.mxu0 %v719
      %2113 = vmatprep.subr.mxu0 0.0
      %2114 = vmatpush1.msra.mxu0 %v716
      %2115 = vmatprep.subr.mxu0 0.0
      %2116 = vmatpush1.msra.mxu0 %v713
      %2117 = vmatprep.subr.mxu0 0.0
      %2118 = vmatpush1.msra.mxu0 %v710
      %2119 = vmatprep.subr.mxu0 0.0
      %2120 = vmatpush1.msra.mxu0 %v707
      %2121 = vmatprep.subr.mxu0 0.0
      %2122 = vmatpush1.msra.mxu0 %v704
      %2123 = vmatprep.subr.mxu0 0.0
      %2124 = vmatpush2.msra.mxu0 %v797
      %2125 = vmatprep.subr.mxu0 0.0
      %2126 = vmatpush2.msra.mxu0 %v794
      %2127 = vmatprep.subr.mxu0 0.0
      %2128 = vmatpush2.msra.mxu0 %v791
      %2129 = vmatprep.subr.mxu0 0.0
      %2130 = vmatpush2.msra.mxu0 %v788
      %2131 = vmatprep.subr.mxu0 0.0
      %2132 = vmatpush2.msra.mxu0 %v785
      %2133 = vmatprep.subr.mxu0 0.0
      %2134 = vmatpush2.msra.mxu0 %v782
      %2135 = vmatprep.subr.mxu0 0.0
      %2136 = vmatpush2.msra.mxu0 %v779
      %2137 = vmatprep.subr.mxu0 0.0
      %2138 = vmatpush2.msra.mxu0 %v776
      %2139 = vmatprep.subr.mxu0 0.0
      %2140 = vmatpush2.msra.mxu0 %v773
      %2141 = vmatprep.subr.mxu0 0.0
      %2142 = vmatpush2.msra.mxu0 %v770
      %2143 = vmatprep.subr.mxu0 0.0
      %2144 = vmatpush2.msra.mxu0 %v767
      %2145 = vmatprep.subr.mxu0 0.0
      %2146 = vmatpush2.msra.mxu0 %v764
      %2147 = vmatprep.subr.mxu0 0.0
      %2148 = vmatpush2.msra.mxu0 %v761
      %2149 = vmatprep.subr.mxu0 0.0
      %2150 = vmatpush2.msra.mxu0 %v758
      %2151 = vmatprep.subr.mxu0 0.0
      %2152 = vmatpush2.msra.mxu0 %v755
      %2153 = vmatprep.subr.mxu0 0.0
      %2154 = vmatpush2.msra.mxu0 %v752
      %2155 = vmatprep.mubr.f32.mxu0 %v2017
      %2156 = vmatmul.mubr.f32.gmra.mxu0 %v2016
      %v2157 = vpop.f32.mrf.mxu0
      %v2158 = vadd.f32 %v2008, %v2157
      %v2159 = vpop.f32.mrf.mxu0
      %2160 = vdwg.mxu0
      %v2162 = vlaneseq
      %v2163 = vshrl.u32 %v2162, 7
      %v2164 = vsub.s32 0, %v2163
      %v2165 = vrot.slane %v509, %v2164
      %v2166 = vlaneseq
      %v2167 = vshrl.u32 %v2166, 7
      %v2168 = vsub.s32 1, %v2167
      %v2169 = vrot.slane %v509, %v2168
      %v2170 = vlaneseq
      %v2171 = vshrl.u32 %v2170, 7
      %v2172 = vsub.s32 2, %v2171
      %v2173 = vrot.slane %v509, %v2172
      %2177 = vmatprep.subr.mxu0 %v844
      %2178 = vmatpush1.msra.mxu0 %v843
      %2179 = vmatprep.subr.mxu0 %v841
      %2180 = vmatpush1.msra.mxu0 %v840
      %2181 = vmatprep.subr.mxu0 %v838
      %2182 = vmatpush1.msra.mxu0 %v837
      %2183 = vmatprep.subr.mxu0 %v835
      %2184 = vmatpush1.msra.mxu0 %v834
      %2185 = vmatprep.subr.mxu0 %v832
      %2186 = vmatpush1.msra.mxu0 %v831
      %2187 = vmatprep.subr.mxu0 %v829
      %2188 = vmatpush1.msra.mxu0 %v828
      %2189 = vmatprep.subr.mxu0 %v826
      %2190 = vmatpush1.msra.mxu0 %v825
      %2191 = vmatprep.subr.mxu0 %v823
      %2192 = vmatpush1.msra.mxu0 %v822
      %2193 = vmatprep.subr.mxu0 %v820
      %2194 = vmatpush1.msra.mxu0 %v819
      %2195 = vmatprep.subr.mxu0 %v817
      %2196 = vmatpush1.msra.mxu0 %v816
      %2197 = vmatprep.subr.mxu0 %v814
      %2198 = vmatpush1.msra.mxu0 %v813
      %2199 = vmatprep.subr.mxu0 %v811
      %2200 = vmatpush1.msra.mxu0 %v810
      %2201 = vmatprep.subr.mxu0 %v808
      %2202 = vmatpush1.msra.mxu0 %v807
      %2203 = vmatprep.subr.mxu0 %v805
      %2204 = vmatpush1.msra.mxu0 %v804
      %2205 = vmatprep.subr.mxu0 %v802
      %2206 = vmatpush1.msra.mxu0 %v801
      %2207 = vmatprep.subr.mxu0 %v799
      %2208 = vmatpush1.msra.mxu0 %v798
      %2209 = vmatprep.subr.mxu0 0.0
      %2210 = vmatpush2.msra.mxu0 0.0
      %2211 = vmatprep.subr.mxu0 0.0
      %2212 = vmatpush2.msra.mxu0 0.0
      %2213 = vmatprep.subr.mxu0 0.0
      %2214 = vmatpush2.msra.mxu0 0.0
      %2215 = vmatprep.subr.mxu0 0.0
      %2216 = vmatpush2.msra.mxu0 0.0
      %2217 = vmatprep.subr.mxu0 0.0
      %2218 = vmatpush2.msra.mxu0 0.0
      %2219 = vmatprep.subr.mxu0 0.0
      %2220 = vmatpush2.msra.mxu0 0.0
      %2221 = vmatprep.subr.mxu0 0.0
      %2222 = vmatpush2.msra.mxu0 0.0
      %2223 = vmatprep.subr.mxu0 0.0
      %2224 = vmatpush2.msra.mxu0 0.0
      %2225 = vmatprep.subr.mxu0 0.0
      %2226 = vmatpush2.msra.mxu0 0.0
      %2227 = vmatprep.subr.mxu0 0.0
      %2228 = vmatpush2.msra.mxu0 0.0
      %2229 = vmatprep.subr.mxu0 0.0
      %2230 = vmatpush2.msra.mxu0 0.0
      %2231 = vmatprep.subr.mxu0 0.0
      %2232 = vmatpush2.msra.mxu0 0.0
      %2233 = vmatprep.subr.mxu0 0.0
      %2234 = vmatpush2.msra.mxu0 0.0
      %2235 = vmatprep.subr.mxu0 0.0
      %2236 = vmatpush2.msra.mxu0 0.0
      %2237 = vmatprep.subr.mxu0 0.0
      %2238 = vmatpush2.msra.mxu0 0.0
      %2239 = vmatprep.subr.mxu0 0.0
      %2240 = vmatpush2.msra.mxu0 0.0
      %2241 = vmatprep.mubr.f32.mxu0 0.0
      %2242 = vmatmul.mubr.f32.gmra.mxu0 %v493
      %v2243 = vpop.f32.mrf.mxu0
      %v2244 = vadd.f32 %v2165, %v2243
      %v2245 = vpop.f32.mrf.mxu0
      %v2246 = vadd.f32 %v2169, %v2245
      %2247 = vdwg.mxu0
      %2248 = vmatprep.subr.mxu0 0.0
      %2249 = vmatpush1.msra.mxu0 %v845
      %2250 = vmatprep.subr.mxu0 0.0
      %2251 = vmatpush1.msra.mxu0 %v842
      %2252 = vmatprep.subr.mxu0 0.0
      %2253 = vmatpush1.msra.mxu0 %v839
      %2254 = vmatprep.subr.mxu0 0.0
      %2255 = vmatpush1.msra.mxu0 %v836
      %2256 = vmatprep.subr.mxu0 0.0
      %2257 = vmatpush1.msra.mxu0 %v833
      %2258 = vmatprep.subr.mxu0 0.0
      %2259 = vmatpush1.msra.mxu0 %v830
      %2260 = vmatprep.subr.mxu0 0.0
      %2261 = vmatpush1.msra.mxu0 %v827
      %2262 = vmatprep.subr.mxu0 0.0
      %2263 = vmatpush1.msra.mxu0 %v824
      %2264 = vmatprep.subr.mxu0 0.0
      %2265 = vmatpush1.msra.mxu0 %v821
      %2266 = vmatprep.subr.mxu0 0.0
      %2267 = vmatpush1.msra.mxu0 %v818
      %2268 = vmatprep.subr.mxu0 0.0
      %2269 = vmatpush1.msra.mxu0 %v815
      %2270 = vmatprep.subr.mxu0 0.0
      %2271 = vmatpush1.msra.mxu0 %v812
      %2272 = vmatprep.subr.mxu0 0.0
      %2273 = vmatpush1.msra.mxu0 %v809
      %2274 = vmatprep.subr.mxu0 0.0
      %2275 = vmatpush1.msra.mxu0 %v806
      %2276 = vmatprep.subr.mxu0 0.0
      %2277 = vmatpush1.msra.mxu0 %v803
      %2278 = vmatprep.subr.mxu0 0.0
      %2279 = vmatpush1.msra.mxu0 %v800
      %2280 = vmatprep.subr.mxu0 0.0
      %2281 = vmatpush2.msra.mxu0 0.0
      %2282 = vmatprep.subr.mxu0 0.0
      %2283 = vmatpush2.msra.mxu0 0.0
      %2284 = vmatprep.subr.mxu0 0.0
      %2285 = vmatpush2.msra.mxu0 0.0
      %2286 = vmatprep.subr.mxu0 0.0
      %2287 = vmatpush2.msra.mxu0 0.0
      %2288 = vmatprep.subr.mxu0 0.0
      %2289 = vmatpush2.msra.mxu0 0.0
      %2290 = vmatprep.subr.mxu0 0.0
      %2291 = vmatpush2.msra.mxu0 0.0
      %2292 = vmatprep.subr.mxu0 0.0
      %2293 = vmatpush2.msra.mxu0 0.0
      %2294 = vmatprep.subr.mxu0 0.0
      %2295 = vmatpush2.msra.mxu0 0.0
      %2296 = vmatprep.subr.mxu0 0.0
      %2297 = vmatpush2.msra.mxu0 0.0
      %2298 = vmatprep.subr.mxu0 0.0
      %2299 = vmatpush2.msra.mxu0 0.0
      %2300 = vmatprep.subr.mxu0 0.0
      %2301 = vmatpush2.msra.mxu0 0.0
      %2302 = vmatprep.subr.mxu0 0.0
      %2303 = vmatpush2.msra.mxu0 0.0
      %2304 = vmatprep.subr.mxu0 0.0
      %2305 = vmatpush2.msra.mxu0 0.0
      %2306 = vmatprep.subr.mxu0 0.0
      %2307 = vmatpush2.msra.mxu0 0.0
      %2308 = vmatprep.subr.mxu0 0.0
      %2309 = vmatpush2.msra.mxu0 0.0
      %2310 = vmatprep.subr.mxu0 0.0
      %2311 = vmatpush2.msra.mxu0 0.0
      %2312 = vmatprep.mubr.f32.mxu0 0.0
      %2313 = vmatmul.mubr.f32.gmra.mxu0 %v493
      %v2314 = vpop.f32.mrf.mxu0
      %v2315 = vadd.f32 %v2173, %v2314
      %v2316 = vpop.f32.mrf.mxu0
      %2317 = vdwg.mxu0
      %v2318 = vadd.f32 %v2087, %v2244
      %v2319 = vsub.f32 0.0, %v2318
      %v2320 = vmul.f32 %v2319, 1.442695
      %v2321 = vpow.pop %v2320
      %v2322 = vadd.f32 %v2321, 1.0
      %v2323 = vrcp.pop %v2322
      %v2324 = vmul.f32 1.0, %v2323
      %v2325 = vadd.f32 %v2089, %v2246
      %v2326 = vsub.f32 0.0, %v2325
      %v2327 = vmul.f32 %v2326, 1.442695
      %v2328 = vpow.pop %v2327
      %v2329 = vadd.f32 %v2328, 1.0
      %v2330 = vrcp.pop %v2329
      %v2331 = vmul.f32 1.0, %v2330
      %v2332 = vmul.f32 %v2324, %v2315
      %v2333 = vadd.f32 %v2158, %v2332
      %v2334 = vtanh.pop %v2333
      %v2335 = vsub.f32 1.0, %v2331
      %v2336 = vmul.f32 %v2335, %v2334
      %v2337 = vmul.f32 %v2331, %v493
      %v2338 = vadd.f32 %v2336, %v2337
      %2339 = vst [vmem:[#allocation2] sm:$0x3] %v2338
      %p2340 = scmp.eq.s32.totalorder %s26, 2
      // Predicated region
      $region57: #{spa_att_pallas.3} parent=51 // pred_check
        %p2341 = pneg %p2340
      $region58: #{spa_att_pallas.3} parent=51 // pred_check_branch
        %2343 = sbr.rel (%p2341) target = $region60
      $region59: #{spa_att_pallas.3} parent=51 // pred_region
        %2344 = vst [vmem:[%s484] sm:$0x3] %v2338
      $region60: #{spa_att_pallas.3} parent=51 // pred_fallthru
        _
      %p2345 = scmp.lt.s32.totalorder %s26, 2
      %s2346 = scalar_select %p2345, %s26, 2
      %p2347 = scmp.lt.s32.totalorder %s25, 0
      %s2348 = scalar_select %p2347, %s25, 0
      %s2349 = sadd.s32 %s2348, %s2346
      %s2350 = smul.addr %s2349, 2
      %s2351 = scalar_lea.vmem %s8, %s2350
      %p2352 = scmp.lt.s32.totalorder %s25, 0
      %s2353 = scalar_select %p2352, %s25, 0
      %s2354 = smul.addr %s2353, 2
      %s2355 = scalar_lea.vmem %s9, %s2354
      // Predicated region
      $region61: #{spa_att_pallas.3} parent=51 // pred_check
        %p2356 = pneg %p252
      $region62: #{spa_att_pallas.3} parent=51 // pred_check_branch
        %2358 = sbr.rel (%p2356) target = $region64
      $region63: #{spa_att_pallas.3} parent=51 // pred_region
        _
      $region64: #{spa_att_pallas.3} parent=51 // pred_fallthru
        _
      // Predicated region
      $region65: #{spa_att_pallas.3} parent=51 // pred_check
        %p2359 = pneg %p278
      $region66: #{spa_att_pallas.3} parent=51 // pred_check_branch
        %2361 = sbr.rel (%p2359) target = $region68
      $region67: #{spa_att_pallas.3} parent=51 // pred_region
        _
      $region68: #{spa_att_pallas.3} parent=51 // pred_fallthru
        _
      // Predicated region
      $region69: #{spa_att_pallas.3} parent=51 // pred_check
        %p2362 = pneg %p278
      $region70: #{spa_att_pallas.3} parent=51 // pred_check_branch
        %2364 = sbr.rel (%p2362) target = $region72
      $region71: #{spa_att_pallas.3} parent=51 // pred_region
        %p2365 = scmp.lt.s32.totalorder %s25, 0
        %s2366 = scalar_select %p2365, %s25, 0
        %s2367 = smul.addr %s2366, 2
        %s2368 = scalar_lea.vmem %s9, %s2367
      $region72: #{spa_att_pallas.3} parent=51 // pred_fallthru
        _
    $region52: #{spa_att_pallas.3} parent=5 // pred_fallthru
      _
    %p2369 = scmp.le.s32.totalorder 2, %s16
    // Predicated region
    $region73: #{spa_att_pallas.3} parent=5 // pred_check
      %p2370 = pneg %p2369
    $region74: #{spa_att_pallas.3} parent=5 // pred_check_branch
      %2372 = sbr.rel (%p2370) target = $region76
    $region75: #{spa_att_pallas.3} parent=5 // pred_region
      %s2373 = ssub.s32 %s16, 2
      // Predicated region
      $region77: #{spa_att_pallas.3} parent=75 // pred_check
        %p2374 = pneg %p258
      $region78: #{spa_att_pallas.3} parent=75 // pred_check_branch
        %2376 = sbr.rel (%p2374) target = $region80
      $region79: #{spa_att_pallas.3} parent=75 // pred_region
        %p2377 = scmp.lt.s32.totalorder %s28, 2
        %s2378 = scalar_select %p2377, %s28, 2
        %p2379 = scmp.lt.s32.totalorder %s27, 0
        %s2380 = scalar_select %p2379, %s27, 0
        %s2381 = sadd.s32 %s2380, %s2378
        %s2382 = smul.addr %s2381, 2
        %s2383 = scalar_lea.vmem %s8, %s2382
      $region80: #{spa_att_pallas.3} parent=75 // pred_fallthru
        _
    $region76: #{spa_att_pallas.3} parent=5 // pred_fallthru
      _
  $region6: #{spa_att_pallas.3} parent=0 // loop_footer
    %s20 = sadd.s32 1, %s16
  $region7: #{spa_att_pallas.3} parent=0 // loop_footer_branch
    %15 = sbr.rel target = $region3
  $region8: #{spa_att_pallas.3} parent=0 // loop_exit
    _

// kernel: spa_att_pallas.2
$region0: #{spa_att_pallas.2}
  #allocation0 [shape = 'u32[]', space=smem, size = 0x4, offset = 0x4, fixed_abs, tag = 'smem constant byte address 0x4 - core index']
  #allocation1 [shape = 'u32[144,128]{1,0:T(1,128)}', space=vmem, size = 0x12000, scoped, tag = 'internal scratch']
  %s0 = inlined_call_operand.vmem [shape: f32[512,32], index: 0, kind: input, shape index: {}]
  %s1 = inlined_call_operand.vmem [shape: f32[32,512], index: 1, kind: input, shape index: {}]
  %s2 = inlined_call_operand.vmem [shape: f32[1,512], index: 2, kind: input, shape index: {}]
  %s3 = inlined_call_operand.vmem [shape: f32[512,256], index: 3, kind: input, shape index: {}]
  %s4 = inlined_call_operand.vmem [shape: f32[1,256], index: 4, kind: input, shape index: {}]
  %s5 = inlined_call_operand.vmem [shape: f32[256,32], index: 5, kind: input, shape index: {}]
  %s6 = inlined_call_operand.vmem [shape: f32[1,32], index: 6, kind: input, shape index: {}]
  %s7 = inlined_call_operand.vmem [shape: f32[512,256], index: 7, kind: output, shape index: {0}]
  %s8 = inlined_call_operand.vmem [shape: f32[512,32], index: 8, kind: output, shape index: {1}]
  %s9 = inlined_call_operand.vmem [shape: f32[8,256], index: 9, kind: output, shape index: {2}]
  %10 = xla_tuple %s7, %s8, %s9
  %s11 = sld [smem:[#allocation0]]
  $region54: #{spa_att_pallas.2} parent=0
    _
  %s13 = ssub.s32 1, %s11
  %s14 = scalar_select 0, %s13, %s11
  // Predicated region
  $region2: #{spa_att_pallas.2} parent=0 // pred_check
    _
  $region3: #{spa_att_pallas.2} parent=0 // pred_check_branch
    %16 = sbr.rel (0) target = $region5
  $region4: #{spa_att_pallas.2} parent=0 // pred_region
    _
  $region5: #{spa_att_pallas.2} parent=0 // pred_fallthru
    _
  // Predicated region
  $region6: #{spa_att_pallas.2} parent=0 // pred_check
    _
  $region7: #{spa_att_pallas.2} parent=0 // pred_check_branch
    %18 = sbr.rel (0) target = $region9
  $region8: #{spa_att_pallas.2} parent=0 // pred_region
    _
  $region9: #{spa_att_pallas.2} parent=0 // pred_fallthru
    _
  // Predicated region
  $region10: #{spa_att_pallas.2} parent=0 // pred_check
    _
  $region11: #{spa_att_pallas.2} parent=0 // pred_check_branch
    %20 = sbr.rel (0) target = $region13
  $region12: #{spa_att_pallas.2} parent=0 // pred_region
    _
  $region13: #{spa_att_pallas.2} parent=0 // pred_fallthru
    _
  // Predicated region
  $region14: #{spa_att_pallas.2} parent=0 // pred_check
    _
  $region15: #{spa_att_pallas.2} parent=0 // pred_check_branch
    %22 = sbr.rel (0) target = $region17
  $region16: #{spa_att_pallas.2} parent=0 // pred_region
    _
  $region17: #{spa_att_pallas.2} parent=0 // pred_fallthru
    _
  // Predicated region
  $region18: #{spa_att_pallas.2} parent=0 // pred_check
    _
  $region19: #{spa_att_pallas.2} parent=0 // pred_check_branch
    %24 = sbr.rel (0) target = $region21
  $region20: #{spa_att_pallas.2} parent=0 // pred_region
    _
  $region21: #{spa_att_pallas.2} parent=0 // pred_fallthru
    _
  // Predicated region
  $region22: #{spa_att_pallas.2} parent=0 // pred_check
    _
  $region23: #{spa_att_pallas.2} parent=0 // pred_check_branch
    %26 = sbr.rel (0) target = $region25
  $region24: #{spa_att_pallas.2} parent=0 // pred_region
    _
  $region25: #{spa_att_pallas.2} parent=0 // pred_fallthru
    _
  // Predicated region
  $region26: #{spa_att_pallas.2} parent=0 // pred_check
    _
  $region27: #{spa_att_pallas.2} parent=0 // pred_check_branch
    %28 = sbr.rel (0) target = $region29
  $region28: #{spa_att_pallas.2} parent=0 // pred_region
    _
  $region29: #{spa_att_pallas.2} parent=0 // pred_fallthru
    _
  %v29 = vld [vmem:[%s0] sm:$0xff]
  %v30 = vld [vmem:[%s0 + $0x8] sm:$0xff]
  %v31 = vld [vmem:[%s0 + $0x10] sm:$0xff]
  %v32 = vld [vmem:[%s0 + $0x18] sm:$0xff]
  %v33 = vld [vmem:[%s0 + $0x20] sm:$0xff]
  %v34 = vld [vmem:[%s0 + $0x28] sm:$0xff]
  %v35 = vld [vmem:[%s0 + $0x30] sm:$0xff]
  %v36 = vld [vmem:[%s0 + $0x38] sm:$0xff]
  %v37 = vld [vmem:[%s0 + $0x40] sm:$0xff]
  %v38 = vld [vmem:[%s0 + $0x48] sm:$0xff]
  %v39 = vld [vmem:[%s0 + $0x50] sm:$0xff]
  %v40 = vld [vmem:[%s0 + $0x58] sm:$0xff]
  %v41 = vld [vmem:[%s0 + $0x60] sm:$0xff]
  %v42 = vld [vmem:[%s0 + $0x68] sm:$0xff]
  %v43 = vld [vmem:[%s0 + $0x70] sm:$0xff]
  %v44 = vld [vmem:[%s0 + $0x78] sm:$0xff]
  %v45 = vld [vmem:[%s0 + $0x80] sm:$0xff]
  %v46 = vld [vmem:[%s0 + $0x88] sm:$0xff]
  %v47 = vld [vmem:[%s0 + $0x90] sm:$0xff]
  %v48 = vld [vmem:[%s0 + $0x98] sm:$0xff]
  %v49 = vld [vmem:[%s0 + $0xa0] sm:$0xff]
  %v50 = vld [vmem:[%s0 + $0xa8] sm:$0xff]
  %v51 = vld [vmem:[%s0 + $0xb0] sm:$0xff]
  %v52 = vld [vmem:[%s0 + $0xb8] sm:$0xff]
  %v53 = vld [vmem:[%s0 + $0xc0] sm:$0xff]
  %v54 = vld [vmem:[%s0 + $0xc8] sm:$0xff]
  %v55 = vld [vmem:[%s0 + $0xd0] sm:$0xff]
  %v56 = vld [vmem:[%s0 + $0xd8] sm:$0xff]
  %v57 = vld [vmem:[%s0 + $0xe0] sm:$0xff]
  %v58 = vld [vmem:[%s0 + $0xe8] sm:$0xff]
  %v59 = vld [vmem:[%s0 + $0xf0] sm:$0xff]
  %v60 = vld [vmem:[%s0 + $0xf8] sm:$0xff]
  %v61 = vld [vmem:[%s0 + $0x100] sm:$0xff]
  %v62 = vld [vmem:[%s0 + $0x108] sm:$0xff]
  %v63 = vld [vmem:[%s0 + $0x110] sm:$0xff]
  %v64 = vld [vmem:[%s0 + $0x118] sm:$0xff]
  %v65 = vld [vmem:[%s0 + $0x120] sm:$0xff]
  %v66 = vld [vmem:[%s0 + $0x128] sm:$0xff]
  %v67 = vld [vmem:[%s0 + $0x130] sm:$0xff]
  %v68 = vld [vmem:[%s0 + $0x138] sm:$0xff]
  %v69 = vld [vmem:[%s0 + $0x140] sm:$0xff]
  %v70 = vld [vmem:[%s0 + $0x148] sm:$0xff]
  %v71 = vld [vmem:[%s0 + $0x150] sm:$0xff]
  %v72 = vld [vmem:[%s0 + $0x158] sm:$0xff]
  %v73 = vld [vmem:[%s0 + $0x160] sm:$0xff]
  %v74 = vld [vmem:[%s0 + $0x168] sm:$0xff]
  %v75 = vld [vmem:[%s0 + $0x170] sm:$0xff]
  %v76 = vld [vmem:[%s0 + $0x178] sm:$0xff]
  %v77 = vld [vmem:[%s0 + $0x180] sm:$0xff]
  %v78 = vld [vmem:[%s0 + $0x188] sm:$0xff]
  %v79 = vld [vmem:[%s0 + $0x190] sm:$0xff]
  %v80 = vld [vmem:[%s0 + $0x198] sm:$0xff]
  %v81 = vld [vmem:[%s0 + $0x1a0] sm:$0xff]
  %v82 = vld [vmem:[%s0 + $0x1a8] sm:$0xff]
  %v83 = vld [vmem:[%s0 + $0x1b0] sm:$0xff]
  %v84 = vld [vmem:[%s0 + $0x1b8] sm:$0xff]
  %v85 = vld [vmem:[%s0 + $0x1c0] sm:$0xff]
  %v86 = vld [vmem:[%s0 + $0x1c8] sm:$0xff]
  %v87 = vld [vmem:[%s0 + $0x1d0] sm:$0xff]
  %v88 = vld [vmem:[%s0 + $0x1d8] sm:$0xff]
  %v89 = vld [vmem:[%s0 + $0x1e0] sm:$0xff]
  %v90 = vld [vmem:[%s0 + $0x1e8] sm:$0xff]
  %v91 = vld [vmem:[%s0 + $0x1f0] sm:$0xff]
  %v92 = vld [vmem:[%s0 + $0x1f8] sm:$0xff]
  %v93 = vld [vmem:[%s1] sm:$0xff]
  %v94 = vld [vmem:[%s1 + $0x8] sm:$0xff]
  %v95 = vld [vmem:[%s1 + $0x10] sm:$0xff]
  %v96 = vld [vmem:[%s1 + $0x18] sm:$0xff]
  %v97 = vld [vmem:[%s1 + $0x20] sm:$0xff]
  %v98 = vld [vmem:[%s1 + $0x28] sm:$0xff]
  %v99 = vld [vmem:[%s1 + $0x30] sm:$0xff]
  %v100 = vld [vmem:[%s1 + $0x38] sm:$0xff]
  %v101 = vld [vmem:[%s1 + $0x40] sm:$0xff]
  %v102 = vld [vmem:[%s1 + $0x48] sm:$0xff]
  %v103 = vld [vmem:[%s1 + $0x50] sm:$0xff]
  %v104 = vld [vmem:[%s1 + $0x58] sm:$0xff]
  %v105 = vld [vmem:[%s1 + $0x60] sm:$0xff]
  %v106 = vld [vmem:[%s1 + $0x68] sm:$0xff]
  %v107 = vld [vmem:[%s1 + $0x70] sm:$0xff]
  %v108 = vld [vmem:[%s1 + $0x78] sm:$0xff]
  %v109 = vld [vmem:[%s2] sm:$0xf]
  %v111 = vlaneseq
  %v112 = vshrl.u32 %v111, 7
  %v113 = vsub.s32 0, %v112
  %v114 = vrot.slane %v109, %v113
  %v115 = vlaneseq
  %v116 = vshrl.u32 %v115, 7
  %v117 = vsub.s32 1, %v116
  %v118 = vrot.slane %v109, %v117
  %v119 = vlaneseq
  %v120 = vshrl.u32 %v119, 7
  %v121 = vsub.s32 2, %v120
  %v122 = vrot.slane %v109, %v121
  %v123 = vlaneseq
  %v124 = vshrl.u32 %v123, 7
  %v125 = vsub.s32 3, %v124
  %v126 = vrot.slane %v109, %v125
  %vm131 = vcmask 261120
  %v133 = vsel %vm131, %v29, 0
  %v136 = vsel %vm131, %v30, 0
  %v139 = vsel %vm131, %v31, 0
  %v142 = vsel %vm131, %v32, 0
  %v145 = vsel %vm131, %v33, 0
  %v148 = vsel %vm131, %v34, 0
  %v151 = vsel %vm131, %v35, 0
  %v154 = vsel %vm131, %v36, 0
  %v157 = vsel %vm131, %v37, 0
  %v160 = vsel %vm131, %v38, 0
  %v163 = vsel %vm131, %v39, 0
  %v166 = vsel %vm131, %v40, 0
  %v169 = vsel %vm131, %v41, 0
  %v172 = vsel %vm131, %v42, 0
  %v175 = vsel %vm131, %v43, 0
  %v178 = vsel %vm131, %v44, 0
  %v181 = vsel %vm131, %v45, 0
  %v184 = vsel %vm131, %v46, 0
  %v187 = vsel %vm131, %v47, 0
  %v190 = vsel %vm131, %v48, 0
  %v193 = vsel %vm131, %v49, 0
  %v196 = vsel %vm131, %v50, 0
  %v199 = vsel %vm131, %v51, 0
  %v202 = vsel %vm131, %v52, 0
  %v205 = vsel %vm131, %v53, 0
  %v208 = vsel %vm131, %v54, 0
  %v211 = vsel %vm131, %v55, 0
  %v214 = vsel %vm131, %v56, 0
  %v217 = vsel %vm131, %v57, 0
  %v220 = vsel %vm131, %v58, 0
  %v223 = vsel %vm131, %v59, 0
  %v226 = vsel %vm131, %v60, 0
  %v229 = vsel %vm131, %v61, 0
  %v232 = vsel %vm131, %v62, 0
  %v235 = vsel %vm131, %v63, 0
  %v238 = vsel %vm131, %v64, 0
  %v241 = vsel %vm131, %v65, 0
  %v244 = vsel %vm131, %v66, 0
  %v247 = vsel %vm131, %v67, 0
  %v250 = vsel %vm131, %v68, 0
  %v253 = vsel %vm131, %v69, 0
  %v256 = vsel %vm131, %v70, 0
  %v259 = vsel %vm131, %v71, 0
  %v262 = vsel %vm131, %v72, 0
  %v265 = vsel %vm131, %v73, 0
  %v268 = vsel %vm131, %v74, 0
  %v271 = vsel %vm131, %v75, 0
  %v274 = vsel %vm131, %v76, 0
  %v277 = vsel %vm131, %v77, 0
  %v280 = vsel %vm131, %v78, 0
  %v283 = vsel %vm131, %v79, 0
  %v286 = vsel %vm131, %v80, 0
  %v289 = vsel %vm131, %v81, 0
  %v292 = vsel %vm131, %v82, 0
  %v295 = vsel %vm131, %v83, 0
  %v298 = vsel %vm131, %v84, 0
  %v301 = vsel %vm131, %v85, 0
  %v304 = vsel %vm131, %v86, 0
  %v307 = vsel %vm131, %v87, 0
  %v310 = vsel %vm131, %v88, 0
  %v313 = vsel %vm131, %v89, 0
  %v316 = vsel %vm131, %v90, 0
  %v319 = vsel %vm131, %v91, 0
  %v322 = vsel %vm131, %v92, 0
  %324 = vmatprep.subr.mxu0 0.0
  %325 = vmatpush1.msra.mxu0 0.0
  %326 = vmatprep.subr.mxu0 0.0
  %327 = vmatpush1.msra.mxu0 0.0
  %328 = vmatprep.subr.mxu0 0.0
  %329 = vmatpush1.msra.mxu0 0.0
  %330 = vmatprep.subr.mxu0 0.0
  %331 = vmatpush1.msra.mxu0 0.0
  %332 = vmatprep.subr.mxu0 0.0
  %333 = vmatpush1.msra.mxu0 0.0
  %334 = vmatprep.subr.mxu0 0.0
  %335 = vmatpush1.msra.mxu0 0.0
  %336 = vmatprep.subr.mxu0 0.0
  %337 = vmatpush1.msra.mxu0 0.0
  %338 = vmatprep.subr.mxu0 0.0
  %339 = vmatpush1.msra.mxu0 0.0
  %340 = vmatprep.subr.mxu0 0.0
  %341 = vmatpush1.msra.mxu0 0.0
  %342 = vmatprep.subr.mxu0 0.0
  %343 = vmatpush1.msra.mxu0 0.0
  %344 = vmatprep.subr.mxu0 0.0
  %345 = vmatpush1.msra.mxu0 0.0
  %346 = vmatprep.subr.mxu0 0.0
  %347 = vmatpush1.msra.mxu0 0.0
  %348 = vmatprep.subr.mxu0 %v106
  %349 = vmatpush1.msra.mxu0 %v105
  %350 = vmatprep.subr.mxu0 %v102
  %351 = vmatpush1.msra.mxu0 %v101
  %352 = vmatprep.subr.mxu0 %v98
  %353 = vmatpush1.msra.mxu0 %v97
  %354 = vmatprep.subr.mxu0 %v94
  %355 = vmatpush1.msra.mxu0 %v93
  %356 = vmatprep.subr.mxu0 0.0
  %357 = vmatpush2.msra.mxu0 0.0
  %358 = vmatprep.subr.mxu0 0.0
  %359 = vmatpush2.msra.mxu0 0.0
  %360 = vmatprep.subr.mxu0 0.0
  %361 = vmatpush2.msra.mxu0 0.0
  %362 = vmatprep.subr.mxu0 0.0
  %363 = vmatpush2.msra.mxu0 0.0
  %364 = vmatprep.subr.mxu0 0.0
  %365 = vmatpush2.msra.mxu0 0.0
  %366 = vmatprep.subr.mxu0 0.0
  %367 = vmatpush2.msra.mxu0 0.0
  %368 = vmatprep.subr.mxu0 0.0
  %369 = vmatpush2.msra.mxu0 0.0
  %370 = vmatprep.subr.mxu0 0.0
  %371 = vmatpush2.msra.mxu0 0.0
  %372 = vmatprep.subr.mxu0 0.0
  %373 = vmatpush2.msra.mxu0 0.0
  %374 = vmatprep.subr.mxu0 0.0
  %375 = vmatpush2.msra.mxu0 0.0
  %376 = vmatprep.subr.mxu0 0.0
  %377 = vmatpush2.msra.mxu0 0.0
  %378 = vmatprep.subr.mxu0 0.0
  %379 = vmatpush2.msra.mxu0 0.0
  %380 = vmatprep.subr.mxu0 0.0
  %381 = vmatpush2.msra.mxu0 0.0
  %382 = vmatprep.subr.mxu0 0.0
  %383 = vmatpush2.msra.mxu0 0.0
  %384 = vmatprep.subr.mxu0 0.0
  %385 = vmatpush2.msra.mxu0 0.0
  %386 = vmatprep.subr.mxu0 0.0
  %387 = vmatpush2.msra.mxu0 0.0
  %388 = vmatprep.mubr.f32.mxu0 0.0
  %389 = vmatmul.mubr.f32.gmra.mxu0 %v133
  %v390 = vpop.f32.mrf.mxu0
  %v391 = vadd.f32 %v114, %v390
  %v392 = vpop.f32.mrf.mxu0
  %v393 = vadd.f32 %v118, %v392
  %394 = vmatprep.mubr.f32.mxu0 0.0
  %395 = vmatmul.mubr.f32.gmra.mxu0 %v136
  %v396 = vpop.f32.mrf.mxu0
  %v397 = vadd.f32 %v114, %v396
  %v398 = vpop.f32.mrf.mxu0
  %v399 = vadd.f32 %v118, %v398
  %400 = vmatprep.mubr.f32.mxu0 0.0
  %401 = vmatmul.mubr.f32.gmra.mxu0 %v139
  %v402 = vpop.f32.mrf.mxu0
  %v403 = vadd.f32 %v114, %v402
  %v404 = vpop.f32.mrf.mxu0
  %v405 = vadd.f32 %v118, %v404
  %406 = vmatprep.mubr.f32.mxu0 0.0
  %407 = vmatmul.mubr.f32.gmra.mxu0 %v142
  %v408 = vpop.f32.mrf.mxu0
  %v409 = vadd.f32 %v114, %v408
  %v410 = vpop.f32.mrf.mxu0
  %v411 = vadd.f32 %v118, %v410
  %412 = vmatprep.mubr.f32.mxu0 0.0
  %413 = vmatmul.mubr.f32.gmra.mxu0 %v145
  %v414 = vpop.f32.mrf.mxu0
  %v415 = vadd.f32 %v114, %v414
  %v416 = vpop.f32.mrf.mxu0
  %v417 = vadd.f32 %v118, %v416
  %418 = vmatprep.mubr.f32.mxu0 0.0
  %419 = vmatmul.mubr.f32.gmra.mxu0 %v148
  %v420 = vpop.f32.mrf.mxu0
  %v421 = vadd.f32 %v114, %v420
  %v422 = vpop.f32.mrf.mxu0
  %v423 = vadd.f32 %v118, %v422
  %424 = vmatprep.mubr.f32.mxu0 0.0
  %425 = vmatmul.mubr.f32.gmra.mxu0 %v151
  %v426 = vpop.f32.mrf.mxu0
  %v427 = vadd.f32 %v114, %v426
  %v428 = vpop.f32.mrf.mxu0
  %v429 = vadd.f32 %v118, %v428
  %430 = vmatprep.mubr.f32.mxu0 0.0
  %431 = vmatmul.mubr.f32.gmra.mxu0 %v154
  %v432 = vpop.f32.mrf.mxu0
  %v433 = vadd.f32 %v114, %v432
  %v434 = vpop.f32.mrf.mxu0
  %v435 = vadd.f32 %v118, %v434
  %436 = vmatprep.mubr.f32.mxu0 0.0
  %437 = vmatmul.mubr.f32.gmra.mxu0 %v157
  %v438 = vpop.f32.mrf.mxu0
  %v439 = vadd.f32 %v114, %v438
  %v440 = vpop.f32.mrf.mxu0
  %v441 = vadd.f32 %v118, %v440
  %442 = vmatprep.mubr.f32.mxu0 0.0
  %443 = vmatmul.mubr.f32.gmra.mxu0 %v160
  %v444 = vpop.f32.mrf.mxu0
  %v445 = vadd.f32 %v114, %v444
  %v446 = vpop.f32.mrf.mxu0
  %v447 = vadd.f32 %v118, %v446
  %448 = vmatprep.mubr.f32.mxu0 0.0
  %449 = vmatmul.mubr.f32.gmra.mxu0 %v163
  %v450 = vpop.f32.mrf.mxu0
  %v451 = vadd.f32 %v114, %v450
  %v452 = vpop.f32.mrf.mxu0
  %v453 = vadd.f32 %v118, %v452
  %454 = vmatprep.mubr.f32.mxu0 0.0
  %455 = vmatmul.mubr.f32.gmra.mxu0 %v166
  %v456 = vpop.f32.mrf.mxu0
  %v457 = vadd.f32 %v114, %v456
  %v458 = vpop.f32.mrf.mxu0
  %v459 = vadd.f32 %v118, %v458
  %460 = vmatprep.mubr.f32.mxu0 0.0
  %461 = vmatmul.mubr.f32.gmra.mxu0 %v169
  %v462 = vpop.f32.mrf.mxu0
  %v463 = vadd.f32 %v114, %v462
  %v464 = vpop.f32.mrf.mxu0
  %v465 = vadd.f32 %v118, %v464
  %466 = vmatprep.mubr.f32.mxu0 0.0
  %467 = vmatmul.mubr.f32.gmra.mxu0 %v172
  %v468 = vpop.f32.mrf.mxu0
  %v469 = vadd.f32 %v114, %v468
  %v470 = vpop.f32.mrf.mxu0
  %v471 = vadd.f32 %v118, %v470
  %472 = vmatprep.mubr.f32.mxu0 0.0
  %473 = vmatmul.mubr.f32.gmra.mxu0 %v175
  %v474 = vpop.f32.mrf.mxu0
  %v475 = vadd.f32 %v114, %v474
  %v476 = vpop.f32.mrf.mxu0
  %v477 = vadd.f32 %v118, %v476
  %478 = vmatprep.mubr.f32.mxu0 0.0
  %479 = vmatmul.mubr.f32.gmra.mxu0 %v178
  %v480 = vpop.f32.mrf.mxu0
  %v481 = vadd.f32 %v114, %v480
  %v482 = vpop.f32.mrf.mxu0
  %v483 = vadd.f32 %v118, %v482
  %484 = vmatprep.mubr.f32.mxu0 0.0
  %485 = vmatmul.mubr.f32.gmra.mxu0 %v181
  %v486 = vpop.f32.mrf.mxu0
  %v487 = vadd.f32 %v114, %v486
  %v488 = vpop.f32.mrf.mxu0
  %v489 = vadd.f32 %v118, %v488
  %490 = vmatprep.mubr.f32.mxu0 0.0
  %491 = vmatmul.mubr.f32.gmra.mxu0 %v184
  %v492 = vpop.f32.mrf.mxu0
  %v493 = vadd.f32 %v114, %v492
  %v494 = vpop.f32.mrf.mxu0
  %v495 = vadd.f32 %v118, %v494
  %496 = vmatprep.mubr.f32.mxu0 0.0
  %497 = vmatmul.mubr.f32.gmra.mxu0 %v187
  %v498 = vpop.f32.mrf.mxu0
  %v499 = vadd.f32 %v114, %v498
  %v500 = vpop.f32.mrf.mxu0
  %v501 = vadd.f32 %v118, %v500
  %502 = vmatprep.mubr.f32.mxu0 0.0
  %503 = vmatmul.mubr.f32.gmra.mxu0 %v190
  %v504 = vpop.f32.mrf.mxu0
  %v505 = vadd.f32 %v114, %v504
  %v506 = vpop.f32.mrf.mxu0
  %v507 = vadd.f32 %v118, %v506
  %508 = vmatprep.mubr.f32.mxu0 0.0
  %509 = vmatmul.mubr.f32.gmra.mxu0 %v193
  %v510 = vpop.f32.mrf.mxu0
  %v511 = vadd.f32 %v114, %v510
  %v512 = vpop.f32.mrf.mxu0
  %v513 = vadd.f32 %v118, %v512
  %514 = vmatprep.mubr.f32.mxu0 0.0
  %515 = vmatmul.mubr.f32.gmra.mxu0 %v196
  %v516 = vpop.f32.mrf.mxu0
  %v517 = vadd.f32 %v114, %v516
  %v518 = vpop.f32.mrf.mxu0
  %v519 = vadd.f32 %v118, %v518
  %520 = vmatprep.mubr.f32.mxu0 0.0
  %521 = vmatmul.mubr.f32.gmra.mxu0 %v199
  %v522 = vpop.f32.mrf.mxu0
  %v523 = vadd.f32 %v114, %v522
  %v524 = vpop.f32.mrf.mxu0
  %v525 = vadd.f32 %v118, %v524
  %526 = vmatprep.mubr.f32.mxu0 0.0
  %527 = vmatmul.mubr.f32.gmra.mxu0 %v202
  %v528 = vpop.f32.mrf.mxu0
  %v529 = vadd.f32 %v114, %v528
  %v530 = vpop.f32.mrf.mxu0
  %v531 = vadd.f32 %v118, %v530
  %532 = vmatprep.mubr.f32.mxu0 0.0
  %533 = vmatmul.mubr.f32.gmra.mxu0 %v205
  %v534 = vpop.f32.mrf.mxu0
  %v535 = vadd.f32 %v114, %v534
  %v536 = vpop.f32.mrf.mxu0
  %v537 = vadd.f32 %v118, %v536
  %538 = vmatprep.mubr.f32.mxu0 0.0
  %539 = vmatmul.mubr.f32.gmra.mxu0 %v208
  %v540 = vpop.f32.mrf.mxu0
  %v541 = vadd.f32 %v114, %v540
  %v542 = vpop.f32.mrf.mxu0
  %v543 = vadd.f32 %v118, %v542
  %544 = vmatprep.mubr.f32.mxu0 0.0
  %545 = vmatmul.mubr.f32.gmra.mxu0 %v211
  %v546 = vpop.f32.mrf.mxu0
  %v547 = vadd.f32 %v114, %v546
  %v548 = vpop.f32.mrf.mxu0
  %v549 = vadd.f32 %v118, %v548
  %550 = vmatprep.mubr.f32.mxu0 0.0
  %551 = vmatmul.mubr.f32.gmra.mxu0 %v214
  %v552 = vpop.f32.mrf.mxu0
  %v553 = vadd.f32 %v114, %v552
  %v554 = vpop.f32.mrf.mxu0
  %v555 = vadd.f32 %v118, %v554
  %556 = vmatprep.mubr.f32.mxu0 0.0
  %557 = vmatmul.mubr.f32.gmra.mxu0 %v217
  %v558 = vpop.f32.mrf.mxu0
  %v559 = vadd.f32 %v114, %v558
  %v560 = vpop.f32.mrf.mxu0
  %v561 = vadd.f32 %v118, %v560
  %562 = vmatprep.mubr.f32.mxu0 0.0
  %563 = vmatmul.mubr.f32.gmra.mxu0 %v220
  %v564 = vpop.f32.mrf.mxu0
  %v565 = vadd.f32 %v114, %v564
  %v566 = vpop.f32.mrf.mxu0
  %v567 = vadd.f32 %v118, %v566
  %568 = vmatprep.mubr.f32.mxu0 0.0
  %569 = vmatmul.mubr.f32.gmra.mxu0 %v223
  %v570 = vpop.f32.mrf.mxu0
  %v571 = vadd.f32 %v114, %v570
  %v572 = vpop.f32.mrf.mxu0
  %v573 = vadd.f32 %v118, %v572
  %574 = vmatprep.mubr.f32.mxu0 0.0
  %575 = vmatmul.mubr.f32.gmra.mxu0 %v226
  %v576 = vpop.f32.mrf.mxu0
  %v577 = vadd.f32 %v114, %v576
  %v578 = vpop.f32.mrf.mxu0
  %v579 = vadd.f32 %v118, %v578
  %580 = vmatprep.mubr.f32.mxu0 0.0
  %581 = vmatmul.mubr.f32.gmra.mxu0 %v229
  %v582 = vpop.f32.mrf.mxu0
  %v583 = vadd.f32 %v114, %v582
  %v584 = vpop.f32.mrf.mxu0
  %v585 = vadd.f32 %v118, %v584
  %586 = vmatprep.mubr.f32.mxu0 0.0
  %587 = vmatmul.mubr.f32.gmra.mxu0 %v232
  %v588 = vpop.f32.mrf.mxu0
  %v589 = vadd.f32 %v114, %v588
  %v590 = vpop.f32.mrf.mxu0
  %v591 = vadd.f32 %v118, %v590
  %592 = vmatprep.mubr.f32.mxu0 0.0
  %593 = vmatmul.mubr.f32.gmra.mxu0 %v235
  %v594 = vpop.f32.mrf.mxu0
  %v595 = vadd.f32 %v114, %v594
  %v596 = vpop.f32.mrf.mxu0
  %v597 = vadd.f32 %v118, %v596
  %598 = vmatprep.mubr.f32.mxu0 0.0
  %599 = vmatmul.mubr.f32.gmra.mxu0 %v238
  %v600 = vpop.f32.mrf.mxu0
  %v601 = vadd.f32 %v114, %v600
  %v602 = vpop.f32.mrf.mxu0
  %v603 = vadd.f32 %v118, %v602
  %604 = vmatprep.mubr.f32.mxu0 0.0
  %605 = vmatmul.mubr.f32.gmra.mxu0 %v241
  %v606 = vpop.f32.mrf.mxu0
  %v607 = vadd.f32 %v114, %v606
  %v608 = vpop.f32.mrf.mxu0
  %v609 = vadd.f32 %v118, %v608
  %610 = vmatprep.mubr.f32.mxu0 0.0
  %611 = vmatmul.mubr.f32.gmra.mxu0 %v244
  %v612 = vpop.f32.mrf.mxu0
  %v613 = vadd.f32 %v114, %v612
  %v614 = vpop.f32.mrf.mxu0
  %v615 = vadd.f32 %v118, %v614
  %616 = vmatprep.mubr.f32.mxu0 0.0
  %617 = vmatmul.mubr.f32.gmra.mxu0 %v247
  %v618 = vpop.f32.mrf.mxu0
  %v619 = vadd.f32 %v114, %v618
  %v620 = vpop.f32.mrf.mxu0
  %v621 = vadd.f32 %v118, %v620
  %622 = vmatprep.mubr.f32.mxu0 0.0
  %623 = vmatmul.mubr.f32.gmra.mxu0 %v250
  %v624 = vpop.f32.mrf.mxu0
  %v625 = vadd.f32 %v114, %v624
  %v626 = vpop.f32.mrf.mxu0
  %v627 = vadd.f32 %v118, %v626
  %628 = vmatprep.mubr.f32.mxu0 0.0
  %629 = vmatmul.mubr.f32.gmra.mxu0 %v253
  %v630 = vpop.f32.mrf.mxu0
  %v631 = vadd.f32 %v114, %v630
  %v632 = vpop.f32.mrf.mxu0
  %v633 = vadd.f32 %v118, %v632
  %634 = vmatprep.mubr.f32.mxu0 0.0
  %635 = vmatmul.mubr.f32.gmra.mxu0 %v256
  %v636 = vpop.f32.mrf.mxu0
  %v637 = vadd.f32 %v114, %v636
  %v638 = vpop.f32.mrf.mxu0
  %v639 = vadd.f32 %v118, %v638
  %640 = vmatprep.mubr.f32.mxu0 0.0
  %641 = vmatmul.mubr.f32.gmra.mxu0 %v259
  %v642 = vpop.f32.mrf.mxu0
  %v643 = vadd.f32 %v114, %v642
  %v644 = vpop.f32.mrf.mxu0
  %v645 = vadd.f32 %v118, %v644
  %646 = vmatprep.mubr.f32.mxu0 0.0
  %647 = vmatmul.mubr.f32.gmra.mxu0 %v262
  %v648 = vpop.f32.mrf.mxu0
  %v649 = vadd.f32 %v114, %v648
  %v650 = vpop.f32.mrf.mxu0
  %v651 = vadd.f32 %v118, %v650
  %652 = vmatprep.mubr.f32.mxu0 0.0
  %653 = vmatmul.mubr.f32.gmra.mxu0 %v265
  %v654 = vpop.f32.mrf.mxu0
  %v655 = vadd.f32 %v114, %v654
  %v656 = vpop.f32.mrf.mxu0
  %v657 = vadd.f32 %v118, %v656
  %658 = vmatprep.mubr.f32.mxu0 0.0
  %659 = vmatmul.mubr.f32.gmra.mxu0 %v268
  %v660 = vpop.f32.mrf.mxu0
  %v661 = vadd.f32 %v114, %v660
  %v662 = vpop.f32.mrf.mxu0
  %v663 = vadd.f32 %v118, %v662
  %664 = vmatprep.mubr.f32.mxu0 0.0
  %665 = vmatmul.mubr.f32.gmra.mxu0 %v271
  %v666 = vpop.f32.mrf.mxu0
  %v667 = vadd.f32 %v114, %v666
  %v668 = vpop.f32.mrf.mxu0
  %v669 = vadd.f32 %v118, %v668
  %670 = vmatprep.mubr.f32.mxu0 0.0
  %671 = vmatmul.mubr.f32.gmra.mxu0 %v274
  %v672 = vpop.f32.mrf.mxu0
  %v673 = vadd.f32 %v114, %v672
  %v674 = vpop.f32.mrf.mxu0
  %v675 = vadd.f32 %v118, %v674
  %676 = vmatprep.mubr.f32.mxu0 0.0
  %677 = vmatmul.mubr.f32.gmra.mxu0 %v277
  %v678 = vpop.f32.mrf.mxu0
  %v679 = vadd.f32 %v114, %v678
  %v680 = vpop.f32.mrf.mxu0
  %v681 = vadd.f32 %v118, %v680
  %682 = vmatprep.mubr.f32.mxu0 0.0
  %683 = vmatmul.mubr.f32.gmra.mxu0 %v280
  %v684 = vpop.f32.mrf.mxu0
  %v685 = vadd.f32 %v114, %v684
  %v686 = vpop.f32.mrf.mxu0
  %v687 = vadd.f32 %v118, %v686
  %688 = vmatprep.mubr.f32.mxu0 0.0
  %689 = vmatmul.mubr.f32.gmra.mxu0 %v283
  %v690 = vpop.f32.mrf.mxu0
  %v691 = vadd.f32 %v114, %v690
  %v692 = vpop.f32.mrf.mxu0
  %v693 = vadd.f32 %v118, %v692
  %694 = vmatprep.mubr.f32.mxu0 0.0
  %695 = vmatmul.mubr.f32.gmra.mxu0 %v286
  %v696 = vpop.f32.mrf.mxu0
  %v697 = vadd.f32 %v114, %v696
  %v698 = vpop.f32.mrf.mxu0
  %v699 = vadd.f32 %v118, %v698
  %700 = vmatprep.mubr.f32.mxu0 0.0
  %701 = vmatmul.mubr.f32.gmra.mxu0 %v289
  %v702 = vpop.f32.mrf.mxu0
  %v703 = vadd.f32 %v114, %v702
  %v704 = vpop.f32.mrf.mxu0
  %v705 = vadd.f32 %v118, %v704
  %706 = vmatprep.mubr.f32.mxu0 0.0
  %707 = vmatmul.mubr.f32.gmra.mxu0 %v292
  %v708 = vpop.f32.mrf.mxu0
  %v709 = vadd.f32 %v114, %v708
  %v710 = vpop.f32.mrf.mxu0
  %v711 = vadd.f32 %v118, %v710
  %712 = vmatprep.mubr.f32.mxu0 0.0
  %713 = vmatmul.mubr.f32.gmra.mxu0 %v295
  %v714 = vpop.f32.mrf.mxu0
  %v715 = vadd.f32 %v114, %v714
  %v716 = vpop.f32.mrf.mxu0
  %v717 = vadd.f32 %v118, %v716
  %718 = vmatprep.mubr.f32.mxu0 0.0
  %719 = vmatmul.mubr.f32.gmra.mxu0 %v298
  %v720 = vpop.f32.mrf.mxu0
  %v721 = vadd.f32 %v114, %v720
  %v722 = vpop.f32.mrf.mxu0
  %v723 = vadd.f32 %v118, %v722
  %724 = vmatprep.mubr.f32.mxu0 0.0
  %725 = vmatmul.mubr.f32.gmra.mxu0 %v301
  %v726 = vpop.f32.mrf.mxu0
  %v727 = vadd.f32 %v114, %v726
  %v728 = vpop.f32.mrf.mxu0
  %v729 = vadd.f32 %v118, %v728
  %730 = vmatprep.mubr.f32.mxu0 0.0
  %731 = vmatmul.mubr.f32.gmra.mxu0 %v304
  %v732 = vpop.f32.mrf.mxu0
  %v733 = vadd.f32 %v114, %v732
  %v734 = vpop.f32.mrf.mxu0
  %v735 = vadd.f32 %v118, %v734
  %736 = vmatprep.mubr.f32.mxu0 0.0
  %737 = vmatmul.mubr.f32.gmra.mxu0 %v307
  %v738 = vpop.f32.mrf.mxu0
  %v739 = vadd.f32 %v114, %v738
  %v740 = vpop.f32.mrf.mxu0
  %v741 = vadd.f32 %v118, %v740
  %742 = vmatprep.mubr.f32.mxu0 0.0
  %743 = vmatmul.mubr.f32.gmra.mxu0 %v310
  %v744 = vpop.f32.mrf.mxu0
  %v745 = vadd.f32 %v114, %v744
  %v746 = vpop.f32.mrf.mxu0
  %v747 = vadd.f32 %v118, %v746
  %748 = vmatprep.mubr.f32.mxu0 0.0
  %749 = vmatmul.mubr.f32.gmra.mxu0 %v313
  %v750 = vpop.f32.mrf.mxu0
  %v751 = vadd.f32 %v114, %v750
  %v752 = vpop.f32.mrf.mxu0
  %v753 = vadd.f32 %v118, %v752
  %754 = vmatprep.mubr.f32.mxu0 0.0
  %755 = vmatmul.mubr.f32.gmra.mxu0 %v316
  %v756 = vpop.f32.mrf.mxu0
  %v757 = vadd.f32 %v114, %v756
  %v758 = vpop.f32.mrf.mxu0
  %v759 = vadd.f32 %v118, %v758
  %760 = vmatprep.mubr.f32.mxu0 0.0
  %761 = vmatmul.mubr.f32.gmra.mxu0 %v319
  %v762 = vpop.f32.mrf.mxu0
  %v763 = vadd.f32 %v114, %v762
  %v764 = vpop.f32.mrf.mxu0
  %v765 = vadd.f32 %v118, %v764
  %766 = vmatprep.mubr.f32.mxu0 0.0
  %767 = vmatmul.mubr.f32.gmra.mxu0 %v322
  %v768 = vpop.f32.mrf.mxu0
  %v769 = vadd.f32 %v114, %v768
  %v770 = vpop.f32.mrf.mxu0
  %v771 = vadd.f32 %v118, %v770
  %772 = vdwg.mxu0
  %773 = vmatprep.subr.mxu0 0.0
  %774 = vmatpush1.msra.mxu0 0.0
  %775 = vmatprep.subr.mxu0 0.0
  %776 = vmatpush1.msra.mxu0 0.0
  %777 = vmatprep.subr.mxu0 0.0
  %778 = vmatpush1.msra.mxu0 0.0
  %779 = vmatprep.subr.mxu0 0.0
  %780 = vmatpush1.msra.mxu0 0.0
  %781 = vmatprep.subr.mxu0 0.0
  %782 = vmatpush1.msra.mxu0 0.0
  %783 = vmatprep.subr.mxu0 0.0
  %784 = vmatpush1.msra.mxu0 0.0
  %785 = vmatprep.subr.mxu0 0.0
  %786 = vmatpush1.msra.mxu0 0.0
  %787 = vmatprep.subr.mxu0 0.0
  %788 = vmatpush1.msra.mxu0 0.0
  %789 = vmatprep.subr.mxu0 0.0
  %790 = vmatpush1.msra.mxu0 0.0
  %791 = vmatprep.subr.mxu0 0.0
  %792 = vmatpush1.msra.mxu0 0.0
  %793 = vmatprep.subr.mxu0 0.0
  %794 = vmatpush1.msra.mxu0 0.0
  %795 = vmatprep.subr.mxu0 0.0
  %796 = vmatpush1.msra.mxu0 0.0
  %797 = vmatprep.subr.mxu0 %v108
  %798 = vmatpush1.msra.mxu0 %v107
  %799 = vmatprep.subr.mxu0 %v104
  %800 = vmatpush1.msra.mxu0 %v103
  %801 = vmatprep.subr.mxu0 %v100
  %802 = vmatpush1.msra.mxu0 %v99
  %803 = vmatprep.subr.mxu0 %v96
  %804 = vmatpush1.msra.mxu0 %v95
  %805 = vmatprep.subr.mxu0 0.0
  %806 = vmatpush2.msra.mxu0 0.0
  %807 = vmatprep.subr.mxu0 0.0
  %808 = vmatpush2.msra.mxu0 0.0
  %809 = vmatprep.subr.mxu0 0.0
  %810 = vmatpush2.msra.mxu0 0.0
  %811 = vmatprep.subr.mxu0 0.0
  %812 = vmatpush2.msra.mxu0 0.0
  %813 = vmatprep.subr.mxu0 0.0
  %814 = vmatpush2.msra.mxu0 0.0
  %815 = vmatprep.subr.mxu0 0.0
  %816 = vmatpush2.msra.mxu0 0.0
  %817 = vmatprep.subr.mxu0 0.0
  %818 = vmatpush2.msra.mxu0 0.0
  %819 = vmatprep.subr.mxu0 0.0
  %820 = vmatpush2.msra.mxu0 0.0
  %821 = vmatprep.subr.mxu0 0.0
  %822 = vmatpush2.msra.mxu0 0.0
  %823 = vmatprep.subr.mxu0 0.0
  %824 = vmatpush2.msra.mxu0 0.0
  %825 = vmatprep.subr.mxu0 0.0
  %826 = vmatpush2.msra.mxu0 0.0
  %827 = vmatprep.subr.mxu0 0.0
  %828 = vmatpush2.msra.mxu0 0.0
  %829 = vmatprep.subr.mxu0 0.0
  %830 = vmatpush2.msra.mxu0 0.0
  %831 = vmatprep.subr.mxu0 0.0
  %832 = vmatpush2.msra.mxu0 0.0
  %833 = vmatprep.subr.mxu0 0.0
  %834 = vmatpush2.msra.mxu0 0.0
  %835 = vmatprep.subr.mxu0 0.0
  %836 = vmatpush2.msra.mxu0 0.0
  %837 = vmatprep.mubr.f32.mxu0 0.0
  %838 = vmatmul.mubr.f32.gmra.mxu0 %v133
  %v839 = vpop.f32.mrf.mxu0
  %v840 = vadd.f32 %v122, %v839
  %v841 = vpop.f32.mrf.mxu0
  %v842 = vadd.f32 %v126, %v841
  %843 = vmatprep.mubr.f32.mxu0 0.0
  %844 = vmatmul.mubr.f32.gmra.mxu0 %v136
  %v845 = vpop.f32.mrf.mxu0
  %v846 = vadd.f32 %v122, %v845
  %v847 = vpop.f32.mrf.mxu0
  %v848 = vadd.f32 %v126, %v847
  %849 = vmatprep.mubr.f32.mxu0 0.0
  %850 = vmatmul.mubr.f32.gmra.mxu0 %v139
  %v851 = vpop.f32.mrf.mxu0
  %v852 = vadd.f32 %v122, %v851
  %v853 = vpop.f32.mrf.mxu0
  %v854 = vadd.f32 %v126, %v853
  %855 = vmatprep.mubr.f32.mxu0 0.0
  %856 = vmatmul.mubr.f32.gmra.mxu0 %v142
  %v857 = vpop.f32.mrf.mxu0
  %v858 = vadd.f32 %v122, %v857
  %v859 = vpop.f32.mrf.mxu0
  %v860 = vadd.f32 %v126, %v859
  %861 = vmatprep.mubr.f32.mxu0 0.0
  %862 = vmatmul.mubr.f32.gmra.mxu0 %v145
  %v863 = vpop.f32.mrf.mxu0
  %v864 = vadd.f32 %v122, %v863
  %v865 = vpop.f32.mrf.mxu0
  %v866 = vadd.f32 %v126, %v865
  %867 = vmatprep.mubr.f32.mxu0 0.0
  %868 = vmatmul.mubr.f32.gmra.mxu0 %v148
  %v869 = vpop.f32.mrf.mxu0
  %v870 = vadd.f32 %v122, %v869
  %v871 = vpop.f32.mrf.mxu0
  %v872 = vadd.f32 %v126, %v871
  %873 = vmatprep.mubr.f32.mxu0 0.0
  %874 = vmatmul.mubr.f32.gmra.mxu0 %v151
  %v875 = vpop.f32.mrf.mxu0
  %v876 = vadd.f32 %v122, %v875
  %v877 = vpop.f32.mrf.mxu0
  %v878 = vadd.f32 %v126, %v877
  %879 = vmatprep.mubr.f32.mxu0 0.0
  %880 = vmatmul.mubr.f32.gmra.mxu0 %v154
  %v881 = vpop.f32.mrf.mxu0
  %v882 = vadd.f32 %v122, %v881
  %v883 = vpop.f32.mrf.mxu0
  %v884 = vadd.f32 %v126, %v883
  %885 = vmatprep.mubr.f32.mxu0 0.0
  %886 = vmatmul.mubr.f32.gmra.mxu0 %v157
  %v887 = vpop.f32.mrf.mxu0
  %v888 = vadd.f32 %v122, %v887
  %v889 = vpop.f32.mrf.mxu0
  %v890 = vadd.f32 %v126, %v889
  %891 = vmatprep.mubr.f32.mxu0 0.0
  %892 = vmatmul.mubr.f32.gmra.mxu0 %v160
  %v893 = vpop.f32.mrf.mxu0
  %v894 = vadd.f32 %v122, %v893
  %v895 = vpop.f32.mrf.mxu0
  %v896 = vadd.f32 %v126, %v895
  %897 = vmatprep.mubr.f32.mxu0 0.0
  %898 = vmatmul.mubr.f32.gmra.mxu0 %v163
  %v899 = vpop.f32.mrf.mxu0
  %v900 = vadd.f32 %v122, %v899
  %v901 = vpop.f32.mrf.mxu0
  %v902 = vadd.f32 %v126, %v901
  %903 = vmatprep.mubr.f32.mxu0 0.0
  %904 = vmatmul.mubr.f32.gmra.mxu0 %v166
  %v905 = vpop.f32.mrf.mxu0
  %v906 = vadd.f32 %v122, %v905
  %v907 = vpop.f32.mrf.mxu0
  %v908 = vadd.f32 %v126, %v907
  %909 = vmatprep.mubr.f32.mxu0 0.0
  %910 = vmatmul.mubr.f32.gmra.mxu0 %v169
  %v911 = vpop.f32.mrf.mxu0
  %v912 = vadd.f32 %v122, %v911
  %v913 = vpop.f32.mrf.mxu0
  %v914 = vadd.f32 %v126, %v913
  %915 = vmatprep.mubr.f32.mxu0 0.0
  %916 = vmatmul.mubr.f32.gmra.mxu0 %v172
  %v917 = vpop.f32.mrf.mxu0
  %v918 = vadd.f32 %v122, %v917
  %v919 = vpop.f32.mrf.mxu0
  %v920 = vadd.f32 %v126, %v919
  %921 = vmatprep.mubr.f32.mxu0 0.0
  %922 = vmatmul.mubr.f32.gmra.mxu0 %v175
  %v923 = vpop.f32.mrf.mxu0
  %v924 = vadd.f32 %v122, %v923
  %v925 = vpop.f32.mrf.mxu0
  %v926 = vadd.f32 %v126, %v925
  %927 = vmatprep.mubr.f32.mxu0 0.0
  %928 = vmatmul.mubr.f32.gmra.mxu0 %v178
  %v929 = vpop.f32.mrf.mxu0
  %v930 = vadd.f32 %v122, %v929
  %v931 = vpop.f32.mrf.mxu0
  %v932 = vadd.f32 %v126, %v931
  %933 = vmatprep.mubr.f32.mxu0 0.0
  %934 = vmatmul.mubr.f32.gmra.mxu0 %v181
  %v935 = vpop.f32.mrf.mxu0
  %v936 = vadd.f32 %v122, %v935
  %v937 = vpop.f32.mrf.mxu0
  %v938 = vadd.f32 %v126, %v937
  %939 = vmatprep.mubr.f32.mxu0 0.0
  %940 = vmatmul.mubr.f32.gmra.mxu0 %v184
  %v941 = vpop.f32.mrf.mxu0
  %v942 = vadd.f32 %v122, %v941
  %v943 = vpop.f32.mrf.mxu0
  %v944 = vadd.f32 %v126, %v943
  %945 = vmatprep.mubr.f32.mxu0 0.0
  %946 = vmatmul.mubr.f32.gmra.mxu0 %v187
  %v947 = vpop.f32.mrf.mxu0
  %v948 = vadd.f32 %v122, %v947
  %v949 = vpop.f32.mrf.mxu0
  %v950 = vadd.f32 %v126, %v949
  %951 = vmatprep.mubr.f32.mxu0 0.0
  %952 = vmatmul.mubr.f32.gmra.mxu0 %v190
  %v953 = vpop.f32.mrf.mxu0
  %v954 = vadd.f32 %v122, %v953
  %v955 = vpop.f32.mrf.mxu0
  %v956 = vadd.f32 %v126, %v955
  %957 = vmatprep.mubr.f32.mxu0 0.0
  %958 = vmatmul.mubr.f32.gmra.mxu0 %v193
  %v959 = vpop.f32.mrf.mxu0
  %v960 = vadd.f32 %v122, %v959
  %v961 = vpop.f32.mrf.mxu0
  %v962 = vadd.f32 %v126, %v961
  %963 = vmatprep.mubr.f32.mxu0 0.0
  %964 = vmatmul.mubr.f32.gmra.mxu0 %v196
  %v965 = vpop.f32.mrf.mxu0
  %v966 = vadd.f32 %v122, %v965
  %v967 = vpop.f32.mrf.mxu0
  %v968 = vadd.f32 %v126, %v967
  %969 = vmatprep.mubr.f32.mxu0 0.0
  %970 = vmatmul.mubr.f32.gmra.mxu0 %v199
  %v971 = vpop.f32.mrf.mxu0
  %v972 = vadd.f32 %v122, %v971
  %v973 = vpop.f32.mrf.mxu0
  %v974 = vadd.f32 %v126, %v973
  %975 = vmatprep.mubr.f32.mxu0 0.0
  %976 = vmatmul.mubr.f32.gmra.mxu0 %v202
  %v977 = vpop.f32.mrf.mxu0
  %v978 = vadd.f32 %v122, %v977
  %v979 = vpop.f32.mrf.mxu0
  %v980 = vadd.f32 %v126, %v979
  %981 = vmatprep.mubr.f32.mxu0 0.0
  %982 = vmatmul.mubr.f32.gmra.mxu0 %v205
  %v983 = vpop.f32.mrf.mxu0
  %v984 = vadd.f32 %v122, %v983
  %v985 = vpop.f32.mrf.mxu0
  %v986 = vadd.f32 %v126, %v985
  %987 = vmatprep.mubr.f32.mxu0 0.0
  %988 = vmatmul.mubr.f32.gmra.mxu0 %v208
  %v989 = vpop.f32.mrf.mxu0
  %v990 = vadd.f32 %v122, %v989
  %v991 = vpop.f32.mrf.mxu0
  %v992 = vadd.f32 %v126, %v991
  %993 = vmatprep.mubr.f32.mxu0 0.0
  %994 = vmatmul.mubr.f32.gmra.mxu0 %v211
  %v995 = vpop.f32.mrf.mxu0
  %v996 = vadd.f32 %v122, %v995
  %v997 = vpop.f32.mrf.mxu0
  %v998 = vadd.f32 %v126, %v997
  %999 = vmatprep.mubr.f32.mxu0 0.0
  %1000 = vmatmul.mubr.f32.gmra.mxu0 %v214
  %v1001 = vpop.f32.mrf.mxu0
  %v1002 = vadd.f32 %v122, %v1001
  %v1003 = vpop.f32.mrf.mxu0
  %v1004 = vadd.f32 %v126, %v1003
  %1005 = vmatprep.mubr.f32.mxu0 0.0
  %1006 = vmatmul.mubr.f32.gmra.mxu0 %v217
  %v1007 = vpop.f32.mrf.mxu0
  %v1008 = vadd.f32 %v122, %v1007
  %v1009 = vpop.f32.mrf.mxu0
  %v1010 = vadd.f32 %v126, %v1009
  %1011 = vmatprep.mubr.f32.mxu0 0.0
  %1012 = vmatmul.mubr.f32.gmra.mxu0 %v220
  %v1013 = vpop.f32.mrf.mxu0
  %v1014 = vadd.f32 %v122, %v1013
  %v1015 = vpop.f32.mrf.mxu0
  %v1016 = vadd.f32 %v126, %v1015
  %1017 = vmatprep.mubr.f32.mxu0 0.0
  %1018 = vmatmul.mubr.f32.gmra.mxu0 %v223
  %v1019 = vpop.f32.mrf.mxu0
  %v1020 = vadd.f32 %v122, %v1019
  %v1021 = vpop.f32.mrf.mxu0
  %v1022 = vadd.f32 %v126, %v1021
  %1023 = vmatprep.mubr.f32.mxu0 0.0
  %1024 = vmatmul.mubr.f32.gmra.mxu0 %v226
  %v1025 = vpop.f32.mrf.mxu0
  %v1026 = vadd.f32 %v122, %v1025
  %v1027 = vpop.f32.mrf.mxu0
  %v1028 = vadd.f32 %v126, %v1027
  %1029 = vmatprep.mubr.f32.mxu0 0.0
  %1030 = vmatmul.mubr.f32.gmra.mxu0 %v229
  %v1031 = vpop.f32.mrf.mxu0
  %v1032 = vadd.f32 %v122, %v1031
  %v1033 = vpop.f32.mrf.mxu0
  %v1034 = vadd.f32 %v126, %v1033
  %1035 = vmatprep.mubr.f32.mxu0 0.0
  %1036 = vmatmul.mubr.f32.gmra.mxu0 %v232
  %v1037 = vpop.f32.mrf.mxu0
  %v1038 = vadd.f32 %v122, %v1037
  %v1039 = vpop.f32.mrf.mxu0
  %v1040 = vadd.f32 %v126, %v1039
  %1041 = vmatprep.mubr.f32.mxu0 0.0
  %1042 = vmatmul.mubr.f32.gmra.mxu0 %v235
  %v1043 = vpop.f32.mrf.mxu0
  %v1044 = vadd.f32 %v122, %v1043
  %v1045 = vpop.f32.mrf.mxu0
  %v1046 = vadd.f32 %v126, %v1045
  %1047 = vmatprep.mubr.f32.mxu0 0.0
  %1048 = vmatmul.mubr.f32.gmra.mxu0 %v238
  %v1049 = vpop.f32.mrf.mxu0
  %v1050 = vadd.f32 %v122, %v1049
  %v1051 = vpop.f32.mrf.mxu0
  %v1052 = vadd.f32 %v126, %v1051
  %1053 = vmatprep.mubr.f32.mxu0 0.0
  %1054 = vmatmul.mubr.f32.gmra.mxu0 %v241
  %v1055 = vpop.f32.mrf.mxu0
  %v1056 = vadd.f32 %v122, %v1055
  %v1057 = vpop.f32.mrf.mxu0
  %v1058 = vadd.f32 %v126, %v1057
  %1059 = vmatprep.mubr.f32.mxu0 0.0
  %1060 = vmatmul.mubr.f32.gmra.mxu0 %v244
  %v1061 = vpop.f32.mrf.mxu0
  %v1062 = vadd.f32 %v122, %v1061
  %v1063 = vpop.f32.mrf.mxu0
  %v1064 = vadd.f32 %v126, %v1063
  %1065 = vmatprep.mubr.f32.mxu0 0.0
  %1066 = vmatmul.mubr.f32.gmra.mxu0 %v247
  %v1067 = vpop.f32.mrf.mxu0
  %v1068 = vadd.f32 %v122, %v1067
  %v1069 = vpop.f32.mrf.mxu0
  %v1070 = vadd.f32 %v126, %v1069
  %1071 = vmatprep.mubr.f32.mxu0 0.0
  %1072 = vmatmul.mubr.f32.gmra.mxu0 %v250
  %v1073 = vpop.f32.mrf.mxu0
  %v1074 = vadd.f32 %v122, %v1073
  %v1075 = vpop.f32.mrf.mxu0
  %v1076 = vadd.f32 %v126, %v1075
  %1077 = vmatprep.mubr.f32.mxu0 0.0
  %1078 = vmatmul.mubr.f32.gmra.mxu0 %v253
  %v1079 = vpop.f32.mrf.mxu0
  %v1080 = vadd.f32 %v122, %v1079
  %v1081 = vpop.f32.mrf.mxu0
  %v1082 = vadd.f32 %v126, %v1081
  %1083 = vmatprep.mubr.f32.mxu0 0.0
  %1084 = vmatmul.mubr.f32.gmra.mxu0 %v256
  %v1085 = vpop.f32.mrf.mxu0
  %v1086 = vadd.f32 %v122, %v1085
  %v1087 = vpop.f32.mrf.mxu0
  %v1088 = vadd.f32 %v126, %v1087
  %1089 = vmatprep.mubr.f32.mxu0 0.0
  %1090 = vmatmul.mubr.f32.gmra.mxu0 %v259
  %v1091 = vpop.f32.mrf.mxu0
  %v1092 = vadd.f32 %v122, %v1091
  %v1093 = vpop.f32.mrf.mxu0
  %v1094 = vadd.f32 %v126, %v1093
  %1095 = vmatprep.mubr.f32.mxu0 0.0
  %1096 = vmatmul.mubr.f32.gmra.mxu0 %v262
  %v1097 = vpop.f32.mrf.mxu0
  %v1098 = vadd.f32 %v122, %v1097
  %v1099 = vpop.f32.mrf.mxu0
  %v1100 = vadd.f32 %v126, %v1099
  %1101 = vmatprep.mubr.f32.mxu0 0.0
  %1102 = vmatmul.mubr.f32.gmra.mxu0 %v265
  %v1103 = vpop.f32.mrf.mxu0
  %v1104 = vadd.f32 %v122, %v1103
  %v1105 = vpop.f32.mrf.mxu0
  %v1106 = vadd.f32 %v126, %v1105
  %1107 = vmatprep.mubr.f32.mxu0 0.0
  %1108 = vmatmul.mubr.f32.gmra.mxu0 %v268
  %v1109 = vpop.f32.mrf.mxu0
  %v1110 = vadd.f32 %v122, %v1109
  %v1111 = vpop.f32.mrf.mxu0
  %v1112 = vadd.f32 %v126, %v1111
  %1113 = vmatprep.mubr.f32.mxu0 0.0
  %1114 = vmatmul.mubr.f32.gmra.mxu0 %v271
  %v1115 = vpop.f32.mrf.mxu0
  %v1116 = vadd.f32 %v122, %v1115
  %v1117 = vpop.f32.mrf.mxu0
  %v1118 = vadd.f32 %v126, %v1117
  %1119 = vmatprep.mubr.f32.mxu0 0.0
  %1120 = vmatmul.mubr.f32.gmra.mxu0 %v274
  %v1121 = vpop.f32.mrf.mxu0
  %v1122 = vadd.f32 %v122, %v1121
  %v1123 = vpop.f32.mrf.mxu0
  %v1124 = vadd.f32 %v126, %v1123
  %1125 = vmatprep.mubr.f32.mxu0 0.0
  %1126 = vmatmul.mubr.f32.gmra.mxu0 %v277
  %v1127 = vpop.f32.mrf.mxu0
  %v1128 = vadd.f32 %v122, %v1127
  %v1129 = vpop.f32.mrf.mxu0
  %v1130 = vadd.f32 %v126, %v1129
  %1131 = vmatprep.mubr.f32.mxu0 0.0
  %1132 = vmatmul.mubr.f32.gmra.mxu0 %v280
  %v1133 = vpop.f32.mrf.mxu0
  %v1134 = vadd.f32 %v122, %v1133
  %v1135 = vpop.f32.mrf.mxu0
  %v1136 = vadd.f32 %v126, %v1135
  %1137 = vmatprep.mubr.f32.mxu0 0.0
  %1138 = vmatmul.mubr.f32.gmra.mxu0 %v283
  %v1139 = vpop.f32.mrf.mxu0
  %v1140 = vadd.f32 %v122, %v1139
  %v1141 = vpop.f32.mrf.mxu0
  %v1142 = vadd.f32 %v126, %v1141
  %1143 = vmatprep.mubr.f32.mxu0 0.0
  %1144 = vmatmul.mubr.f32.gmra.mxu0 %v286
  %v1145 = vpop.f32.mrf.mxu0
  %v1146 = vadd.f32 %v122, %v1145
  %v1147 = vpop.f32.mrf.mxu0
  %v1148 = vadd.f32 %v126, %v1147
  %1149 = vmatprep.mubr.f32.mxu0 0.0
  %1150 = vmatmul.mubr.f32.gmra.mxu0 %v289
  %v1151 = vpop.f32.mrf.mxu0
  %v1152 = vadd.f32 %v122, %v1151
  %v1153 = vpop.f32.mrf.mxu0
  %v1154 = vadd.f32 %v126, %v1153
  %1155 = vmatprep.mubr.f32.mxu0 0.0
  %1156 = vmatmul.mubr.f32.gmra.mxu0 %v292
  %v1157 = vpop.f32.mrf.mxu0
  %v1158 = vadd.f32 %v122, %v1157
  %v1159 = vpop.f32.mrf.mxu0
  %v1160 = vadd.f32 %v126, %v1159
  %1161 = vmatprep.mubr.f32.mxu0 0.0
  %1162 = vmatmul.mubr.f32.gmra.mxu0 %v295
  %v1163 = vpop.f32.mrf.mxu0
  %v1164 = vadd.f32 %v122, %v1163
  %v1165 = vpop.f32.mrf.mxu0
  %v1166 = vadd.f32 %v126, %v1165
  %1167 = vmatprep.mubr.f32.mxu0 0.0
  %1168 = vmatmul.mubr.f32.gmra.mxu0 %v298
  %v1169 = vpop.f32.mrf.mxu0
  %v1170 = vadd.f32 %v122, %v1169
  %v1171 = vpop.f32.mrf.mxu0
  %v1172 = vadd.f32 %v126, %v1171
  %1173 = vmatprep.mubr.f32.mxu0 0.0
  %1174 = vmatmul.mubr.f32.gmra.mxu0 %v301
  %v1175 = vpop.f32.mrf.mxu0
  %v1176 = vadd.f32 %v122, %v1175
  %v1177 = vpop.f32.mrf.mxu0
  %v1178 = vadd.f32 %v126, %v1177
  %1179 = vmatprep.mubr.f32.mxu0 0.0
  %1180 = vmatmul.mubr.f32.gmra.mxu0 %v304
  %v1181 = vpop.f32.mrf.mxu0
  %v1182 = vadd.f32 %v122, %v1181
  %v1183 = vpop.f32.mrf.mxu0
  %v1184 = vadd.f32 %v126, %v1183
  %1185 = vmatprep.mubr.f32.mxu0 0.0
  %1186 = vmatmul.mubr.f32.gmra.mxu0 %v307
  %v1187 = vpop.f32.mrf.mxu0
  %v1188 = vadd.f32 %v122, %v1187
  %v1189 = vpop.f32.mrf.mxu0
  %v1190 = vadd.f32 %v126, %v1189
  %1191 = vmatprep.mubr.f32.mxu0 0.0
  %1192 = vmatmul.mubr.f32.gmra.mxu0 %v310
  %v1193 = vpop.f32.mrf.mxu0
  %v1194 = vadd.f32 %v122, %v1193
  %v1195 = vpop.f32.mrf.mxu0
  %v1196 = vadd.f32 %v126, %v1195
  %1197 = vmatprep.mubr.f32.mxu0 0.0
  %1198 = vmatmul.mubr.f32.gmra.mxu0 %v313
  %v1199 = vpop.f32.mrf.mxu0
  %v1200 = vadd.f32 %v122, %v1199
  %v1201 = vpop.f32.mrf.mxu0
  %v1202 = vadd.f32 %v126, %v1201
  %1203 = vmatprep.mubr.f32.mxu0 0.0
  %1204 = vmatmul.mubr.f32.gmra.mxu0 %v316
  %v1205 = vpop.f32.mrf.mxu0
  %v1206 = vadd.f32 %v122, %v1205
  %v1207 = vpop.f32.mrf.mxu0
  %v1208 = vadd.f32 %v126, %v1207
  %1209 = vmatprep.mubr.f32.mxu0 0.0
  %1210 = vmatmul.mubr.f32.gmra.mxu0 %v319
  %v1211 = vpop.f32.mrf.mxu0
  %v1212 = vadd.f32 %v122, %v1211
  %v1213 = vpop.f32.mrf.mxu0
  %v1214 = vadd.f32 %v126, %v1213
  %1215 = vmatprep.mubr.f32.mxu0 0.0
  %1216 = vmatmul.mubr.f32.gmra.mxu0 %v322
  %v1217 = vpop.f32.mrf.mxu0
  %v1218 = vadd.f32 %v122, %v1217
  %v1219 = vpop.f32.mrf.mxu0
  %v1220 = vadd.f32 %v126, %v1219
  %1221 = vdwg.mxu0
  %v1222 = vmax.f32 %v391, 0.0
  %v1223 = vmax.f32 %v393, 0.0
  %v1224 = vmax.f32 %v840, 0.0
  %v1225 = vmax.f32 %v842, 0.0
  %v1226 = vmax.f32 %v397, 0.0
  %v1227 = vmax.f32 %v399, 0.0
  %v1228 = vmax.f32 %v846, 0.0
  %v1229 = vmax.f32 %v848, 0.0
  %v1230 = vmax.f32 %v403, 0.0
  %v1231 = vmax.f32 %v405, 0.0
  %v1232 = vmax.f32 %v852, 0.0
  %v1233 = vmax.f32 %v854, 0.0
  %v1234 = vmax.f32 %v409, 0.0
  %v1235 = vmax.f32 %v411, 0.0
  %v1236 = vmax.f32 %v858, 0.0
  %v1237 = vmax.f32 %v860, 0.0
  %v1238 = vmax.f32 %v415, 0.0
  %v1239 = vmax.f32 %v417, 0.0
  %v1240 = vmax.f32 %v864, 0.0
  %v1241 = vmax.f32 %v866, 0.0
  %v1242 = vmax.f32 %v421, 0.0
  %v1243 = vmax.f32 %v423, 0.0
  %v1244 = vmax.f32 %v870, 0.0
  %v1245 = vmax.f32 %v872, 0.0
  %v1246 = vmax.f32 %v427, 0.0
  %v1247 = vmax.f32 %v429, 0.0
  %v1248 = vmax.f32 %v876, 0.0
  %v1249 = vmax.f32 %v878, 0.0
  %v1250 = vmax.f32 %v433, 0.0
  %v1251 = vmax.f32 %v435, 0.0
  %v1252 = vmax.f32 %v882, 0.0
  %v1253 = vmax.f32 %v884, 0.0
  %v1254 = vmax.f32 %v439, 0.0
  %v1255 = vmax.f32 %v441, 0.0
  %v1256 = vmax.f32 %v888, 0.0
  %v1257 = vmax.f32 %v890, 0.0
  %v1258 = vmax.f32 %v445, 0.0
  %v1259 = vmax.f32 %v447, 0.0
  %v1260 = vmax.f32 %v894, 0.0
  %v1261 = vmax.f32 %v896, 0.0
  %v1262 = vmax.f32 %v451, 0.0
  %v1263 = vmax.f32 %v453, 0.0
  %v1264 = vmax.f32 %v900, 0.0
  %v1265 = vmax.f32 %v902, 0.0
  %v1266 = vmax.f32 %v457, 0.0
  %v1267 = vmax.f32 %v459, 0.0
  %v1268 = vmax.f32 %v906, 0.0
  %v1269 = vmax.f32 %v908, 0.0
  %v1270 = vmax.f32 %v463, 0.0
  %v1271 = vmax.f32 %v465, 0.0
  %v1272 = vmax.f32 %v912, 0.0
  %v1273 = vmax.f32 %v914, 0.0
  %v1274 = vmax.f32 %v469, 0.0
  %v1275 = vmax.f32 %v471, 0.0
  %v1276 = vmax.f32 %v918, 0.0
  %v1277 = vmax.f32 %v920, 0.0
  %v1278 = vmax.f32 %v475, 0.0
  %v1279 = vmax.f32 %v477, 0.0
  %v1280 = vmax.f32 %v924, 0.0
  %v1281 = vmax.f32 %v926, 0.0
  %v1282 = vmax.f32 %v481, 0.0
  %v1283 = vmax.f32 %v483, 0.0
  %v1284 = vmax.f32 %v930, 0.0
  %v1285 = vmax.f32 %v932, 0.0
  %v1286 = vmax.f32 %v487, 0.0
  %v1287 = vmax.f32 %v489, 0.0
  %v1288 = vmax.f32 %v936, 0.0
  %v1289 = vmax.f32 %v938, 0.0
  %v1290 = vmax.f32 %v493, 0.0
  %v1291 = vmax.f32 %v495, 0.0
  %v1292 = vmax.f32 %v942, 0.0
  %v1293 = vmax.f32 %v944, 0.0
  %v1294 = vmax.f32 %v499, 0.0
  %v1295 = vmax.f32 %v501, 0.0
  %v1296 = vmax.f32 %v948, 0.0
  %v1297 = vmax.f32 %v950, 0.0
  %v1298 = vmax.f32 %v505, 0.0
  %v1299 = vmax.f32 %v507, 0.0
  %v1300 = vmax.f32 %v954, 0.0
  %v1301 = vmax.f32 %v956, 0.0
  %v1302 = vmax.f32 %v511, 0.0
  %v1303 = vmax.f32 %v513, 0.0
  %v1304 = vmax.f32 %v960, 0.0
  %v1305 = vmax.f32 %v962, 0.0
  %v1306 = vmax.f32 %v517, 0.0
  %v1307 = vmax.f32 %v519, 0.0
  %v1308 = vmax.f32 %v966, 0.0
  %v1309 = vmax.f32 %v968, 0.0
  %v1310 = vmax.f32 %v523, 0.0
  %v1311 = vmax.f32 %v525, 0.0
  %v1312 = vmax.f32 %v972, 0.0
  %v1313 = vmax.f32 %v974, 0.0
  %v1314 = vmax.f32 %v529, 0.0
  %v1315 = vmax.f32 %v531, 0.0
  %v1316 = vmax.f32 %v978, 0.0
  %v1317 = vmax.f32 %v980, 0.0
  %v1318 = vmax.f32 %v535, 0.0
  %v1319 = vmax.f32 %v537, 0.0
  %v1320 = vmax.f32 %v984, 0.0
  %v1321 = vmax.f32 %v986, 0.0
  %v1322 = vmax.f32 %v541, 0.0
  %v1323 = vmax.f32 %v543, 0.0
  %v1324 = vmax.f32 %v990, 0.0
  %v1325 = vmax.f32 %v992, 0.0
  %v1326 = vmax.f32 %v547, 0.0
  %v1327 = vmax.f32 %v549, 0.0
  %v1328 = vmax.f32 %v996, 0.0
  %v1329 = vmax.f32 %v998, 0.0
  %v1330 = vmax.f32 %v553, 0.0
  %v1331 = vmax.f32 %v555, 0.0
  %v1332 = vmax.f32 %v1002, 0.0
  %v1333 = vmax.f32 %v1004, 0.0
  %v1334 = vmax.f32 %v559, 0.0
  %v1335 = vmax.f32 %v561, 0.0
  %v1336 = vmax.f32 %v1008, 0.0
  %v1337 = vmax.f32 %v1010, 0.0
  %v1338 = vmax.f32 %v565, 0.0
  %v1339 = vmax.f32 %v567, 0.0
  %v1340 = vmax.f32 %v1014, 0.0
  %v1341 = vmax.f32 %v1016, 0.0
  %v1342 = vmax.f32 %v571, 0.0
  %v1343 = vmax.f32 %v573, 0.0
  %v1344 = vmax.f32 %v1020, 0.0
  %v1345 = vmax.f32 %v1022, 0.0
  %v1346 = vmax.f32 %v577, 0.0
  %v1347 = vmax.f32 %v579, 0.0
  %v1348 = vmax.f32 %v1026, 0.0
  %v1349 = vmax.f32 %v1028, 0.0
  %v1350 = vmax.f32 %v583, 0.0
  %v1351 = vmax.f32 %v585, 0.0
  %v1352 = vmax.f32 %v1032, 0.0
  %v1353 = vmax.f32 %v1034, 0.0
  %v1354 = vmax.f32 %v589, 0.0
  %v1355 = vmax.f32 %v591, 0.0
  %v1356 = vmax.f32 %v1038, 0.0
  %v1357 = vmax.f32 %v1040, 0.0
  %v1358 = vmax.f32 %v595, 0.0
  %v1359 = vmax.f32 %v597, 0.0
  %v1360 = vmax.f32 %v1044, 0.0
  %v1361 = vmax.f32 %v1046, 0.0
  %v1362 = vmax.f32 %v601, 0.0
  %v1363 = vmax.f32 %v603, 0.0
  %v1364 = vmax.f32 %v1050, 0.0
  %v1365 = vmax.f32 %v1052, 0.0
  %v1366 = vmax.f32 %v607, 0.0
  %v1367 = vmax.f32 %v609, 0.0
  %v1368 = vmax.f32 %v1056, 0.0
  %v1369 = vmax.f32 %v1058, 0.0
  %v1370 = vmax.f32 %v613, 0.0
  %v1371 = vmax.f32 %v615, 0.0
  %v1372 = vmax.f32 %v1062, 0.0
  %v1373 = vmax.f32 %v1064, 0.0
  %v1374 = vmax.f32 %v619, 0.0
  %v1375 = vmax.f32 %v621, 0.0
  %v1376 = vmax.f32 %v1068, 0.0
  %v1377 = vmax.f32 %v1070, 0.0
  %v1378 = vmax.f32 %v625, 0.0
  %v1379 = vmax.f32 %v627, 0.0
  %v1380 = vmax.f32 %v1074, 0.0
  %v1381 = vmax.f32 %v1076, 0.0
  %v1382 = vmax.f32 %v631, 0.0
  %v1383 = vmax.f32 %v633, 0.0
  %v1384 = vmax.f32 %v1080, 0.0
  %v1385 = vmax.f32 %v1082, 0.0
  %v1386 = vmax.f32 %v637, 0.0
  %v1387 = vmax.f32 %v639, 0.0
  %v1388 = vmax.f32 %v1086, 0.0
  %v1389 = vmax.f32 %v1088, 0.0
  %v1390 = vmax.f32 %v643, 0.0
  %v1391 = vmax.f32 %v645, 0.0
  %v1392 = vmax.f32 %v1092, 0.0
  %v1393 = vmax.f32 %v1094, 0.0
  %v1394 = vmax.f32 %v649, 0.0
  %v1395 = vmax.f32 %v651, 0.0
  %v1396 = vmax.f32 %v1098, 0.0
  %v1397 = vmax.f32 %v1100, 0.0
  %v1398 = vmax.f32 %v655, 0.0
  %v1399 = vmax.f32 %v657, 0.0
  %v1400 = vmax.f32 %v1104, 0.0
  %v1401 = vmax.f32 %v1106, 0.0
  %v1402 = vmax.f32 %v661, 0.0
  %v1403 = vmax.f32 %v663, 0.0
  %v1404 = vmax.f32 %v1110, 0.0
  %v1405 = vmax.f32 %v1112, 0.0
  %v1406 = vmax.f32 %v667, 0.0
  %v1407 = vmax.f32 %v669, 0.0
  %v1408 = vmax.f32 %v1116, 0.0
  %v1409 = vmax.f32 %v1118, 0.0
  %v1410 = vmax.f32 %v673, 0.0
  %v1411 = vmax.f32 %v675, 0.0
  %v1412 = vmax.f32 %v1122, 0.0
  %v1413 = vmax.f32 %v1124, 0.0
  %v1414 = vmax.f32 %v679, 0.0
  %v1415 = vmax.f32 %v681, 0.0
  %v1416 = vmax.f32 %v1128, 0.0
  %v1417 = vmax.f32 %v1130, 0.0
  %v1418 = vmax.f32 %v685, 0.0
  %v1419 = vmax.f32 %v687, 0.0
  %v1420 = vmax.f32 %v1134, 0.0
  %v1421 = vmax.f32 %v1136, 0.0
  %v1422 = vmax.f32 %v691, 0.0
  %v1423 = vmax.f32 %v693, 0.0
  %v1424 = vmax.f32 %v1140, 0.0
  %v1425 = vmax.f32 %v1142, 0.0
  %v1426 = vmax.f32 %v697, 0.0
  %v1427 = vmax.f32 %v699, 0.0
  %v1428 = vmax.f32 %v1146, 0.0
  %v1429 = vmax.f32 %v1148, 0.0
  %v1430 = vmax.f32 %v703, 0.0
  %v1431 = vmax.f32 %v705, 0.0
  %v1432 = vmax.f32 %v1152, 0.0
  %v1433 = vmax.f32 %v1154, 0.0
  %v1434 = vmax.f32 %v709, 0.0
  %v1435 = vmax.f32 %v711, 0.0
  %v1436 = vmax.f32 %v1158, 0.0
  %v1437 = vmax.f32 %v1160, 0.0
  %v1438 = vmax.f32 %v715, 0.0
  %v1439 = vmax.f32 %v717, 0.0
  %v1440 = vmax.f32 %v1164, 0.0
  %v1441 = vmax.f32 %v1166, 0.0
  %v1442 = vmax.f32 %v721, 0.0
  %v1443 = vmax.f32 %v723, 0.0
  %v1444 = vmax.f32 %v1170, 0.0
  %v1445 = vmax.f32 %v1172, 0.0
  %v1446 = vmax.f32 %v727, 0.0
  %v1447 = vmax.f32 %v729, 0.0
  %v1448 = vmax.f32 %v1176, 0.0
  %v1449 = vmax.f32 %v1178, 0.0
  %v1450 = vmax.f32 %v733, 0.0
  %v1451 = vmax.f32 %v735, 0.0
  %v1452 = vmax.f32 %v1182, 0.0
  %v1453 = vmax.f32 %v1184, 0.0
  %v1454 = vmax.f32 %v739, 0.0
  %v1455 = vmax.f32 %v741, 0.0
  %v1456 = vmax.f32 %v1188, 0.0
  %v1457 = vmax.f32 %v1190, 0.0
  %v1458 = vmax.f32 %v745, 0.0
  %v1459 = vmax.f32 %v747, 0.0
  %v1460 = vmax.f32 %v1194, 0.0
  %v1461 = vmax.f32 %v1196, 0.0
  %v1462 = vmax.f32 %v751, 0.0
  %v1463 = vmax.f32 %v753, 0.0
  %v1464 = vmax.f32 %v1200, 0.0
  %v1465 = vmax.f32 %v1202, 0.0
  %v1466 = vmax.f32 %v757, 0.0
  %v1467 = vmax.f32 %v759, 0.0
  %v1468 = vmax.f32 %v1206, 0.0
  %v1469 = vmax.f32 %v1208, 0.0
  %v1470 = vmax.f32 %v763, 0.0
  %v1471 = vmax.f32 %v765, 0.0
  %v1472 = vmax.f32 %v1212, 0.0
  %v1473 = vmax.f32 %v1214, 0.0
  %v1474 = vmax.f32 %v769, 0.0
  %v1475 = vmax.f32 %v771, 0.0
  %v1476 = vmax.f32 %v1218, 0.0
  %v1477 = vmax.f32 %v1220, 0.0
  %v1478 = vld [vmem:[%s3] sm:$0xff]
  %v1479 = vld [vmem:[%s3 + $0x8] sm:$0xff]
  %v1480 = vld [vmem:[%s3 + $0x10] sm:$0xff]
  %v1481 = vld [vmem:[%s3 + $0x18] sm:$0xff]
  %v1482 = vld [vmem:[%s3 + $0x20] sm:$0xff]
  %v1483 = vld [vmem:[%s3 + $0x28] sm:$0xff]
  %v1484 = vld [vmem:[%s3 + $0x30] sm:$0xff]
  %v1485 = vld [vmem:[%s3 + $0x38] sm:$0xff]
  %v1486 = vld [vmem:[%s3 + $0x40] sm:$0xff]
  %v1487 = vld [vmem:[%s3 + $0x48] sm:$0xff]
  %v1488 = vld [vmem:[%s3 + $0x50] sm:$0xff]
  %v1489 = vld [vmem:[%s3 + $0x58] sm:$0xff]
  %v1490 = vld [vmem:[%s3 + $0x60] sm:$0xff]
  %v1491 = vld [vmem:[%s3 + $0x68] sm:$0xff]
  %v1492 = vld [vmem:[%s3 + $0x70] sm:$0xff]
  %v1493 = vld [vmem:[%s3 + $0x78] sm:$0xff]
  %v1494 = vld [vmem:[%s3 + $0x80] sm:$0xff]
  %v1495 = vld [vmem:[%s3 + $0x88] sm:$0xff]
  %v1496 = vld [vmem:[%s3 + $0x90] sm:$0xff]
  %v1497 = vld [vmem:[%s3 + $0x98] sm:$0xff]
  %v1498 = vld [vmem:[%s3 + $0xa0] sm:$0xff]
  %v1499 = vld [vmem:[%s3 + $0xa8] sm:$0xff]
  %v1500 = vld [vmem:[%s3 + $0xb0] sm:$0xff]
  %v1501 = vld [vmem:[%s3 + $0xb8] sm:$0xff]
  %v1502 = vld [vmem:[%s3 + $0xc0] sm:$0xff]
  %v1503 = vld [vmem:[%s3 + $0xc8] sm:$0xff]
  %v1504 = vld [vmem:[%s3 + $0xd0] sm:$0xff]
  %v1505 = vld [vmem:[%s3 + $0xd8] sm:$0xff]
  %v1506 = vld [vmem:[%s3 + $0xe0] sm:$0xff]
  %v1507 = vld [vmem:[%s3 + $0xe8] sm:$0xff]
  %v1508 = vld [vmem:[%s3 + $0xf0] sm:$0xff]
  %v1509 = vld [vmem:[%s3 + $0xf8] sm:$0xff]
  %v1510 = vld [vmem:[%s3 + $0x100] sm:$0xff]
  %v1511 = vld [vmem:[%s3 + $0x108] sm:$0xff]
  %v1512 = vld [vmem:[%s3 + $0x110] sm:$0xff]
  %v1513 = vld [vmem:[%s3 + $0x118] sm:$0xff]
  %v1514 = vld [vmem:[%s3 + $0x120] sm:$0xff]
  %v1515 = vld [vmem:[%s3 + $0x128] sm:$0xff]
  %v1516 = vld [vmem:[%s3 + $0x130] sm:$0xff]
  %v1517 = vld [vmem:[%s3 + $0x138] sm:$0xff]
  %v1518 = vld [vmem:[%s3 + $0x140] sm:$0xff]
  %v1519 = vld [vmem:[%s3 + $0x148] sm:$0xff]
  %v1520 = vld [vmem:[%s3 + $0x150] sm:$0xff]
  %v1521 = vld [vmem:[%s3 + $0x158] sm:$0xff]
  %v1522 = vld [vmem:[%s3 + $0x160] sm:$0xff]
  %v1523 = vld [vmem:[%s3 + $0x168] sm:$0xff]
  %v1524 = vld [vmem:[%s3 + $0x170] sm:$0xff]
  %v1525 = vld [vmem:[%s3 + $0x178] sm:$0xff]
  %v1526 = vld [vmem:[%s3 + $0x180] sm:$0xff]
  %v1527 = vld [vmem:[%s3 + $0x188] sm:$0xff]
  %v1528 = vld [vmem:[%s3 + $0x190] sm:$0xff]
  %v1529 = vld [vmem:[%s3 + $0x198] sm:$0xff]
  %v1530 = vld [vmem:[%s3 + $0x1a0] sm:$0xff]
  %v1531 = vld [vmem:[%s3 + $0x1a8] sm:$0xff]
  %v1532 = vld [vmem:[%s3 + $0x1b0] sm:$0xff]
  %v1533 = vld [vmem:[%s3 + $0x1b8] sm:$0xff]
  %v1534 = vld [vmem:[%s3 + $0x1c0] sm:$0xff]
  %v1535 = vld [vmem:[%s3 + $0x1c8] sm:$0xff]
  %v1536 = vld [vmem:[%s3 + $0x1d0] sm:$0xff]
  %v1537 = vld [vmem:[%s3 + $0x1d8] sm:$0xff]
  %v1538 = vld [vmem:[%s3 + $0x1e0] sm:$0xff]
  %v1539 = vld [vmem:[%s3 + $0x1e8] sm:$0xff]
  %v1540 = vld [vmem:[%s3 + $0x1f0] sm:$0xff]
  %v1541 = vld [vmem:[%s3 + $0x1f8] sm:$0xff]
  %v1542 = vld [vmem:[%s3 + $0x200] sm:$0xff]
  %v1543 = vld [vmem:[%s3 + $0x208] sm:$0xff]
  %v1544 = vld [vmem:[%s3 + $0x210] sm:$0xff]
  %v1545 = vld [vmem:[%s3 + $0x218] sm:$0xff]
  %v1546 = vld [vmem:[%s3 + $0x220] sm:$0xff]
  %v1547 = vld [vmem:[%s3 + $0x228] sm:$0xff]
  %v1548 = vld [vmem:[%s3 + $0x230] sm:$0xff]
  %v1549 = vld [vmem:[%s3 + $0x238] sm:$0xff]
  %v1550 = vld [vmem:[%s3 + $0x240] sm:$0xff]
  %v1551 = vld [vmem:[%s3 + $0x248] sm:$0xff]
  %v1552 = vld [vmem:[%s3 + $0x250] sm:$0xff]
  %v1553 = vld [vmem:[%s3 + $0x258] sm:$0xff]
  %v1554 = vld [vmem:[%s3 + $0x260] sm:$0xff]
  %v1555 = vld [vmem:[%s3 + $0x268] sm:$0xff]
  %v1556 = vld [vmem:[%s3 + $0x270] sm:$0xff]
  %v1557 = vld [vmem:[%s3 + $0x278] sm:$0xff]
  %v1558 = vld [vmem:[%s3 + $0x280] sm:$0xff]
  %v1559 = vld [vmem:[%s3 + $0x288] sm:$0xff]
  %v1560 = vld [vmem:[%s3 + $0x290] sm:$0xff]
  %v1561 = vld [vmem:[%s3 + $0x298] sm:$0xff]
  %v1562 = vld [vmem:[%s3 + $0x2a0] sm:$0xff]
  %v1563 = vld [vmem:[%s3 + $0x2a8] sm:$0xff]
  %v1564 = vld [vmem:[%s3 + $0x2b0] sm:$0xff]
  %v1565 = vld [vmem:[%s3 + $0x2b8] sm:$0xff]
  %v1566 = vld [vmem:[%s3 + $0x2c0] sm:$0xff]
  %v1567 = vld [vmem:[%s3 + $0x2c8] sm:$0xff]
  %v1568 = vld [vmem:[%s3 + $0x2d0] sm:$0xff]
  %v1569 = vld [vmem:[%s3 + $0x2d8] sm:$0xff]
  %v1570 = vld [vmem:[%s3 + $0x2e0] sm:$0xff]
  %v1571 = vld [vmem:[%s3 + $0x2e8] sm:$0xff]
  %v1572 = vld [vmem:[%s3 + $0x2f0] sm:$0xff]
  %v1573 = vld [vmem:[%s3 + $0x2f8] sm:$0xff]
  %v1574 = vld [vmem:[%s3 + $0x300] sm:$0xff]
  %v1575 = vld [vmem:[%s3 + $0x308] sm:$0xff]
  %v1576 = vld [vmem:[%s3 + $0x310] sm:$0xff]
  %v1577 = vld [vmem:[%s3 + $0x318] sm:$0xff]
  %v1578 = vld [vmem:[%s3 + $0x320] sm:$0xff]
  %v1579 = vld [vmem:[%s3 + $0x328] sm:$0xff]
  %v1580 = vld [vmem:[%s3 + $0x330] sm:$0xff]
  %v1581 = vld [vmem:[%s3 + $0x338] sm:$0xff]
  %v1582 = vld [vmem:[%s3 + $0x340] sm:$0xff]
  %v1583 = vld [vmem:[%s3 + $0x348] sm:$0xff]
  %v1584 = vld [vmem:[%s3 + $0x350] sm:$0xff]
  %v1585 = vld [vmem:[%s3 + $0x358] sm:$0xff]
  %v1586 = vld [vmem:[%s3 + $0x360] sm:$0xff]
  %v1587 = vld [vmem:[%s3 + $0x368] sm:$0xff]
  %v1588 = vld [vmem:[%s3 + $0x370] sm:$0xff]
  %v1589 = vld [vmem:[%s3 + $0x378] sm:$0xff]
  %v1590 = vld [vmem:[%s3 + $0x380] sm:$0xff]
  %v1591 = vld [vmem:[%s3 + $0x388] sm:$0xff]
  %v1592 = vld [vmem:[%s3 + $0x390] sm:$0xff]
  %v1593 = vld [vmem:[%s3 + $0x398] sm:$0xff]
  %v1594 = vld [vmem:[%s3 + $0x3a0] sm:$0xff]
  %v1595 = vld [vmem:[%s3 + $0x3a8] sm:$0xff]
  %v1596 = vld [vmem:[%s3 + $0x3b0] sm:$0xff]
  %v1597 = vld [vmem:[%s3 + $0x3b8] sm:$0xff]
  %v1598 = vld [vmem:[%s3 + $0x3c0] sm:$0xff]
  %v1599 = vld [vmem:[%s3 + $0x3c8] sm:$0xff]
  %v1600 = vld [vmem:[%s3 + $0x3d0] sm:$0xff]
  %v1601 = vld [vmem:[%s3 + $0x3d8] sm:$0xff]
  %v1602 = vld [vmem:[%s3 + $0x3e0] sm:$0xff]
  %v1603 = vld [vmem:[%s3 + $0x3e8] sm:$0xff]
  %v1604 = vld [vmem:[%s3 + $0x3f0] sm:$0xff]
  %v1605 = vld [vmem:[%s3 + $0x3f8] sm:$0xff]
  %v1606 = vld [vmem:[%s4] sm:$0x3]
  %v1608 = vlaneseq
  %v1609 = vshrl.u32 %v1608, 7
  %v1610 = vsub.s32 0, %v1609
  %v1611 = vrot.slane %v1606, %v1610
  %v1612 = vlaneseq
  %v1613 = vshrl.u32 %v1612, 7
  %v1614 = vsub.s32 1, %v1613
  %v1615 = vrot.slane %v1606, %v1614
  %1618 = vmatprep.subr.mxu0 %v1509
  %1619 = vmatpush1.msra.mxu0 %v1508
  %1620 = vmatprep.subr.mxu0 %v1507
  %1621 = vmatpush1.msra.mxu0 %v1506
  %1622 = vmatprep.subr.mxu0 %v1505
  %1623 = vmatpush1.msra.mxu0 %v1504
  %1624 = vmatprep.subr.mxu0 %v1503
  %1625 = vmatpush1.msra.mxu0 %v1502
  %1626 = vmatprep.subr.mxu0 %v1501
  %1627 = vmatpush1.msra.mxu0 %v1500
  %1628 = vmatprep.subr.mxu0 %v1499
  %1629 = vmatpush1.msra.mxu0 %v1498
  %1630 = vmatprep.subr.mxu0 %v1497
  %1631 = vmatpush1.msra.mxu0 %v1496
  %1632 = vmatprep.subr.mxu0 %v1495
  %1633 = vmatpush1.msra.mxu0 %v1494
  %1634 = vmatprep.subr.mxu0 %v1493
  %1635 = vmatpush1.msra.mxu0 %v1492
  %1636 = vmatprep.subr.mxu0 %v1491
  %1637 = vmatpush1.msra.mxu0 %v1490
  %1638 = vmatprep.subr.mxu0 %v1489
  %1639 = vmatpush1.msra.mxu0 %v1488
  %1640 = vmatprep.subr.mxu0 %v1487
  %1641 = vmatpush1.msra.mxu0 %v1486
  %1642 = vmatprep.subr.mxu0 %v1485
  %1643 = vmatpush1.msra.mxu0 %v1484
  %1644 = vmatprep.subr.mxu0 %v1483
  %1645 = vmatpush1.msra.mxu0 %v1482
  %1646 = vmatprep.subr.mxu0 %v1481
  %1647 = vmatpush1.msra.mxu0 %v1480
  %1648 = vmatprep.subr.mxu0 %v1479
  %1649 = vmatpush1.msra.mxu0 %v1478
  %1650 = vmatprep.subr.mxu0 %v1541
  %1651 = vmatpush2.msra.mxu0 %v1540
  %1652 = vmatprep.subr.mxu0 %v1539
  %1653 = vmatpush2.msra.mxu0 %v1538
  %1654 = vmatprep.subr.mxu0 %v1537
  %1655 = vmatpush2.msra.mxu0 %v1536
  %1656 = vmatprep.subr.mxu0 %v1535
  %1657 = vmatpush2.msra.mxu0 %v1534
  %1658 = vmatprep.subr.mxu0 %v1533
  %1659 = vmatpush2.msra.mxu0 %v1532
  %1660 = vmatprep.subr.mxu0 %v1531
  %1661 = vmatpush2.msra.mxu0 %v1530
  %1662 = vmatprep.subr.mxu0 %v1529
  %1663 = vmatpush2.msra.mxu0 %v1528
  %1664 = vmatprep.subr.mxu0 %v1527
  %1665 = vmatpush2.msra.mxu0 %v1526
  %1666 = vmatprep.subr.mxu0 %v1525
  %1667 = vmatpush2.msra.mxu0 %v1524
  %1668 = vmatprep.subr.mxu0 %v1523
  %1669 = vmatpush2.msra.mxu0 %v1522
  %1670 = vmatprep.subr.mxu0 %v1521
  %1671 = vmatpush2.msra.mxu0 %v1520
  %1672 = vmatprep.subr.mxu0 %v1519
  %1673 = vmatpush2.msra.mxu0 %v1518
  %1674 = vmatprep.subr.mxu0 %v1517
  %1675 = vmatpush2.msra.mxu0 %v1516
  %1676 = vmatprep.subr.mxu0 %v1515
  %1677 = vmatpush2.msra.mxu0 %v1514
  %1678 = vmatprep.subr.mxu0 %v1513
  %1679 = vmatpush2.msra.mxu0 %v1512
  %1680 = vmatprep.subr.mxu0 %v1511
  %1681 = vmatpush2.msra.mxu0 %v1510
  %1682 = vmatprep.mubr.f32.mxu0 %v1223
  %1683 = vmatmul.mubr.f32.gmra.mxu0 %v1222
  %v1684 = vpop.f32.mrf.mxu0
  %v1685 = vadd.f32 %v1611, %v1684
  %v1686 = vpop.f32.mrf.mxu0
  %v1687 = vadd.f32 %v1615, %v1686
  %1688 = vmatprep.mubr.f32.mxu0 %v1227
  %1689 = vmatmul.mubr.f32.gmra.mxu0 %v1226
  %v1690 = vpop.f32.mrf.mxu0
  %v1691 = vadd.f32 %v1611, %v1690
  %v1692 = vpop.f32.mrf.mxu0
  %v1693 = vadd.f32 %v1615, %v1692
  %1694 = vmatprep.mubr.f32.mxu0 %v1231
  %1695 = vmatmul.mubr.f32.gmra.mxu0 %v1230
  %v1696 = vpop.f32.mrf.mxu0
  %v1697 = vadd.f32 %v1611, %v1696
  %v1698 = vpop.f32.mrf.mxu0
  %v1699 = vadd.f32 %v1615, %v1698
  %1700 = vmatprep.mubr.f32.mxu0 %v1235
  %1701 = vmatmul.mubr.f32.gmra.mxu0 %v1234
  %v1702 = vpop.f32.mrf.mxu0
  %v1703 = vadd.f32 %v1611, %v1702
  %v1704 = vpop.f32.mrf.mxu0
  %v1705 = vadd.f32 %v1615, %v1704
  %1706 = vmatprep.mubr.f32.mxu0 %v1239
  %1707 = vmatmul.mubr.f32.gmra.mxu0 %v1238
  %v1708 = vpop.f32.mrf.mxu0
  %v1709 = vadd.f32 %v1611, %v1708
  %v1710 = vpop.f32.mrf.mxu0
  %v1711 = vadd.f32 %v1615, %v1710
  %1712 = vmatprep.mubr.f32.mxu0 %v1243
  %1713 = vmatmul.mubr.f32.gmra.mxu0 %v1242
  %v1714 = vpop.f32.mrf.mxu0
  %v1715 = vadd.f32 %v1611, %v1714
  %v1716 = vpop.f32.mrf.mxu0
  %v1717 = vadd.f32 %v1615, %v1716
  %1718 = vmatprep.mubr.f32.mxu0 %v1247
  %1719 = vmatmul.mubr.f32.gmra.mxu0 %v1246
  %v1720 = vpop.f32.mrf.mxu0
  %v1721 = vadd.f32 %v1611, %v1720
  %v1722 = vpop.f32.mrf.mxu0
  %v1723 = vadd.f32 %v1615, %v1722
  %1724 = vmatprep.mubr.f32.mxu0 %v1251
  %1725 = vmatmul.mubr.f32.gmra.mxu0 %v1250
  %v1726 = vpop.f32.mrf.mxu0
  %v1727 = vadd.f32 %v1611, %v1726
  %v1728 = vpop.f32.mrf.mxu0
  %v1729 = vadd.f32 %v1615, %v1728
  %1730 = vmatprep.mubr.f32.mxu0 %v1255
  %1731 = vmatmul.mubr.f32.gmra.mxu0 %v1254
  %v1732 = vpop.f32.mrf.mxu0
  %v1733 = vadd.f32 %v1611, %v1732
  %v1734 = vpop.f32.mrf.mxu0
  %v1735 = vadd.f32 %v1615, %v1734
  %1736 = vmatprep.mubr.f32.mxu0 %v1259
  %1737 = vmatmul.mubr.f32.gmra.mxu0 %v1258
  %v1738 = vpop.f32.mrf.mxu0
  %v1739 = vadd.f32 %v1611, %v1738
  %v1740 = vpop.f32.mrf.mxu0
  %v1741 = vadd.f32 %v1615, %v1740
  %1742 = vmatprep.mubr.f32.mxu0 %v1263
  %1743 = vmatmul.mubr.f32.gmra.mxu0 %v1262
  %v1744 = vpop.f32.mrf.mxu0
  %v1745 = vadd.f32 %v1611, %v1744
  %v1746 = vpop.f32.mrf.mxu0
  %v1747 = vadd.f32 %v1615, %v1746
  %1748 = vmatprep.mubr.f32.mxu0 %v1267
  %1749 = vmatmul.mubr.f32.gmra.mxu0 %v1266
  %v1750 = vpop.f32.mrf.mxu0
  %v1751 = vadd.f32 %v1611, %v1750
  %v1752 = vpop.f32.mrf.mxu0
  %v1753 = vadd.f32 %v1615, %v1752
  %1754 = vmatprep.mubr.f32.mxu0 %v1271
  %1755 = vmatmul.mubr.f32.gmra.mxu0 %v1270
  %v1756 = vpop.f32.mrf.mxu0
  %v1757 = vadd.f32 %v1611, %v1756
  %v1758 = vpop.f32.mrf.mxu0
  %v1759 = vadd.f32 %v1615, %v1758
  %1760 = vmatprep.mubr.f32.mxu0 %v1275
  %1761 = vmatmul.mubr.f32.gmra.mxu0 %v1274
  %v1762 = vpop.f32.mrf.mxu0
  %v1763 = vadd.f32 %v1611, %v1762
  %v1764 = vpop.f32.mrf.mxu0
  %v1765 = vadd.f32 %v1615, %v1764
  %1766 = vmatprep.mubr.f32.mxu0 %v1279
  %1767 = vmatmul.mubr.f32.gmra.mxu0 %v1278
  %v1768 = vpop.f32.mrf.mxu0
  %v1769 = vadd.f32 %v1611, %v1768
  %v1770 = vpop.f32.mrf.mxu0
  %v1771 = vadd.f32 %v1615, %v1770
  %1772 = vmatprep.mubr.f32.mxu0 %v1283
  %1773 = vmatmul.mubr.f32.gmra.mxu0 %v1282
  %v1774 = vpop.f32.mrf.mxu0
  %v1775 = vadd.f32 %v1611, %v1774
  %v1776 = vpop.f32.mrf.mxu0
  %v1777 = vadd.f32 %v1615, %v1776
  %1778 = vmatprep.mubr.f32.mxu0 %v1287
  %1779 = vmatmul.mubr.f32.gmra.mxu0 %v1286
  %v1780 = vpop.f32.mrf.mxu0
  %v1781 = vadd.f32 %v1611, %v1780
  %v1782 = vpop.f32.mrf.mxu0
  %v1783 = vadd.f32 %v1615, %v1782
  %1784 = vmatprep.mubr.f32.mxu0 %v1291
  %1785 = vmatmul.mubr.f32.gmra.mxu0 %v1290
  %v1786 = vpop.f32.mrf.mxu0
  %v1787 = vadd.f32 %v1611, %v1786
  %v1788 = vpop.f32.mrf.mxu0
  %v1789 = vadd.f32 %v1615, %v1788
  %1790 = vmatprep.mubr.f32.mxu0 %v1295
  %1791 = vmatmul.mubr.f32.gmra.mxu0 %v1294
  %v1792 = vpop.f32.mrf.mxu0
  %v1793 = vadd.f32 %v1611, %v1792
  %v1794 = vpop.f32.mrf.mxu0
  %v1795 = vadd.f32 %v1615, %v1794
  %1796 = vmatprep.mubr.f32.mxu0 %v1299
  %1797 = vmatmul.mubr.f32.gmra.mxu0 %v1298
  %v1798 = vpop.f32.mrf.mxu0
  %v1799 = vadd.f32 %v1611, %v1798
  %v1800 = vpop.f32.mrf.mxu0
  %v1801 = vadd.f32 %v1615, %v1800
  %1802 = vmatprep.mubr.f32.mxu0 %v1303
  %1803 = vmatmul.mubr.f32.gmra.mxu0 %v1302
  %v1804 = vpop.f32.mrf.mxu0
  %v1805 = vadd.f32 %v1611, %v1804
  %v1806 = vpop.f32.mrf.mxu0
  %v1807 = vadd.f32 %v1615, %v1806
  %1808 = vmatprep.mubr.f32.mxu0 %v1307
  %1809 = vmatmul.mubr.f32.gmra.mxu0 %v1306
  %v1810 = vpop.f32.mrf.mxu0
  %v1811 = vadd.f32 %v1611, %v1810
  %v1812 = vpop.f32.mrf.mxu0
  %v1813 = vadd.f32 %v1615, %v1812
  %1814 = vmatprep.mubr.f32.mxu0 %v1311
  %1815 = vmatmul.mubr.f32.gmra.mxu0 %v1310
  %v1816 = vpop.f32.mrf.mxu0
  %v1817 = vadd.f32 %v1611, %v1816
  %v1818 = vpop.f32.mrf.mxu0
  %v1819 = vadd.f32 %v1615, %v1818
  %1820 = vmatprep.mubr.f32.mxu0 %v1315
  %1821 = vmatmul.mubr.f32.gmra.mxu0 %v1314
  %v1822 = vpop.f32.mrf.mxu0
  %v1823 = vadd.f32 %v1611, %v1822
  %v1824 = vpop.f32.mrf.mxu0
  %v1825 = vadd.f32 %v1615, %v1824
  %1826 = vmatprep.mubr.f32.mxu0 %v1319
  %1827 = vmatmul.mubr.f32.gmra.mxu0 %v1318
  %v1828 = vpop.f32.mrf.mxu0
  %v1829 = vadd.f32 %v1611, %v1828
  %v1830 = vpop.f32.mrf.mxu0
  %v1831 = vadd.f32 %v1615, %v1830
  %1832 = vmatprep.mubr.f32.mxu0 %v1323
  %1833 = vmatmul.mubr.f32.gmra.mxu0 %v1322
  %v1834 = vpop.f32.mrf.mxu0
  %v1835 = vadd.f32 %v1611, %v1834
  %v1836 = vpop.f32.mrf.mxu0
  %v1837 = vadd.f32 %v1615, %v1836
  %1838 = vmatprep.mubr.f32.mxu0 %v1327
  %1839 = vmatmul.mubr.f32.gmra.mxu0 %v1326
  %v1840 = vpop.f32.mrf.mxu0
  %v1841 = vadd.f32 %v1611, %v1840
  %v1842 = vpop.f32.mrf.mxu0
  %v1843 = vadd.f32 %v1615, %v1842
  %1844 = vmatprep.mubr.f32.mxu0 %v1331
  %1845 = vmatmul.mubr.f32.gmra.mxu0 %v1330
  %v1846 = vpop.f32.mrf.mxu0
  %v1847 = vadd.f32 %v1611, %v1846
  %v1848 = vpop.f32.mrf.mxu0
  %v1849 = vadd.f32 %v1615, %v1848
  %1850 = vmatprep.mubr.f32.mxu0 %v1335
  %1851 = vmatmul.mubr.f32.gmra.mxu0 %v1334
  %v1852 = vpop.f32.mrf.mxu0
  %v1853 = vadd.f32 %v1611, %v1852
  %v1854 = vpop.f32.mrf.mxu0
  %v1855 = vadd.f32 %v1615, %v1854
  %1856 = vmatprep.mubr.f32.mxu0 %v1339
  %1857 = vmatmul.mubr.f32.gmra.mxu0 %v1338
  %v1858 = vpop.f32.mrf.mxu0
  %v1859 = vadd.f32 %v1611, %v1858
  %v1860 = vpop.f32.mrf.mxu0
  %v1861 = vadd.f32 %v1615, %v1860
  %1862 = vmatprep.mubr.f32.mxu0 %v1343
  %1863 = vmatmul.mubr.f32.gmra.mxu0 %v1342
  %v1864 = vpop.f32.mrf.mxu0
  %v1865 = vadd.f32 %v1611, %v1864
  %v1866 = vpop.f32.mrf.mxu0
  %v1867 = vadd.f32 %v1615, %v1866
  %1868 = vmatprep.mubr.f32.mxu0 %v1347
  %1869 = vmatmul.mubr.f32.gmra.mxu0 %v1346
  %v1870 = vpop.f32.mrf.mxu0
  %v1871 = vadd.f32 %v1611, %v1870
  %v1872 = vpop.f32.mrf.mxu0
  %v1873 = vadd.f32 %v1615, %v1872
  %1874 = vmatprep.mubr.f32.mxu0 %v1351
  %1875 = vmatmul.mubr.f32.gmra.mxu0 %v1350
  %v1876 = vpop.f32.mrf.mxu0
  %v1877 = vadd.f32 %v1611, %v1876
  %v1878 = vpop.f32.mrf.mxu0
  %v1879 = vadd.f32 %v1615, %v1878
  %1880 = vmatprep.mubr.f32.mxu0 %v1355
  %1881 = vmatmul.mubr.f32.gmra.mxu0 %v1354
  %v1882 = vpop.f32.mrf.mxu0
  %v1883 = vadd.f32 %v1611, %v1882
  %v1884 = vpop.f32.mrf.mxu0
  %v1885 = vadd.f32 %v1615, %v1884
  %1886 = vmatprep.mubr.f32.mxu0 %v1359
  %1887 = vmatmul.mubr.f32.gmra.mxu0 %v1358
  %v1888 = vpop.f32.mrf.mxu0
  %v1889 = vadd.f32 %v1611, %v1888
  %v1890 = vpop.f32.mrf.mxu0
  %v1891 = vadd.f32 %v1615, %v1890
  %1892 = vmatprep.mubr.f32.mxu0 %v1363
  %1893 = vmatmul.mubr.f32.gmra.mxu0 %v1362
  %v1894 = vpop.f32.mrf.mxu0
  %v1895 = vadd.f32 %v1611, %v1894
  %v1896 = vpop.f32.mrf.mxu0
  %v1897 = vadd.f32 %v1615, %v1896
  %1898 = vmatprep.mubr.f32.mxu0 %v1367
  %1899 = vmatmul.mubr.f32.gmra.mxu0 %v1366
  %v1900 = vpop.f32.mrf.mxu0
  %v1901 = vadd.f32 %v1611, %v1900
  %v1902 = vpop.f32.mrf.mxu0
  %v1903 = vadd.f32 %v1615, %v1902
  %1904 = vmatprep.mubr.f32.mxu0 %v1371
  %1905 = vmatmul.mubr.f32.gmra.mxu0 %v1370
  %v1906 = vpop.f32.mrf.mxu0
  %v1907 = vadd.f32 %v1611, %v1906
  %v1908 = vpop.f32.mrf.mxu0
  %v1909 = vadd.f32 %v1615, %v1908
  %1910 = vmatprep.mubr.f32.mxu0 %v1375
  %1911 = vmatmul.mubr.f32.gmra.mxu0 %v1374
  %v1912 = vpop.f32.mrf.mxu0
  %v1913 = vadd.f32 %v1611, %v1912
  %v1914 = vpop.f32.mrf.mxu0
  %v1915 = vadd.f32 %v1615, %v1914
  %1916 = vmatprep.mubr.f32.mxu0 %v1379
  %1917 = vmatmul.mubr.f32.gmra.mxu0 %v1378
  %v1918 = vpop.f32.mrf.mxu0
  %v1919 = vadd.f32 %v1611, %v1918
  %v1920 = vpop.f32.mrf.mxu0
  %v1921 = vadd.f32 %v1615, %v1920
  %1922 = vmatprep.mubr.f32.mxu0 %v1383
  %1923 = vmatmul.mubr.f32.gmra.mxu0 %v1382
  %v1924 = vpop.f32.mrf.mxu0
  %v1925 = vadd.f32 %v1611, %v1924
  %v1926 = vpop.f32.mrf.mxu0
  %v1927 = vadd.f32 %v1615, %v1926
  %1928 = vmatprep.mubr.f32.mxu0 %v1387
  %1929 = vmatmul.mubr.f32.gmra.mxu0 %v1386
  %v1930 = vpop.f32.mrf.mxu0
  %v1931 = vadd.f32 %v1611, %v1930
  %v1932 = vpop.f32.mrf.mxu0
  %v1933 = vadd.f32 %v1615, %v1932
  %1934 = vmatprep.mubr.f32.mxu0 %v1391
  %1935 = vmatmul.mubr.f32.gmra.mxu0 %v1390
  %v1936 = vpop.f32.mrf.mxu0
  %v1937 = vadd.f32 %v1611, %v1936
  %v1938 = vpop.f32.mrf.mxu0
  %v1939 = vadd.f32 %v1615, %v1938
  %1940 = vmatprep.mubr.f32.mxu0 %v1395
  %1941 = vmatmul.mubr.f32.gmra.mxu0 %v1394
  %v1942 = vpop.f32.mrf.mxu0
  %v1943 = vadd.f32 %v1611, %v1942
  %v1944 = vpop.f32.mrf.mxu0
  %v1945 = vadd.f32 %v1615, %v1944
  %1946 = vmatprep.mubr.f32.mxu0 %v1399
  %1947 = vmatmul.mubr.f32.gmra.mxu0 %v1398
  %v1948 = vpop.f32.mrf.mxu0
  %v1949 = vadd.f32 %v1611, %v1948
  %v1950 = vpop.f32.mrf.mxu0
  %v1951 = vadd.f32 %v1615, %v1950
  %1952 = vmatprep.mubr.f32.mxu0 %v1403
  %1953 = vmatmul.mubr.f32.gmra.mxu0 %v1402
  %v1954 = vpop.f32.mrf.mxu0
  %v1955 = vadd.f32 %v1611, %v1954
  %v1956 = vpop.f32.mrf.mxu0
  %v1957 = vadd.f32 %v1615, %v1956
  %1958 = vmatprep.mubr.f32.mxu0 %v1407
  %1959 = vmatmul.mubr.f32.gmra.mxu0 %v1406
  %v1960 = vpop.f32.mrf.mxu0
  %v1961 = vadd.f32 %v1611, %v1960
  %v1962 = vpop.f32.mrf.mxu0
  %v1963 = vadd.f32 %v1615, %v1962
  %1964 = vmatprep.mubr.f32.mxu0 %v1411
  %1965 = vmatmul.mubr.f32.gmra.mxu0 %v1410
  %v1966 = vpop.f32.mrf.mxu0
  %v1967 = vadd.f32 %v1611, %v1966
  %v1968 = vpop.f32.mrf.mxu0
  %v1969 = vadd.f32 %v1615, %v1968
  %1970 = vmatprep.mubr.f32.mxu0 %v1415
  %1971 = vmatmul.mubr.f32.gmra.mxu0 %v1414
  %v1972 = vpop.f32.mrf.mxu0
  %v1973 = vadd.f32 %v1611, %v1972
  %v1974 = vpop.f32.mrf.mxu0
  %v1975 = vadd.f32 %v1615, %v1974
  %1976 = vmatprep.mubr.f32.mxu0 %v1419
  %1977 = vmatmul.mubr.f32.gmra.mxu0 %v1418
  %v1978 = vpop.f32.mrf.mxu0
  %v1979 = vadd.f32 %v1611, %v1978
  %v1980 = vpop.f32.mrf.mxu0
  %v1981 = vadd.f32 %v1615, %v1980
  %1982 = vmatprep.mubr.f32.mxu0 %v1423
  %1983 = vmatmul.mubr.f32.gmra.mxu0 %v1422
  %v1984 = vpop.f32.mrf.mxu0
  %v1985 = vadd.f32 %v1611, %v1984
  %v1986 = vpop.f32.mrf.mxu0
  %v1987 = vadd.f32 %v1615, %v1986
  %1988 = vmatprep.mubr.f32.mxu0 %v1427
  %1989 = vmatmul.mubr.f32.gmra.mxu0 %v1426
  %v1990 = vpop.f32.mrf.mxu0
  %v1991 = vadd.f32 %v1611, %v1990
  %v1992 = vpop.f32.mrf.mxu0
  %v1993 = vadd.f32 %v1615, %v1992
  %1994 = vmatprep.mubr.f32.mxu0 %v1431
  %1995 = vmatmul.mubr.f32.gmra.mxu0 %v1430
  %v1996 = vpop.f32.mrf.mxu0
  %v1997 = vadd.f32 %v1611, %v1996
  %v1998 = vpop.f32.mrf.mxu0
  %v1999 = vadd.f32 %v1615, %v1998
  %2000 = vmatprep.mubr.f32.mxu0 %v1435
  %2001 = vmatmul.mubr.f32.gmra.mxu0 %v1434
  %v2002 = vpop.f32.mrf.mxu0
  %v2003 = vadd.f32 %v1611, %v2002
  %v2004 = vpop.f32.mrf.mxu0
  %v2005 = vadd.f32 %v1615, %v2004
  %2006 = vmatprep.mubr.f32.mxu0 %v1439
  %2007 = vmatmul.mubr.f32.gmra.mxu0 %v1438
  %v2008 = vpop.f32.mrf.mxu0
  %v2009 = vadd.f32 %v1611, %v2008
  %v2010 = vpop.f32.mrf.mxu0
  %v2011 = vadd.f32 %v1615, %v2010
  %2012 = vmatprep.mubr.f32.mxu0 %v1443
  %2013 = vmatmul.mubr.f32.gmra.mxu0 %v1442
  %v2014 = vpop.f32.mrf.mxu0
  %v2015 = vadd.f32 %v1611, %v2014
  %v2016 = vpop.f32.mrf.mxu0
  %v2017 = vadd.f32 %v1615, %v2016
  %2018 = vmatprep.mubr.f32.mxu0 %v1447
  %2019 = vmatmul.mubr.f32.gmra.mxu0 %v1446
  %v2020 = vpop.f32.mrf.mxu0
  %v2021 = vadd.f32 %v1611, %v2020
  %v2022 = vpop.f32.mrf.mxu0
  %v2023 = vadd.f32 %v1615, %v2022
  %2024 = vmatprep.mubr.f32.mxu0 %v1451
  %2025 = vmatmul.mubr.f32.gmra.mxu0 %v1450
  %v2026 = vpop.f32.mrf.mxu0
  %v2027 = vadd.f32 %v1611, %v2026
  %v2028 = vpop.f32.mrf.mxu0
  %v2029 = vadd.f32 %v1615, %v2028
  %2030 = vmatprep.mubr.f32.mxu0 %v1455
  %2031 = vmatmul.mubr.f32.gmra.mxu0 %v1454
  %v2032 = vpop.f32.mrf.mxu0
  %v2033 = vadd.f32 %v1611, %v2032
  %v2034 = vpop.f32.mrf.mxu0
  %v2035 = vadd.f32 %v1615, %v2034
  %2036 = vmatprep.mubr.f32.mxu0 %v1459
  %2037 = vmatmul.mubr.f32.gmra.mxu0 %v1458
  %v2038 = vpop.f32.mrf.mxu0
  %v2039 = vadd.f32 %v1611, %v2038
  %v2040 = vpop.f32.mrf.mxu0
  %v2041 = vadd.f32 %v1615, %v2040
  %2042 = vmatprep.mubr.f32.mxu0 %v1463
  %2043 = vmatmul.mubr.f32.gmra.mxu0 %v1462
  %v2044 = vpop.f32.mrf.mxu0
  %v2045 = vadd.f32 %v1611, %v2044
  %v2046 = vpop.f32.mrf.mxu0
  %v2047 = vadd.f32 %v1615, %v2046
  %2048 = vmatprep.mubr.f32.mxu0 %v1467
  %2049 = vmatmul.mubr.f32.gmra.mxu0 %v1466
  %v2050 = vpop.f32.mrf.mxu0
  %v2051 = vadd.f32 %v1611, %v2050
  %v2052 = vpop.f32.mrf.mxu0
  %v2053 = vadd.f32 %v1615, %v2052
  %2054 = vmatprep.mubr.f32.mxu0 %v1471
  %2055 = vmatmul.mubr.f32.gmra.mxu0 %v1470
  %v2056 = vpop.f32.mrf.mxu0
  %v2057 = vadd.f32 %v1611, %v2056
  %v2058 = vpop.f32.mrf.mxu0
  %v2059 = vadd.f32 %v1615, %v2058
  %2060 = vmatprep.mubr.f32.mxu0 %v1475
  %2061 = vmatmul.mubr.f32.gmra.mxu0 %v1474
  %v2062 = vpop.f32.mrf.mxu0
  %v2063 = vadd.f32 %v1611, %v2062
  %v2064 = vpop.f32.mrf.mxu0
  %v2065 = vadd.f32 %v1615, %v2064
  %2066 = vdwg.mxu0
  %2067 = vmatprep.subr.mxu0 %v1573
  %2068 = vmatpush1.msra.mxu0 %v1572
  %2069 = vmatprep.subr.mxu0 %v1571
  %2070 = vmatpush1.msra.mxu0 %v1570
  %2071 = vmatprep.subr.mxu0 %v1569
  %2072 = vmatpush1.msra.mxu0 %v1568
  %2073 = vmatprep.subr.mxu0 %v1567
  %2074 = vmatpush1.msra.mxu0 %v1566
  %2075 = vmatprep.subr.mxu0 %v1565
  %2076 = vmatpush1.msra.mxu0 %v1564
  %2077 = vmatprep.subr.mxu0 %v1563
  %2078 = vmatpush1.msra.mxu0 %v1562
  %2079 = vmatprep.subr.mxu0 %v1561
  %2080 = vmatpush1.msra.mxu0 %v1560
  %2081 = vmatprep.subr.mxu0 %v1559
  %2082 = vmatpush1.msra.mxu0 %v1558
  %2083 = vmatprep.subr.mxu0 %v1557
  %2084 = vmatpush1.msra.mxu0 %v1556
  %2085 = vmatprep.subr.mxu0 %v1555
  %2086 = vmatpush1.msra.mxu0 %v1554
  %2087 = vmatprep.subr.mxu0 %v1553
  %2088 = vmatpush1.msra.mxu0 %v1552
  %2089 = vmatprep.subr.mxu0 %v1551
  %2090 = vmatpush1.msra.mxu0 %v1550
  %2091 = vmatprep.subr.mxu0 %v1549
  %2092 = vmatpush1.msra.mxu0 %v1548
  %2093 = vmatprep.subr.mxu0 %v1547
  %2094 = vmatpush1.msra.mxu0 %v1546
  %2095 = vmatprep.subr.mxu0 %v1545
  %2096 = vmatpush1.msra.mxu0 %v1544
  %2097 = vmatprep.subr.mxu0 %v1543
  %2098 = vmatpush1.msra.mxu0 %v1542
  %2099 = vmatprep.subr.mxu0 %v1605
  %2100 = vmatpush2.msra.mxu0 %v1604
  %2101 = vmatprep.subr.mxu0 %v1603
  %2102 = vmatpush2.msra.mxu0 %v1602
  %2103 = vmatprep.subr.mxu0 %v1601
  %2104 = vmatpush2.msra.mxu0 %v1600
  %2105 = vmatprep.subr.mxu0 %v1599
  %2106 = vmatpush2.msra.mxu0 %v1598
  %2107 = vmatprep.subr.mxu0 %v1597
  %2108 = vmatpush2.msra.mxu0 %v1596
  %2109 = vmatprep.subr.mxu0 %v1595
  %2110 = vmatpush2.msra.mxu0 %v1594
  %2111 = vmatprep.subr.mxu0 %v1593
  %2112 = vmatpush2.msra.mxu0 %v1592
  %2113 = vmatprep.subr.mxu0 %v1591
  %2114 = vmatpush2.msra.mxu0 %v1590
  %2115 = vmatprep.subr.mxu0 %v1589
  %2116 = vmatpush2.msra.mxu0 %v1588
  %2117 = vmatprep.subr.mxu0 %v1587
  %2118 = vmatpush2.msra.mxu0 %v1586
  %2119 = vmatprep.subr.mxu0 %v1585
  %2120 = vmatpush2.msra.mxu0 %v1584
  %2121 = vmatprep.subr.mxu0 %v1583
  %2122 = vmatpush2.msra.mxu0 %v1582
  %2123 = vmatprep.subr.mxu0 %v1581
  %2124 = vmatpush2.msra.mxu0 %v1580
  %2125 = vmatprep.subr.mxu0 %v1579
  %2126 = vmatpush2.msra.mxu0 %v1578
  %2127 = vmatprep.subr.mxu0 %v1577
  %2128 = vmatpush2.msra.mxu0 %v1576
  %2129 = vmatprep.subr.mxu0 %v1575
  %2130 = vmatpush2.msra.mxu0 %v1574
  %2131 = vmatprep.mubr.f32.mxu0 %v1225
  %2132 = vmatmul.mubr.f32.gmra.mxu0 %v1224
  %v2133 = vpop.f32.mrf.mxu0
  %v2134 = vadd.f32 %v1685, %v2133
  %v2135 = vpop.f32.mrf.mxu0
  %v2136 = vadd.f32 %v1687, %v2135
  %2137 = vmatprep.mubr.f32.mxu0 %v1229
  %2138 = vmatmul.mubr.f32.gmra.mxu0 %v1228
  %v2139 = vpop.f32.mrf.mxu0
  %v2140 = vadd.f32 %v1691, %v2139
  %v2141 = vpop.f32.mrf.mxu0
  %v2142 = vadd.f32 %v1693, %v2141
  %2143 = vmatprep.mubr.f32.mxu0 %v1233
  %2144 = vmatmul.mubr.f32.gmra.mxu0 %v1232
  %v2145 = vpop.f32.mrf.mxu0
  %v2146 = vadd.f32 %v1697, %v2145
  %v2147 = vpop.f32.mrf.mxu0
  %v2148 = vadd.f32 %v1699, %v2147
  %2149 = vmatprep.mubr.f32.mxu0 %v1237
  %2150 = vmatmul.mubr.f32.gmra.mxu0 %v1236
  %v2151 = vpop.f32.mrf.mxu0
  %v2152 = vadd.f32 %v1703, %v2151
  %v2153 = vpop.f32.mrf.mxu0
  %v2154 = vadd.f32 %v1705, %v2153
  %2155 = vmatprep.mubr.f32.mxu0 %v1241
  %2156 = vmatmul.mubr.f32.gmra.mxu0 %v1240
  %v2157 = vpop.f32.mrf.mxu0
  %v2158 = vadd.f32 %v1709, %v2157
  %v2159 = vpop.f32.mrf.mxu0
  %v2160 = vadd.f32 %v1711, %v2159
  %2161 = vmatprep.mubr.f32.mxu0 %v1245
  %2162 = vmatmul.mubr.f32.gmra.mxu0 %v1244
  %v2163 = vpop.f32.mrf.mxu0
  %v2164 = vadd.f32 %v1715, %v2163
  %v2165 = vpop.f32.mrf.mxu0
  %v2166 = vadd.f32 %v1717, %v2165
  %2167 = vmatprep.mubr.f32.mxu0 %v1249
  %2168 = vmatmul.mubr.f32.gmra.mxu0 %v1248
  %v2169 = vpop.f32.mrf.mxu0
  %v2170 = vadd.f32 %v1721, %v2169
  %v2171 = vpop.f32.mrf.mxu0
  %v2172 = vadd.f32 %v1723, %v2171
  %2173 = vmatprep.mubr.f32.mxu0 %v1253
  %2174 = vmatmul.mubr.f32.gmra.mxu0 %v1252
  %v2175 = vpop.f32.mrf.mxu0
  %v2176 = vadd.f32 %v1727, %v2175
  %v2177 = vpop.f32.mrf.mxu0
  %v2178 = vadd.f32 %v1729, %v2177
  %2179 = vmatprep.mubr.f32.mxu0 %v1257
  %2180 = vmatmul.mubr.f32.gmra.mxu0 %v1256
  %v2181 = vpop.f32.mrf.mxu0
  %v2182 = vadd.f32 %v1733, %v2181
  %v2183 = vpop.f32.mrf.mxu0
  %v2184 = vadd.f32 %v1735, %v2183
  %2185 = vmatprep.mubr.f32.mxu0 %v1261
  %2186 = vmatmul.mubr.f32.gmra.mxu0 %v1260
  %v2187 = vpop.f32.mrf.mxu0
  %v2188 = vadd.f32 %v1739, %v2187
  %v2189 = vpop.f32.mrf.mxu0
  %v2190 = vadd.f32 %v1741, %v2189
  %2191 = vmatprep.mubr.f32.mxu0 %v1265
  %2192 = vmatmul.mubr.f32.gmra.mxu0 %v1264
  %v2193 = vpop.f32.mrf.mxu0
  %v2194 = vadd.f32 %v1745, %v2193
  %v2195 = vpop.f32.mrf.mxu0
  %v2196 = vadd.f32 %v1747, %v2195
  %2197 = vmatprep.mubr.f32.mxu0 %v1269
  %2198 = vmatmul.mubr.f32.gmra.mxu0 %v1268
  %v2199 = vpop.f32.mrf.mxu0
  %v2200 = vadd.f32 %v1751, %v2199
  %v2201 = vpop.f32.mrf.mxu0
  %v2202 = vadd.f32 %v1753, %v2201
  %2203 = vmatprep.mubr.f32.mxu0 %v1273
  %2204 = vmatmul.mubr.f32.gmra.mxu0 %v1272
  %v2205 = vpop.f32.mrf.mxu0
  %v2206 = vadd.f32 %v1757, %v2205
  %v2207 = vpop.f32.mrf.mxu0
  %v2208 = vadd.f32 %v1759, %v2207
  %2209 = vmatprep.mubr.f32.mxu0 %v1277
  %2210 = vmatmul.mubr.f32.gmra.mxu0 %v1276
  %v2211 = vpop.f32.mrf.mxu0
  %v2212 = vadd.f32 %v1763, %v2211
  %v2213 = vpop.f32.mrf.mxu0
  %v2214 = vadd.f32 %v1765, %v2213
  %2215 = vmatprep.mubr.f32.mxu0 %v1281
  %2216 = vmatmul.mubr.f32.gmra.mxu0 %v1280
  %v2217 = vpop.f32.mrf.mxu0
  %v2218 = vadd.f32 %v1769, %v2217
  %v2219 = vpop.f32.mrf.mxu0
  %v2220 = vadd.f32 %v1771, %v2219
  %2221 = vmatprep.mubr.f32.mxu0 %v1285
  %2222 = vmatmul.mubr.f32.gmra.mxu0 %v1284
  %v2223 = vpop.f32.mrf.mxu0
  %v2224 = vadd.f32 %v1775, %v2223
  %v2225 = vpop.f32.mrf.mxu0
  %v2226 = vadd.f32 %v1777, %v2225
  %2227 = vmatprep.mubr.f32.mxu0 %v1289
  %2228 = vmatmul.mubr.f32.gmra.mxu0 %v1288
  %v2229 = vpop.f32.mrf.mxu0
  %v2230 = vadd.f32 %v1781, %v2229
  %v2231 = vpop.f32.mrf.mxu0
  %v2232 = vadd.f32 %v1783, %v2231
  %2233 = vmatprep.mubr.f32.mxu0 %v1293
  %2234 = vmatmul.mubr.f32.gmra.mxu0 %v1292
  %v2235 = vpop.f32.mrf.mxu0
  %v2236 = vadd.f32 %v1787, %v2235
  %v2237 = vpop.f32.mrf.mxu0
  %v2238 = vadd.f32 %v1789, %v2237
  %2239 = vmatprep.mubr.f32.mxu0 %v1297
  %2240 = vmatmul.mubr.f32.gmra.mxu0 %v1296
  %v2241 = vpop.f32.mrf.mxu0
  %v2242 = vadd.f32 %v1793, %v2241
  %v2243 = vpop.f32.mrf.mxu0
  %v2244 = vadd.f32 %v1795, %v2243
  %2245 = vmatprep.mubr.f32.mxu0 %v1301
  %2246 = vmatmul.mubr.f32.gmra.mxu0 %v1300
  %v2247 = vpop.f32.mrf.mxu0
  %v2248 = vadd.f32 %v1799, %v2247
  %v2249 = vpop.f32.mrf.mxu0
  %v2250 = vadd.f32 %v1801, %v2249
  %2251 = vmatprep.mubr.f32.mxu0 %v1305
  %2252 = vmatmul.mubr.f32.gmra.mxu0 %v1304
  %v2253 = vpop.f32.mrf.mxu0
  %v2254 = vadd.f32 %v1805, %v2253
  %v2255 = vpop.f32.mrf.mxu0
  %v2256 = vadd.f32 %v1807, %v2255
  %2257 = vmatprep.mubr.f32.mxu0 %v1309
  %2258 = vmatmul.mubr.f32.gmra.mxu0 %v1308
  %v2259 = vpop.f32.mrf.mxu0
  %v2260 = vadd.f32 %v1811, %v2259
  %v2261 = vpop.f32.mrf.mxu0
  %v2262 = vadd.f32 %v1813, %v2261
  %2263 = vmatprep.mubr.f32.mxu0 %v1313
  %2264 = vmatmul.mubr.f32.gmra.mxu0 %v1312
  %v2265 = vpop.f32.mrf.mxu0
  %v2266 = vadd.f32 %v1817, %v2265
  %v2267 = vpop.f32.mrf.mxu0
  %v2268 = vadd.f32 %v1819, %v2267
  %2269 = vmatprep.mubr.f32.mxu0 %v1317
  %2270 = vmatmul.mubr.f32.gmra.mxu0 %v1316
  %v2271 = vpop.f32.mrf.mxu0
  %v2272 = vadd.f32 %v1823, %v2271
  %v2273 = vpop.f32.mrf.mxu0
  %v2274 = vadd.f32 %v1825, %v2273
  %2275 = vmatprep.mubr.f32.mxu0 %v1321
  %2276 = vmatmul.mubr.f32.gmra.mxu0 %v1320
  %v2277 = vpop.f32.mrf.mxu0
  %v2278 = vadd.f32 %v1829, %v2277
  %v2279 = vpop.f32.mrf.mxu0
  %v2280 = vadd.f32 %v1831, %v2279
  %2281 = vmatprep.mubr.f32.mxu0 %v1325
  %2282 = vmatmul.mubr.f32.gmra.mxu0 %v1324
  %v2283 = vpop.f32.mrf.mxu0
  %v2284 = vadd.f32 %v1835, %v2283
  %v2285 = vpop.f32.mrf.mxu0
  %v2286 = vadd.f32 %v1837, %v2285
  %2287 = vmatprep.mubr.f32.mxu0 %v1329
  %2288 = vmatmul.mubr.f32.gmra.mxu0 %v1328
  %v2289 = vpop.f32.mrf.mxu0
  %v2290 = vadd.f32 %v1841, %v2289
  %v2291 = vpop.f32.mrf.mxu0
  %v2292 = vadd.f32 %v1843, %v2291
  %2293 = vmatprep.mubr.f32.mxu0 %v1333
  %2294 = vmatmul.mubr.f32.gmra.mxu0 %v1332
  %v2295 = vpop.f32.mrf.mxu0
  %v2296 = vadd.f32 %v1847, %v2295
  %v2297 = vpop.f32.mrf.mxu0
  %v2298 = vadd.f32 %v1849, %v2297
  %2299 = vmatprep.mubr.f32.mxu0 %v1337
  %2300 = vmatmul.mubr.f32.gmra.mxu0 %v1336
  %v2301 = vpop.f32.mrf.mxu0
  %v2302 = vadd.f32 %v1853, %v2301
  %v2303 = vpop.f32.mrf.mxu0
  %v2304 = vadd.f32 %v1855, %v2303
  %2305 = vmatprep.mubr.f32.mxu0 %v1341
  %2306 = vmatmul.mubr.f32.gmra.mxu0 %v1340
  %v2307 = vpop.f32.mrf.mxu0
  %v2308 = vadd.f32 %v1859, %v2307
  %v2309 = vpop.f32.mrf.mxu0
  %v2310 = vadd.f32 %v1861, %v2309
  %2311 = vmatprep.mubr.f32.mxu0 %v1345
  %2312 = vmatmul.mubr.f32.gmra.mxu0 %v1344
  %v2313 = vpop.f32.mrf.mxu0
  %v2314 = vadd.f32 %v1865, %v2313
  %v2315 = vpop.f32.mrf.mxu0
  %v2316 = vadd.f32 %v1867, %v2315
  %2317 = vmatprep.mubr.f32.mxu0 %v1349
  %2318 = vmatmul.mubr.f32.gmra.mxu0 %v1348
  %v2319 = vpop.f32.mrf.mxu0
  %v2320 = vadd.f32 %v1871, %v2319
  %v2321 = vpop.f32.mrf.mxu0
  %v2322 = vadd.f32 %v1873, %v2321
  %2323 = vmatprep.mubr.f32.mxu0 %v1353
  %2324 = vmatmul.mubr.f32.gmra.mxu0 %v1352
  %v2325 = vpop.f32.mrf.mxu0
  %v2326 = vadd.f32 %v1877, %v2325
  %v2327 = vpop.f32.mrf.mxu0
  %v2328 = vadd.f32 %v1879, %v2327
  %2329 = vmatprep.mubr.f32.mxu0 %v1357
  %2330 = vmatmul.mubr.f32.gmra.mxu0 %v1356
  %v2331 = vpop.f32.mrf.mxu0
  %v2332 = vadd.f32 %v1883, %v2331
  %v2333 = vpop.f32.mrf.mxu0
  %v2334 = vadd.f32 %v1885, %v2333
  %2335 = vmatprep.mubr.f32.mxu0 %v1361
  %2336 = vmatmul.mubr.f32.gmra.mxu0 %v1360
  %v2337 = vpop.f32.mrf.mxu0
  %v2338 = vadd.f32 %v1889, %v2337
  %v2339 = vpop.f32.mrf.mxu0
  %v2340 = vadd.f32 %v1891, %v2339
  %2341 = vmatprep.mubr.f32.mxu0 %v1365
  %2342 = vmatmul.mubr.f32.gmra.mxu0 %v1364
  %v2343 = vpop.f32.mrf.mxu0
  %v2344 = vadd.f32 %v1895, %v2343
  %v2345 = vpop.f32.mrf.mxu0
  %v2346 = vadd.f32 %v1897, %v2345
  %2347 = vmatprep.mubr.f32.mxu0 %v1369
  %2348 = vmatmul.mubr.f32.gmra.mxu0 %v1368
  %v2349 = vpop.f32.mrf.mxu0
  %v2350 = vadd.f32 %v1901, %v2349
  %v2351 = vpop.f32.mrf.mxu0
  %v2352 = vadd.f32 %v1903, %v2351
  %2353 = vmatprep.mubr.f32.mxu0 %v1373
  %2354 = vmatmul.mubr.f32.gmra.mxu0 %v1372
  %v2355 = vpop.f32.mrf.mxu0
  %v2356 = vadd.f32 %v1907, %v2355
  %v2357 = vpop.f32.mrf.mxu0
  %v2358 = vadd.f32 %v1909, %v2357
  %2359 = vmatprep.mubr.f32.mxu0 %v1377
  %2360 = vmatmul.mubr.f32.gmra.mxu0 %v1376
  %v2361 = vpop.f32.mrf.mxu0
  %v2362 = vadd.f32 %v1913, %v2361
  %v2363 = vpop.f32.mrf.mxu0
  %v2364 = vadd.f32 %v1915, %v2363
  %2365 = vmatprep.mubr.f32.mxu0 %v1381
  %2366 = vmatmul.mubr.f32.gmra.mxu0 %v1380
  %v2367 = vpop.f32.mrf.mxu0
  %v2368 = vadd.f32 %v1919, %v2367
  %v2369 = vpop.f32.mrf.mxu0
  %v2370 = vadd.f32 %v1921, %v2369
  %2371 = vmatprep.mubr.f32.mxu0 %v1385
  %2372 = vmatmul.mubr.f32.gmra.mxu0 %v1384
  %v2373 = vpop.f32.mrf.mxu0
  %v2374 = vadd.f32 %v1925, %v2373
  %v2375 = vpop.f32.mrf.mxu0
  %v2376 = vadd.f32 %v1927, %v2375
  %2377 = vmatprep.mubr.f32.mxu0 %v1389
  %2378 = vmatmul.mubr.f32.gmra.mxu0 %v1388
  %v2379 = vpop.f32.mrf.mxu0
  %v2380 = vadd.f32 %v1931, %v2379
  %v2381 = vpop.f32.mrf.mxu0
  %v2382 = vadd.f32 %v1933, %v2381
  %2383 = vmatprep.mubr.f32.mxu0 %v1393
  %2384 = vmatmul.mubr.f32.gmra.mxu0 %v1392
  %v2385 = vpop.f32.mrf.mxu0
  %v2386 = vadd.f32 %v1937, %v2385
  %v2387 = vpop.f32.mrf.mxu0
  %v2388 = vadd.f32 %v1939, %v2387
  %2389 = vmatprep.mubr.f32.mxu0 %v1397
  %2390 = vmatmul.mubr.f32.gmra.mxu0 %v1396
  %v2391 = vpop.f32.mrf.mxu0
  %v2392 = vadd.f32 %v1943, %v2391
  %v2393 = vpop.f32.mrf.mxu0
  %v2394 = vadd.f32 %v1945, %v2393
  %2395 = vmatprep.mubr.f32.mxu0 %v1401
  %2396 = vmatmul.mubr.f32.gmra.mxu0 %v1400
  %v2397 = vpop.f32.mrf.mxu0
  %v2398 = vadd.f32 %v1949, %v2397
  %v2399 = vpop.f32.mrf.mxu0
  %v2400 = vadd.f32 %v1951, %v2399
  %2401 = vmatprep.mubr.f32.mxu0 %v1405
  %2402 = vmatmul.mubr.f32.gmra.mxu0 %v1404
  %v2403 = vpop.f32.mrf.mxu0
  %v2404 = vadd.f32 %v1955, %v2403
  %v2405 = vpop.f32.mrf.mxu0
  %v2406 = vadd.f32 %v1957, %v2405
  %2407 = vmatprep.mubr.f32.mxu0 %v1409
  %2408 = vmatmul.mubr.f32.gmra.mxu0 %v1408
  %v2409 = vpop.f32.mrf.mxu0
  %v2410 = vadd.f32 %v1961, %v2409
  %v2411 = vpop.f32.mrf.mxu0
  %v2412 = vadd.f32 %v1963, %v2411
  %2413 = vmatprep.mubr.f32.mxu0 %v1413
  %2414 = vmatmul.mubr.f32.gmra.mxu0 %v1412
  %v2415 = vpop.f32.mrf.mxu0
  %v2416 = vadd.f32 %v1967, %v2415
  %v2417 = vpop.f32.mrf.mxu0
  %v2418 = vadd.f32 %v1969, %v2417
  %2419 = vmatprep.mubr.f32.mxu0 %v1417
  %2420 = vmatmul.mubr.f32.gmra.mxu0 %v1416
  %v2421 = vpop.f32.mrf.mxu0
  %v2422 = vadd.f32 %v1973, %v2421
  %v2423 = vpop.f32.mrf.mxu0
  %v2424 = vadd.f32 %v1975, %v2423
  %2425 = vmatprep.mubr.f32.mxu0 %v1421
  %2426 = vmatmul.mubr.f32.gmra.mxu0 %v1420
  %v2427 = vpop.f32.mrf.mxu0
  %v2428 = vadd.f32 %v1979, %v2427
  %v2429 = vpop.f32.mrf.mxu0
  %v2430 = vadd.f32 %v1981, %v2429
  %2431 = vmatprep.mubr.f32.mxu0 %v1425
  %2432 = vmatmul.mubr.f32.gmra.mxu0 %v1424
  %v2433 = vpop.f32.mrf.mxu0
  %v2434 = vadd.f32 %v1985, %v2433
  %v2435 = vpop.f32.mrf.mxu0
  %v2436 = vadd.f32 %v1987, %v2435
  %2437 = vmatprep.mubr.f32.mxu0 %v1429
  %2438 = vmatmul.mubr.f32.gmra.mxu0 %v1428
  %v2439 = vpop.f32.mrf.mxu0
  %v2440 = vadd.f32 %v1991, %v2439
  %v2441 = vpop.f32.mrf.mxu0
  %v2442 = vadd.f32 %v1993, %v2441
  %2443 = vmatprep.mubr.f32.mxu0 %v1433
  %2444 = vmatmul.mubr.f32.gmra.mxu0 %v1432
  %v2445 = vpop.f32.mrf.mxu0
  %v2446 = vadd.f32 %v1997, %v2445
  %v2447 = vpop.f32.mrf.mxu0
  %v2448 = vadd.f32 %v1999, %v2447
  %2449 = vmatprep.mubr.f32.mxu0 %v1437
  %2450 = vmatmul.mubr.f32.gmra.mxu0 %v1436
  %v2451 = vpop.f32.mrf.mxu0
  %v2452 = vadd.f32 %v2003, %v2451
  %v2453 = vpop.f32.mrf.mxu0
  %v2454 = vadd.f32 %v2005, %v2453
  %2455 = vmatprep.mubr.f32.mxu0 %v1441
  %2456 = vmatmul.mubr.f32.gmra.mxu0 %v1440
  %v2457 = vpop.f32.mrf.mxu0
  %v2458 = vadd.f32 %v2009, %v2457
  %v2459 = vpop.f32.mrf.mxu0
  %v2460 = vadd.f32 %v2011, %v2459
  %2461 = vmatprep.mubr.f32.mxu0 %v1445
  %2462 = vmatmul.mubr.f32.gmra.mxu0 %v1444
  %v2463 = vpop.f32.mrf.mxu0
  %v2464 = vadd.f32 %v2015, %v2463
  %v2465 = vpop.f32.mrf.mxu0
  %v2466 = vadd.f32 %v2017, %v2465
  %2467 = vmatprep.mubr.f32.mxu0 %v1449
  %2468 = vmatmul.mubr.f32.gmra.mxu0 %v1448
  %v2469 = vpop.f32.mrf.mxu0
  %v2470 = vadd.f32 %v2021, %v2469
  %v2471 = vpop.f32.mrf.mxu0
  %v2472 = vadd.f32 %v2023, %v2471
  %2473 = vmatprep.mubr.f32.mxu0 %v1453
  %2474 = vmatmul.mubr.f32.gmra.mxu0 %v1452
  %v2475 = vpop.f32.mrf.mxu0
  %v2476 = vadd.f32 %v2027, %v2475
  %v2477 = vpop.f32.mrf.mxu0
  %v2478 = vadd.f32 %v2029, %v2477
  %2479 = vmatprep.mubr.f32.mxu0 %v1457
  %2480 = vmatmul.mubr.f32.gmra.mxu0 %v1456
  %v2481 = vpop.f32.mrf.mxu0
  %v2482 = vadd.f32 %v2033, %v2481
  %v2483 = vpop.f32.mrf.mxu0
  %v2484 = vadd.f32 %v2035, %v2483
  %2485 = vmatprep.mubr.f32.mxu0 %v1461
  %2486 = vmatmul.mubr.f32.gmra.mxu0 %v1460
  %v2487 = vpop.f32.mrf.mxu0
  %v2488 = vadd.f32 %v2039, %v2487
  %v2489 = vpop.f32.mrf.mxu0
  %v2490 = vadd.f32 %v2041, %v2489
  %2491 = vmatprep.mubr.f32.mxu0 %v1465
  %2492 = vmatmul.mubr.f32.gmra.mxu0 %v1464
  %v2493 = vpop.f32.mrf.mxu0
  %v2494 = vadd.f32 %v2045, %v2493
  %v2495 = vpop.f32.mrf.mxu0
  %v2496 = vadd.f32 %v2047, %v2495
  %2497 = vmatprep.mubr.f32.mxu0 %v1469
  %2498 = vmatmul.mubr.f32.gmra.mxu0 %v1468
  %v2499 = vpop.f32.mrf.mxu0
  %v2500 = vadd.f32 %v2051, %v2499
  %v2501 = vpop.f32.mrf.mxu0
  %v2502 = vadd.f32 %v2053, %v2501
  %2503 = vmatprep.mubr.f32.mxu0 %v1473
  %2504 = vmatmul.mubr.f32.gmra.mxu0 %v1472
  %v2505 = vpop.f32.mrf.mxu0
  %v2506 = vadd.f32 %v2057, %v2505
  %v2507 = vpop.f32.mrf.mxu0
  %v2508 = vadd.f32 %v2059, %v2507
  %2509 = vmatprep.mubr.f32.mxu0 %v1477
  %2510 = vmatmul.mubr.f32.gmra.mxu0 %v1476
  %v2511 = vpop.f32.mrf.mxu0
  %v2512 = vadd.f32 %v2063, %v2511
  %v2513 = vpop.f32.mrf.mxu0
  %v2514 = vadd.f32 %v2065, %v2513
  %2515 = vdwg.mxu0
  %2516 = vst [vmem:[%s7] sm:$0xff] %v2134
  %2517 = vst [vmem:[%s7 + $0x8] sm:$0xff] %v2136
  %2518 = vst [vmem:[%s7 + $0x10] sm:$0xff] %v2140
  %2519 = vst [vmem:[%s7 + $0x18] sm:$0xff] %v2142
  %2520 = vst [vmem:[%s7 + $0x20] sm:$0xff] %v2146
  %2521 = vst [vmem:[%s7 + $0x28] sm:$0xff] %v2148
  %2522 = vst [vmem:[%s7 + $0x30] sm:$0xff] %v2152
  %2523 = vst [vmem:[%s7 + $0x38] sm:$0xff] %v2154
  %2524 = vst [vmem:[%s7 + $0x40] sm:$0xff] %v2158
  %2525 = vst [vmem:[%s7 + $0x48] sm:$0xff] %v2160
  %2526 = vst [vmem:[%s7 + $0x50] sm:$0xff] %v2164
  %2527 = vst [vmem:[%s7 + $0x58] sm:$0xff] %v2166
  %2528 = vst [vmem:[%s7 + $0x60] sm:$0xff] %v2170
  %2529 = vst [vmem:[%s7 + $0x68] sm:$0xff] %v2172
  %2530 = vst [vmem:[%s7 + $0x70] sm:$0xff] %v2176
  %2531 = vst [vmem:[%s7 + $0x78] sm:$0xff] %v2178
  %2532 = vst [vmem:[%s7 + $0x80] sm:$0xff] %v2182
  %2533 = vst [vmem:[%s7 + $0x88] sm:$0xff] %v2184
  %2534 = vst [vmem:[%s7 + $0x90] sm:$0xff] %v2188
  %2535 = vst [vmem:[%s7 + $0x98] sm:$0xff] %v2190
  %2536 = vst [vmem:[%s7 + $0xa0] sm:$0xff] %v2194
  %2537 = vst [vmem:[%s7 + $0xa8] sm:$0xff] %v2196
  %2538 = vst [vmem:[%s7 + $0xb0] sm:$0xff] %v2200
  %2539 = vst [vmem:[%s7 + $0xb8] sm:$0xff] %v2202
  %2540 = vst [vmem:[%s7 + $0xc0] sm:$0xff] %v2206
  %2541 = vst [vmem:[%s7 + $0xc8] sm:$0xff] %v2208
  %2542 = vst [vmem:[%s7 + $0xd0] sm:$0xff] %v2212
  %2543 = vst [vmem:[%s7 + $0xd8] sm:$0xff] %v2214
  %2544 = vst [vmem:[%s7 + $0xe0] sm:$0xff] %v2218
  %2545 = vst [vmem:[%s7 + $0xe8] sm:$0xff] %v2220
  %2546 = vst [vmem:[%s7 + $0xf0] sm:$0xff] %v2224
  %2547 = vst [vmem:[%s7 + $0xf8] sm:$0xff] %v2226
  %2548 = vst [vmem:[%s7 + $0x100] sm:$0xff] %v2230
  %2549 = vst [vmem:[%s7 + $0x108] sm:$0xff] %v2232
  %2550 = vst [vmem:[%s7 + $0x110] sm:$0xff] %v2236
  %2551 = vst [vmem:[%s7 + $0x118] sm:$0xff] %v2238
  %2552 = vst [vmem:[%s7 + $0x120] sm:$0xff] %v2242
  %2553 = vst [vmem:[%s7 + $0x128] sm:$0xff] %v2244
  %2554 = vst [vmem:[%s7 + $0x130] sm:$0xff] %v2248
  %2555 = vst [vmem:[%s7 + $0x138] sm:$0xff] %v2250
  %2556 = vst [vmem:[%s7 + $0x140] sm:$0xff] %v2254
  %2557 = vst [vmem:[%s7 + $0x148] sm:$0xff] %v2256
  %2558 = vst [vmem:[%s7 + $0x150] sm:$0xff] %v2260
  %2559 = vst [vmem:[%s7 + $0x158] sm:$0xff] %v2262
  %2560 = vst [vmem:[%s7 + $0x160] sm:$0xff] %v2266
  %2561 = vst [vmem:[%s7 + $0x168] sm:$0xff] %v2268
  %2562 = vst [vmem:[%s7 + $0x170] sm:$0xff] %v2272
  %2563 = vst [vmem:[%s7 + $0x178] sm:$0xff] %v2274
  %2564 = vst [vmem:[%s7 + $0x180] sm:$0xff] %v2278
  %2565 = vst [vmem:[%s7 + $0x188] sm:$0xff] %v2280
  %2566 = vst [vmem:[%s7 + $0x190] sm:$0xff] %v2284
  %2567 = vst [vmem:[%s7 + $0x198] sm:$0xff] %v2286
  %2568 = vst [vmem:[%s7 + $0x1a0] sm:$0xff] %v2290
  %2569 = vst [vmem:[%s7 + $0x1a8] sm:$0xff] %v2292
  %2570 = vst [vmem:[%s7 + $0x1b0] sm:$0xff] %v2296
  %2571 = vst [vmem:[%s7 + $0x1b8] sm:$0xff] %v2298
  %2572 = vst [vmem:[%s7 + $0x1c0] sm:$0xff] %v2302
  %2573 = vst [vmem:[%s7 + $0x1c8] sm:$0xff] %v2304
  %2574 = vst [vmem:[%s7 + $0x1d0] sm:$0xff] %v2308
  %2575 = vst [vmem:[%s7 + $0x1d8] sm:$0xff] %v2310
  %2576 = vst [vmem:[%s7 + $0x1e0] sm:$0xff] %v2314
  %2577 = vst [vmem:[%s7 + $0x1e8] sm:$0xff] %v2316
  %2578 = vst [vmem:[%s7 + $0x1f0] sm:$0xff] %v2320
  %2579 = vst [vmem:[%s7 + $0x1f8] sm:$0xff] %v2322
  %2580 = vst [vmem:[%s7 + $0x200] sm:$0xff] %v2326
  %2581 = vst [vmem:[%s7 + $0x208] sm:$0xff] %v2328
  %2582 = vst [vmem:[%s7 + $0x210] sm:$0xff] %v2332
  %2583 = vst [vmem:[%s7 + $0x218] sm:$0xff] %v2334
  %2584 = vst [vmem:[%s7 + $0x220] sm:$0xff] %v2338
  %2585 = vst [vmem:[%s7 + $0x228] sm:$0xff] %v2340
  %2586 = vst [vmem:[%s7 + $0x230] sm:$0xff] %v2344
  %2587 = vst [vmem:[%s7 + $0x238] sm:$0xff] %v2346
  %2588 = vst [vmem:[%s7 + $0x240] sm:$0xff] %v2350
  %2589 = vst [vmem:[%s7 + $0x248] sm:$0xff] %v2352
  %2590 = vst [vmem:[%s7 + $0x250] sm:$0xff] %v2356
  %2591 = vst [vmem:[%s7 + $0x258] sm:$0xff] %v2358
  %2592 = vst [vmem:[%s7 + $0x260] sm:$0xff] %v2362
  %2593 = vst [vmem:[%s7 + $0x268] sm:$0xff] %v2364
  %2594 = vst [vmem:[%s7 + $0x270] sm:$0xff] %v2368
  %2595 = vst [vmem:[%s7 + $0x278] sm:$0xff] %v2370
  %2596 = vst [vmem:[%s7 + $0x280] sm:$0xff] %v2374
  %2597 = vst [vmem:[%s7 + $0x288] sm:$0xff] %v2376
  %2598 = vst [vmem:[%s7 + $0x290] sm:$0xff] %v2380
  %2599 = vst [vmem:[%s7 + $0x298] sm:$0xff] %v2382
  %2600 = vst [vmem:[%s7 + $0x2a0] sm:$0xff] %v2386
  %2601 = vst [vmem:[%s7 + $0x2a8] sm:$0xff] %v2388
  %2602 = vst [vmem:[%s7 + $0x2b0] sm:$0xff] %v2392
  %2603 = vst [vmem:[%s7 + $0x2b8] sm:$0xff] %v2394
  %2604 = vst [vmem:[%s7 + $0x2c0] sm:$0xff] %v2398
  %2605 = vst [vmem:[%s7 + $0x2c8] sm:$0xff] %v2400
  %2606 = vst [vmem:[%s7 + $0x2d0] sm:$0xff] %v2404
  %2607 = vst [vmem:[%s7 + $0x2d8] sm:$0xff] %v2406
  %2608 = vst [vmem:[%s7 + $0x2e0] sm:$0xff] %v2410
  %2609 = vst [vmem:[%s7 + $0x2e8] sm:$0xff] %v2412
  %2610 = vst [vmem:[%s7 + $0x2f0] sm:$0xff] %v2416
  %2611 = vst [vmem:[%s7 + $0x2f8] sm:$0xff] %v2418
  %2612 = vst [vmem:[%s7 + $0x300] sm:$0xff] %v2422
  %2613 = vst [vmem:[%s7 + $0x308] sm:$0xff] %v2424
  %2614 = vst [vmem:[%s7 + $0x310] sm:$0xff] %v2428
  %2615 = vst [vmem:[%s7 + $0x318] sm:$0xff] %v2430
  %2616 = vst [vmem:[%s7 + $0x320] sm:$0xff] %v2434
  %2617 = vst [vmem:[%s7 + $0x328] sm:$0xff] %v2436
  %2618 = vst [vmem:[%s7 + $0x330] sm:$0xff] %v2440
  %2619 = vst [vmem:[%s7 + $0x338] sm:$0xff] %v2442
  %2620 = vst [vmem:[%s7 + $0x340] sm:$0xff] %v2446
  %2621 = vst [vmem:[%s7 + $0x348] sm:$0xff] %v2448
  %2622 = vst [vmem:[%s7 + $0x350] sm:$0xff] %v2452
  %2623 = vst [vmem:[%s7 + $0x358] sm:$0xff] %v2454
  %2624 = vst [vmem:[%s7 + $0x360] sm:$0xff] %v2458
  %2625 = vst [vmem:[%s7 + $0x368] sm:$0xff] %v2460
  %2626 = vst [vmem:[%s7 + $0x370] sm:$0xff] %v2464
  %2627 = vst [vmem:[%s7 + $0x378] sm:$0xff] %v2466
  %2628 = vst [vmem:[%s7 + $0x380] sm:$0xff] %v2470
  %2629 = vst [vmem:[%s7 + $0x388] sm:$0xff] %v2472
  %2630 = vst [vmem:[%s7 + $0x390] sm:$0xff] %v2476
  %2631 = vst [vmem:[%s7 + $0x398] sm:$0xff] %v2478
  %2632 = vst [vmem:[%s7 + $0x3a0] sm:$0xff] %v2482
  %2633 = vst [vmem:[%s7 + $0x3a8] sm:$0xff] %v2484
  %2634 = vst [vmem:[%s7 + $0x3b0] sm:$0xff] %v2488
  %2635 = vst [vmem:[%s7 + $0x3b8] sm:$0xff] %v2490
  %2636 = vst [vmem:[%s7 + $0x3c0] sm:$0xff] %v2494
  %2637 = vst [vmem:[%s7 + $0x3c8] sm:$0xff] %v2496
  %2638 = vst [vmem:[%s7 + $0x3d0] sm:$0xff] %v2500
  %2639 = vst [vmem:[%s7 + $0x3d8] sm:$0xff] %v2502
  %2640 = vst [vmem:[%s7 + $0x3e0] sm:$0xff] %v2506
  %2641 = vst [vmem:[%s7 + $0x3e8] sm:$0xff] %v2508
  %2642 = vst [vmem:[%s7 + $0x3f0] sm:$0xff] %v2512
  %2643 = vst [vmem:[%s7 + $0x3f8] sm:$0xff] %v2514
  %v2644 = vld [vmem:[%s5] sm:$0xff]
  %v2645 = vld [vmem:[%s5 + $0x8] sm:$0xff]
  %v2646 = vld [vmem:[%s5 + $0x10] sm:$0xff]
  %v2647 = vld [vmem:[%s5 + $0x18] sm:$0xff]
  %v2648 = vld [vmem:[%s5 + $0x20] sm:$0xff]
  %v2649 = vld [vmem:[%s5 + $0x28] sm:$0xff]
  %v2650 = vld [vmem:[%s5 + $0x30] sm:$0xff]
  %v2651 = vld [vmem:[%s5 + $0x38] sm:$0xff]
  %v2652 = vld [vmem:[%s5 + $0x40] sm:$0xff]
  %v2653 = vld [vmem:[%s5 + $0x48] sm:$0xff]
  %v2654 = vld [vmem:[%s5 + $0x50] sm:$0xff]
  %v2655 = vld [vmem:[%s5 + $0x58] sm:$0xff]
  %v2656 = vld [vmem:[%s5 + $0x60] sm:$0xff]
  %v2657 = vld [vmem:[%s5 + $0x68] sm:$0xff]
  %v2658 = vld [vmem:[%s5 + $0x70] sm:$0xff]
  %v2659 = vld [vmem:[%s5 + $0x78] sm:$0xff]
  %v2660 = vld [vmem:[%s5 + $0x80] sm:$0xff]
  %v2661 = vld [vmem:[%s5 + $0x88] sm:$0xff]
  %v2662 = vld [vmem:[%s5 + $0x90] sm:$0xff]
  %v2663 = vld [vmem:[%s5 + $0x98] sm:$0xff]
  %v2664 = vld [vmem:[%s5 + $0xa0] sm:$0xff]
  %v2665 = vld [vmem:[%s5 + $0xa8] sm:$0xff]
  %v2666 = vld [vmem:[%s5 + $0xb0] sm:$0xff]
  %v2667 = vld [vmem:[%s5 + $0xb8] sm:$0xff]
  %v2668 = vld [vmem:[%s5 + $0xc0] sm:$0xff]
  %v2669 = vld [vmem:[%s5 + $0xc8] sm:$0xff]
  %v2670 = vld [vmem:[%s5 + $0xd0] sm:$0xff]
  %v2671 = vld [vmem:[%s5 + $0xd8] sm:$0xff]
  %v2672 = vld [vmem:[%s5 + $0xe0] sm:$0xff]
  %v2673 = vld [vmem:[%s5 + $0xe8] sm:$0xff]
  %v2674 = vld [vmem:[%s5 + $0xf0] sm:$0xff]
  %v2675 = vld [vmem:[%s5 + $0xf8] sm:$0xff]
  %v2676 = vld [vmem:[%s6] sm:$0x1]
  %v2678 = vlaneseq
  %v2679 = vshrl.u32 %v2678, 7
  %v2680 = vsub.s32 0, %v2679
  %v2681 = vrot.slane %v2676, %v2680
  %2683 = vmatprep.subr.mxu0 0.0
  %2684 = vmatpush1.msra.mxu0 %v2659
  %2685 = vmatprep.subr.mxu0 0.0
  %2686 = vmatpush1.msra.mxu0 %v2658
  %2687 = vmatprep.subr.mxu0 0.0
  %2688 = vmatpush1.msra.mxu0 %v2657
  %2689 = vmatprep.subr.mxu0 0.0
  %2690 = vmatpush1.msra.mxu0 %v2656
  %2691 = vmatprep.subr.mxu0 0.0
  %2692 = vmatpush1.msra.mxu0 %v2655
  %2693 = vmatprep.subr.mxu0 0.0
  %2694 = vmatpush1.msra.mxu0 %v2654
  %2695 = vmatprep.subr.mxu0 0.0
  %2696 = vmatpush1.msra.mxu0 %v2653
  %2697 = vmatprep.subr.mxu0 0.0
  %2698 = vmatpush1.msra.mxu0 %v2652
  %2699 = vmatprep.subr.mxu0 0.0
  %2700 = vmatpush1.msra.mxu0 %v2651
  %2701 = vmatprep.subr.mxu0 0.0
  %2702 = vmatpush1.msra.mxu0 %v2650
  %2703 = vmatprep.subr.mxu0 0.0
  %2704 = vmatpush1.msra.mxu0 %v2649
  %2705 = vmatprep.subr.mxu0 0.0
  %2706 = vmatpush1.msra.mxu0 %v2648
  %2707 = vmatprep.subr.mxu0 0.0
  %2708 = vmatpush1.msra.mxu0 %v2647
  %2709 = vmatprep.subr.mxu0 0.0
  %2710 = vmatpush1.msra.mxu0 %v2646
  %2711 = vmatprep.subr.mxu0 0.0
  %2712 = vmatpush1.msra.mxu0 %v2645
  %2713 = vmatprep.subr.mxu0 0.0
  %2714 = vmatpush1.msra.mxu0 %v2644
  %2715 = vmatprep.subr.mxu0 0.0
  %2716 = vmatpush2.msra.mxu0 %v2675
  %2717 = vmatprep.subr.mxu0 0.0
  %2718 = vmatpush2.msra.mxu0 %v2674
  %2719 = vmatprep.subr.mxu0 0.0
  %2720 = vmatpush2.msra.mxu0 %v2673
  %2721 = vmatprep.subr.mxu0 0.0
  %2722 = vmatpush2.msra.mxu0 %v2672
  %2723 = vmatprep.subr.mxu0 0.0
  %2724 = vmatpush2.msra.mxu0 %v2671
  %2725 = vmatprep.subr.mxu0 0.0
  %2726 = vmatpush2.msra.mxu0 %v2670
  %2727 = vmatprep.subr.mxu0 0.0
  %2728 = vmatpush2.msra.mxu0 %v2669
  %2729 = vmatprep.subr.mxu0 0.0
  %2730 = vmatpush2.msra.mxu0 %v2668
  %2731 = vmatprep.subr.mxu0 0.0
  %2732 = vmatpush2.msra.mxu0 %v2667
  %2733 = vmatprep.subr.mxu0 0.0
  %2734 = vmatpush2.msra.mxu0 %v2666
  %2735 = vmatprep.subr.mxu0 0.0
  %2736 = vmatpush2.msra.mxu0 %v2665
  %2737 = vmatprep.subr.mxu0 0.0
  %2738 = vmatpush2.msra.mxu0 %v2664
  %2739 = vmatprep.subr.mxu0 0.0
  %2740 = vmatpush2.msra.mxu0 %v2663
  %2741 = vmatprep.subr.mxu0 0.0
  %2742 = vmatpush2.msra.mxu0 %v2662
  %2743 = vmatprep.subr.mxu0 0.0
  %2744 = vmatpush2.msra.mxu0 %v2661
  %2745 = vmatprep.subr.mxu0 0.0
  %2746 = vmatpush2.msra.mxu0 %v2660
  %2747 = vmatprep.mubr.f32.mxu0 %v2136
  %2748 = vmatmul.mubr.f32.gmra.mxu0 %v2134
  %v2749 = vpop.f32.mrf.mxu0
  %v2750 = vadd.f32 %v2681, %v2749
  %v2751 = vpop.f32.mrf.mxu0
  %2752 = vmatprep.mubr.f32.mxu0 %v2142
  %2753 = vmatmul.mubr.f32.gmra.mxu0 %v2140
  %v2754 = vpop.f32.mrf.mxu0
  %v2755 = vadd.f32 %v2681, %v2754
  %v2756 = vpop.f32.mrf.mxu0
  %2757 = vmatprep.mubr.f32.mxu0 %v2148
  %2758 = vmatmul.mubr.f32.gmra.mxu0 %v2146
  %v2759 = vpop.f32.mrf.mxu0
  %v2760 = vadd.f32 %v2681, %v2759
  %v2761 = vpop.f32.mrf.mxu0
  %2762 = vmatprep.mubr.f32.mxu0 %v2154
  %2763 = vmatmul.mubr.f32.gmra.mxu0 %v2152
  %v2764 = vpop.f32.mrf.mxu0
  %v2765 = vadd.f32 %v2681, %v2764
  %v2766 = vpop.f32.mrf.mxu0
  %2767 = vmatprep.mubr.f32.mxu0 %v2160
  %2768 = vmatmul.mubr.f32.gmra.mxu0 %v2158
  %v2769 = vpop.f32.mrf.mxu0
  %v2770 = vadd.f32 %v2681, %v2769
  %v2771 = vpop.f32.mrf.mxu0
  %2772 = vmatprep.mubr.f32.mxu0 %v2166
  %2773 = vmatmul.mubr.f32.gmra.mxu0 %v2164
  %v2774 = vpop.f32.mrf.mxu0
  %v2775 = vadd.f32 %v2681, %v2774
  %v2776 = vpop.f32.mrf.mxu0
  %2777 = vmatprep.mubr.f32.mxu0 %v2172
  %2778 = vmatmul.mubr.f32.gmra.mxu0 %v2170
  %v2779 = vpop.f32.mrf.mxu0
  %v2780 = vadd.f32 %v2681, %v2779
  %v2781 = vpop.f32.mrf.mxu0
  %2782 = vmatprep.mubr.f32.mxu0 %v2178
  %2783 = vmatmul.mubr.f32.gmra.mxu0 %v2176
  %v2784 = vpop.f32.mrf.mxu0
  %v2785 = vadd.f32 %v2681, %v2784
  %v2786 = vpop.f32.mrf.mxu0
  %2787 = vmatprep.mubr.f32.mxu0 %v2184
  %2788 = vmatmul.mubr.f32.gmra.mxu0 %v2182
  %v2789 = vpop.f32.mrf.mxu0
  %v2790 = vadd.f32 %v2681, %v2789
  %v2791 = vpop.f32.mrf.mxu0
  %2792 = vmatprep.mubr.f32.mxu0 %v2190
  %2793 = vmatmul.mubr.f32.gmra.mxu0 %v2188
  %v2794 = vpop.f32.mrf.mxu0
  %v2795 = vadd.f32 %v2681, %v2794
  %v2796 = vpop.f32.mrf.mxu0
  %2797 = vmatprep.mubr.f32.mxu0 %v2196
  %2798 = vmatmul.mubr.f32.gmra.mxu0 %v2194
  %v2799 = vpop.f32.mrf.mxu0
  %v2800 = vadd.f32 %v2681, %v2799
  %v2801 = vpop.f32.mrf.mxu0
  %2802 = vmatprep.mubr.f32.mxu0 %v2202
  %2803 = vmatmul.mubr.f32.gmra.mxu0 %v2200
  %v2804 = vpop.f32.mrf.mxu0
  %v2805 = vadd.f32 %v2681, %v2804
  %v2806 = vpop.f32.mrf.mxu0
  %2807 = vmatprep.mubr.f32.mxu0 %v2208
  %2808 = vmatmul.mubr.f32.gmra.mxu0 %v2206
  %v2809 = vpop.f32.mrf.mxu0
  %v2810 = vadd.f32 %v2681, %v2809
  %v2811 = vpop.f32.mrf.mxu0
  %2812 = vmatprep.mubr.f32.mxu0 %v2214
  %2813 = vmatmul.mubr.f32.gmra.mxu0 %v2212
  %v2814 = vpop.f32.mrf.mxu0
  %v2815 = vadd.f32 %v2681, %v2814
  %v2816 = vpop.f32.mrf.mxu0
  %2817 = vmatprep.mubr.f32.mxu0 %v2220
  %2818 = vmatmul.mubr.f32.gmra.mxu0 %v2218
  %v2819 = vpop.f32.mrf.mxu0
  %v2820 = vadd.f32 %v2681, %v2819
  %v2821 = vpop.f32.mrf.mxu0
  %2822 = vmatprep.mubr.f32.mxu0 %v2226
  %2823 = vmatmul.mubr.f32.gmra.mxu0 %v2224
  %v2824 = vpop.f32.mrf.mxu0
  %v2825 = vadd.f32 %v2681, %v2824
  %v2826 = vpop.f32.mrf.mxu0
  %2827 = vmatprep.mubr.f32.mxu0 %v2232
  %2828 = vmatmul.mubr.f32.gmra.mxu0 %v2230
  %v2829 = vpop.f32.mrf.mxu0
  %v2830 = vadd.f32 %v2681, %v2829
  %v2831 = vpop.f32.mrf.mxu0
  %2832 = vmatprep.mubr.f32.mxu0 %v2238
  %2833 = vmatmul.mubr.f32.gmra.mxu0 %v2236
  %v2834 = vpop.f32.mrf.mxu0
  %v2835 = vadd.f32 %v2681, %v2834
  %v2836 = vpop.f32.mrf.mxu0
  %2837 = vmatprep.mubr.f32.mxu0 %v2244
  %2838 = vmatmul.mubr.f32.gmra.mxu0 %v2242
  %v2839 = vpop.f32.mrf.mxu0
  %v2840 = vadd.f32 %v2681, %v2839
  %v2841 = vpop.f32.mrf.mxu0
  %2842 = vmatprep.mubr.f32.mxu0 %v2250
  %2843 = vmatmul.mubr.f32.gmra.mxu0 %v2248
  %v2844 = vpop.f32.mrf.mxu0
  %v2845 = vadd.f32 %v2681, %v2844
  %v2846 = vpop.f32.mrf.mxu0
  %2847 = vmatprep.mubr.f32.mxu0 %v2256
  %2848 = vmatmul.mubr.f32.gmra.mxu0 %v2254
  %v2849 = vpop.f32.mrf.mxu0
  %v2850 = vadd.f32 %v2681, %v2849
  %v2851 = vpop.f32.mrf.mxu0
  %2852 = vmatprep.mubr.f32.mxu0 %v2262
  %2853 = vmatmul.mubr.f32.gmra.mxu0 %v2260
  %v2854 = vpop.f32.mrf.mxu0
  %v2855 = vadd.f32 %v2681, %v2854
  %v2856 = vpop.f32.mrf.mxu0
  %2857 = vmatprep.mubr.f32.mxu0 %v2268
  %2858 = vmatmul.mubr.f32.gmra.mxu0 %v2266
  %v2859 = vpop.f32.mrf.mxu0
  %v2860 = vadd.f32 %v2681, %v2859
  %v2861 = vpop.f32.mrf.mxu0
  %2862 = vmatprep.mubr.f32.mxu0 %v2274
  %2863 = vmatmul.mubr.f32.gmra.mxu0 %v2272
  %v2864 = vpop.f32.mrf.mxu0
  %v2865 = vadd.f32 %v2681, %v2864
  %v2866 = vpop.f32.mrf.mxu0
  %2867 = vmatprep.mubr.f32.mxu0 %v2280
  %2868 = vmatmul.mubr.f32.gmra.mxu0 %v2278
  %v2869 = vpop.f32.mrf.mxu0
  %v2870 = vadd.f32 %v2681, %v2869
  %v2871 = vpop.f32.mrf.mxu0
  %2872 = vmatprep.mubr.f32.mxu0 %v2286
  %2873 = vmatmul.mubr.f32.gmra.mxu0 %v2284
  %v2874 = vpop.f32.mrf.mxu0
  %v2875 = vadd.f32 %v2681, %v2874
  %v2876 = vpop.f32.mrf.mxu0
  %2877 = vmatprep.mubr.f32.mxu0 %v2292
  %2878 = vmatmul.mubr.f32.gmra.mxu0 %v2290
  %v2879 = vpop.f32.mrf.mxu0
  %v2880 = vadd.f32 %v2681, %v2879
  %v2881 = vpop.f32.mrf.mxu0
  %2882 = vmatprep.mubr.f32.mxu0 %v2298
  %2883 = vmatmul.mubr.f32.gmra.mxu0 %v2296
  %v2884 = vpop.f32.mrf.mxu0
  %v2885 = vadd.f32 %v2681, %v2884
  %v2886 = vpop.f32.mrf.mxu0
  %2887 = vmatprep.mubr.f32.mxu0 %v2304
  %2888 = vmatmul.mubr.f32.gmra.mxu0 %v2302
  %v2889 = vpop.f32.mrf.mxu0
  %v2890 = vadd.f32 %v2681, %v2889
  %v2891 = vpop.f32.mrf.mxu0
  %2892 = vmatprep.mubr.f32.mxu0 %v2310
  %2893 = vmatmul.mubr.f32.gmra.mxu0 %v2308
  %v2894 = vpop.f32.mrf.mxu0
  %v2895 = vadd.f32 %v2681, %v2894
  %v2896 = vpop.f32.mrf.mxu0
  %2897 = vmatprep.mubr.f32.mxu0 %v2316
  %2898 = vmatmul.mubr.f32.gmra.mxu0 %v2314
  %v2899 = vpop.f32.mrf.mxu0
  %v2900 = vadd.f32 %v2681, %v2899
  %v2901 = vpop.f32.mrf.mxu0
  %2902 = vmatprep.mubr.f32.mxu0 %v2322
  %2903 = vmatmul.mubr.f32.gmra.mxu0 %v2320
  %v2904 = vpop.f32.mrf.mxu0
  %v2905 = vadd.f32 %v2681, %v2904
  %v2906 = vpop.f32.mrf.mxu0
  %2907 = vmatprep.mubr.f32.mxu0 %v2328
  %2908 = vmatmul.mubr.f32.gmra.mxu0 %v2326
  %v2909 = vpop.f32.mrf.mxu0
  %v2910 = vadd.f32 %v2681, %v2909
  %v2911 = vpop.f32.mrf.mxu0
  %2912 = vmatprep.mubr.f32.mxu0 %v2334
  %2913 = vmatmul.mubr.f32.gmra.mxu0 %v2332
  %v2914 = vpop.f32.mrf.mxu0
  %v2915 = vadd.f32 %v2681, %v2914
  %v2916 = vpop.f32.mrf.mxu0
  %2917 = vmatprep.mubr.f32.mxu0 %v2340
  %2918 = vmatmul.mubr.f32.gmra.mxu0 %v2338
  %v2919 = vpop.f32.mrf.mxu0
  %v2920 = vadd.f32 %v2681, %v2919
  %v2921 = vpop.f32.mrf.mxu0
  %2922 = vmatprep.mubr.f32.mxu0 %v2346
  %2923 = vmatmul.mubr.f32.gmra.mxu0 %v2344
  %v2924 = vpop.f32.mrf.mxu0
  %v2925 = vadd.f32 %v2681, %v2924
  %v2926 = vpop.f32.mrf.mxu0
  %2927 = vmatprep.mubr.f32.mxu0 %v2352
  %2928 = vmatmul.mubr.f32.gmra.mxu0 %v2350
  %v2929 = vpop.f32.mrf.mxu0
  %v2930 = vadd.f32 %v2681, %v2929
  %v2931 = vpop.f32.mrf.mxu0
  %2932 = vmatprep.mubr.f32.mxu0 %v2358
  %2933 = vmatmul.mubr.f32.gmra.mxu0 %v2356
  %v2934 = vpop.f32.mrf.mxu0
  %v2935 = vadd.f32 %v2681, %v2934
  %v2936 = vpop.f32.mrf.mxu0
  %2937 = vmatprep.mubr.f32.mxu0 %v2364
  %2938 = vmatmul.mubr.f32.gmra.mxu0 %v2362
  %v2939 = vpop.f32.mrf.mxu0
  %v2940 = vadd.f32 %v2681, %v2939
  %v2941 = vpop.f32.mrf.mxu0
  %2942 = vmatprep.mubr.f32.mxu0 %v2370
  %2943 = vmatmul.mubr.f32.gmra.mxu0 %v2368
  %v2944 = vpop.f32.mrf.mxu0
  %v2945 = vadd.f32 %v2681, %v2944
  %v2946 = vpop.f32.mrf.mxu0
  %2947 = vmatprep.mubr.f32.mxu0 %v2376
  %2948 = vmatmul.mubr.f32.gmra.mxu0 %v2374
  %v2949 = vpop.f32.mrf.mxu0
  %v2950 = vadd.f32 %v2681, %v2949
  %v2951 = vpop.f32.mrf.mxu0
  %2952 = vmatprep.mubr.f32.mxu0 %v2382
  %2953 = vmatmul.mubr.f32.gmra.mxu0 %v2380
  %v2954 = vpop.f32.mrf.mxu0
  %v2955 = vadd.f32 %v2681, %v2954
  %v2956 = vpop.f32.mrf.mxu0
  %2957 = vmatprep.mubr.f32.mxu0 %v2388
  %2958 = vmatmul.mubr.f32.gmra.mxu0 %v2386
  %v2959 = vpop.f32.mrf.mxu0
  %v2960 = vadd.f32 %v2681, %v2959
  %v2961 = vpop.f32.mrf.mxu0
  %2962 = vmatprep.mubr.f32.mxu0 %v2394
  %2963 = vmatmul.mubr.f32.gmra.mxu0 %v2392
  %v2964 = vpop.f32.mrf.mxu0
  %v2965 = vadd.f32 %v2681, %v2964
  %v2966 = vpop.f32.mrf.mxu0
  %2967 = vmatprep.mubr.f32.mxu0 %v2400
  %2968 = vmatmul.mubr.f32.gmra.mxu0 %v2398
  %v2969 = vpop.f32.mrf.mxu0
  %v2970 = vadd.f32 %v2681, %v2969
  %v2971 = vpop.f32.mrf.mxu0
  %2972 = vmatprep.mubr.f32.mxu0 %v2406
  %2973 = vmatmul.mubr.f32.gmra.mxu0 %v2404
  %v2974 = vpop.f32.mrf.mxu0
  %v2975 = vadd.f32 %v2681, %v2974
  %v2976 = vpop.f32.mrf.mxu0
  %2977 = vmatprep.mubr.f32.mxu0 %v2412
  %2978 = vmatmul.mubr.f32.gmra.mxu0 %v2410
  %v2979 = vpop.f32.mrf.mxu0
  %v2980 = vadd.f32 %v2681, %v2979
  %v2981 = vpop.f32.mrf.mxu0
  %2982 = vmatprep.mubr.f32.mxu0 %v2418
  %2983 = vmatmul.mubr.f32.gmra.mxu0 %v2416
  %v2984 = vpop.f32.mrf.mxu0
  %v2985 = vadd.f32 %v2681, %v2984
  %v2986 = vpop.f32.mrf.mxu0
  %2987 = vmatprep.mubr.f32.mxu0 %v2424
  %2988 = vmatmul.mubr.f32.gmra.mxu0 %v2422
  %v2989 = vpop.f32.mrf.mxu0
  %v2990 = vadd.f32 %v2681, %v2989
  %v2991 = vpop.f32.mrf.mxu0
  %2992 = vmatprep.mubr.f32.mxu0 %v2430
  %2993 = vmatmul.mubr.f32.gmra.mxu0 %v2428
  %v2994 = vpop.f32.mrf.mxu0
  %v2995 = vadd.f32 %v2681, %v2994
  %v2996 = vpop.f32.mrf.mxu0
  %2997 = vmatprep.mubr.f32.mxu0 %v2436
  %2998 = vmatmul.mubr.f32.gmra.mxu0 %v2434
  %v2999 = vpop.f32.mrf.mxu0
  %v3000 = vadd.f32 %v2681, %v2999
  %v3001 = vpop.f32.mrf.mxu0
  %3002 = vmatprep.mubr.f32.mxu0 %v2442
  %3003 = vmatmul.mubr.f32.gmra.mxu0 %v2440
  %v3004 = vpop.f32.mrf.mxu0
  %v3005 = vadd.f32 %v2681, %v3004
  %v3006 = vpop.f32.mrf.mxu0
  %3007 = vmatprep.mubr.f32.mxu0 %v2448
  %3008 = vmatmul.mubr.f32.gmra.mxu0 %v2446
  %v3009 = vpop.f32.mrf.mxu0
  %v3010 = vadd.f32 %v2681, %v3009
  %v3011 = vpop.f32.mrf.mxu0
  %3012 = vmatprep.mubr.f32.mxu0 %v2454
  %3013 = vmatmul.mubr.f32.gmra.mxu0 %v2452
  %v3014 = vpop.f32.mrf.mxu0
  %v3015 = vadd.f32 %v2681, %v3014
  %v3016 = vpop.f32.mrf.mxu0
  %3017 = vmatprep.mubr.f32.mxu0 %v2460
  %3018 = vmatmul.mubr.f32.gmra.mxu0 %v2458
  %v3019 = vpop.f32.mrf.mxu0
  %v3020 = vadd.f32 %v2681, %v3019
  %v3021 = vpop.f32.mrf.mxu0
  %3022 = vmatprep.mubr.f32.mxu0 %v2466
  %3023 = vmatmul.mubr.f32.gmra.mxu0 %v2464
  %v3024 = vpop.f32.mrf.mxu0
  %v3025 = vadd.f32 %v2681, %v3024
  %v3026 = vpop.f32.mrf.mxu0
  %3027 = vmatprep.mubr.f32.mxu0 %v2472
  %3028 = vmatmul.mubr.f32.gmra.mxu0 %v2470
  %v3029 = vpop.f32.mrf.mxu0
  %v3030 = vadd.f32 %v2681, %v3029
  %v3031 = vpop.f32.mrf.mxu0
  %3032 = vmatprep.mubr.f32.mxu0 %v2478
  %3033 = vmatmul.mubr.f32.gmra.mxu0 %v2476
  %v3034 = vpop.f32.mrf.mxu0
  %v3035 = vadd.f32 %v2681, %v3034
  %v3036 = vpop.f32.mrf.mxu0
  %3037 = vmatprep.mubr.f32.mxu0 %v2484
  %3038 = vmatmul.mubr.f32.gmra.mxu0 %v2482
  %v3039 = vpop.f32.mrf.mxu0
  %v3040 = vadd.f32 %v2681, %v3039
  %v3041 = vpop.f32.mrf.mxu0
  %3042 = vmatprep.mubr.f32.mxu0 %v2490
  %3043 = vmatmul.mubr.f32.gmra.mxu0 %v2488
  %v3044 = vpop.f32.mrf.mxu0
  %v3045 = vadd.f32 %v2681, %v3044
  %v3046 = vpop.f32.mrf.mxu0
  %3047 = vmatprep.mubr.f32.mxu0 %v2496
  %3048 = vmatmul.mubr.f32.gmra.mxu0 %v2494
  %v3049 = vpop.f32.mrf.mxu0
  %v3050 = vadd.f32 %v2681, %v3049
  %v3051 = vpop.f32.mrf.mxu0
  %3052 = vmatprep.mubr.f32.mxu0 %v2502
  %3053 = vmatmul.mubr.f32.gmra.mxu0 %v2500
  %v3054 = vpop.f32.mrf.mxu0
  %v3055 = vadd.f32 %v2681, %v3054
  %v3056 = vpop.f32.mrf.mxu0
  %3057 = vmatprep.mubr.f32.mxu0 %v2508
  %3058 = vmatmul.mubr.f32.gmra.mxu0 %v2506
  %v3059 = vpop.f32.mrf.mxu0
  %v3060 = vadd.f32 %v2681, %v3059
  %v3061 = vpop.f32.mrf.mxu0
  %3062 = vmatprep.mubr.f32.mxu0 %v2514
  %3063 = vmatmul.mubr.f32.gmra.mxu0 %v2512
  %v3064 = vpop.f32.mrf.mxu0
  %v3065 = vadd.f32 %v2681, %v3064
  %v3066 = vpop.f32.mrf.mxu0
  %3067 = vdwg.mxu0
  %3068 = vst.msk [vmem:[%s8] sm:$0xff] %vm131, %v2750
  %3069 = vst.msk [vmem:[%s8 + $0x8] sm:$0xff] %vm131, %v2755
  %3070 = vst.msk [vmem:[%s8 + $0x10] sm:$0xff] %vm131, %v2760
  %3071 = vst.msk [vmem:[%s8 + $0x18] sm:$0xff] %vm131, %v2765
  %3072 = vst.msk [vmem:[%s8 + $0x20] sm:$0xff] %vm131, %v2770
  %3073 = vst.msk [vmem:[%s8 + $0x28] sm:$0xff] %vm131, %v2775
  %3074 = vst.msk [vmem:[%s8 + $0x30] sm:$0xff] %vm131, %v2780
  %3075 = vst.msk [vmem:[%s8 + $0x38] sm:$0xff] %vm131, %v2785
  %3076 = vst.msk [vmem:[%s8 + $0x40] sm:$0xff] %vm131, %v2790
  %3077 = vst.msk [vmem:[%s8 + $0x48] sm:$0xff] %vm131, %v2795
  %3078 = vst.msk [vmem:[%s8 + $0x50] sm:$0xff] %vm131, %v2800
  %3079 = vst.msk [vmem:[%s8 + $0x58] sm:$0xff] %vm131, %v2805
  %3080 = vst.msk [vmem:[%s8 + $0x60] sm:$0xff] %vm131, %v2810
  %3081 = vst.msk [vmem:[%s8 + $0x68] sm:$0xff] %vm131, %v2815
  %3082 = vst.msk [vmem:[%s8 + $0x70] sm:$0xff] %vm131, %v2820
  %3083 = vst.msk [vmem:[%s8 + $0x78] sm:$0xff] %vm131, %v2825
  %3084 = vst.msk [vmem:[%s8 + $0x80] sm:$0xff] %vm131, %v2830
  %3085 = vst.msk [vmem:[%s8 + $0x88] sm:$0xff] %vm131, %v2835
  %3086 = vst.msk [vmem:[%s8 + $0x90] sm:$0xff] %vm131, %v2840
  %3087 = vst.msk [vmem:[%s8 + $0x98] sm:$0xff] %vm131, %v2845
  %3088 = vst.msk [vmem:[%s8 + $0xa0] sm:$0xff] %vm131, %v2850
  %3089 = vst.msk [vmem:[%s8 + $0xa8] sm:$0xff] %vm131, %v2855
  %3090 = vst.msk [vmem:[%s8 + $0xb0] sm:$0xff] %vm131, %v2860
  %3091 = vst.msk [vmem:[%s8 + $0xb8] sm:$0xff] %vm131, %v2865
  %3092 = vst.msk [vmem:[%s8 + $0xc0] sm:$0xff] %vm131, %v2870
  %3093 = vst.msk [vmem:[%s8 + $0xc8] sm:$0xff] %vm131, %v2875
  %3094 = vst.msk [vmem:[%s8 + $0xd0] sm:$0xff] %vm131, %v2880
  %3095 = vst.msk [vmem:[%s8 + $0xd8] sm:$0xff] %vm131, %v2885
  %3096 = vst.msk [vmem:[%s8 + $0xe0] sm:$0xff] %vm131, %v2890
  %3097 = vst.msk [vmem:[%s8 + $0xe8] sm:$0xff] %vm131, %v2895
  %3098 = vst.msk [vmem:[%s8 + $0xf0] sm:$0xff] %vm131, %v2900
  %3099 = vst.msk [vmem:[%s8 + $0xf8] sm:$0xff] %vm131, %v2905
  %3100 = vst.msk [vmem:[%s8 + $0x100] sm:$0xff] %vm131, %v2910
  %3101 = vst.msk [vmem:[%s8 + $0x108] sm:$0xff] %vm131, %v2915
  %3102 = vst.msk [vmem:[%s8 + $0x110] sm:$0xff] %vm131, %v2920
  %3103 = vst.msk [vmem:[%s8 + $0x118] sm:$0xff] %vm131, %v2925
  %3104 = vst.msk [vmem:[%s8 + $0x120] sm:$0xff] %vm131, %v2930
  %3105 = vst.msk [vmem:[%s8 + $0x128] sm:$0xff] %vm131, %v2935
  %3106 = vst.msk [vmem:[%s8 + $0x130] sm:$0xff] %vm131, %v2940
  %3107 = vst.msk [vmem:[%s8 + $0x138] sm:$0xff] %vm131, %v2945
  %3108 = vst.msk [vmem:[%s8 + $0x140] sm:$0xff] %vm131, %v2950
  %3109 = vst.msk [vmem:[%s8 + $0x148] sm:$0xff] %vm131, %v2955
  %3110 = vst.msk [vmem:[%s8 + $0x150] sm:$0xff] %vm131, %v2960
  %3111 = vst.msk [vmem:[%s8 + $0x158] sm:$0xff] %vm131, %v2965
  %3112 = vst.msk [vmem:[%s8 + $0x160] sm:$0xff] %vm131, %v2970
  %3113 = vst.msk [vmem:[%s8 + $0x168] sm:$0xff] %vm131, %v2975
  %3114 = vst.msk [vmem:[%s8 + $0x170] sm:$0xff] %vm131, %v2980
  %3115 = vst.msk [vmem:[%s8 + $0x178] sm:$0xff] %vm131, %v2985
  %3116 = vst.msk [vmem:[%s8 + $0x180] sm:$0xff] %vm131, %v2990
  %3117 = vst.msk [vmem:[%s8 + $0x188] sm:$0xff] %vm131, %v2995
  %3118 = vst.msk [vmem:[%s8 + $0x190] sm:$0xff] %vm131, %v3000
  %3119 = vst.msk [vmem:[%s8 + $0x198] sm:$0xff] %vm131, %v3005
  %3120 = vst.msk [vmem:[%s8 + $0x1a0] sm:$0xff] %vm131, %v3010
  %3121 = vst.msk [vmem:[%s8 + $0x1a8] sm:$0xff] %vm131, %v3015
  %3122 = vst.msk [vmem:[%s8 + $0x1b0] sm:$0xff] %vm131, %v3020
  %3123 = vst.msk [vmem:[%s8 + $0x1b8] sm:$0xff] %vm131, %v3025
  %3124 = vst.msk [vmem:[%s8 + $0x1c0] sm:$0xff] %vm131, %v3030
  %3125 = vst.msk [vmem:[%s8 + $0x1c8] sm:$0xff] %vm131, %v3035
  %3126 = vst.msk [vmem:[%s8 + $0x1d0] sm:$0xff] %vm131, %v3040
  %3127 = vst.msk [vmem:[%s8 + $0x1d8] sm:$0xff] %vm131, %v3045
  %3128 = vst.msk [vmem:[%s8 + $0x1e0] sm:$0xff] %vm131, %v3050
  %3129 = vst.msk [vmem:[%s8 + $0x1e8] sm:$0xff] %vm131, %v3055
  %3130 = vst.msk [vmem:[%s8 + $0x1f0] sm:$0xff] %vm131, %v3060
  %3131 = vst.msk [vmem:[%s8 + $0x1f8] sm:$0xff] %vm131, %v3065
  %v3132 = vlaneseq
  %v3133 = vshrl.u32 %v3132, 7
  %v3134 = vadd.s32 %v3133, 8
  %v3135 = vadd.s32 %v3133, 16
  %v3136 = vadd.s32 %v3133, 24
  %v3137 = vadd.s32 %v3133, 32
  %v3138 = vadd.s32 %v3133, 40
  %v3139 = vadd.s32 %v3133, 48
  %v3140 = vadd.s32 %v3133, 56
  %vm3141 = vcmp.lt.s32.totalorder %v3133, 49
  %vm3142 = vcmp.lt.s32.totalorder %v3134, 49
  %vm3143 = vcmp.lt.s32.totalorder %v3135, 49
  %vm3144 = vcmp.lt.s32.totalorder %v3136, 49
  %vm3145 = vcmp.lt.s32.totalorder %v3137, 49
  %vm3146 = vcmp.lt.s32.totalorder %v3138, 49
  %vm3147 = vcmp.lt.s32.totalorder %v3139, 49
  %vm3148 = vcmp.lt.s32.totalorder %v3140, 49
  %v3149 = vsel %vm3141, 1, 0
  %v3150 = vsel %vm3142, 1, 0
  %v3151 = vsel %vm3143, 1, 0
  %v3152 = vsel %vm3144, 1, 0
  %v3153 = vsel %vm3145, 1, 0
  %v3154 = vsel %vm3146, 1, 0
  %v3155 = vsel %vm3147, 1, 0
  %v3156 = vsel %vm3148, 1, 0
  %vm3157 = vcmp.eq.s32.totalorder %v3149, 1
  %vm3158 = vcmp.eq.s32.totalorder %v3150, 1
  %vm3159 = vcmp.eq.s32.totalorder %v3151, 1
  %vm3160 = vcmp.eq.s32.totalorder %v3152, 1
  %vm3161 = vcmp.eq.s32.totalorder %v3153, 1
  %vm3162 = vcmp.eq.s32.totalorder %v3154, 1
  %vm3163 = vcmp.eq.s32.totalorder %v3155, 1
  %vm3164 = vcmp.eq.s32.totalorder %v3156, 1
  %v3165 = vsel %vm3157, %v2134, 0.0
  %v3166 = vsel %vm3157, %v2136, 0.0
  %v3167 = vsel %vm3158, %v2140, 0.0
  %v3168 = vsel %vm3158, %v2142, 0.0
  %v3169 = vsel %vm3159, %v2146, 0.0
  %v3170 = vsel %vm3159, %v2148, 0.0
  %v3171 = vsel %vm3160, %v2152, 0.0
  %v3172 = vsel %vm3160, %v2154, 0.0
  %v3173 = vsel %vm3161, %v2158, 0.0
  %v3174 = vsel %vm3161, %v2160, 0.0
  %v3175 = vsel %vm3162, %v2164, 0.0
  %v3176 = vsel %vm3162, %v2166, 0.0
  %v3177 = vsel %vm3163, %v2170, 0.0
  %v3178 = vsel %vm3163, %v2172, 0.0
  %v3179 = vsel %vm3164, %v2176, 0.0
  %v3180 = vsel %vm3164, %v2178, 0.0
  %v3181 = vsel %vm3157, %v2182, 0.0
  %v3182 = vsel %vm3157, %v2184, 0.0
  %v3183 = vsel %vm3158, %v2188, 0.0
  %v3184 = vsel %vm3158, %v2190, 0.0
  %v3185 = vsel %vm3159, %v2194, 0.0
  %v3186 = vsel %vm3159, %v2196, 0.0
  %v3187 = vsel %vm3160, %v2200, 0.0
  %v3188 = vsel %vm3160, %v2202, 0.0
  %v3189 = vsel %vm3161, %v2206, 0.0
  %v3190 = vsel %vm3161, %v2208, 0.0
  %v3191 = vsel %vm3162, %v2212, 0.0
  %v3192 = vsel %vm3162, %v2214, 0.0
  %v3193 = vsel %vm3163, %v2218, 0.0
  %v3194 = vsel %vm3163, %v2220, 0.0
  %v3195 = vsel %vm3164, %v2224, 0.0
  %v3196 = vsel %vm3164, %v2226, 0.0
  %v3197 = vsel %vm3157, %v2230, 0.0
  %v3198 = vsel %vm3157, %v2232, 0.0
  %v3199 = vsel %vm3158, %v2236, 0.0
  %v3200 = vsel %vm3158, %v2238, 0.0
  %v3201 = vsel %vm3159, %v2242, 0.0
  %v3202 = vsel %vm3159, %v2244, 0.0
  %v3203 = vsel %vm3160, %v2248, 0.0
  %v3204 = vsel %vm3160, %v2250, 0.0
  %v3205 = vsel %vm3161, %v2254, 0.0
  %v3206 = vsel %vm3161, %v2256, 0.0
  %v3207 = vsel %vm3162, %v2260, 0.0
  %v3208 = vsel %vm3162, %v2262, 0.0
  %v3209 = vsel %vm3163, %v2266, 0.0
  %v3210 = vsel %vm3163, %v2268, 0.0
  %v3211 = vsel %vm3164, %v2272, 0.0
  %v3212 = vsel %vm3164, %v2274, 0.0
  %v3213 = vsel %vm3157, %v2278, 0.0
  %v3214 = vsel %vm3157, %v2280, 0.0
  %v3215 = vsel %vm3158, %v2284, 0.0
  %v3216 = vsel %vm3158, %v2286, 0.0
  %v3217 = vsel %vm3159, %v2290, 0.0
  %v3218 = vsel %vm3159, %v2292, 0.0
  %v3219 = vsel %vm3160, %v2296, 0.0
  %v3220 = vsel %vm3160, %v2298, 0.0
  %v3221 = vsel %vm3161, %v2302, 0.0
  %v3222 = vsel %vm3161, %v2304, 0.0
  %v3223 = vsel %vm3162, %v2308, 0.0
  %v3224 = vsel %vm3162, %v2310, 0.0
  %v3225 = vsel %vm3163, %v2314, 0.0
  %v3226 = vsel %vm3163, %v2316, 0.0
  %v3227 = vsel %vm3164, %v2320, 0.0
  %v3228 = vsel %vm3164, %v2322, 0.0
  %v3229 = vsel %vm3157, %v2326, 0.0
  %v3230 = vsel %vm3157, %v2328, 0.0
  %v3231 = vsel %vm3158, %v2332, 0.0
  %v3232 = vsel %vm3158, %v2334, 0.0
  %v3233 = vsel %vm3159, %v2338, 0.0
  %v3234 = vsel %vm3159, %v2340, 0.0
  %v3235 = vsel %vm3160, %v2344, 0.0
  %v3236 = vsel %vm3160, %v2346, 0.0
  %v3237 = vsel %vm3161, %v2350, 0.0
  %v3238 = vsel %vm3161, %v2352, 0.0
  %v3239 = vsel %vm3162, %v2356, 0.0
  %v3240 = vsel %vm3162, %v2358, 0.0
  %v3241 = vsel %vm3163, %v2362, 0.0
  %v3242 = vsel %vm3163, %v2364, 0.0
  %v3243 = vsel %vm3164, %v2368, 0.0
  %v3244 = vsel %vm3164, %v2370, 0.0
  %v3245 = vsel %vm3157, %v2374, 0.0
  %v3246 = vsel %vm3157, %v2376, 0.0
  %v3247 = vsel %vm3158, %v2380, 0.0
  %v3248 = vsel %vm3158, %v2382, 0.0
  %v3249 = vsel %vm3159, %v2386, 0.0
  %v3250 = vsel %vm3159, %v2388, 0.0
  %v3251 = vsel %vm3160, %v2392, 0.0
  %v3252 = vsel %vm3160, %v2394, 0.0
  %v3253 = vsel %vm3161, %v2398, 0.0
  %v3254 = vsel %vm3161, %v2400, 0.0
  %v3255 = vsel %vm3162, %v2404, 0.0
  %v3256 = vsel %vm3162, %v2406, 0.0
  %v3257 = vsel %vm3163, %v2410, 0.0
  %v3258 = vsel %vm3163, %v2412, 0.0
  %v3259 = vsel %vm3164, %v2416, 0.0
  %v3260 = vsel %vm3164, %v2418, 0.0
  %v3261 = vsel %vm3157, %v2422, 0.0
  %v3262 = vsel %vm3157, %v2424, 0.0
  %v3263 = vsel %vm3158, %v2428, 0.0
  %v3264 = vsel %vm3158, %v2430, 0.0
  %v3265 = vsel %vm3159, %v2434, 0.0
  %v3266 = vsel %vm3159, %v2436, 0.0
  %v3267 = vsel %vm3160, %v2440, 0.0
  %v3268 = vsel %vm3160, %v2442, 0.0
  %v3269 = vsel %vm3161, %v2446, 0.0
  %v3270 = vsel %vm3161, %v2448, 0.0
  %v3271 = vsel %vm3162, %v2452, 0.0
  %v3272 = vsel %vm3162, %v2454, 0.0
  %v3273 = vsel %vm3163, %v2458, 0.0
  %v3274 = vsel %vm3163, %v2460, 0.0
  %v3275 = vsel %vm3164, %v2464, 0.0
  %v3276 = vsel %vm3164, %v2466, 0.0
  %v3277 = vsel %vm3157, %v2470, 0.0
  %v3278 = vsel %vm3157, %v2472, 0.0
  %v3279 = vsel %vm3158, %v2476, 0.0
  %v3280 = vsel %vm3158, %v2478, 0.0
  %v3281 = vsel %vm3159, %v2482, 0.0
  %v3282 = vsel %vm3159, %v2484, 0.0
  %v3283 = vsel %vm3160, %v2488, 0.0
  %v3284 = vsel %vm3160, %v2490, 0.0
  %v3285 = vsel %vm3161, %v2494, 0.0
  %v3286 = vsel %vm3161, %v2496, 0.0
  %v3287 = vsel %vm3162, %v2500, 0.0
  %v3288 = vsel %vm3162, %v2502, 0.0
  %v3289 = vsel %vm3163, %v2506, 0.0
  %v3290 = vsel %vm3163, %v2508, 0.0
  %v3291 = vsel %vm3164, %v2512, 0.0
  %v3292 = vsel %vm3164, %v2514, 0.0
  %v3293 = vadd.f32 %v3165, %v3167
  %v3294 = vadd.f32 %v3293, %v3169
  %v3295 = vadd.f32 %v3294, %v3171
  %v3296 = vadd.f32 %v3295, %v3173
  %v3297 = vadd.f32 %v3296, %v3175
  %v3298 = vadd.f32 %v3297, %v3177
  %v3299 = vadd.f32 %v3298, %v3179
  %v3300 = vrot.slane %v3299, 4
  %v3301 = vadd.f32 %v3299, %v3300
  %v3302 = vrot.slane %v3301, 2
  %v3303 = vadd.f32 %v3301, %v3302
  %v3304 = vrot.slane %v3303, 1
  %v3305 = vadd.f32 %v3303, %v3304
  %v3306 = vadd.f32 %v3166, %v3168
  %v3307 = vadd.f32 %v3306, %v3170
  %v3308 = vadd.f32 %v3307, %v3172
  %v3309 = vadd.f32 %v3308, %v3174
  %v3310 = vadd.f32 %v3309, %v3176
  %v3311 = vadd.f32 %v3310, %v3178
  %v3312 = vadd.f32 %v3311, %v3180
  %v3313 = vrot.slane %v3312, 4
  %v3314 = vadd.f32 %v3312, %v3313
  %v3315 = vrot.slane %v3314, 2
  %v3316 = vadd.f32 %v3314, %v3315
  %v3317 = vrot.slane %v3316, 1
  %v3318 = vadd.f32 %v3316, %v3317
  %v3319 = vadd.f32 %v3181, %v3183
  %v3320 = vadd.f32 %v3319, %v3185
  %v3321 = vadd.f32 %v3320, %v3187
  %v3322 = vadd.f32 %v3321, %v3189
  %v3323 = vadd.f32 %v3322, %v3191
  %v3324 = vadd.f32 %v3323, %v3193
  %v3325 = vadd.f32 %v3324, %v3195
  %v3326 = vrot.slane %v3325, 4
  %v3327 = vadd.f32 %v3325, %v3326
  %v3328 = vrot.slane %v3327, 2
  %v3329 = vadd.f32 %v3327, %v3328
  %v3330 = vrot.slane %v3329, 1
  %v3331 = vadd.f32 %v3329, %v3330
  %v3332 = vadd.f32 %v3182, %v3184
  %v3333 = vadd.f32 %v3332, %v3186
  %v3334 = vadd.f32 %v3333, %v3188
  %v3335 = vadd.f32 %v3334, %v3190
  %v3336 = vadd.f32 %v3335, %v3192
  %v3337 = vadd.f32 %v3336, %v3194
  %v3338 = vadd.f32 %v3337, %v3196
  %v3339 = vrot.slane %v3338, 4
  %v3340 = vadd.f32 %v3338, %v3339
  %v3341 = vrot.slane %v3340, 2
  %v3342 = vadd.f32 %v3340, %v3341
  %v3343 = vrot.slane %v3342, 1
  %v3344 = vadd.f32 %v3342, %v3343
  %v3345 = vadd.f32 %v3197, %v3199
  %v3346 = vadd.f32 %v3345, %v3201
  %v3347 = vadd.f32 %v3346, %v3203
  %v3348 = vadd.f32 %v3347, %v3205
  %v3349 = vadd.f32 %v3348, %v3207
  %v3350 = vadd.f32 %v3349, %v3209
  %v3351 = vadd.f32 %v3350, %v3211
  %v3352 = vrot.slane %v3351, 4
  %v3353 = vadd.f32 %v3351, %v3352
  %v3354 = vrot.slane %v3353, 2
  %v3355 = vadd.f32 %v3353, %v3354
  %v3356 = vrot.slane %v3355, 1
  %v3357 = vadd.f32 %v3355, %v3356
  %v3358 = vadd.f32 %v3198, %v3200
  %v3359 = vadd.f32 %v3358, %v3202
  %v3360 = vadd.f32 %v3359, %v3204
  %v3361 = vadd.f32 %v3360, %v3206
  %v3362 = vadd.f32 %v3361, %v3208
  %v3363 = vadd.f32 %v3362, %v3210
  %v3364 = vadd.f32 %v3363, %v3212
  %v3365 = vrot.slane %v3364, 4
  %v3366 = vadd.f32 %v3364, %v3365
  %v3367 = vrot.slane %v3366, 2
  %v3368 = vadd.f32 %v3366, %v3367
  %v3369 = vrot.slane %v3368, 1
  %v3370 = vadd.f32 %v3368, %v3369
  %v3371 = vadd.f32 %v3213, %v3215
  %v3372 = vadd.f32 %v3371, %v3217
  %v3373 = vadd.f32 %v3372, %v3219
  %v3374 = vadd.f32 %v3373, %v3221
  %v3375 = vadd.f32 %v3374, %v3223
  %v3376 = vadd.f32 %v3375, %v3225
  %v3377 = vadd.f32 %v3376, %v3227
  %v3378 = vrot.slane %v3377, 4
  %v3379 = vadd.f32 %v3377, %v3378
  %v3380 = vrot.slane %v3379, 2
  %v3381 = vadd.f32 %v3379, %v3380
  %v3382 = vrot.slane %v3381, 1
  %v3383 = vadd.f32 %v3381, %v3382
  %v3384 = vadd.f32 %v3214, %v3216
  %v3385 = vadd.f32 %v3384, %v3218
  %v3386 = vadd.f32 %v3385, %v3220
  %v3387 = vadd.f32 %v3386, %v3222
  %v3388 = vadd.f32 %v3387, %v3224
  %v3389 = vadd.f32 %v3388, %v3226
  %v3390 = vadd.f32 %v3389, %v3228
  %v3391 = vrot.slane %v3390, 4
  %v3392 = vadd.f32 %v3390, %v3391
  %v3393 = vrot.slane %v3392, 2
  %v3394 = vadd.f32 %v3392, %v3393
  %v3395 = vrot.slane %v3394, 1
  %v3396 = vadd.f32 %v3394, %v3395
  %v3397 = vadd.f32 %v3229, %v3231
  %v3398 = vadd.f32 %v3397, %v3233
  %v3399 = vadd.f32 %v3398, %v3235
  %v3400 = vadd.f32 %v3399, %v3237
  %v3401 = vadd.f32 %v3400, %v3239
  %v3402 = vadd.f32 %v3401, %v3241
  %v3403 = vadd.f32 %v3402, %v3243
  %v3404 = vrot.slane %v3403, 4
  %v3405 = vadd.f32 %v3403, %v3404
  %v3406 = vrot.slane %v3405, 2
  %v3407 = vadd.f32 %v3405, %v3406
  %v3408 = vrot.slane %v3407, 1
  %v3409 = vadd.f32 %v3407, %v3408
  %v3410 = vadd.f32 %v3230, %v3232
  %v3411 = vadd.f32 %v3410, %v3234
  %v3412 = vadd.f32 %v3411, %v3236
  %v3413 = vadd.f32 %v3412, %v3238
  %v3414 = vadd.f32 %v3413, %v3240
  %v3415 = vadd.f32 %v3414, %v3242
  %v3416 = vadd.f32 %v3415, %v3244
  %v3417 = vrot.slane %v3416, 4
  %v3418 = vadd.f32 %v3416, %v3417
  %v3419 = vrot.slane %v3418, 2
  %v3420 = vadd.f32 %v3418, %v3419
  %v3421 = vrot.slane %v3420, 1
  %v3422 = vadd.f32 %v3420, %v3421
  %v3423 = vadd.f32 %v3245, %v3247
  %v3424 = vadd.f32 %v3423, %v3249
  %v3425 = vadd.f32 %v3424, %v3251
  %v3426 = vadd.f32 %v3425, %v3253
  %v3427 = vadd.f32 %v3426, %v3255
  %v3428 = vadd.f32 %v3427, %v3257
  %v3429 = vadd.f32 %v3428, %v3259
  %v3430 = vrot.slane %v3429, 4
  %v3431 = vadd.f32 %v3429, %v3430
  %v3432 = vrot.slane %v3431, 2
  %v3433 = vadd.f32 %v3431, %v3432
  %v3434 = vrot.slane %v3433, 1
  %v3435 = vadd.f32 %v3433, %v3434
  %v3436 = vadd.f32 %v3246, %v3248
  %v3437 = vadd.f32 %v3436, %v3250
  %v3438 = vadd.f32 %v3437, %v3252
  %v3439 = vadd.f32 %v3438, %v3254
  %v3440 = vadd.f32 %v3439, %v3256
  %v3441 = vadd.f32 %v3440, %v3258
  %v3442 = vadd.f32 %v3441, %v3260
  %v3443 = vrot.slane %v3442, 4
  %v3444 = vadd.f32 %v3442, %v3443
  %v3445 = vrot.slane %v3444, 2
  %v3446 = vadd.f32 %v3444, %v3445
  %v3447 = vrot.slane %v3446, 1
  %v3448 = vadd.f32 %v3446, %v3447
  %v3449 = vadd.f32 %v3261, %v3263
  %v3450 = vadd.f32 %v3449, %v3265
  %v3451 = vadd.f32 %v3450, %v3267
  %v3452 = vadd.f32 %v3451, %v3269
  %v3453 = vadd.f32 %v3452, %v3271
  %v3454 = vadd.f32 %v3453, %v3273
  %v3455 = vadd.f32 %v3454, %v3275
  %v3456 = vrot.slane %v3455, 4
  %v3457 = vadd.f32 %v3455, %v3456
  %v3458 = vrot.slane %v3457, 2
  %v3459 = vadd.f32 %v3457, %v3458
  %v3460 = vrot.slane %v3459, 1
  %v3461 = vadd.f32 %v3459, %v3460
  %v3462 = vadd.f32 %v3262, %v3264
  %v3463 = vadd.f32 %v3462, %v3266
  %v3464 = vadd.f32 %v3463, %v3268
  %v3465 = vadd.f32 %v3464, %v3270
  %v3466 = vadd.f32 %v3465, %v3272
  %v3467 = vadd.f32 %v3466, %v3274
  %v3468 = vadd.f32 %v3467, %v3276
  %v3469 = vrot.slane %v3468, 4
  %v3470 = vadd.f32 %v3468, %v3469
  %v3471 = vrot.slane %v3470, 2
  %v3472 = vadd.f32 %v3470, %v3471
  %v3473 = vrot.slane %v3472, 1
  %v3474 = vadd.f32 %v3472, %v3473
  %v3475 = vadd.f32 %v3277, %v3279
  %v3476 = vadd.f32 %v3475, %v3281
  %v3477 = vadd.f32 %v3476, %v3283
  %v3478 = vadd.f32 %v3477, %v3285
  %v3479 = vadd.f32 %v3478, %v3287
  %v3480 = vadd.f32 %v3479, %v3289
  %v3481 = vadd.f32 %v3480, %v3291
  %v3482 = vrot.slane %v3481, 4
  %v3483 = vadd.f32 %v3481, %v3482
  %v3484 = vrot.slane %v3483, 2
  %v3485 = vadd.f32 %v3483, %v3484
  %v3486 = vrot.slane %v3485, 1
  %v3487 = vadd.f32 %v3485, %v3486
  %v3488 = vadd.f32 %v3278, %v3280
  %v3489 = vadd.f32 %v3488, %v3282
  %v3490 = vadd.f32 %v3489, %v3284
  %v3491 = vadd.f32 %v3490, %v3286
  %v3492 = vadd.f32 %v3491, %v3288
  %v3493 = vadd.f32 %v3492, %v3290
  %v3494 = vadd.f32 %v3493, %v3292
  %v3495 = vrot.slane %v3494, 4
  %v3496 = vadd.f32 %v3494, %v3495
  %v3497 = vrot.slane %v3496, 2
  %v3498 = vadd.f32 %v3496, %v3497
  %v3499 = vrot.slane %v3498, 1
  %v3500 = vadd.f32 %v3498, %v3499
  %v3501 = vmul.f32 %v3305, 0.020408163
  %v3502 = vmul.f32 %v3318, 0.020408163
  %v3503 = vmul.f32 %v3331, 0.020408163
  %v3504 = vmul.f32 %v3344, 0.020408163
  %v3505 = vmul.f32 %v3357, 0.020408163
  %v3506 = vmul.f32 %v3370, 0.020408163
  %v3507 = vmul.f32 %v3383, 0.020408163
  %v3508 = vmul.f32 %v3396, 0.020408163
  %v3509 = vmul.f32 %v3409, 0.020408163
  %v3510 = vmul.f32 %v3422, 0.020408163
  %v3511 = vmul.f32 %v3435, 0.020408163
  %v3512 = vmul.f32 %v3448, 0.020408163
  %v3513 = vmul.f32 %v3461, 0.020408163
  %v3514 = vmul.f32 %v3474, 0.020408163
  %v3515 = vmul.f32 %v3487, 0.020408163
  %v3516 = vmul.f32 %v3500, 0.020408163
  %v3517 = vsel %vm3157, %v2134, -inf
  %v3518 = vsel %vm3157, %v2136, -inf
  %v3519 = vsel %vm3158, %v2140, -inf
  %v3520 = vsel %vm3158, %v2142, -inf
  %v3521 = vsel %vm3159, %v2146, -inf
  %v3522 = vsel %vm3159, %v2148, -inf
  %v3523 = vsel %vm3160, %v2152, -inf
  %v3524 = vsel %vm3160, %v2154, -inf
  %v3525 = vsel %vm3161, %v2158, -inf
  %v3526 = vsel %vm3161, %v2160, -inf
  %v3527 = vsel %vm3162, %v2164, -inf
  %v3528 = vsel %vm3162, %v2166, -inf
  %v3529 = vsel %vm3163, %v2170, -inf
  %v3530 = vsel %vm3163, %v2172, -inf
  %v3531 = vsel %vm3164, %v2176, -inf
  %v3532 = vsel %vm3164, %v2178, -inf
  %v3533 = vsel %vm3157, %v2182, -inf
  %v3534 = vsel %vm3157, %v2184, -inf
  %v3535 = vsel %vm3158, %v2188, -inf
  %v3536 = vsel %vm3158, %v2190, -inf
  %v3537 = vsel %vm3159, %v2194, -inf
  %v3538 = vsel %vm3159, %v2196, -inf
  %v3539 = vsel %vm3160, %v2200, -inf
  %v3540 = vsel %vm3160, %v2202, -inf
  %v3541 = vsel %vm3161, %v2206, -inf
  %v3542 = vsel %vm3161, %v2208, -inf
  %v3543 = vsel %vm3162, %v2212, -inf
  %v3544 = vsel %vm3162, %v2214, -inf
  %v3545 = vsel %vm3163, %v2218, -inf
  %v3546 = vsel %vm3163, %v2220, -inf
  %v3547 = vsel %vm3164, %v2224, -inf
  %v3548 = vsel %vm3164, %v2226, -inf
  %v3549 = vsel %vm3157, %v2230, -inf
  %v3550 = vsel %vm3157, %v2232, -inf
  %v3551 = vsel %vm3158, %v2236, -inf
  %v3552 = vsel %vm3158, %v2238, -inf
  %v3553 = vsel %vm3159, %v2242, -inf
  %v3554 = vsel %vm3159, %v2244, -inf
  %v3555 = vsel %vm3160, %v2248, -inf
  %v3556 = vsel %vm3160, %v2250, -inf
  %v3557 = vsel %vm3161, %v2254, -inf
  %v3558 = vsel %vm3161, %v2256, -inf
  %v3559 = vsel %vm3162, %v2260, -inf
  %v3560 = vsel %vm3162, %v2262, -inf
  %v3561 = vsel %vm3163, %v2266, -inf
  %v3562 = vsel %vm3163, %v2268, -inf
  %v3563 = vsel %vm3164, %v2272, -inf
  %v3564 = vsel %vm3164, %v2274, -inf
  %v3565 = vsel %vm3157, %v2278, -inf
  %v3566 = vsel %vm3157, %v2280, -inf
  %v3567 = vsel %vm3158, %v2284, -inf
  %v3568 = vsel %vm3158, %v2286, -inf
  %v3569 = vsel %vm3159, %v2290, -inf
  %v3570 = vsel %vm3159, %v2292, -inf
  %v3571 = vsel %vm3160, %v2296, -inf
  %v3572 = vsel %vm3160, %v2298, -inf
  %v3573 = vsel %vm3161, %v2302, -inf
  %v3574 = vsel %vm3161, %v2304, -inf
  %v3575 = vsel %vm3162, %v2308, -inf
  %v3576 = vsel %vm3162, %v2310, -inf
  %v3577 = vsel %vm3163, %v2314, -inf
  %v3578 = vsel %vm3163, %v2316, -inf
  %v3579 = vsel %vm3164, %v2320, -inf
  %v3580 = vsel %vm3164, %v2322, -inf
  %v3581 = vsel %vm3157, %v2326, -inf
  %v3582 = vsel %vm3157, %v2328, -inf
  %v3583 = vsel %vm3158, %v2332, -inf
  %v3584 = vsel %vm3158, %v2334, -inf
  %v3585 = vsel %vm3159, %v2338, -inf
  %v3586 = vsel %vm3159, %v2340, -inf
  %v3587 = vsel %vm3160, %v2344, -inf
  %v3588 = vsel %vm3160, %v2346, -inf
  %v3589 = vsel %vm3161, %v2350, -inf
  %v3590 = vsel %vm3161, %v2352, -inf
  %v3591 = vsel %vm3162, %v2356, -inf
  %v3592 = vsel %vm3162, %v2358, -inf
  %v3593 = vsel %vm3163, %v2362, -inf
  %v3594 = vsel %vm3163, %v2364, -inf
  %v3595 = vsel %vm3164, %v2368, -inf
  %v3596 = vsel %vm3164, %v2370, -inf
  %v3597 = vsel %vm3157, %v2374, -inf
  %v3598 = vsel %vm3157, %v2376, -inf
  %v3599 = vsel %vm3158, %v2380, -inf
  %v3600 = vsel %vm3158, %v2382, -inf
  %v3601 = vsel %vm3159, %v2386, -inf
  %v3602 = vsel %vm3159, %v2388, -inf
  %v3603 = vsel %vm3160, %v2392, -inf
  %v3604 = vsel %vm3160, %v2394, -inf
  %v3605 = vsel %vm3161, %v2398, -inf
  %v3606 = vsel %vm3161, %v2400, -inf
  %v3607 = vsel %vm3162, %v2404, -inf
  %v3608 = vsel %vm3162, %v2406, -inf
  %v3609 = vsel %vm3163, %v2410, -inf
  %v3610 = vsel %vm3163, %v2412, -inf
  %v3611 = vsel %vm3164, %v2416, -inf
  %v3612 = vsel %vm3164, %v2418, -inf
  %v3613 = vsel %vm3157, %v2422, -inf
  %v3614 = vsel %vm3157, %v2424, -inf
  %v3615 = vsel %vm3158, %v2428, -inf
  %v3616 = vsel %vm3158, %v2430, -inf
  %v3617 = vsel %vm3159, %v2434, -inf
  %v3618 = vsel %vm3159, %v2436, -inf
  %v3619 = vsel %vm3160, %v2440, -inf
  %v3620 = vsel %vm3160, %v2442, -inf
  %v3621 = vsel %vm3161, %v2446, -inf
  %v3622 = vsel %vm3161, %v2448, -inf
  %v3623 = vsel %vm3162, %v2452, -inf
  %v3624 = vsel %vm3162, %v2454, -inf
  %v3625 = vsel %vm3163, %v2458, -inf
  %v3626 = vsel %vm3163, %v2460, -inf
  %v3627 = vsel %vm3164, %v2464, -inf
  %v3628 = vsel %vm3164, %v2466, -inf
  %v3629 = vsel %vm3157, %v2470, -inf
  %v3630 = vsel %vm3157, %v2472, -inf
  %v3631 = vsel %vm3158, %v2476, -inf
  %v3632 = vsel %vm3158, %v2478, -inf
  %v3633 = vsel %vm3159, %v2482, -inf
  %v3634 = vsel %vm3159, %v2484, -inf
  %v3635 = vsel %vm3160, %v2488, -inf
  %v3636 = vsel %vm3160, %v2490, -inf
  %v3637 = vsel %vm3161, %v2494, -inf
  %v3638 = vsel %vm3161, %v2496, -inf
  %v3639 = vsel %vm3162, %v2500, -inf
  %v3640 = vsel %vm3162, %v2502, -inf
  %v3641 = vsel %vm3163, %v2506, -inf
  %v3642 = vsel %vm3163, %v2508, -inf
  %v3643 = vsel %vm3164, %v2512, -inf
  %v3644 = vsel %vm3164, %v2514, -inf
  %v3645 = vmax.f32 %v3517, %v3519
  %v3646 = vmax.f32 %v3645, %v3521
  %v3647 = vmax.f32 %v3646, %v3523
  %v3648 = vmax.f32 %v3647, %v3525
  %v3649 = vmax.f32 %v3648, %v3527
  %v3650 = vmax.f32 %v3649, %v3529
  %v3651 = vmax.f32 %v3650, %v3531
  %v3652 = vrot.slane %v3651, 4
  %v3653 = vmax.f32 %v3651, %v3652
  %v3654 = vrot.slane %v3653, 2
  %v3655 = vmax.f32 %v3653, %v3654
  %v3656 = vrot.slane %v3655, 1
  %v3657 = vmax.f32 %v3655, %v3656
  %v3658 = vmax.f32 %v3518, %v3520
  %v3659 = vmax.f32 %v3658, %v3522
  %v3660 = vmax.f32 %v3659, %v3524
  %v3661 = vmax.f32 %v3660, %v3526
  %v3662 = vmax.f32 %v3661, %v3528
  %v3663 = vmax.f32 %v3662, %v3530
  %v3664 = vmax.f32 %v3663, %v3532
  %v3665 = vrot.slane %v3664, 4
  %v3666 = vmax.f32 %v3664, %v3665
  %v3667 = vrot.slane %v3666, 2
  %v3668 = vmax.f32 %v3666, %v3667
  %v3669 = vrot.slane %v3668, 1
  %v3670 = vmax.f32 %v3668, %v3669
  %v3671 = vmax.f32 %v3533, %v3535
  %v3672 = vmax.f32 %v3671, %v3537
  %v3673 = vmax.f32 %v3672, %v3539
  %v3674 = vmax.f32 %v3673, %v3541
  %v3675 = vmax.f32 %v3674, %v3543
  %v3676 = vmax.f32 %v3675, %v3545
  %v3677 = vmax.f32 %v3676, %v3547
  %v3678 = vrot.slane %v3677, 4
  %v3679 = vmax.f32 %v3677, %v3678
  %v3680 = vrot.slane %v3679, 2
  %v3681 = vmax.f32 %v3679, %v3680
  %v3682 = vrot.slane %v3681, 1
  %v3683 = vmax.f32 %v3681, %v3682
  %v3684 = vmax.f32 %v3534, %v3536
  %v3685 = vmax.f32 %v3684, %v3538
  %v3686 = vmax.f32 %v3685, %v3540
  %v3687 = vmax.f32 %v3686, %v3542
  %v3688 = vmax.f32 %v3687, %v3544
  %v3689 = vmax.f32 %v3688, %v3546
  %v3690 = vmax.f32 %v3689, %v3548
  %v3691 = vrot.slane %v3690, 4
  %v3692 = vmax.f32 %v3690, %v3691
  %v3693 = vrot.slane %v3692, 2
  %v3694 = vmax.f32 %v3692, %v3693
  %v3695 = vrot.slane %v3694, 1
  %v3696 = vmax.f32 %v3694, %v3695
  %v3697 = vmax.f32 %v3549, %v3551
  %v3698 = vmax.f32 %v3697, %v3553
  %v3699 = vmax.f32 %v3698, %v3555
  %v3700 = vmax.f32 %v3699, %v3557
  %v3701 = vmax.f32 %v3700, %v3559
  %v3702 = vmax.f32 %v3701, %v3561
  %v3703 = vmax.f32 %v3702, %v3563
  %v3704 = vrot.slane %v3703, 4
  %v3705 = vmax.f32 %v3703, %v3704
  %v3706 = vrot.slane %v3705, 2
  %v3707 = vmax.f32 %v3705, %v3706
  %v3708 = vrot.slane %v3707, 1
  %v3709 = vmax.f32 %v3707, %v3708
  %v3710 = vmax.f32 %v3550, %v3552
  %v3711 = vmax.f32 %v3710, %v3554
  %v3712 = vmax.f32 %v3711, %v3556
  %v3713 = vmax.f32 %v3712, %v3558
  %v3714 = vmax.f32 %v3713, %v3560
  %v3715 = vmax.f32 %v3714, %v3562
  %v3716 = vmax.f32 %v3715, %v3564
  %v3717 = vrot.slane %v3716, 4
  %v3718 = vmax.f32 %v3716, %v3717
  %v3719 = vrot.slane %v3718, 2
  %v3720 = vmax.f32 %v3718, %v3719
  %v3721 = vrot.slane %v3720, 1
  %v3722 = vmax.f32 %v3720, %v3721
  %v3723 = vmax.f32 %v3565, %v3567
  %v3724 = vmax.f32 %v3723, %v3569
  %v3725 = vmax.f32 %v3724, %v3571
  %v3726 = vmax.f32 %v3725, %v3573
  %v3727 = vmax.f32 %v3726, %v3575
  %v3728 = vmax.f32 %v3727, %v3577
  %v3729 = vmax.f32 %v3728, %v3579
  %v3730 = vrot.slane %v3729, 4
  %v3731 = vmax.f32 %v3729, %v3730
  %v3732 = vrot.slane %v3731, 2
  %v3733 = vmax.f32 %v3731, %v3732
  %v3734 = vrot.slane %v3733, 1
  %v3735 = vmax.f32 %v3733, %v3734
  %v3736 = vmax.f32 %v3566, %v3568
  %v3737 = vmax.f32 %v3736, %v3570
  %v3738 = vmax.f32 %v3737, %v3572
  %v3739 = vmax.f32 %v3738, %v3574
  %v3740 = vmax.f32 %v3739, %v3576
  %v3741 = vmax.f32 %v3740, %v3578
  %v3742 = vmax.f32 %v3741, %v3580
  %v3743 = vrot.slane %v3742, 4
  %v3744 = vmax.f32 %v3742, %v3743
  %v3745 = vrot.slane %v3744, 2
  %v3746 = vmax.f32 %v3744, %v3745
  %v3747 = vrot.slane %v3746, 1
  %v3748 = vmax.f32 %v3746, %v3747
  %v3749 = vmax.f32 %v3581, %v3583
  %v3750 = vmax.f32 %v3749, %v3585
  %v3751 = vmax.f32 %v3750, %v3587
  %v3752 = vmax.f32 %v3751, %v3589
  %v3753 = vmax.f32 %v3752, %v3591
  %v3754 = vmax.f32 %v3753, %v3593
  %v3755 = vmax.f32 %v3754, %v3595
  %v3756 = vrot.slane %v3755, 4
  %v3757 = vmax.f32 %v3755, %v3756
  %v3758 = vrot.slane %v3757, 2
  %v3759 = vmax.f32 %v3757, %v3758
  %v3760 = vrot.slane %v3759, 1
  %v3761 = vmax.f32 %v3759, %v3760
  %v3762 = vmax.f32 %v3582, %v3584
  %v3763 = vmax.f32 %v3762, %v3586
  %v3764 = vmax.f32 %v3763, %v3588
  %v3765 = vmax.f32 %v3764, %v3590
  %v3766 = vmax.f32 %v3765, %v3592
  %v3767 = vmax.f32 %v3766, %v3594
  %v3768 = vmax.f32 %v3767, %v3596
  %v3769 = vrot.slane %v3768, 4
  %v3770 = vmax.f32 %v3768, %v3769
  %v3771 = vrot.slane %v3770, 2
  %v3772 = vmax.f32 %v3770, %v3771
  %v3773 = vrot.slane %v3772, 1
  %v3774 = vmax.f32 %v3772, %v3773
  %v3775 = vmax.f32 %v3597, %v3599
  %v3776 = vmax.f32 %v3775, %v3601
  %v3777 = vmax.f32 %v3776, %v3603
  %v3778 = vmax.f32 %v3777, %v3605
  %v3779 = vmax.f32 %v3778, %v3607
  %v3780 = vmax.f32 %v3779, %v3609
  %v3781 = vmax.f32 %v3780, %v3611
  %v3782 = vrot.slane %v3781, 4
  %v3783 = vmax.f32 %v3781, %v3782
  %v3784 = vrot.slane %v3783, 2
  %v3785 = vmax.f32 %v3783, %v3784
  %v3786 = vrot.slane %v3785, 1
  %v3787 = vmax.f32 %v3785, %v3786
  %v3788 = vmax.f32 %v3598, %v3600
  %v3789 = vmax.f32 %v3788, %v3602
  %v3790 = vmax.f32 %v3789, %v3604
  %v3791 = vmax.f32 %v3790, %v3606
  %v3792 = vmax.f32 %v3791, %v3608
  %v3793 = vmax.f32 %v3792, %v3610
  %v3794 = vmax.f32 %v3793, %v3612
  %v3795 = vrot.slane %v3794, 4
  %v3796 = vmax.f32 %v3794, %v3795
  %v3797 = vrot.slane %v3796, 2
  %v3798 = vmax.f32 %v3796, %v3797
  %v3799 = vrot.slane %v3798, 1
  %v3800 = vmax.f32 %v3798, %v3799
  %v3801 = vmax.f32 %v3613, %v3615
  %v3802 = vmax.f32 %v3801, %v3617
  %v3803 = vmax.f32 %v3802, %v3619
  %v3804 = vmax.f32 %v3803, %v3621
  %v3805 = vmax.f32 %v3804, %v3623
  %v3806 = vmax.f32 %v3805, %v3625
  %v3807 = vmax.f32 %v3806, %v3627
  %v3808 = vrot.slane %v3807, 4
  %v3809 = vmax.f32 %v3807, %v3808
  %v3810 = vrot.slane %v3809, 2
  %v3811 = vmax.f32 %v3809, %v3810
  %v3812 = vrot.slane %v3811, 1
  %v3813 = vmax.f32 %v3811, %v3812
  %v3814 = vmax.f32 %v3614, %v3616
  %v3815 = vmax.f32 %v3814, %v3618
  %v3816 = vmax.f32 %v3815, %v3620
  %v3817 = vmax.f32 %v3816, %v3622
  %v3818 = vmax.f32 %v3817, %v3624
  %v3819 = vmax.f32 %v3818, %v3626
  %v3820 = vmax.f32 %v3819, %v3628
  %v3821 = vrot.slane %v3820, 4
  %v3822 = vmax.f32 %v3820, %v3821
  %v3823 = vrot.slane %v3822, 2
  %v3824 = vmax.f32 %v3822, %v3823
  %v3825 = vrot.slane %v3824, 1
  %v3826 = vmax.f32 %v3824, %v3825
  %v3827 = vmax.f32 %v3629, %v3631
  %v3828 = vmax.f32 %v3827, %v3633
  %v3829 = vmax.f32 %v3828, %v3635
  %v3830 = vmax.f32 %v3829, %v3637
  %v3831 = vmax.f32 %v3830, %v3639
  %v3832 = vmax.f32 %v3831, %v3641
  %v3833 = vmax.f32 %v3832, %v3643
  %v3834 = vrot.slane %v3833, 4
  %v3835 = vmax.f32 %v3833, %v3834
  %v3836 = vrot.slane %v3835, 2
  %v3837 = vmax.f32 %v3835, %v3836
  %v3838 = vrot.slane %v3837, 1
  %v3839 = vmax.f32 %v3837, %v3838
  %v3840 = vmax.f32 %v3630, %v3632
  %v3841 = vmax.f32 %v3840, %v3634
  %v3842 = vmax.f32 %v3841, %v3636
  %v3843 = vmax.f32 %v3842, %v3638
  %v3844 = vmax.f32 %v3843, %v3640
  %v3845 = vmax.f32 %v3844, %v3642
  %v3846 = vmax.f32 %v3845, %v3644
  %v3847 = vrot.slane %v3846, 4
  %v3848 = vmax.f32 %v3846, %v3847
  %v3849 = vrot.slane %v3848, 2
  %v3850 = vmax.f32 %v3848, %v3849
  %v3851 = vrot.slane %v3850, 1
  %v3852 = vmax.f32 %v3850, %v3851
  %v3853 = vadd.f32 %v3501, %v3657
  %v3854 = vadd.f32 %v3502, %v3670
  %v3855 = vadd.f32 %v3503, %v3683
  %v3856 = vadd.f32 %v3504, %v3696
  %v3857 = vadd.f32 %v3505, %v3709
  %v3858 = vadd.f32 %v3506, %v3722
  %v3859 = vadd.f32 %v3507, %v3735
  %v3860 = vadd.f32 %v3508, %v3748
  %v3861 = vadd.f32 %v3509, %v3761
  %v3862 = vadd.f32 %v3510, %v3774
  %v3863 = vadd.f32 %v3511, %v3787
  %v3864 = vadd.f32 %v3512, %v3800
  %v3865 = vadd.f32 %v3513, %v3813
  %v3866 = vadd.f32 %v3514, %v3826
  %v3867 = vadd.f32 %v3515, %v3839
  %v3868 = vadd.f32 %v3516, %v3852
  %vm3885 = vcmask 1041409
  %v3886 = vsel %vm3885, %v3855, %v3853
  %vm3887 = vcmask 1042434
  %v3888 = vsel %vm3887, %v3857, %v3886
  %vm3889 = vcmask 1043459
  %v3890 = vsel %vm3889, %v3859, %v3888
  %vm3891 = vcmask 1044484
  %v3892 = vsel %vm3891, %v3861, %v3890
  %vm3893 = vcmask 1045509
  %v3894 = vsel %vm3893, %v3863, %v3892
  %vm3895 = vcmask 1046534
  %v3896 = vsel %vm3895, %v3865, %v3894
  %vm3897 = vcmask 1047559
  %v3898 = vsel %vm3897, %v3867, %v3896
  %v3899 = vsel %vm3885, %v3856, %v3854
  %v3900 = vsel %vm3887, %v3858, %v3899
  %v3901 = vsel %vm3889, %v3860, %v3900
  %v3902 = vsel %vm3891, %v3862, %v3901
  %v3903 = vsel %vm3893, %v3864, %v3902
  %v3904 = vsel %vm3895, %v3866, %v3903
  %v3905 = vsel %vm3897, %v3868, %v3904
  %3908 = vst [vmem:[%s9] sm:$0xff] %v3898
  %3909 = vst [vmem:[%s9 + $0x8] sm:$0xff] %v3905
  // Predicated region
  $region30: #{spa_att_pallas.2} parent=0 // pred_check
    _
  $region31: #{spa_att_pallas.2} parent=0 // pred_check_branch
    %3911 = sbr.rel (0) target = $region33
  $region32: #{spa_att_pallas.2} parent=0 // pred_region
    _
  $region33: #{spa_att_pallas.2} parent=0 // pred_fallthru
    _
  // Predicated region
  $region34: #{spa_att_pallas.2} parent=0 // pred_check
    _
  $region35: #{spa_att_pallas.2} parent=0 // pred_check_branch
    %3913 = sbr.rel (0) target = $region37
  $region36: #{spa_att_pallas.2} parent=0 // pred_region
    _
  $region37: #{spa_att_pallas.2} parent=0 // pred_fallthru
    _
  // Predicated region
  $region38: #{spa_att_pallas.2} parent=0 // pred_check
    _
  $region39: #{spa_att_pallas.2} parent=0 // pred_check_branch
    %3915 = sbr.rel (0) target = $region41
  $region40: #{spa_att_pallas.2} parent=0 // pred_region
    _
  $region41: #{spa_att_pallas.2} parent=0 // pred_fallthru
    _
  // Predicated region
  $region42: #{spa_att_pallas.2} parent=0 // pred_check
    _
  $region43: #{spa_att_pallas.2} parent=0 // pred_check_branch
    %3917 = sbr.rel (0) target = $region45
  $region44: #{spa_att_pallas.2} parent=0 // pred_region
    _
  $region45: #{spa_att_pallas.2} parent=0 // pred_fallthru
    _
  // Predicated region
  $region46: #{spa_att_pallas.2} parent=0 // pred_check
    _
  $region47: #{spa_att_pallas.2} parent=0 // pred_check_branch
    %3919 = sbr.rel (0) target = $region49
  $region48: #{spa_att_pallas.2} parent=0 // pred_region
    _
  $region49: #{spa_att_pallas.2} parent=0 // pred_fallthru
    _
  // Predicated region
  $region50: #{spa_att_pallas.2} parent=0 // pred_check
    _
  $region51: #{spa_att_pallas.2} parent=0 // pred_check_branch
    %3921 = sbr.rel (0) target = $region53
  $region52: #{spa_att_pallas.2} parent=0 // pred_region
    _
  $region53: #{spa_att_pallas.2} parent=0 // pred_fallthru
    _

</llo_original>
